<compile_context>
chip_gen: v6e
topology: v6e:2x2x1
jax: 0.10.0
libtpu: 0.0.40
codegen_flags: <defaults>
</compile_context>

<pallas_src>
import functools

import numpy as np
import jax
import jax.numpy as jnp
from jax import lax
from jax.experimental import pallas as pl
from jax.experimental.pallas import tpu as pltpu

IN_CHANNELS = 64
NUM_CLASSES = 3
MID = 128
HEAD_PAD = 128          # cls(3) + loc(7) padded to a lane-dense 128-wide output
BN_EPS = 1e-5


# --------------------------- Pallas kernel -----------------------------------

def _rpn_fused_kernel(p1_ref, w1_ref, w234_ref, sc_ref, bi_ref, wh_ref, bh_ref,
                      out_ref, *, ho, wo, bt):
    """Fused RPN forward for one batch tile.

    p1_ref  : (M, 9*Cin)        bf16  stride-2 im2col patches for conv1, M = bt*ho*wo
    w1_ref  : (9*Cin, 128)      bf16  conv1 weight (HWIO flattened)
    w234_ref: (27, 128, 128)    bf16  conv2..4 weights, [layer*9 + tap]
    sc_ref  : (4, 1, 128)       f32   folded BN scales (layers 1..4)
    bi_ref  : (4, 1, 128)       f32   folded BN biases (conv bias included)
    wh_ref  : (128, HEAD_PAD)   bf16  cls|loc head weights, zero-padded lane-dense
    bh_ref  : (1, HEAD_PAD)     f32   cls|loc head biases, zero-padded
    out_ref : (M, HEAD_PAD)     f32   fused head output
    """
    hw = ho * wo
    m = bt * hw
    cmid = w1_ref.shape[1]
    # zero-pad rows so every 3x3 tap is a static sublane slice; pad >= wo+1,
    # rounded up to a sublane multiple so the concat stays aligned.
    s = ((wo + 1 + 7) // 8) * 8

    # ---- layer 1: stride-2 3x3 conv as one big matmul over im2col patches ----
    acc = jnp.dot(p1_ref[...], w1_ref[...], preferred_element_type=jnp.float32)
    act = jnp.maximum(acc * sc_ref[0] + bi_ref[0], 0.0)            # (m, 128) f32

    # Per-row pixel coordinates for image-boundary masks. hw and wo are powers
    # of two, so only shift/and integer ops are needed (no vector division).
    pix = lax.broadcasted_iota(jnp.int32, (m, cmid), 0)
    pix_img = jnp.bitwise_and(pix, hw - 1)         # flat index within the image
    col = jnp.bitwise_and(pix_img, wo - 1)         # column index within the row

    zpad = jnp.zeros((s, cmid), jnp.float32)

    # ---- layers 2..4: stride-1 3x3 conv = 9 shifted VMEM-resident matmuls ----
    for li in range(3):
        a_pad = jnp.concatenate([zpad, act, zpad], axis=0)         # (m + 2s, 128)
        acc = jnp.zeros((m, cmid), jnp.float32)
        for t in range(9):
            dh, dw = t // 3 - 1, t % 3 - 1
            shift = dh * wo + dw
            x_s = a_pad[s + shift:s + shift + m, :]
            conds = []
            if dh < 0:
                conds.append(pix_img >= wo)            # needs a row above
            elif dh > 0:
                conds.append(pix_img < hw - wo)        # needs a row below
            if dw < 0:
                conds.append(col >= 1)                 # needs a column to the left
            elif dw > 0:
                conds.append(col < wo - 1)             # needs a column to the right
            if conds:
                valid = conds[0]
                for c in conds[1:]:
                    valid = jnp.logical_and(valid, c)
                x_s = jnp.where(valid, x_s, 0.0)
            acc = acc + jnp.dot(x_s.astype(jnp.bfloat16), w234_ref[li * 9 + t],
                                preferred_element_type=jnp.float32)
        act = jnp.maximum(acc * sc_ref[li + 1] + bi_ref[li + 1], 0.0)

    # ---- fused cls + loc heads: single lane-dense matmul ----
    out_ref[...] = jnp.dot(act.astype(jnp.bfloat16), wh_ref[...],
                           preferred_element_type=jnp.float32) + bh_ref[...]


# --------------------------- Pallas wrapper -----------------------------------

def rpn_fused(p1, w1, w234, sc, bi, wh, bh, *, batch, bt, ho, wo):
    hw = ho * wo
    m = bt * hw
    k1 = p1.shape[1]
    kernel = functools.partial(_rpn_fused_kernel, ho=ho, wo=wo, bt=bt)
    return pl.pallas_call(
        kernel,
        out_shape=jax.ShapeDtypeStruct((batch * hw, HEAD_PAD), jnp.float32),
        grid_spec=pl.GridSpec(
            grid=(batch // bt,),
            in_specs=[
                pl.BlockSpec((m, k1), lambda i: (i, 0)),
                pl.BlockSpec((k1, MID), lambda i: (0, 0)),
                pl.BlockSpec((27, MID, MID), lambda i: (0, 0, 0)),
                pl.BlockSpec((4, 1, MID), lambda i: (0, 0, 0)),
                pl.BlockSpec((4, 1, MID), lambda i: (0, 0, 0)),
                pl.BlockSpec((MID, HEAD_PAD), lambda i: (0, 0)),
                pl.BlockSpec((1, HEAD_PAD), lambda i: (0, 0)),
            ],
            out_specs=pl.BlockSpec((m, HEAD_PAD), lambda i: (i, 0)),
        ),
        compiler_params=pltpu.CompilerParams(
            dimension_semantics=("parallel",),
            vmem_limit_bytes=32 * 1024 * 1024,
        ),
    )(p1, w1, w234, sc, bi, wh, bh)


# --------------------------- JAX glue ------------------------------------------

def im2col(x_nhwc, stride):
    """3x3 conv, padding=1 -> patches (B*Ho*Wo, 9*C) in (kh, kw, cin) order."""
    B, H, W, C = x_nhwc.shape
    xp = jnp.pad(x_nhwc, ((0, 0), (1, 1), (1, 1), (0, 0)))
    Ho = (H + 2 - 3) // stride + 1
    Wo = (W + 2 - 3) // stride + 1
    taps = []
    for kh in range(3):
        for kw in range(3):
            taps.append(xp[:, kh:kh + stride * Ho:stride, kw:kw + stride * Wo:stride, :])
    cols = jnp.concatenate(taps, axis=-1)          # (B, Ho, Wo, 9*C)
    return cols.reshape(B * Ho * Wo, 9 * C), Ho, Wo


def init_params(key):
    """Deterministic synthetic parameters (shapes match the PyTorch module)."""
    keys = jax.random.split(key, 32)
    ki = iter(keys)

    def conv3(cin, cout):
        w = 0.05 * jax.random.normal(next(ki), (3, 3, cin, cout), jnp.float32)  # HWIO
        b = 0.02 * jax.random.normal(next(ki), (cout,), jnp.float32)
        return w, b

    def bn(c):
        gamma = 1.0 + 0.1 * jax.random.normal(next(ki), (c,), jnp.float32)
        beta = 0.05 * jax.random.normal(next(ki), (c,), jnp.float32)
        mean = 0.02 * jax.random.normal(next(ki), (c,), jnp.float32)
        var = 1.0 + 0.1 * jax.random.uniform(next(ki), (c,), jnp.float32)
        return gamma, beta, mean, var

    params = {}
    cin = IN_CHANNELS
    for i in range(1, 5):
        w, cb = conv3(cin, MID)
        gamma, beta, mean, var = bn(MID)
        scale = gamma / jnp.sqrt(var + BN_EPS)
        bias = (cb - mean) * scale + beta          # conv bias + BN folded together
        params[f"w{i}"] = w
        params[f"s{i}"] = scale
        params[f"b{i}"] = bias
        cin = MID
    params["wc"] = 0.05 * jax.random.normal(next(ki), (MID, NUM_CLASSES), jnp.float32)
    params["bc"] = 0.02 * jax.random.normal(next(ki), (NUM_CLASSES,), jnp.float32)
    params["wl"] = 0.05 * jax.random.normal(next(ki), (MID, 7), jnp.float32)
    params["bl"] = 0.02 * jax.random.normal(next(ki), (7,), jnp.float32)
    return params


def rpn_forward(x_nchw, params, *, batch_tile=None):
    # TODO(synk): BatchNorm is applied in inference mode (running stats folded
    # into a per-channel scale/bias); train-mode batch statistics are not computed.
    x = jnp.transpose(x_nchw, (0, 2, 3, 1)).astype(jnp.float32)    # NCHW -> NHWC
    B, H, W, Cin = x.shape

    # Only the stride-2 first layer builds patches outside the kernel (cheap:
    # it reads the downsampled raw 64-channel input). Layers 2-4 and the heads
    # run fully in VMEM inside one fused Pallas kernel.
    p1, Ho, Wo = im2col(x, stride=2)
    HW = Ho * Wo
    # in-kernel boundary masks use shift/and arithmetic only
    assert (HW & (HW - 1)) == 0 and (Wo & (Wo - 1)) == 0, "pow2 spatial dims expected"

    bt = B if batch_tile is None else batch_tile
    assert B % bt == 0

    w1 = params["w1"].reshape(9 * Cin, MID).astype(jnp.bfloat16)
    w234 = jnp.concatenate(
        [params[f"w{i}"].reshape(9, MID, MID) for i in (2, 3, 4)], axis=0
    ).astype(jnp.bfloat16)                                          # (27, 128, 128)
    sc = jnp.stack([params[f"s{i}"] for i in (1, 2, 3, 4)]).reshape(4, 1, MID)
    bi = jnp.stack([params[f"b{i}"] for i in (1, 2, 3, 4)]).reshape(4, 1, MID)

    # fused lane-dense head weight: cols [0:3] = cls, [3:10] = loc, rest zero
    wh = jnp.zeros((MID, HEAD_PAD), jnp.float32)
    wh = wh.at[:, :NUM_CLASSES].set(params["wc"])
    wh = wh.at[:, NUM_CLASSES:NUM_CLASSES + 7].set(params["wl"])
    bh = jnp.zeros((1, HEAD_PAD), jnp.float32)
    bh = bh.at[0, :NUM_CLASSES].set(params["bc"])
    bh = bh.at[0, NUM_CLASSES:NUM_CLASSES + 7].set(params["bl"])

    out = rpn_fused(p1.astype(jnp.bfloat16), w1, w234, sc, bi,
                    wh.astype(jnp.bfloat16), bh,
                    batch=B, bt=bt, ho=Ho, wo=Wo)                   # (B*HW, 128)

    out = out.reshape(B, Ho, Wo, HEAD_PAD)
    cls_preds = out[..., :NUM_CLASSES].transpose(0, 3, 1, 2)        # NCHW
    loc_preds = out[..., NUM_CLASSES:NUM_CLASSES + 7].transpose(0, 3, 1, 2)
    return cls_preds, loc_preds


# --------------------------- pure-JAX reference -------------------------------

def ref_forward(x_nchw, params):
    dn = ("NHWC", "HWIO", "NHWC")
    x = jnp.transpose(x_nchw, (0, 2, 3, 1)).astype(jnp.float32)

    def cbr(x, w, s, b, stride):
        y = lax.conv_general_dilated(x, w, (stride, stride), ((1, 1), (1, 1)),
                                     dimension_numbers=dn,
                                     precision=lax.Precision.HIGHEST)
        return jnp.maximum(y * s + b, 0.0)

    strides = (2, 1, 1, 1)
    for i, stride in zip(range(1, 5), strides):
        x = cbr(x, params[f"w{i}"], params[f"s{i}"], params[f"b{i}"], stride)
    cls = lax.conv_general_dilated(x, params["wc"][None, None], (1, 1), "VALID",
                                   dimension_numbers=dn,
                                   precision=lax.Precision.HIGHEST) + params["bc"]
    loc = lax.conv_general_dilated(x, params["wl"][None, None], (1, 1), "VALID",
                                   dimension_numbers=dn,
                                   precision=lax.Precision.HIGHEST) + params["bl"]
    return cls.transpose(0, 3, 1, 2), loc.transpose(0, 3, 1, 2)


# --------------------------- main ---------------------------------------------

if __name__ == "__main__":
    key = jax.random.PRNGKey(0)
    pkey, xkey = jax.random.split(key)
    params = init_params(pkey)

    # PyTorch-style NCHW input: (B, C, H, W)
    x = jax.random.normal(xkey, (2, IN_CHANNELS, 16, 16), jnp.float32)

    cls_preds, loc_preds = jax.jit(rpn_forward)(x, params)
    jax.block_until_ready((cls_preds, loc_preds))

    # conv1 has stride 2 -> spatial 16x16 becomes 8x8
    assert cls_preds.shape == (2, NUM_CLASSES, 8, 8), cls_preds.shape
    assert loc_preds.shape == (2, 7, 8, 8), loc_preds.shape

    # Reference is f32 HIGHEST; kernel uses bf16 MXU inputs with f32 accumulation,
    # which stays well inside this tolerance at these magnitudes.
    cls_ref, loc_ref = ref_forward(x, params)
    np.testing.assert_allclose(np.asarray(cls_preds), np.asarray(cls_ref),
                               rtol=2e-2, atol=2e-2)
    np.testing.assert_allclose(np.asarray(loc_preds), np.asarray(loc_ref),
                               rtol=2e-2, atol=2e-2)

    print("KERNEL_OK")
</pallas_src>

<mosaic_0001>
module attributes {stable_mosaic.version = 11 : i64} {
  func.func @_rpn_fused_kernel(%arg0: i32, %arg1: memref<128x576xbf16, #tpu.memory_space<vmem>>, %arg2: memref<576x128xbf16, #tpu.memory_space<vmem>>, %arg3: memref<27x128x128xbf16, #tpu.memory_space<vmem>>, %arg4: memref<4x1x128xf32, #tpu.memory_space<vmem>>, %arg5: memref<4x1x128xf32, #tpu.memory_space<vmem>>, %arg6: memref<128x128xbf16, #tpu.memory_space<vmem>>, %arg7: memref<1x128xf32, #tpu.memory_space<vmem>>, %arg8: memref<128x128xf32, #tpu.memory_space<vmem>>) attributes {dimension_semantics = [#tpu.dimension_semantics<parallel>], iteration_bounds = array<i64: 1>, scalar_prefetch = 0 : i64, scratch_operands = 0 : i64, tpu.core_type = #tpu.core_type<tc>, window_params = [{transform_indices = @transform_0, window_bounds = array<i64: 128, 576>}, {pipeline_mode = #tpu.pipeline_mode<synchronous>, transform_indices = @transform_1, window_bounds = array<i64: 576, 128>}, {pipeline_mode = #tpu.pipeline_mode<synchronous>, transform_indices = @transform_2, window_bounds = array<i64: 27, 128, 128>}, {pipeline_mode = #tpu.pipeline_mode<synchronous>, transform_indices = @transform_3, window_bounds = array<i64: 4, 1, 128>}, {pipeline_mode = #tpu.pipeline_mode<synchronous>, transform_indices = @transform_4, window_bounds = array<i64: 4, 1, 128>}, {pipeline_mode = #tpu.pipeline_mode<synchronous>, transform_indices = @transform_5, window_bounds = array<i64: 128, 128>}, {pipeline_mode = #tpu.pipeline_mode<synchronous>, transform_indices = @transform_6, window_bounds = array<i64: 1, 128>}, {transform_indices = @transform_7, window_bounds = array<i64: 128, 128>}]} {
    %c0 = arith.constant 0 : index
    %c0_0 = arith.constant 0 : index
    %0 = vector.load %arg1[%c0, %c0_0] : memref<128x576xbf16, #tpu.memory_space<vmem>>, vector<128x576xbf16>
    %c0_1 = arith.constant 0 : index
    %c0_2 = arith.constant 0 : index
    %1 = vector.load %arg2[%c0_1, %c0_2] : memref<576x128xbf16, #tpu.memory_space<vmem>>, vector<576x128xbf16>
    %cst = arith.constant dense<0.000000e+00> : vector<128x128xf32>
    %2 = tpu.matmul %0, %1, %cst {dimension_numbers = #tpu.dot_dimension_numbers<[1], [0], [0], [1], [0, 0, 1, 1], [], []>} : vector<128x576xbf16>, vector<576x128xbf16>, vector<128x128xf32> -> vector<128x128xf32>
    %c0_3 = arith.constant 0 : index
    %c0_4 = arith.constant 0 : index
    %c0_5 = arith.constant 0 : index
    %3 = vector.load %arg4[%c0_3, %c0_4, %c0_5] : memref<4x1x128xf32, #tpu.memory_space<vmem>>, vector<1x1x128xf32>
    %4 = vector.shape_cast %3 : vector<1x1x128xf32> to vector<1x128xf32>
    %5 = vector.broadcast %4 : vector<1x128xf32> to vector<128x128xf32>
    %6 = arith.mulf %2, %5 : vector<128x128xf32>
    %c0_6 = arith.constant 0 : index
    %c0_7 = arith.constant 0 : index
    %c0_8 = arith.constant 0 : index
    %7 = vector.load %arg5[%c0_6, %c0_7, %c0_8] : memref<4x1x128xf32, #tpu.memory_space<vmem>>, vector<1x1x128xf32>
    %8 = vector.shape_cast %7 : vector<1x1x128xf32> to vector<1x128xf32>
    %9 = vector.broadcast %8 : vector<1x128xf32> to vector<128x128xf32>
    %10 = arith.addf %6, %9 : vector<128x128xf32>
    %cst_9 = arith.constant 0.000000e+00 : f32
    %11 = vector.broadcast %cst_9 : f32 to vector<128x128xf32>
    %12 = arith.maximumf %10, %11 : vector<128x128xf32>
    %13 = tpu.iota {dimensions = array<i32: 0>} : vector<128x128xi32>
    %c63_i32 = arith.constant 63 : i32
    %14 = vector.broadcast %c63_i32 : i32 to vector<128x128xi32>
    %15 = arith.andi %13, %14 : vector<128x128xi32>
    %c7_i32 = arith.constant 7 : i32
    %16 = vector.broadcast %c7_i32 : i32 to vector<128x128xi32>
    %17 = arith.andi %15, %16 : vector<128x128xi32>
    %cst_10 = arith.constant 0.000000e+00 : f32
    %18 = vector.broadcast %cst_10 : f32 to vector<16x128xf32>
    %19 = tpu.concatenate %18, %12, %18 in 0 : vector<16x128xf32>, vector<128x128xf32>, vector<16x128xf32> -> vector<160x128xf32>
    %cst_11 = arith.constant 0.000000e+00 : f32
    %20 = vector.broadcast %cst_11 : f32 to vector<128x128xf32>
    %21 = vector.extract_strided_slice %19 {offsets = [7, 0], sizes = [128, 128], strides = [1, 1]} : vector<160x128xf32> to vector<128x128xf32>
    %c8_i32 = arith.constant 8 : i32
    %22 = vector.broadcast %c8_i32 : i32 to vector<128x128xi32>
    %23 = arith.cmpi sge, %15, %22 : vector<128x128xi32>
    %c1_i32 = arith.constant 1 : i32
    %24 = vector.broadcast %c1_i32 : i32 to vector<128x128xi32>
    %25 = arith.cmpi sge, %17, %24 : vector<128x128xi32>
    %26 = arith.andi %23, %25 : vector<128x128xi1>
    %cst_12 = arith.constant 0.000000e+00 : f32
    %27 = vector.broadcast %cst_12 : f32 to vector<128x128xf32>
    %28 = arith.select %26, %21, %27 : vector<128x128xi1>, vector<128x128xf32>
    %29 = arith.truncf %28 : vector<128x128xf32> to vector<128x128xbf16>
    %c0_13 = arith.constant 0 : index
    %c0_14 = arith.constant 0 : index
    %c0_15 = arith.constant 0 : index
    %30 = vector.load %arg3[%c0_13, %c0_14, %c0_15] : memref<27x128x128xbf16, #tpu.memory_space<vmem>>, vector<1x128x128xbf16>
    %31 = vector.shape_cast %30 : vector<1x128x128xbf16> to vector<128x128xbf16>
    %cst_16 = arith.constant dense<0.000000e+00> : vector<128x128xf32>
    %32 = tpu.matmul %29, %31, %cst_16 {dimension_numbers = #tpu.dot_dimension_numbers<[1], [0], [0], [1], [0, 0, 1, 1], [], []>} : vector<128x128xbf16>, vector<128x128xbf16>, vector<128x128xf32> -> vector<128x128xf32>
    %33 = arith.addf %20, %32 : vector<128x128xf32>
    %34 = vector.extract_strided_slice %19 {offsets = [8, 0], sizes = [128, 128], strides = [1, 1]} : vector<160x128xf32> to vector<128x128xf32>
    %c8_i32_17 = arith.constant 8 : i32
    %35 = vector.broadcast %c8_i32_17 : i32 to vector<128x128xi32>
    %36 = arith.cmpi sge, %15, %35 : vector<128x128xi32>
    %cst_18 = arith.constant 0.000000e+00 : f32
    %37 = vector.broadcast %cst_18 : f32 to vector<128x128xf32>
    %38 = arith.select %36, %34, %37 : vector<128x128xi1>, vector<128x128xf32>
    %39 = arith.truncf %38 : vector<128x128xf32> to vector<128x128xbf16>
    %c1 = arith.constant 1 : index
    %c0_19 = arith.constant 0 : index
    %c0_20 = arith.constant 0 : index
    %40 = vector.load %arg3[%c1, %c0_19, %c0_20] : memref<27x128x128xbf16, #tpu.memory_space<vmem>>, vector<1x128x128xbf16>
    %41 = vector.shape_cast %40 : vector<1x128x128xbf16> to vector<128x128xbf16>
    %cst_21 = arith.constant dense<0.000000e+00> : vector<128x128xf32>
    %42 = tpu.matmul %39, %41, %cst_21 {dimension_numbers = #tpu.dot_dimension_numbers<[1], [0], [0], [1], [0, 0, 1, 1], [], []>} : vector<128x128xbf16>, vector<128x128xbf16>, vector<128x128xf32> -> vector<128x128xf32>
    %43 = arith.addf %33, %42 : vector<128x128xf32>
    %44 = vector.extract_strided_slice %19 {offsets = [9, 0], sizes = [128, 128], strides = [1, 1]} : vector<160x128xf32> to vector<128x128xf32>
    %c8_i32_22 = arith.constant 8 : i32
    %45 = vector.broadcast %c8_i32_22 : i32 to vector<128x128xi32>
    %46 = arith.cmpi sge, %15, %45 : vector<128x128xi32>
    %c7_i32_23 = arith.constant 7 : i32
    %47 = vector.broadcast %c7_i32_23 : i32 to vector<128x128xi32>
    %48 = arith.cmpi slt, %17, %47 : vector<128x128xi32>
    %49 = arith.andi %46, %48 : vector<128x128xi1>
    %cst_24 = arith.constant 0.000000e+00 : f32
    %50 = vector.broadcast %cst_24 : f32 to vector<128x128xf32>
    %51 = arith.select %49, %44, %50 : vector<128x128xi1>, vector<128x128xf32>
    %52 = arith.truncf %51 : vector<128x128xf32> to vector<128x128xbf16>
    %c2 = arith.constant 2 : index
    %c0_25 = arith.constant 0 : index
    %c0_26 = arith.constant 0 : index
    %53 = vector.load %arg3[%c2, %c0_25, %c0_26] : memref<27x128x128xbf16, #tpu.memory_space<vmem>>, vector<1x128x128xbf16>
    %54 = vector.shape_cast %53 : vector<1x128x128xbf16> to vector<128x128xbf16>
    %cst_27 = arith.constant dense<0.000000e+00> : vector<128x128xf32>
    %55 = tpu.matmul %52, %54, %cst_27 {dimension_numbers = #tpu.dot_dimension_numbers<[1], [0], [0], [1], [0, 0, 1, 1], [], []>} : vector<128x128xbf16>, vector<128x128xbf16>, vector<128x128xf32> -> vector<128x128xf32>
    %56 = arith.addf %43, %55 : vector<128x128xf32>
    %57 = vector.extract_strided_slice %19 {offsets = [15, 0], sizes = [128, 128], strides = [1, 1]} : vector<160x128xf32> to vector<128x128xf32>
    %c1_i32_28 = arith.constant 1 : i32
    %58 = vector.broadcast %c1_i32_28 : i32 to vector<128x128xi32>
    %59 = arith.cmpi sge, %17, %58 : vector<128x128xi32>
    %cst_29 = arith.constant 0.000000e+00 : f32
    %60 = vector.broadcast %cst_29 : f32 to vector<128x128xf32>
    %61 = arith.select %59, %57, %60 : vector<128x128xi1>, vector<128x128xf32>
    %62 = arith.truncf %61 : vector<128x128xf32> to vector<128x128xbf16>
    %c3 = arith.constant 3 : index
    %c0_30 = arith.constant 0 : index
    %c0_31 = arith.constant 0 : index
    %63 = vector.load %arg3[%c3, %c0_30, %c0_31] : memref<27x128x128xbf16, #tpu.memory_space<vmem>>, vector<1x128x128xbf16>
    %64 = vector.shape_cast %63 : vector<1x128x128xbf16> to vector<128x128xbf16>
    %cst_32 = arith.constant dense<0.000000e+00> : vector<128x128xf32>
    %65 = tpu.matmul %62, %64, %cst_32 {dimension_numbers = #tpu.dot_dimension_numbers<[1], [0], [0], [1], [0, 0, 1, 1], [], []>} : vector<128x128xbf16>, vector<128x128xbf16>, vector<128x128xf32> -> vector<128x128xf32>
    %66 = arith.addf %56, %65 : vector<128x128xf32>
    %67 = vector.extract_strided_slice %19 {offsets = [16, 0], sizes = [128, 128], strides = [1, 1]} : vector<160x128xf32> to vector<128x128xf32>
    %68 = arith.truncf %67 : vector<128x128xf32> to vector<128x128xbf16>
    %c4 = arith.constant 4 : index
    %c0_33 = arith.constant 0 : index
    %c0_34 = arith.constant 0 : index
    %69 = vector.load %arg3[%c4, %c0_33, %c0_34] : memref<27x128x128xbf16, #tpu.memory_space<vmem>>, vector<1x128x128xbf16>
    %70 = vector.shape_cast %69 : vector<1x128x128xbf16> to vector<128x128xbf16>
    %cst_35 = arith.constant dense<0.000000e+00> : vector<128x128xf32>
    %71 = tpu.matmul %68, %70, %cst_35 {dimension_numbers = #tpu.dot_dimension_numbers<[1], [0], [0], [1], [0, 0, 1, 1], [], []>} : vector<128x128xbf16>, vector<128x128xbf16>, vector<128x128xf32> -> vector<128x128xf32>
    %72 = arith.addf %66, %71 : vector<128x128xf32>
    %73 = vector.extract_strided_slice %19 {offsets = [17, 0], sizes = [128, 128], strides = [1, 1]} : vector<160x128xf32> to vector<128x128xf32>
    %c7_i32_36 = arith.constant 7 : i32
    %74 = vector.broadcast %c7_i32_36 : i32 to vector<128x128xi32>
    %75 = arith.cmpi slt, %17, %74 : vector<128x128xi32>
    %cst_37 = arith.constant 0.000000e+00 : f32
    %76 = vector.broadcast %cst_37 : f32 to vector<128x128xf32>
    %77 = arith.select %75, %73, %76 : vector<128x128xi1>, vector<128x128xf32>
    %78 = arith.truncf %77 : vector<128x128xf32> to vector<128x128xbf16>
    %c5 = arith.constant 5 : index
    %c0_38 = arith.constant 0 : index
    %c0_39 = arith.constant 0 : index
    %79 = vector.load %arg3[%c5, %c0_38, %c0_39] : memref<27x128x128xbf16, #tpu.memory_space<vmem>>, vector<1x128x128xbf16>
    %80 = vector.shape_cast %79 : vector<1x128x128xbf16> to vector<128x128xbf16>
    %cst_40 = arith.constant dense<0.000000e+00> : vector<128x128xf32>
    %81 = tpu.matmul %78, %80, %cst_40 {dimension_numbers = #tpu.dot_dimension_numbers<[1], [0], [0], [1], [0, 0, 1, 1], [], []>} : vector<128x128xbf16>, vector<128x128xbf16>, vector<128x128xf32> -> vector<128x128xf32>
    %82 = arith.addf %72, %81 : vector<128x128xf32>
    %83 = vector.extract_strided_slice %19 {offsets = [23, 0], sizes = [128, 128], strides = [1, 1]} : vector<160x128xf32> to vector<128x128xf32>
    %c56_i32 = arith.constant 56 : i32
    %84 = vector.broadcast %c56_i32 : i32 to vector<128x128xi32>
    %85 = arith.cmpi slt, %15, %84 : vector<128x128xi32>
    %c1_i32_41 = arith.constant 1 : i32
    %86 = vector.broadcast %c1_i32_41 : i32 to vector<128x128xi32>
    %87 = arith.cmpi sge, %17, %86 : vector<128x128xi32>
    %88 = arith.andi %85, %87 : vector<128x128xi1>
    %cst_42 = arith.constant 0.000000e+00 : f32
    %89 = vector.broadcast %cst_42 : f32 to vector<128x128xf32>
    %90 = arith.select %88, %83, %89 : vector<128x128xi1>, vector<128x128xf32>
    %91 = arith.truncf %90 : vector<128x128xf32> to vector<128x128xbf16>
    %c6 = arith.constant 6 : index
    %c0_43 = arith.constant 0 : index
    %c0_44 = arith.constant 0 : index
    %92 = vector.load %arg3[%c6, %c0_43, %c0_44] : memref<27x128x128xbf16, #tpu.memory_space<vmem>>, vector<1x128x128xbf16>
    %93 = vector.shape_cast %92 : vector<1x128x128xbf16> to vector<128x128xbf16>
    %cst_45 = arith.constant dense<0.000000e+00> : vector<128x128xf32>
    %94 = tpu.matmul %91, %93, %cst_45 {dimension_numbers = #tpu.dot_dimension_numbers<[1], [0], [0], [1], [0, 0, 1, 1], [], []>} : vector<128x128xbf16>, vector<128x128xbf16>, vector<128x128xf32> -> vector<128x128xf32>
    %95 = arith.addf %82, %94 : vector<128x128xf32>
    %96 = vector.extract_strided_slice %19 {offsets = [24, 0], sizes = [128, 128], strides = [1, 1]} : vector<160x128xf32> to vector<128x128xf32>
    %c56_i32_46 = arith.constant 56 : i32
    %97 = vector.broadcast %c56_i32_46 : i32 to vector<128x128xi32>
    %98 = arith.cmpi slt, %15, %97 : vector<128x128xi32>
    %cst_47 = arith.constant 0.000000e+00 : f32
    %99 = vector.broadcast %cst_47 : f32 to vector<128x128xf32>
    %100 = arith.select %98, %96, %99 : vector<128x128xi1>, vector<128x128xf32>
    %101 = arith.truncf %100 : vector<128x128xf32> to vector<128x128xbf16>
    %c7 = arith.constant 7 : index
    %c0_48 = arith.constant 0 : index
    %c0_49 = arith.constant 0 : index
    %102 = vector.load %arg3[%c7, %c0_48, %c0_49] : memref<27x128x128xbf16, #tpu.memory_space<vmem>>, vector<1x128x128xbf16>
    %103 = vector.shape_cast %102 : vector<1x128x128xbf16> to vector<128x128xbf16>
    %cst_50 = arith.constant dense<0.000000e+00> : vector<128x128xf32>
    %104 = tpu.matmul %101, %103, %cst_50 {dimension_numbers = #tpu.dot_dimension_numbers<[1], [0], [0], [1], [0, 0, 1, 1], [], []>} : vector<128x128xbf16>, vector<128x128xbf16>, vector<128x128xf32> -> vector<128x128xf32>
    %105 = arith.addf %95, %104 : vector<128x128xf32>
    %106 = vector.extract_strided_slice %19 {offsets = [25, 0], sizes = [128, 128], strides = [1, 1]} : vector<160x128xf32> to vector<128x128xf32>
    %c56_i32_51 = arith.constant 56 : i32
    %107 = vector.broadcast %c56_i32_51 : i32 to vector<128x128xi32>
    %108 = arith.cmpi slt, %15, %107 : vector<128x128xi32>
    %c7_i32_52 = arith.constant 7 : i32
    %109 = vector.broadcast %c7_i32_52 : i32 to vector<128x128xi32>
    %110 = arith.cmpi slt, %17, %109 : vector<128x128xi32>
    %111 = arith.andi %108, %110 : vector<128x128xi1>
    %cst_53 = arith.constant 0.000000e+00 : f32
    %112 = vector.broadcast %cst_53 : f32 to vector<128x128xf32>
    %113 = arith.select %111, %106, %112 : vector<128x128xi1>, vector<128x128xf32>
    %114 = arith.truncf %113 : vector<128x128xf32> to vector<128x128xbf16>
    %c8 = arith.constant 8 : index
    %c0_54 = arith.constant 0 : index
    %c0_55 = arith.constant 0 : index
    %115 = vector.load %arg3[%c8, %c0_54, %c0_55] : memref<27x128x128xbf16, #tpu.memory_space<vmem>>, vector<1x128x128xbf16>
    %116 = vector.shape_cast %115 : vector<1x128x128xbf16> to vector<128x128xbf16>
    %cst_56 = arith.constant dense<0.000000e+00> : vector<128x128xf32>
    %117 = tpu.matmul %114, %116, %cst_56 {dimension_numbers = #tpu.dot_dimension_numbers<[1], [0], [0], [1], [0, 0, 1, 1], [], []>} : vector<128x128xbf16>, vector<128x128xbf16>, vector<128x128xf32> -> vector<128x128xf32>
    %118 = arith.addf %105, %117 : vector<128x128xf32>
    %c1_57 = arith.constant 1 : index
    %c0_58 = arith.constant 0 : index
    %c0_59 = arith.constant 0 : index
    %119 = vector.load %arg4[%c1_57, %c0_58, %c0_59] : memref<4x1x128xf32, #tpu.memory_space<vmem>>, vector<1x1x128xf32>
    %120 = vector.shape_cast %119 : vector<1x1x128xf32> to vector<1x128xf32>
    %121 = vector.broadcast %120 : vector<1x128xf32> to vector<128x128xf32>
    %122 = arith.mulf %118, %121 : vector<128x128xf32>
    %c1_60 = arith.constant 1 : index
    %c0_61 = arith.constant 0 : index
    %c0_62 = arith.constant 0 : index
    %123 = vector.load %arg5[%c1_60, %c0_61, %c0_62] : memref<4x1x128xf32, #tpu.memory_space<vmem>>, vector<1x1x128xf32>
    %124 = vector.shape_cast %123 : vector<1x1x128xf32> to vector<1x128xf32>
    %125 = vector.broadcast %124 : vector<1x128xf32> to vector<128x128xf32>
    %126 = arith.addf %122, %125 : vector<128x128xf32>
    %cst_63 = arith.constant 0.000000e+00 : f32
    %127 = vector.broadcast %cst_63 : f32 to vector<128x128xf32>
    %128 = arith.maximumf %126, %127 : vector<128x128xf32>
    %129 = tpu.concatenate %18, %128, %18 in 0 : vector<16x128xf32>, vector<128x128xf32>, vector<16x128xf32> -> vector<160x128xf32>
    %cst_64 = arith.constant 0.000000e+00 : f32
    %130 = vector.broadcast %cst_64 : f32 to vector<128x128xf32>
    %131 = vector.extract_strided_slice %129 {offsets = [7, 0], sizes = [128, 128], strides = [1, 1]} : vector<160x128xf32> to vector<128x128xf32>
    %c8_i32_65 = arith.constant 8 : i32
    %132 = vector.broadcast %c8_i32_65 : i32 to vector<128x128xi32>
    %133 = arith.cmpi sge, %15, %132 : vector<128x128xi32>
    %c1_i32_66 = arith.constant 1 : i32
    %134 = vector.broadcast %c1_i32_66 : i32 to vector<128x128xi32>
    %135 = arith.cmpi sge, %17, %134 : vector<128x128xi32>
    %136 = arith.andi %133, %135 : vector<128x128xi1>
    %cst_67 = arith.constant 0.000000e+00 : f32
    %137 = vector.broadcast %cst_67 : f32 to vector<128x128xf32>
    %138 = arith.select %136, %131, %137 : vector<128x128xi1>, vector<128x128xf32>
    %139 = arith.truncf %138 : vector<128x128xf32> to vector<128x128xbf16>
    %c9 = arith.constant 9 : index
    %c0_68 = arith.constant 0 : index
    %c0_69 = arith.constant 0 : index
    %140 = vector.load %arg3[%c9, %c0_68, %c0_69] : memref<27x128x128xbf16, #tpu.memory_space<vmem>>, vector<1x128x128xbf16>
    %141 = vector.shape_cast %140 : vector<1x128x128xbf16> to vector<128x128xbf16>
    %cst_70 = arith.constant dense<0.000000e+00> : vector<128x128xf32>
    %142 = tpu.matmul %139, %141, %cst_70 {dimension_numbers = #tpu.dot_dimension_numbers<[1], [0], [0], [1], [0, 0, 1, 1], [], []>} : vector<128x128xbf16>, vector<128x128xbf16>, vector<128x128xf32> -> vector<128x128xf32>
    %143 = arith.addf %130, %142 : vector<128x128xf32>
    %144 = vector.extract_strided_slice %129 {offsets = [8, 0], sizes = [128, 128], strides = [1, 1]} : vector<160x128xf32> to vector<128x128xf32>
    %c8_i32_71 = arith.constant 8 : i32
    %145 = vector.broadcast %c8_i32_71 : i32 to vector<128x128xi32>
    %146 = arith.cmpi sge, %15, %145 : vector<128x128xi32>
    %cst_72 = arith.constant 0.000000e+00 : f32
    %147 = vector.broadcast %cst_72 : f32 to vector<128x128xf32>
    %148 = arith.select %146, %144, %147 : vector<128x128xi1>, vector<128x128xf32>
    %149 = arith.truncf %148 : vector<128x128xf32> to vector<128x128xbf16>
    %c10 = arith.constant 10 : index
    %c0_73 = arith.constant 0 : index
    %c0_74 = arith.constant 0 : index
    %150 = vector.load %arg3[%c10, %c0_73, %c0_74] : memref<27x128x128xbf16, #tpu.memory_space<vmem>>, vector<1x128x128xbf16>
    %151 = vector.shape_cast %150 : vector<1x128x128xbf16> to vector<128x128xbf16>
    %cst_75 = arith.constant dense<0.000000e+00> : vector<128x128xf32>
    %152 = tpu.matmul %149, %151, %cst_75 {dimension_numbers = #tpu.dot_dimension_numbers<[1], [0], [0], [1], [0, 0, 1, 1], [], []>} : vector<128x128xbf16>, vector<128x128xbf16>, vector<128x128xf32> -> vector<128x128xf32>
    %153 = arith.addf %143, %152 : vector<128x128xf32>
    %154 = vector.extract_strided_slice %129 {offsets = [9, 0], sizes = [128, 128], strides = [1, 1]} : vector<160x128xf32> to vector<128x128xf32>
    %c8_i32_76 = arith.constant 8 : i32
    %155 = vector.broadcast %c8_i32_76 : i32 to vector<128x128xi32>
    %156 = arith.cmpi sge, %15, %155 : vector<128x128xi32>
    %c7_i32_77 = arith.constant 7 : i32
    %157 = vector.broadcast %c7_i32_77 : i32 to vector<128x128xi32>
    %158 = arith.cmpi slt, %17, %157 : vector<128x128xi32>
    %159 = arith.andi %156, %158 : vector<128x128xi1>
    %cst_78 = arith.constant 0.000000e+00 : f32
    %160 = vector.broadcast %cst_78 : f32 to vector<128x128xf32>
    %161 = arith.select %159, %154, %160 : vector<128x128xi1>, vector<128x128xf32>
    %162 = arith.truncf %161 : vector<128x128xf32> to vector<128x128xbf16>
    %c11 = arith.constant 11 : index
    %c0_79 = arith.constant 0 : index
    %c0_80 = arith.constant 0 : index
    %163 = vector.load %arg3[%c11, %c0_79, %c0_80] : memref<27x128x128xbf16, #tpu.memory_space<vmem>>, vector<1x128x128xbf16>
    %164 = vector.shape_cast %163 : vector<1x128x128xbf16> to vector<128x128xbf16>
    %cst_81 = arith.constant dense<0.000000e+00> : vector<128x128xf32>
    %165 = tpu.matmul %162, %164, %cst_81 {dimension_numbers = #tpu.dot_dimension_numbers<[1], [0], [0], [1], [0, 0, 1, 1], [], []>} : vector<128x128xbf16>, vector<128x128xbf16>, vector<128x128xf32> -> vector<128x128xf32>
    %166 = arith.addf %153, %165 : vector<128x128xf32>
    %167 = vector.extract_strided_slice %129 {offsets = [15, 0], sizes = [128, 128], strides = [1, 1]} : vector<160x128xf32> to vector<128x128xf32>
    %c1_i32_82 = arith.constant 1 : i32
    %168 = vector.broadcast %c1_i32_82 : i32 to vector<128x128xi32>
    %169 = arith.cmpi sge, %17, %168 : vector<128x128xi32>
    %cst_83 = arith.constant 0.000000e+00 : f32
    %170 = vector.broadcast %cst_83 : f32 to vector<128x128xf32>
    %171 = arith.select %169, %167, %170 : vector<128x128xi1>, vector<128x128xf32>
    %172 = arith.truncf %171 : vector<128x128xf32> to vector<128x128xbf16>
    %c12 = arith.constant 12 : index
    %c0_84 = arith.constant 0 : index
    %c0_85 = arith.constant 0 : index
    %173 = vector.load %arg3[%c12, %c0_84, %c0_85] : memref<27x128x128xbf16, #tpu.memory_space<vmem>>, vector<1x128x128xbf16>
    %174 = vector.shape_cast %173 : vector<1x128x128xbf16> to vector<128x128xbf16>
    %cst_86 = arith.constant dense<0.000000e+00> : vector<128x128xf32>
    %175 = tpu.matmul %172, %174, %cst_86 {dimension_numbers = #tpu.dot_dimension_numbers<[1], [0], [0], [1], [0, 0, 1, 1], [], []>} : vector<128x128xbf16>, vector<128x128xbf16>, vector<128x128xf32> -> vector<128x128xf32>
    %176 = arith.addf %166, %175 : vector<128x128xf32>
    %177 = vector.extract_strided_slice %129 {offsets = [16, 0], sizes = [128, 128], strides = [1, 1]} : vector<160x128xf32> to vector<128x128xf32>
    %178 = arith.truncf %177 : vector<128x128xf32> to vector<128x128xbf16>
    %c13 = arith.constant 13 : index
    %c0_87 = arith.constant 0 : index
    %c0_88 = arith.constant 0 : index
    %179 = vector.load %arg3[%c13, %c0_87, %c0_88] : memref<27x128x128xbf16, #tpu.memory_space<vmem>>, vector<1x128x128xbf16>
    %180 = vector.shape_cast %179 : vector<1x128x128xbf16> to vector<128x128xbf16>
    %cst_89 = arith.constant dense<0.000000e+00> : vector<128x128xf32>
    %181 = tpu.matmul %178, %180, %cst_89 {dimension_numbers = #tpu.dot_dimension_numbers<[1], [0], [0], [1], [0, 0, 1, 1], [], []>} : vector<128x128xbf16>, vector<128x128xbf16>, vector<128x128xf32> -> vector<128x128xf32>
    %182 = arith.addf %176, %181 : vector<128x128xf32>
    %183 = vector.extract_strided_slice %129 {offsets = [17, 0], sizes = [128, 128], strides = [1, 1]} : vector<160x128xf32> to vector<128x128xf32>
    %c7_i32_90 = arith.constant 7 : i32
    %184 = vector.broadcast %c7_i32_90 : i32 to vector<128x128xi32>
    %185 = arith.cmpi slt, %17, %184 : vector<128x128xi32>
    %cst_91 = arith.constant 0.000000e+00 : f32
    %186 = vector.broadcast %cst_91 : f32 to vector<128x128xf32>
    %187 = arith.select %185, %183, %186 : vector<128x128xi1>, vector<128x128xf32>
    %188 = arith.truncf %187 : vector<128x128xf32> to vector<128x128xbf16>
    %c14 = arith.constant 14 : index
    %c0_92 = arith.constant 0 : index
    %c0_93 = arith.constant 0 : index
    %189 = vector.load %arg3[%c14, %c0_92, %c0_93] : memref<27x128x128xbf16, #tpu.memory_space<vmem>>, vector<1x128x128xbf16>
    %190 = vector.shape_cast %189 : vector<1x128x128xbf16> to vector<128x128xbf16>
    %cst_94 = arith.constant dense<0.000000e+00> : vector<128x128xf32>
    %191 = tpu.matmul %188, %190, %cst_94 {dimension_numbers = #tpu.dot_dimension_numbers<[1], [0], [0], [1], [0, 0, 1, 1], [], []>} : vector<128x128xbf16>, vector<128x128xbf16>, vector<128x128xf32> -> vector<128x128xf32>
    %192 = arith.addf %182, %191 : vector<128x128xf32>
    %193 = vector.extract_strided_slice %129 {offsets = [23, 0], sizes = [128, 128], strides = [1, 1]} : vector<160x128xf32> to vector<128x128xf32>
    %c56_i32_95 = arith.constant 56 : i32
    %194 = vector.broadcast %c56_i32_95 : i32 to vector<128x128xi32>
    %195 = arith.cmpi slt, %15, %194 : vector<128x128xi32>
    %c1_i32_96 = arith.constant 1 : i32
    %196 = vector.broadcast %c1_i32_96 : i32 to vector<128x128xi32>
    %197 = arith.cmpi sge, %17, %196 : vector<128x128xi32>
    %198 = arith.andi %195, %197 : vector<128x128xi1>
    %cst_97 = arith.constant 0.000000e+00 : f32
    %199 = vector.broadcast %cst_97 : f32 to vector<128x128xf32>
    %200 = arith.select %198, %193, %199 : vector<128x128xi1>, vector<128x128xf32>
    %201 = arith.truncf %200 : vector<128x128xf32> to vector<128x128xbf16>
    %c15 = arith.constant 15 : index
    %c0_98 = arith.constant 0 : index
    %c0_99 = arith.constant 0 : index
    %202 = vector.load %arg3[%c15, %c0_98, %c0_99] : memref<27x128x128xbf16, #tpu.memory_space<vmem>>, vector<1x128x128xbf16>
    %203 = vector.shape_cast %202 : vector<1x128x128xbf16> to vector<128x128xbf16>
    %cst_100 = arith.constant dense<0.000000e+00> : vector<128x128xf32>
    %204 = tpu.matmul %201, %203, %cst_100 {dimension_numbers = #tpu.dot_dimension_numbers<[1], [0], [0], [1], [0, 0, 1, 1], [], []>} : vector<128x128xbf16>, vector<128x128xbf16>, vector<128x128xf32> -> vector<128x128xf32>
    %205 = arith.addf %192, %204 : vector<128x128xf32>
    %206 = vector.extract_strided_slice %129 {offsets = [24, 0], sizes = [128, 128], strides = [1, 1]} : vector<160x128xf32> to vector<128x128xf32>
    %c56_i32_101 = arith.constant 56 : i32
    %207 = vector.broadcast %c56_i32_101 : i32 to vector<128x128xi32>
    %208 = arith.cmpi slt, %15, %207 : vector<128x128xi32>
    %cst_102 = arith.constant 0.000000e+00 : f32
    %209 = vector.broadcast %cst_102 : f32 to vector<128x128xf32>
    %210 = arith.select %208, %206, %209 : vector<128x128xi1>, vector<128x128xf32>
    %211 = arith.truncf %210 : vector<128x128xf32> to vector<128x128xbf16>
    %c16 = arith.constant 16 : index
    %c0_103 = arith.constant 0 : index
    %c0_104 = arith.constant 0 : index
    %212 = vector.load %arg3[%c16, %c0_103, %c0_104] : memref<27x128x128xbf16, #tpu.memory_space<vmem>>, vector<1x128x128xbf16>
    %213 = vector.shape_cast %212 : vector<1x128x128xbf16> to vector<128x128xbf16>
    %cst_105 = arith.constant dense<0.000000e+00> : vector<128x128xf32>
    %214 = tpu.matmul %211, %213, %cst_105 {dimension_numbers = #tpu.dot_dimension_numbers<[1], [0], [0], [1], [0, 0, 1, 1], [], []>} : vector<128x128xbf16>, vector<128x128xbf16>, vector<128x128xf32> -> vector<128x128xf32>
    %215 = arith.addf %205, %214 : vector<128x128xf32>
    %216 = vector.extract_strided_slice %129 {offsets = [25, 0], sizes = [128, 128], strides = [1, 1]} : vector<160x128xf32> to vector<128x128xf32>
    %c56_i32_106 = arith.constant 56 : i32
    %217 = vector.broadcast %c56_i32_106 : i32 to vector<128x128xi32>
    %218 = arith.cmpi slt, %15, %217 : vector<128x128xi32>
    %c7_i32_107 = arith.constant 7 : i32
    %219 = vector.broadcast %c7_i32_107 : i32 to vector<128x128xi32>
    %220 = arith.cmpi slt, %17, %219 : vector<128x128xi32>
    %221 = arith.andi %218, %220 : vector<128x128xi1>
    %cst_108 = arith.constant 0.000000e+00 : f32
    %222 = vector.broadcast %cst_108 : f32 to vector<128x128xf32>
    %223 = arith.select %221, %216, %222 : vector<128x128xi1>, vector<128x128xf32>
    %224 = arith.truncf %223 : vector<128x128xf32> to vector<128x128xbf16>
    %c17 = arith.constant 17 : index
    %c0_109 = arith.constant 0 : index
    %c0_110 = arith.constant 0 : index
    %225 = vector.load %arg3[%c17, %c0_109, %c0_110] : memref<27x128x128xbf16, #tpu.memory_space<vmem>>, vector<1x128x128xbf16>
    %226 = vector.shape_cast %225 : vector<1x128x128xbf16> to vector<128x128xbf16>
    %cst_111 = arith.constant dense<0.000000e+00> : vector<128x128xf32>
    %227 = tpu.matmul %224, %226, %cst_111 {dimension_numbers = #tpu.dot_dimension_numbers<[1], [0], [0], [1], [0, 0, 1, 1], [], []>} : vector<128x128xbf16>, vector<128x128xbf16>, vector<128x128xf32> -> vector<128x128xf32>
    %228 = arith.addf %215, %227 : vector<128x128xf32>
    %c2_112 = arith.constant 2 : index
    %c0_113 = arith.constant 0 : index
    %c0_114 = arith.constant 0 : index
    %229 = vector.load %arg4[%c2_112, %c0_113, %c0_114] : memref<4x1x128xf32, #tpu.memory_space<vmem>>, vector<1x1x128xf32>
    %230 = vector.shape_cast %229 : vector<1x1x128xf32> to vector<1x128xf32>
    %231 = vector.broadcast %230 : vector<1x128xf32> to vector<128x128xf32>
    %232 = arith.mulf %228, %231 : vector<128x128xf32>
    %c2_115 = arith.constant 2 : index
    %c0_116 = arith.constant 0 : index
    %c0_117 = arith.constant 0 : index
    %233 = vector.load %arg5[%c2_115, %c0_116, %c0_117] : memref<4x1x128xf32, #tpu.memory_space<vmem>>, vector<1x1x128xf32>
    %234 = vector.shape_cast %233 : vector<1x1x128xf32> to vector<1x128xf32>
    %235 = vector.broadcast %234 : vector<1x128xf32> to vector<128x128xf32>
    %236 = arith.addf %232, %235 : vector<128x128xf32>
    %cst_118 = arith.constant 0.000000e+00 : f32
    %237 = vector.broadcast %cst_118 : f32 to vector<128x128xf32>
    %238 = arith.maximumf %236, %237 : vector<128x128xf32>
    %239 = tpu.concatenate %18, %238, %18 in 0 : vector<16x128xf32>, vector<128x128xf32>, vector<16x128xf32> -> vector<160x128xf32>
    %cst_119 = arith.constant 0.000000e+00 : f32
    %240 = vector.broadcast %cst_119 : f32 to vector<128x128xf32>
    %241 = vector.extract_strided_slice %239 {offsets = [7, 0], sizes = [128, 128], strides = [1, 1]} : vector<160x128xf32> to vector<128x128xf32>
    %c8_i32_120 = arith.constant 8 : i32
    %242 = vector.broadcast %c8_i32_120 : i32 to vector<128x128xi32>
    %243 = arith.cmpi sge, %15, %242 : vector<128x128xi32>
    %c1_i32_121 = arith.constant 1 : i32
    %244 = vector.broadcast %c1_i32_121 : i32 to vector<128x128xi32>
    %245 = arith.cmpi sge, %17, %244 : vector<128x128xi32>
    %246 = arith.andi %243, %245 : vector<128x128xi1>
    %cst_122 = arith.constant 0.000000e+00 : f32
    %247 = vector.broadcast %cst_122 : f32 to vector<128x128xf32>
    %248 = arith.select %246, %241, %247 : vector<128x128xi1>, vector<128x128xf32>
    %249 = arith.truncf %248 : vector<128x128xf32> to vector<128x128xbf16>
    %c18 = arith.constant 18 : index
    %c0_123 = arith.constant 0 : index
    %c0_124 = arith.constant 0 : index
    %250 = vector.load %arg3[%c18, %c0_123, %c0_124] : memref<27x128x128xbf16, #tpu.memory_space<vmem>>, vector<1x128x128xbf16>
    %251 = vector.shape_cast %250 : vector<1x128x128xbf16> to vector<128x128xbf16>
    %cst_125 = arith.constant dense<0.000000e+00> : vector<128x128xf32>
    %252 = tpu.matmul %249, %251, %cst_125 {dimension_numbers = #tpu.dot_dimension_numbers<[1], [0], [0], [1], [0, 0, 1, 1], [], []>} : vector<128x128xbf16>, vector<128x128xbf16>, vector<128x128xf32> -> vector<128x128xf32>
    %253 = arith.addf %240, %252 : vector<128x128xf32>
    %254 = vector.extract_strided_slice %239 {offsets = [8, 0], sizes = [128, 128], strides = [1, 1]} : vector<160x128xf32> to vector<128x128xf32>
    %c8_i32_126 = arith.constant 8 : i32
    %255 = vector.broadcast %c8_i32_126 : i32 to vector<128x128xi32>
    %256 = arith.cmpi sge, %15, %255 : vector<128x128xi32>
    %cst_127 = arith.constant 0.000000e+00 : f32
    %257 = vector.broadcast %cst_127 : f32 to vector<128x128xf32>
    %258 = arith.select %256, %254, %257 : vector<128x128xi1>, vector<128x128xf32>
    %259 = arith.truncf %258 : vector<128x128xf32> to vector<128x128xbf16>
    %c19 = arith.constant 19 : index
    %c0_128 = arith.constant 0 : index
    %c0_129 = arith.constant 0 : index
    %260 = vector.load %arg3[%c19, %c0_128, %c0_129] : memref<27x128x128xbf16, #tpu.memory_space<vmem>>, vector<1x128x128xbf16>
    %261 = vector.shape_cast %260 : vector<1x128x128xbf16> to vector<128x128xbf16>
    %cst_130 = arith.constant dense<0.000000e+00> : vector<128x128xf32>
    %262 = tpu.matmul %259, %261, %cst_130 {dimension_numbers = #tpu.dot_dimension_numbers<[1], [0], [0], [1], [0, 0, 1, 1], [], []>} : vector<128x128xbf16>, vector<128x128xbf16>, vector<128x128xf32> -> vector<128x128xf32>
    %263 = arith.addf %253, %262 : vector<128x128xf32>
    %264 = vector.extract_strided_slice %239 {offsets = [9, 0], sizes = [128, 128], strides = [1, 1]} : vector<160x128xf32> to vector<128x128xf32>
    %c8_i32_131 = arith.constant 8 : i32
    %265 = vector.broadcast %c8_i32_131 : i32 to vector<128x128xi32>
    %266 = arith.cmpi sge, %15, %265 : vector<128x128xi32>
    %c7_i32_132 = arith.constant 7 : i32
    %267 = vector.broadcast %c7_i32_132 : i32 to vector<128x128xi32>
    %268 = arith.cmpi slt, %17, %267 : vector<128x128xi32>
    %269 = arith.andi %266, %268 : vector<128x128xi1>
    %cst_133 = arith.constant 0.000000e+00 : f32
    %270 = vector.broadcast %cst_133 : f32 to vector<128x128xf32>
    %271 = arith.select %269, %264, %270 : vector<128x128xi1>, vector<128x128xf32>
    %272 = arith.truncf %271 : vector<128x128xf32> to vector<128x128xbf16>
    %c20 = arith.constant 20 : index
    %c0_134 = arith.constant 0 : index
    %c0_135 = arith.constant 0 : index
    %273 = vector.load %arg3[%c20, %c0_134, %c0_135] : memref<27x128x128xbf16, #tpu.memory_space<vmem>>, vector<1x128x128xbf16>
    %274 = vector.shape_cast %273 : vector<1x128x128xbf16> to vector<128x128xbf16>
    %cst_136 = arith.constant dense<0.000000e+00> : vector<128x128xf32>
    %275 = tpu.matmul %272, %274, %cst_136 {dimension_numbers = #tpu.dot_dimension_numbers<[1], [0], [0], [1], [0, 0, 1, 1], [], []>} : vector<128x128xbf16>, vector<128x128xbf16>, vector<128x128xf32> -> vector<128x128xf32>
    %276 = arith.addf %263, %275 : vector<128x128xf32>
    %277 = vector.extract_strided_slice %239 {offsets = [15, 0], sizes = [128, 128], strides = [1, 1]} : vector<160x128xf32> to vector<128x128xf32>
    %c1_i32_137 = arith.constant 1 : i32
    %278 = vector.broadcast %c1_i32_137 : i32 to vector<128x128xi32>
    %279 = arith.cmpi sge, %17, %278 : vector<128x128xi32>
    %cst_138 = arith.constant 0.000000e+00 : f32
    %280 = vector.broadcast %cst_138 : f32 to vector<128x128xf32>
    %281 = arith.select %279, %277, %280 : vector<128x128xi1>, vector<128x128xf32>
    %282 = arith.truncf %281 : vector<128x128xf32> to vector<128x128xbf16>
    %c21 = arith.constant 21 : index
    %c0_139 = arith.constant 0 : index
    %c0_140 = arith.constant 0 : index
    %283 = vector.load %arg3[%c21, %c0_139, %c0_140] : memref<27x128x128xbf16, #tpu.memory_space<vmem>>, vector<1x128x128xbf16>
    %284 = vector.shape_cast %283 : vector<1x128x128xbf16> to vector<128x128xbf16>
    %cst_141 = arith.constant dense<0.000000e+00> : vector<128x128xf32>
    %285 = tpu.matmul %282, %284, %cst_141 {dimension_numbers = #tpu.dot_dimension_numbers<[1], [0], [0], [1], [0, 0, 1, 1], [], []>} : vector<128x128xbf16>, vector<128x128xbf16>, vector<128x128xf32> -> vector<128x128xf32>
    %286 = arith.addf %276, %285 : vector<128x128xf32>
    %287 = vector.extract_strided_slice %239 {offsets = [16, 0], sizes = [128, 128], strides = [1, 1]} : vector<160x128xf32> to vector<128x128xf32>
    %288 = arith.truncf %287 : vector<128x128xf32> to vector<128x128xbf16>
    %c22 = arith.constant 22 : index
    %c0_142 = arith.constant 0 : index
    %c0_143 = arith.constant 0 : index
    %289 = vector.load %arg3[%c22, %c0_142, %c0_143] : memref<27x128x128xbf16, #tpu.memory_space<vmem>>, vector<1x128x128xbf16>
    %290 = vector.shape_cast %289 : vector<1x128x128xbf16> to vector<128x128xbf16>
    %cst_144 = arith.constant dense<0.000000e+00> : vector<128x128xf32>
    %291 = tpu.matmul %288, %290, %cst_144 {dimension_numbers = #tpu.dot_dimension_numbers<[1], [0], [0], [1], [0, 0, 1, 1], [], []>} : vector<128x128xbf16>, vector<128x128xbf16>, vector<128x128xf32> -> vector<128x128xf32>
    %292 = arith.addf %286, %291 : vector<128x128xf32>
    %293 = vector.extract_strided_slice %239 {offsets = [17, 0], sizes = [128, 128], strides = [1, 1]} : vector<160x128xf32> to vector<128x128xf32>
    %c7_i32_145 = arith.constant 7 : i32
    %294 = vector.broadcast %c7_i32_145 : i32 to vector<128x128xi32>
    %295 = arith.cmpi slt, %17, %294 : vector<128x128xi32>
    %cst_146 = arith.constant 0.000000e+00 : f32
    %296 = vector.broadcast %cst_146 : f32 to vector<128x128xf32>
    %297 = arith.select %295, %293, %296 : vector<128x128xi1>, vector<128x128xf32>
    %298 = arith.truncf %297 : vector<128x128xf32> to vector<128x128xbf16>
    %c23 = arith.constant 23 : index
    %c0_147 = arith.constant 0 : index
    %c0_148 = arith.constant 0 : index
    %299 = vector.load %arg3[%c23, %c0_147, %c0_148] : memref<27x128x128xbf16, #tpu.memory_space<vmem>>, vector<1x128x128xbf16>
    %300 = vector.shape_cast %299 : vector<1x128x128xbf16> to vector<128x128xbf16>
    %cst_149 = arith.constant dense<0.000000e+00> : vector<128x128xf32>
    %301 = tpu.matmul %298, %300, %cst_149 {dimension_numbers = #tpu.dot_dimension_numbers<[1], [0], [0], [1], [0, 0, 1, 1], [], []>} : vector<128x128xbf16>, vector<128x128xbf16>, vector<128x128xf32> -> vector<128x128xf32>
    %302 = arith.addf %292, %301 : vector<128x128xf32>
    %303 = vector.extract_strided_slice %239 {offsets = [23, 0], sizes = [128, 128], strides = [1, 1]} : vector<160x128xf32> to vector<128x128xf32>
    %c56_i32_150 = arith.constant 56 : i32
    %304 = vector.broadcast %c56_i32_150 : i32 to vector<128x128xi32>
    %305 = arith.cmpi slt, %15, %304 : vector<128x128xi32>
    %c1_i32_151 = arith.constant 1 : i32
    %306 = vector.broadcast %c1_i32_151 : i32 to vector<128x128xi32>
    %307 = arith.cmpi sge, %17, %306 : vector<128x128xi32>
    %308 = arith.andi %305, %307 : vector<128x128xi1>
    %cst_152 = arith.constant 0.000000e+00 : f32
    %309 = vector.broadcast %cst_152 : f32 to vector<128x128xf32>
    %310 = arith.select %308, %303, %309 : vector<128x128xi1>, vector<128x128xf32>
    %311 = arith.truncf %310 : vector<128x128xf32> to vector<128x128xbf16>
    %c24 = arith.constant 24 : index
    %c0_153 = arith.constant 0 : index
    %c0_154 = arith.constant 0 : index
    %312 = vector.load %arg3[%c24, %c0_153, %c0_154] : memref<27x128x128xbf16, #tpu.memory_space<vmem>>, vector<1x128x128xbf16>
    %313 = vector.shape_cast %312 : vector<1x128x128xbf16> to vector<128x128xbf16>
    %cst_155 = arith.constant dense<0.000000e+00> : vector<128x128xf32>
    %314 = tpu.matmul %311, %313, %cst_155 {dimension_numbers = #tpu.dot_dimension_numbers<[1], [0], [0], [1], [0, 0, 1, 1], [], []>} : vector<128x128xbf16>, vector<128x128xbf16>, vector<128x128xf32> -> vector<128x128xf32>
    %315 = arith.addf %302, %314 : vector<128x128xf32>
    %316 = vector.extract_strided_slice %239 {offsets = [24, 0], sizes = [128, 128], strides = [1, 1]} : vector<160x128xf32> to vector<128x128xf32>
    %c56_i32_156 = arith.constant 56 : i32
    %317 = vector.broadcast %c56_i32_156 : i32 to vector<128x128xi32>
    %318 = arith.cmpi slt, %15, %317 : vector<128x128xi32>
    %cst_157 = arith.constant 0.000000e+00 : f32
    %319 = vector.broadcast %cst_157 : f32 to vector<128x128xf32>
    %320 = arith.select %318, %316, %319 : vector<128x128xi1>, vector<128x128xf32>
    %321 = arith.truncf %320 : vector<128x128xf32> to vector<128x128xbf16>
    %c25 = arith.constant 25 : index
    %c0_158 = arith.constant 0 : index
    %c0_159 = arith.constant 0 : index
    %322 = vector.load %arg3[%c25, %c0_158, %c0_159] : memref<27x128x128xbf16, #tpu.memory_space<vmem>>, vector<1x128x128xbf16>
    %323 = vector.shape_cast %322 : vector<1x128x128xbf16> to vector<128x128xbf16>
    %cst_160 = arith.constant dense<0.000000e+00> : vector<128x128xf32>
    %324 = tpu.matmul %321, %323, %cst_160 {dimension_numbers = #tpu.dot_dimension_numbers<[1], [0], [0], [1], [0, 0, 1, 1], [], []>} : vector<128x128xbf16>, vector<128x128xbf16>, vector<128x128xf32> -> vector<128x128xf32>
    %325 = arith.addf %315, %324 : vector<128x128xf32>
    %326 = vector.extract_strided_slice %239 {offsets = [25, 0], sizes = [128, 128], strides = [1, 1]} : vector<160x128xf32> to vector<128x128xf32>
    %c56_i32_161 = arith.constant 56 : i32
    %327 = vector.broadcast %c56_i32_161 : i32 to vector<128x128xi32>
    %328 = arith.cmpi slt, %15, %327 : vector<128x128xi32>
    %c7_i32_162 = arith.constant 7 : i32
    %329 = vector.broadcast %c7_i32_162 : i32 to vector<128x128xi32>
    %330 = arith.cmpi slt, %17, %329 : vector<128x128xi32>
    %331 = arith.andi %328, %330 : vector<128x128xi1>
    %cst_163 = arith.constant 0.000000e+00 : f32
    %332 = vector.broadcast %cst_163 : f32 to vector<128x128xf32>
    %333 = arith.select %331, %326, %332 : vector<128x128xi1>, vector<128x128xf32>
    %334 = arith.truncf %333 : vector<128x128xf32> to vector<128x128xbf16>
    %c26 = arith.constant 26 : index
    %c0_164 = arith.constant 0 : index
    %c0_165 = arith.constant 0 : index
    %335 = vector.load %arg3[%c26, %c0_164, %c0_165] : memref<27x128x128xbf16, #tpu.memory_space<vmem>>, vector<1x128x128xbf16>
    %336 = vector.shape_cast %335 : vector<1x128x128xbf16> to vector<128x128xbf16>
    %cst_166 = arith.constant dense<0.000000e+00> : vector<128x128xf32>
    %337 = tpu.matmul %334, %336, %cst_166 {dimension_numbers = #tpu.dot_dimension_numbers<[1], [0], [0], [1], [0, 0, 1, 1], [], []>} : vector<128x128xbf16>, vector<128x128xbf16>, vector<128x128xf32> -> vector<128x128xf32>
    %338 = arith.addf %325, %337 : vector<128x128xf32>
    %c3_167 = arith.constant 3 : index
    %c0_168 = arith.constant 0 : index
    %c0_169 = arith.constant 0 : index
    %339 = vector.load %arg4[%c3_167, %c0_168, %c0_169] : memref<4x1x128xf32, #tpu.memory_space<vmem>>, vector<1x1x128xf32>
    %340 = vector.shape_cast %339 : vector<1x1x128xf32> to vector<1x128xf32>
    %341 = vector.broadcast %340 : vector<1x128xf32> to vector<128x128xf32>
    %342 = arith.mulf %338, %341 : vector<128x128xf32>
    %c3_170 = arith.constant 3 : index
    %c0_171 = arith.constant 0 : index
    %c0_172 = arith.constant 0 : index
    %343 = vector.load %arg5[%c3_170, %c0_171, %c0_172] : memref<4x1x128xf32, #tpu.memory_space<vmem>>, vector<1x1x128xf32>
    %344 = vector.shape_cast %343 : vector<1x1x128xf32> to vector<1x128xf32>
    %345 = vector.broadcast %344 : vector<1x128xf32> to vector<128x128xf32>
    %346 = arith.addf %342, %345 : vector<128x128xf32>
    %cst_173 = arith.constant 0.000000e+00 : f32
    %347 = vector.broadcast %cst_173 : f32 to vector<128x128xf32>
    %348 = arith.maximumf %346, %347 : vector<128x128xf32>
    %349 = arith.truncf %348 : vector<128x128xf32> to vector<128x128xbf16>
    %c0_174 = arith.constant 0 : index
    %c0_175 = arith.constant 0 : index
    %350 = vector.load %arg6[%c0_174, %c0_175] : memref<128x128xbf16, #tpu.memory_space<vmem>>, vector<128x128xbf16>
    %cst_176 = arith.constant dense<0.000000e+00> : vector<128x128xf32>
    %351 = tpu.matmul %349, %350, %cst_176 {dimension_numbers = #tpu.dot_dimension_numbers<[1], [0], [0], [1], [0, 0, 1, 1], [], []>} : vector<128x128xbf16>, vector<128x128xbf16>, vector<128x128xf32> -> vector<128x128xf32>
    %c0_177 = arith.constant 0 : index
    %c0_178 = arith.constant 0 : index
    %352 = vector.load %arg7[%c0_177, %c0_178] : memref<1x128xf32, #tpu.memory_space<vmem>>, vector<1x128xf32>
    %353 = vector.broadcast %352 : vector<1x128xf32> to vector<128x128xf32>
    %354 = arith.addf %351, %353 : vector<128x128xf32>
    %c0_179 = arith.constant 0 : index
    %c0_180 = arith.constant 0 : index
    %355 = vector.load %arg8[%c0_179, %c0_180] : memref<128x128xf32, #tpu.memory_space<vmem>>, vector<128x128xf32>
    tpu.vector_store %arg8[%c0_179, %c0_180], %354 {strides = array<i32>} : memref<128x128xf32, #tpu.memory_space<vmem>>, vector<128x128xf32>,
    return
  }
  func.func @transform_0(%arg0: i32) -> (i32, i32) {
    %c0_i32 = arith.constant 0 : i32
    %c0_i32_0 = arith.constant 0 : i32
    return %arg0, %c0_i32 : i32, i32
  }
  func.func @transform_1(%arg0: i32) -> (i32, i32) {
    %c0_i32 = arith.constant 0 : i32
    %c0_i32_0 = arith.constant 0 : i32
    %c0_i32_1 = arith.constant 0 : i32
    return %c0_i32, %c0_i32_0 : i32, i32
  }
  func.func @transform_2(%arg0: i32) -> (i32, i32, i32) {
    %c0_i32 = arith.constant 0 : i32
    %c0_i32_0 = arith.constant 0 : i32
    %c0_i32_1 = arith.constant 0 : i32
    %c0_i32_2 = arith.constant 0 : i32
    return %c0_i32, %c0_i32_0, %c0_i32_1 : i32, i32, i32
  }
  func.func @transform_3(%arg0: i32) -> (i32, i32, i32) {
    %c0_i32 = arith.constant 0 : i32
    %c0_i32_0 = arith.constant 0 : i32
    %c0_i32_1 = arith.constant 0 : i32
    %c0_i32_2 = arith.constant 0 : i32
    return %c0_i32, %c0_i32_0, %c0_i32_1 : i32, i32, i32
  }
  func.func @transform_4(%arg0: i32) -> (i32, i32, i32) {
    %c0_i32 = arith.constant 0 : i32
    %c0_i32_0 = arith.constant 0 : i32
    %c0_i32_1 = arith.constant 0 : i32
    %c0_i32_2 = arith.constant 0 : i32
    return %c0_i32, %c0_i32_0, %c0_i32_1 : i32, i32, i32
  }
  func.func @transform_5(%arg0: i32) -> (i32, i32) {
    %c0_i32 = arith.constant 0 : i32
    %c0_i32_0 = arith.constant 0 : i32
    %c0_i32_1 = arith.constant 0 : i32
    return %c0_i32, %c0_i32_0 : i32, i32
  }
  func.func @transform_6(%arg0: i32) -> (i32, i32) {
    %c0_i32 = arith.constant 0 : i32
    %c0_i32_0 = arith.constant 0 : i32
    %c0_i32_1 = arith.constant 0 : i32
    return %c0_i32, %c0_i32_0 : i32, i32
  }
  func.func @transform_7(%arg0: i32) -> (i32, i32) {
    %c0_i32 = arith.constant 0 : i32
    %c0_i32_0 = arith.constant 0 : i32
    return %arg0, %c0_i32 : i32, i32
  }
}

</mosaic_0001>

<llo_original>
// kernel: rpn_forward.1
$region0: #{rpn_forward.1}
  #allocation0 [shape = 'u32[]', space=smem, size = 0x4, offset = 0x4, fixed_abs, tag = 'smem constant byte address 0x4 - core index']
  #allocation1 [shape = 'u32[144,128]{1,0:T(1,128)}', space=vmem, size = 0x12000, scoped, tag = 'internal scratch']
  %s0 = inlined_call_operand.vmem [shape: bf16[128,576], index: 0, kind: input, shape index: {}]
  %s1 = inlined_call_operand.vmem [shape: bf16[576,128], index: 1, kind: input, shape index: {}]
  %s2 = inlined_call_operand.vmem [shape: bf16[27,128,128], index: 2, kind: input, shape index: {}]
  %s3 = inlined_call_operand.vmem [shape: f32[4,1,128], index: 3, kind: input, shape index: {}]
  %s4 = inlined_call_operand.vmem [shape: f32[4,1,128], index: 4, kind: input, shape index: {}]
  %s5 = inlined_call_operand.vmem [shape: bf16[128,128], index: 5, kind: input, shape index: {}]
  %s6 = inlined_call_operand.vmem [shape: f32[1,128], index: 6, kind: input, shape index: {}]
  %s7 = inlined_call_operand.vmem [shape: f32[128,128], index: 7, kind: output, shape index: {}]
  %s8 = sld [smem:[#allocation0]]
  $region38: #{rpn_forward.1} parent=0
    _
  %s10 = ssub.s32 1, %s8
  %s11 = scalar_select 0, %s10, %s8
  // Predicated region
  $region2: #{rpn_forward.1} parent=0 // pred_check
    _
  $region3: #{rpn_forward.1} parent=0 // pred_check_branch
    %13 = sbr.rel (0) target = $region5
  $region4: #{rpn_forward.1} parent=0 // pred_region
    _
  $region5: #{rpn_forward.1} parent=0 // pred_fallthru
    _
  // Predicated region
  $region6: #{rpn_forward.1} parent=0 // pred_check
    _
  $region7: #{rpn_forward.1} parent=0 // pred_check_branch
    %15 = sbr.rel (0) target = $region9
  $region8: #{rpn_forward.1} parent=0 // pred_region
    _
  $region9: #{rpn_forward.1} parent=0 // pred_fallthru
    _
  // Predicated region
  $region10: #{rpn_forward.1} parent=0 // pred_check
    _
  $region11: #{rpn_forward.1} parent=0 // pred_check_branch
    %17 = sbr.rel (0) target = $region13
  $region12: #{rpn_forward.1} parent=0 // pred_region
    _
  $region13: #{rpn_forward.1} parent=0 // pred_fallthru
    _
  // Predicated region
  $region14: #{rpn_forward.1} parent=0 // pred_check
    _
  $region15: #{rpn_forward.1} parent=0 // pred_check_branch
    %19 = sbr.rel (0) target = $region17
  $region16: #{rpn_forward.1} parent=0 // pred_region
    _
  $region17: #{rpn_forward.1} parent=0 // pred_fallthru
    _
  // Predicated region
  $region18: #{rpn_forward.1} parent=0 // pred_check
    _
  $region19: #{rpn_forward.1} parent=0 // pred_check_branch
    %21 = sbr.rel (0) target = $region21
  $region20: #{rpn_forward.1} parent=0 // pred_region
    _
  $region21: #{rpn_forward.1} parent=0 // pred_fallthru
    _
  // Predicated region
  $region22: #{rpn_forward.1} parent=0 // pred_check
    _
  $region23: #{rpn_forward.1} parent=0 // pred_check_branch
    %23 = sbr.rel (0) target = $region25
  $region24: #{rpn_forward.1} parent=0 // pred_region
    _
  $region25: #{rpn_forward.1} parent=0 // pred_fallthru
    _
  // Predicated region
  $region26: #{rpn_forward.1} parent=0 // pred_check
    _
  $region27: #{rpn_forward.1} parent=0 // pred_check_branch
    %25 = sbr.rel (0) target = $region29
  $region28: #{rpn_forward.1} parent=0 // pred_region
    _
  $region29: #{rpn_forward.1} parent=0 // pred_fallthru
    _
  %v27 = vld [vmem:[%s0] sm:$0xff]
  %v28 = vld [vmem:[%s0 + $0x8] sm:$0xff]
  %v29 = vld [vmem:[%s0 + $0x10] sm:$0xf]
  %v30 = vld [vmem:[%s0 + $0x14] sm:$0xff]
  %v31 = vld [vmem:[%s0 + $0x1c] sm:$0xff]
  %v32 = vld [vmem:[%s0 + $0x24] sm:$0xf]
  %v33 = vld [vmem:[%s0 + $0x28] sm:$0xff]
  %v34 = vld [vmem:[%s0 + $0x30] sm:$0xff]
  %v35 = vld [vmem:[%s0 + $0x38] sm:$0xf]
  %v36 = vld [vmem:[%s0 + $0x3c] sm:$0xff]
  %v37 = vld [vmem:[%s0 + $0x44] sm:$0xff]
  %v38 = vld [vmem:[%s0 + $0x4c] sm:$0xf]
  %v39 = vld [vmem:[%s0 + $0x50] sm:$0xff]
  %v40 = vld [vmem:[%s0 + $0x58] sm:$0xff]
  %v41 = vld [vmem:[%s0 + $0x60] sm:$0xf]
  %v42 = vld [vmem:[%s0 + $0x64] sm:$0xff]
  %v43 = vld [vmem:[%s0 + $0x6c] sm:$0xff]
  %v44 = vld [vmem:[%s0 + $0x74] sm:$0xf]
  %v45 = vld [vmem:[%s0 + $0x78] sm:$0xff]
  %v46 = vld [vmem:[%s0 + $0x80] sm:$0xff]
  %v47 = vld [vmem:[%s0 + $0x88] sm:$0xf]
  %v48 = vld [vmem:[%s0 + $0x8c] sm:$0xff]
  %v49 = vld [vmem:[%s0 + $0x94] sm:$0xff]
  %v50 = vld [vmem:[%s0 + $0x9c] sm:$0xf]
  %v51 = vld [vmem:[%s0 + $0xa0] sm:$0xff]
  %v52 = vld [vmem:[%s0 + $0xa8] sm:$0xff]
  %v53 = vld [vmem:[%s0 + $0xb0] sm:$0xf]
  %v54 = vld [vmem:[%s0 + $0xb4] sm:$0xff]
  %v55 = vld [vmem:[%s0 + $0xbc] sm:$0xff]
  %v56 = vld [vmem:[%s0 + $0xc4] sm:$0xf]
  %v57 = vld [vmem:[%s0 + $0xc8] sm:$0xff]
  %v58 = vld [vmem:[%s0 + $0xd0] sm:$0xff]
  %v59 = vld [vmem:[%s0 + $0xd8] sm:$0xf]
  %v60 = vld [vmem:[%s0 + $0xdc] sm:$0xff]
  %v61 = vld [vmem:[%s0 + $0xe4] sm:$0xff]
  %v62 = vld [vmem:[%s0 + $0xec] sm:$0xf]
  %v63 = vld [vmem:[%s0 + $0xf0] sm:$0xff]
  %v64 = vld [vmem:[%s0 + $0xf8] sm:$0xff]
  %v65 = vld [vmem:[%s0 + $0x100] sm:$0xf]
  %v66 = vld [vmem:[%s0 + $0x104] sm:$0xff]
  %v67 = vld [vmem:[%s0 + $0x10c] sm:$0xff]
  %v68 = vld [vmem:[%s0 + $0x114] sm:$0xf]
  %v69 = vld [vmem:[%s0 + $0x118] sm:$0xff]
  %v70 = vld [vmem:[%s0 + $0x120] sm:$0xff]
  %v71 = vld [vmem:[%s0 + $0x128] sm:$0xf]
  %v72 = vld [vmem:[%s0 + $0x12c] sm:$0xff]
  %v73 = vld [vmem:[%s0 + $0x134] sm:$0xff]
  %v74 = vld [vmem:[%s0 + $0x13c] sm:$0xf]
  %v75 = vld [vmem:[%s1] sm:$0xf]
  %v76 = vld [vmem:[%s1 + $0x4] sm:$0xf]
  %v77 = vld [vmem:[%s1 + $0x8] sm:$0xf]
  %v78 = vld [vmem:[%s1 + $0xc] sm:$0xf]
  %v79 = vld [vmem:[%s1 + $0x10] sm:$0xf]
  %v80 = vld [vmem:[%s1 + $0x14] sm:$0xf]
  %v81 = vld [vmem:[%s1 + $0x18] sm:$0xf]
  %v82 = vld [vmem:[%s1 + $0x1c] sm:$0xf]
  %v83 = vld [vmem:[%s1 + $0x20] sm:$0xf]
  %v84 = vld [vmem:[%s1 + $0x24] sm:$0xf]
  %v85 = vld [vmem:[%s1 + $0x28] sm:$0xf]
  %v86 = vld [vmem:[%s1 + $0x2c] sm:$0xf]
  %v87 = vld [vmem:[%s1 + $0x30] sm:$0xf]
  %v88 = vld [vmem:[%s1 + $0x34] sm:$0xf]
  %v89 = vld [vmem:[%s1 + $0x38] sm:$0xf]
  %v90 = vld [vmem:[%s1 + $0x3c] sm:$0xf]
  %v91 = vld [vmem:[%s1 + $0x40] sm:$0xf]
  %v92 = vld [vmem:[%s1 + $0x44] sm:$0xf]
  %v93 = vld [vmem:[%s1 + $0x48] sm:$0xf]
  %v94 = vld [vmem:[%s1 + $0x4c] sm:$0xf]
  %v95 = vld [vmem:[%s1 + $0x50] sm:$0xf]
  %v96 = vld [vmem:[%s1 + $0x54] sm:$0xf]
  %v97 = vld [vmem:[%s1 + $0x58] sm:$0xf]
  %v98 = vld [vmem:[%s1 + $0x5c] sm:$0xf]
  %v99 = vld [vmem:[%s1 + $0x60] sm:$0xf]
  %v100 = vld [vmem:[%s1 + $0x64] sm:$0xf]
  %v101 = vld [vmem:[%s1 + $0x68] sm:$0xf]
  %v102 = vld [vmem:[%s1 + $0x6c] sm:$0xf]
  %v103 = vld [vmem:[%s1 + $0x70] sm:$0xf]
  %v104 = vld [vmem:[%s1 + $0x74] sm:$0xf]
  %v105 = vld [vmem:[%s1 + $0x78] sm:$0xf]
  %v106 = vld [vmem:[%s1 + $0x7c] sm:$0xf]
  %v107 = vld [vmem:[%s1 + $0x80] sm:$0xf]
  %v108 = vld [vmem:[%s1 + $0x84] sm:$0xf]
  %v109 = vld [vmem:[%s1 + $0x88] sm:$0xf]
  %v110 = vld [vmem:[%s1 + $0x8c] sm:$0xf]
  %v111 = vld [vmem:[%s1 + $0x90] sm:$0xf]
  %v112 = vld [vmem:[%s1 + $0x94] sm:$0xf]
  %v113 = vld [vmem:[%s1 + $0x98] sm:$0xf]
  %v114 = vld [vmem:[%s1 + $0x9c] sm:$0xf]
  %v115 = vld [vmem:[%s1 + $0xa0] sm:$0xf]
  %v116 = vld [vmem:[%s1 + $0xa4] sm:$0xf]
  %v117 = vld [vmem:[%s1 + $0xa8] sm:$0xf]
  %v118 = vld [vmem:[%s1 + $0xac] sm:$0xf]
  %v119 = vld [vmem:[%s1 + $0xb0] sm:$0xf]
  %v120 = vld [vmem:[%s1 + $0xb4] sm:$0xf]
  %v121 = vld [vmem:[%s1 + $0xb8] sm:$0xf]
  %v122 = vld [vmem:[%s1 + $0xbc] sm:$0xf]
  %v123 = vld [vmem:[%s1 + $0xc0] sm:$0xf]
  %v124 = vld [vmem:[%s1 + $0xc4] sm:$0xf]
  %v125 = vld [vmem:[%s1 + $0xc8] sm:$0xf]
  %v126 = vld [vmem:[%s1 + $0xcc] sm:$0xf]
  %v127 = vld [vmem:[%s1 + $0xd0] sm:$0xf]
  %v128 = vld [vmem:[%s1 + $0xd4] sm:$0xf]
  %v129 = vld [vmem:[%s1 + $0xd8] sm:$0xf]
  %v130 = vld [vmem:[%s1 + $0xdc] sm:$0xf]
  %v131 = vld [vmem:[%s1 + $0xe0] sm:$0xf]
  %v132 = vld [vmem:[%s1 + $0xe4] sm:$0xf]
  %v133 = vld [vmem:[%s1 + $0xe8] sm:$0xf]
  %v134 = vld [vmem:[%s1 + $0xec] sm:$0xf]
  %v135 = vld [vmem:[%s1 + $0xf0] sm:$0xf]
  %v136 = vld [vmem:[%s1 + $0xf4] sm:$0xf]
  %v137 = vld [vmem:[%s1 + $0xf8] sm:$0xf]
  %v138 = vld [vmem:[%s1 + $0xfc] sm:$0xf]
  %v139 = vld [vmem:[%s1 + $0x100] sm:$0xf]
  %v140 = vld [vmem:[%s1 + $0x104] sm:$0xf]
  %v141 = vld [vmem:[%s1 + $0x108] sm:$0xf]
  %v142 = vld [vmem:[%s1 + $0x10c] sm:$0xf]
  %v143 = vld [vmem:[%s1 + $0x110] sm:$0xf]
  %v144 = vld [vmem:[%s1 + $0x114] sm:$0xf]
  %v145 = vld [vmem:[%s1 + $0x118] sm:$0xf]
  %v146 = vld [vmem:[%s1 + $0x11c] sm:$0xf]
  %v195 = vunpack.c.l.b16 %v27
  %v196 = vunpack.c.h.b16 %v27
  %v197 = vunpack.c.l.b16 %v28
  %v198 = vunpack.c.h.b16 %v28
  %v199 = vunpack.c.l.b16 %v29
  %v200 = vunpack.c.l.b16 %v30
  %v201 = vunpack.c.h.b16 %v30
  %v202 = vunpack.c.l.b16 %v31
  %v203 = vunpack.c.h.b16 %v31
  %v204 = vunpack.c.l.b16 %v32
  %v205 = vunpack.c.l.b16 %v33
  %v206 = vunpack.c.h.b16 %v33
  %v207 = vunpack.c.l.b16 %v34
  %v208 = vunpack.c.h.b16 %v34
  %v209 = vunpack.c.l.b16 %v35
  %v210 = vunpack.c.l.b16 %v36
  %v211 = vunpack.c.h.b16 %v36
  %v212 = vunpack.c.l.b16 %v37
  %v213 = vunpack.c.h.b16 %v37
  %v214 = vunpack.c.l.b16 %v38
  %v215 = vunpack.c.l.b16 %v39
  %v216 = vunpack.c.h.b16 %v39
  %v217 = vunpack.c.l.b16 %v40
  %v218 = vunpack.c.h.b16 %v40
  %v219 = vunpack.c.l.b16 %v41
  %v220 = vunpack.c.l.b16 %v42
  %v221 = vunpack.c.h.b16 %v42
  %v222 = vunpack.c.l.b16 %v43
  %v223 = vunpack.c.h.b16 %v43
  %v224 = vunpack.c.l.b16 %v44
  %v225 = vunpack.c.l.b16 %v45
  %v226 = vunpack.c.h.b16 %v45
  %v227 = vunpack.c.l.b16 %v46
  %v228 = vunpack.c.h.b16 %v46
  %v229 = vunpack.c.l.b16 %v47
  %v230 = vunpack.c.l.b16 %v48
  %v231 = vunpack.c.h.b16 %v48
  %v232 = vunpack.c.l.b16 %v49
  %v233 = vunpack.c.h.b16 %v49
  %v234 = vunpack.c.l.b16 %v50
  %v235 = vunpack.c.l.b16 %v51
  %v236 = vunpack.c.h.b16 %v51
  %v237 = vunpack.c.l.b16 %v52
  %v238 = vunpack.c.h.b16 %v52
  %v239 = vunpack.c.l.b16 %v53
  %v240 = vunpack.c.l.b16 %v54
  %v241 = vunpack.c.h.b16 %v54
  %v242 = vunpack.c.l.b16 %v55
  %v243 = vunpack.c.h.b16 %v55
  %v244 = vunpack.c.l.b16 %v56
  %v245 = vunpack.c.l.b16 %v57
  %v246 = vunpack.c.h.b16 %v57
  %v247 = vunpack.c.l.b16 %v58
  %v248 = vunpack.c.h.b16 %v58
  %v249 = vunpack.c.l.b16 %v59
  %v250 = vunpack.c.l.b16 %v60
  %v251 = vunpack.c.h.b16 %v60
  %v252 = vunpack.c.l.b16 %v61
  %v253 = vunpack.c.h.b16 %v61
  %v254 = vunpack.c.l.b16 %v62
  %v255 = vunpack.c.l.b16 %v63
  %v256 = vunpack.c.h.b16 %v63
  %v257 = vunpack.c.l.b16 %v64
  %v258 = vunpack.c.h.b16 %v64
  %v259 = vunpack.c.l.b16 %v65
  %v260 = vunpack.c.l.b16 %v66
  %v261 = vunpack.c.h.b16 %v66
  %v262 = vunpack.c.l.b16 %v67
  %v263 = vunpack.c.h.b16 %v67
  %v264 = vunpack.c.l.b16 %v68
  %v265 = vunpack.c.l.b16 %v69
  %v266 = vunpack.c.h.b16 %v69
  %v267 = vunpack.c.l.b16 %v70
  %v268 = vunpack.c.h.b16 %v70
  %v269 = vunpack.c.l.b16 %v71
  %v270 = vunpack.c.l.b16 %v72
  %v271 = vunpack.c.h.b16 %v72
  %v272 = vunpack.c.l.b16 %v73
  %v273 = vunpack.c.h.b16 %v73
  %v274 = vunpack.c.l.b16 %v74
  %v275 = vpack.c.b16 %v200, %v195
  %v276 = vpack.c.b16 %v201, %v196
  %v277 = vpack.c.b16 %v202, %v197
  %v278 = vpack.c.b16 %v203, %v198
  %v279 = vpack.c.b16 %v204, %v199
  %v280 = vpack.c.b16 %v210, %v205
  %v281 = vpack.c.b16 %v211, %v206
  %v282 = vpack.c.b16 %v212, %v207
  %v283 = vpack.c.b16 %v213, %v208
  %v284 = vpack.c.b16 %v214, %v209
  %v285 = vpack.c.b16 %v220, %v215
  %v286 = vpack.c.b16 %v221, %v216
  %v287 = vpack.c.b16 %v222, %v217
  %v288 = vpack.c.b16 %v223, %v218
  %v289 = vpack.c.b16 %v224, %v219
  %v290 = vpack.c.b16 %v230, %v225
  %v291 = vpack.c.b16 %v231, %v226
  %v292 = vpack.c.b16 %v232, %v227
  %v293 = vpack.c.b16 %v233, %v228
  %v294 = vpack.c.b16 %v234, %v229
  %v295 = vpack.c.b16 %v240, %v235
  %v296 = vpack.c.b16 %v241, %v236
  %v297 = vpack.c.b16 %v242, %v237
  %v298 = vpack.c.b16 %v243, %v238
  %v299 = vpack.c.b16 %v244, %v239
  %v300 = vpack.c.b16 %v250, %v245
  %v301 = vpack.c.b16 %v251, %v246
  %v302 = vpack.c.b16 %v252, %v247
  %v303 = vpack.c.b16 %v253, %v248
  %v304 = vpack.c.b16 %v254, %v249
  %v305 = vpack.c.b16 %v260, %v255
  %v306 = vpack.c.b16 %v261, %v256
  %v307 = vpack.c.b16 %v262, %v257
  %v308 = vpack.c.b16 %v263, %v258
  %v309 = vpack.c.b16 %v264, %v259
  %v310 = vpack.c.b16 %v270, %v265
  %v311 = vpack.c.b16 %v271, %v266
  %v312 = vpack.c.b16 %v272, %v267
  %v313 = vpack.c.b16 %v273, %v268
  %v314 = vpack.c.b16 %v274, %v269
  %v419 = vunpack.c.l.b16 %v75
  %v420 = vunpack.c.l.b16 %v76
  %v421 = vunpack.c.l.b16 %v77
  %v422 = vunpack.c.l.b16 %v78
  %v423 = vunpack.c.l.b16 %v79
  %v424 = vunpack.c.l.b16 %v80
  %v425 = vunpack.c.l.b16 %v81
  %v426 = vunpack.c.l.b16 %v82
  %v427 = vunpack.c.l.b16 %v83
  %v428 = vunpack.c.l.b16 %v84
  %v429 = vunpack.c.l.b16 %v85
  %v430 = vunpack.c.l.b16 %v86
  %v431 = vunpack.c.l.b16 %v87
  %v432 = vunpack.c.l.b16 %v88
  %v433 = vunpack.c.l.b16 %v89
  %v434 = vunpack.c.l.b16 %v90
  %v435 = vunpack.c.l.b16 %v91
  %v436 = vunpack.c.l.b16 %v92
  %v437 = vunpack.c.l.b16 %v93
  %v438 = vunpack.c.l.b16 %v94
  %v439 = vunpack.c.l.b16 %v95
  %v440 = vunpack.c.l.b16 %v96
  %v441 = vunpack.c.l.b16 %v97
  %v442 = vunpack.c.l.b16 %v98
  %v443 = vunpack.c.l.b16 %v99
  %v444 = vunpack.c.l.b16 %v100
  %v445 = vunpack.c.l.b16 %v101
  %v446 = vunpack.c.l.b16 %v102
  %v447 = vunpack.c.l.b16 %v103
  %v448 = vunpack.c.l.b16 %v104
  %v449 = vunpack.c.l.b16 %v105
  %v450 = vunpack.c.l.b16 %v106
  %v451 = vunpack.c.l.b16 %v107
  %v452 = vunpack.c.l.b16 %v108
  %v453 = vunpack.c.l.b16 %v109
  %v454 = vunpack.c.l.b16 %v110
  %v455 = vunpack.c.l.b16 %v111
  %v456 = vunpack.c.l.b16 %v112
  %v457 = vunpack.c.l.b16 %v113
  %v458 = vunpack.c.l.b16 %v114
  %v459 = vunpack.c.l.b16 %v115
  %v460 = vunpack.c.l.b16 %v116
  %v461 = vunpack.c.l.b16 %v117
  %v462 = vunpack.c.l.b16 %v118
  %v463 = vunpack.c.l.b16 %v119
  %v464 = vunpack.c.l.b16 %v120
  %v465 = vunpack.c.l.b16 %v121
  %v466 = vunpack.c.l.b16 %v122
  %v467 = vunpack.c.l.b16 %v123
  %v468 = vunpack.c.l.b16 %v124
  %v469 = vunpack.c.l.b16 %v125
  %v470 = vunpack.c.l.b16 %v126
  %v471 = vunpack.c.l.b16 %v127
  %v472 = vunpack.c.l.b16 %v128
  %v473 = vunpack.c.l.b16 %v129
  %v474 = vunpack.c.l.b16 %v130
  %v475 = vunpack.c.l.b16 %v131
  %v476 = vunpack.c.l.b16 %v132
  %v477 = vunpack.c.l.b16 %v133
  %v478 = vunpack.c.l.b16 %v134
  %v479 = vunpack.c.l.b16 %v135
  %v480 = vunpack.c.l.b16 %v136
  %v481 = vunpack.c.l.b16 %v137
  %v482 = vunpack.c.l.b16 %v138
  %v483 = vunpack.c.l.b16 %v139
  %v484 = vunpack.c.l.b16 %v140
  %v485 = vunpack.c.l.b16 %v141
  %v486 = vunpack.c.l.b16 %v142
  %v487 = vunpack.c.l.b16 %v143
  %v488 = vunpack.c.l.b16 %v144
  %v489 = vunpack.c.l.b16 %v145
  %v490 = vunpack.c.l.b16 %v146
  %v491 = vpack.c.b16 %v420, %v419
  %v492 = vpack.c.b16 %v422, %v421
  %v493 = vpack.c.b16 %v424, %v423
  %v494 = vpack.c.b16 %v426, %v425
  %v495 = vpack.c.b16 %v428, %v427
  %v496 = vpack.c.b16 %v430, %v429
  %v497 = vpack.c.b16 %v432, %v431
  %v498 = vpack.c.b16 %v434, %v433
  %v499 = vpack.c.b16 %v436, %v435
  %v500 = vpack.c.b16 %v438, %v437
  %v501 = vpack.c.b16 %v440, %v439
  %v502 = vpack.c.b16 %v442, %v441
  %v503 = vpack.c.b16 %v444, %v443
  %v504 = vpack.c.b16 %v446, %v445
  %v505 = vpack.c.b16 %v448, %v447
  %v506 = vpack.c.b16 %v450, %v449
  %v507 = vpack.c.b16 %v452, %v451
  %v508 = vpack.c.b16 %v454, %v453
  %v509 = vpack.c.b16 %v456, %v455
  %v510 = vpack.c.b16 %v458, %v457
  %v511 = vpack.c.b16 %v460, %v459
  %v512 = vpack.c.b16 %v462, %v461
  %v513 = vpack.c.b16 %v464, %v463
  %v514 = vpack.c.b16 %v466, %v465
  %v515 = vpack.c.b16 %v468, %v467
  %v516 = vpack.c.b16 %v470, %v469
  %v517 = vpack.c.b16 %v472, %v471
  %v518 = vpack.c.b16 %v474, %v473
  %v519 = vpack.c.b16 %v476, %v475
  %v520 = vpack.c.b16 %v478, %v477
  %v521 = vpack.c.b16 %v480, %v479
  %v522 = vpack.c.b16 %v482, %v481
  %v523 = vpack.c.b16 %v484, %v483
  %v524 = vpack.c.b16 %v486, %v485
  %v525 = vpack.c.b16 %v488, %v487
  %v526 = vpack.c.b16 %v490, %v489
  %vm563 = vcmask 523264
  %v565 = vsel %vm563, %v279, 0
  %v568 = vsel %vm563, %v284, 0
  %v571 = vsel %vm563, %v289, 0
  %v574 = vsel %vm563, %v294, 0
  %v577 = vsel %vm563, %v299, 0
  %v580 = vsel %vm563, %v304, 0
  %v583 = vsel %vm563, %v309, 0
  %v586 = vsel %vm563, %v314, 0
  %588 = vmatprep.subr.bf16.mxu0 0
  %589 = vmatpush1.bf16.msra.mxu0 %v498
  %590 = vmatprep.subr.bf16.mxu0 0
  %591 = vmatpush1.bf16.msra.mxu0 %v497
  %592 = vmatprep.subr.bf16.mxu0 0
  %593 = vmatpush1.bf16.msra.mxu0 %v496
  %594 = vmatprep.subr.bf16.mxu0 0
  %595 = vmatpush1.bf16.msra.mxu0 %v495
  %596 = vmatprep.subr.bf16.mxu0 0
  %597 = vmatpush1.bf16.msra.mxu0 %v494
  %598 = vmatprep.subr.bf16.mxu0 0
  %599 = vmatpush1.bf16.msra.mxu0 %v493
  %600 = vmatprep.subr.bf16.mxu0 0
  %601 = vmatpush1.bf16.msra.mxu0 %v492
  %602 = vmatprep.subr.bf16.mxu0 0
  %603 = vmatpush1.bf16.msra.mxu0 %v491
  %604 = vmatprep.subr.bf16.mxu0 0
  %605 = vmatpush2.bf16.msra.mxu0 %v506
  %606 = vmatprep.subr.bf16.mxu0 0
  %607 = vmatpush2.bf16.msra.mxu0 %v505
  %608 = vmatprep.subr.bf16.mxu0 0
  %609 = vmatpush2.bf16.msra.mxu0 %v504
  %610 = vmatprep.subr.bf16.mxu0 0
  %611 = vmatpush2.bf16.msra.mxu0 %v503
  %612 = vmatprep.subr.bf16.mxu0 0
  %613 = vmatpush2.bf16.msra.mxu0 %v502
  %614 = vmatprep.subr.bf16.mxu0 0
  %615 = vmatpush2.bf16.msra.mxu0 %v501
  %616 = vmatprep.subr.bf16.mxu0 0
  %617 = vmatpush2.bf16.msra.mxu0 %v500
  %618 = vmatprep.subr.bf16.mxu0 0
  %619 = vmatpush2.bf16.msra.mxu0 %v499
  %620 = vmatprep.mubr.bf16.mxu0 %v276
  %621 = vmatmul.mubr.bf16.gmra.mxu0 %v275
  %v622 = vpop.f32.mrf.mxu0
  %v623 = vadd.f32 0.0, %v622
  %v624 = vpop.f32.mrf.mxu0
  %v625 = vpop.f32.mrf.mxu0
  %v626 = vadd.f32 0.0, %v625
  %v627 = vpop.f32.mrf.mxu0
  %628 = vmatprep.mubr.bf16.mxu0 %v281
  %629 = vmatmul.mubr.bf16.gmra.mxu0 %v280
  %v630 = vpop.f32.mrf.mxu0
  %v631 = vadd.f32 0.0, %v630
  %v632 = vpop.f32.mrf.mxu0
  %v633 = vpop.f32.mrf.mxu0
  %v634 = vadd.f32 0.0, %v633
  %v635 = vpop.f32.mrf.mxu0
  %636 = vmatprep.mubr.bf16.mxu0 %v286
  %637 = vmatmul.mubr.bf16.gmra.mxu0 %v285
  %v638 = vpop.f32.mrf.mxu0
  %v639 = vadd.f32 0.0, %v638
  %v640 = vpop.f32.mrf.mxu0
  %v641 = vpop.f32.mrf.mxu0
  %v642 = vadd.f32 0.0, %v641
  %v643 = vpop.f32.mrf.mxu0
  %644 = vmatprep.mubr.bf16.mxu0 %v291
  %645 = vmatmul.mubr.bf16.gmra.mxu0 %v290
  %v646 = vpop.f32.mrf.mxu0
  %v647 = vadd.f32 0.0, %v646
  %v648 = vpop.f32.mrf.mxu0
  %v649 = vpop.f32.mrf.mxu0
  %v650 = vadd.f32 0.0, %v649
  %v651 = vpop.f32.mrf.mxu0
  %652 = vmatprep.mubr.bf16.mxu0 %v296
  %653 = vmatmul.mubr.bf16.gmra.mxu0 %v295
  %v654 = vpop.f32.mrf.mxu0
  %v655 = vadd.f32 0.0, %v654
  %v656 = vpop.f32.mrf.mxu0
  %v657 = vpop.f32.mrf.mxu0
  %v658 = vadd.f32 0.0, %v657
  %v659 = vpop.f32.mrf.mxu0
  %660 = vmatprep.mubr.bf16.mxu0 %v301
  %661 = vmatmul.mubr.bf16.gmra.mxu0 %v300
  %v662 = vpop.f32.mrf.mxu0
  %v663 = vadd.f32 0.0, %v662
  %v664 = vpop.f32.mrf.mxu0
  %v665 = vpop.f32.mrf.mxu0
  %v666 = vadd.f32 0.0, %v665
  %v667 = vpop.f32.mrf.mxu0
  %668 = vmatprep.mubr.bf16.mxu0 %v306
  %669 = vmatmul.mubr.bf16.gmra.mxu0 %v305
  %v670 = vpop.f32.mrf.mxu0
  %v671 = vadd.f32 0.0, %v670
  %v672 = vpop.f32.mrf.mxu0
  %v673 = vpop.f32.mrf.mxu0
  %v674 = vadd.f32 0.0, %v673
  %v675 = vpop.f32.mrf.mxu0
  %676 = vmatprep.mubr.bf16.mxu0 %v311
  %677 = vmatmul.mubr.bf16.gmra.mxu0 %v310
  %v678 = vpop.f32.mrf.mxu0
  %v679 = vadd.f32 0.0, %v678
  %v680 = vpop.f32.mrf.mxu0
  %v681 = vpop.f32.mrf.mxu0
  %v682 = vadd.f32 0.0, %v681
  %v683 = vpop.f32.mrf.mxu0
  %684 = vdwg.mxu0
  %685 = vmatprep.subr.bf16.mxu0 0
  %686 = vmatpush1.bf16.msra.mxu0 %v514
  %687 = vmatprep.subr.bf16.mxu0 0
  %688 = vmatpush1.bf16.msra.mxu0 %v513
  %689 = vmatprep.subr.bf16.mxu0 0
  %690 = vmatpush1.bf16.msra.mxu0 %v512
  %691 = vmatprep.subr.bf16.mxu0 0
  %692 = vmatpush1.bf16.msra.mxu0 %v511
  %693 = vmatprep.subr.bf16.mxu0 0
  %694 = vmatpush1.bf16.msra.mxu0 %v510
  %695 = vmatprep.subr.bf16.mxu0 0
  %696 = vmatpush1.bf16.msra.mxu0 %v509
  %697 = vmatprep.subr.bf16.mxu0 0
  %698 = vmatpush1.bf16.msra.mxu0 %v508
  %699 = vmatprep.subr.bf16.mxu0 0
  %700 = vmatpush1.bf16.msra.mxu0 %v507
  %701 = vmatprep.subr.bf16.mxu0 0
  %702 = vmatpush2.bf16.msra.mxu0 %v522
  %703 = vmatprep.subr.bf16.mxu0 0
  %704 = vmatpush2.bf16.msra.mxu0 %v521
  %705 = vmatprep.subr.bf16.mxu0 0
  %706 = vmatpush2.bf16.msra.mxu0 %v520
  %707 = vmatprep.subr.bf16.mxu0 0
  %708 = vmatpush2.bf16.msra.mxu0 %v519
  %709 = vmatprep.subr.bf16.mxu0 0
  %710 = vmatpush2.bf16.msra.mxu0 %v518
  %711 = vmatprep.subr.bf16.mxu0 0
  %712 = vmatpush2.bf16.msra.mxu0 %v517
  %713 = vmatprep.subr.bf16.mxu0 0
  %714 = vmatpush2.bf16.msra.mxu0 %v516
  %715 = vmatprep.subr.bf16.mxu0 0
  %716 = vmatpush2.bf16.msra.mxu0 %v515
  %717 = vmatprep.mubr.bf16.mxu0 %v278
  %718 = vmatmul.mubr.bf16.gmra.mxu0 %v277
  %v719 = vpop.f32.mrf.mxu0
  %v720 = vadd.f32 %v623, %v719
  %v721 = vpop.f32.mrf.mxu0
  %v722 = vpop.f32.mrf.mxu0
  %v723 = vadd.f32 %v626, %v722
  %v724 = vpop.f32.mrf.mxu0
  %725 = vmatprep.mubr.bf16.mxu0 %v283
  %726 = vmatmul.mubr.bf16.gmra.mxu0 %v282
  %v727 = vpop.f32.mrf.mxu0
  %v728 = vadd.f32 %v631, %v727
  %v729 = vpop.f32.mrf.mxu0
  %v730 = vpop.f32.mrf.mxu0
  %v731 = vadd.f32 %v634, %v730
  %v732 = vpop.f32.mrf.mxu0
  %733 = vmatprep.mubr.bf16.mxu0 %v288
  %734 = vmatmul.mubr.bf16.gmra.mxu0 %v287
  %v735 = vpop.f32.mrf.mxu0
  %v736 = vadd.f32 %v639, %v735
  %v737 = vpop.f32.mrf.mxu0
  %v738 = vpop.f32.mrf.mxu0
  %v739 = vadd.f32 %v642, %v738
  %v740 = vpop.f32.mrf.mxu0
  %741 = vmatprep.mubr.bf16.mxu0 %v293
  %742 = vmatmul.mubr.bf16.gmra.mxu0 %v292
  %v743 = vpop.f32.mrf.mxu0
  %v744 = vadd.f32 %v647, %v743
  %v745 = vpop.f32.mrf.mxu0
  %v746 = vpop.f32.mrf.mxu0
  %v747 = vadd.f32 %v650, %v746
  %v748 = vpop.f32.mrf.mxu0
  %749 = vmatprep.mubr.bf16.mxu0 %v298
  %750 = vmatmul.mubr.bf16.gmra.mxu0 %v297
  %v751 = vpop.f32.mrf.mxu0
  %v752 = vadd.f32 %v655, %v751
  %v753 = vpop.f32.mrf.mxu0
  %v754 = vpop.f32.mrf.mxu0
  %v755 = vadd.f32 %v658, %v754
  %v756 = vpop.f32.mrf.mxu0
  %757 = vmatprep.mubr.bf16.mxu0 %v303
  %758 = vmatmul.mubr.bf16.gmra.mxu0 %v302
  %v759 = vpop.f32.mrf.mxu0
  %v760 = vadd.f32 %v663, %v759
  %v761 = vpop.f32.mrf.mxu0
  %v762 = vpop.f32.mrf.mxu0
  %v763 = vadd.f32 %v666, %v762
  %v764 = vpop.f32.mrf.mxu0
  %765 = vmatprep.mubr.bf16.mxu0 %v308
  %766 = vmatmul.mubr.bf16.gmra.mxu0 %v307
  %v767 = vpop.f32.mrf.mxu0
  %v768 = vadd.f32 %v671, %v767
  %v769 = vpop.f32.mrf.mxu0
  %v770 = vpop.f32.mrf.mxu0
  %v771 = vadd.f32 %v674, %v770
  %v772 = vpop.f32.mrf.mxu0
  %773 = vmatprep.mubr.bf16.mxu0 %v313
  %774 = vmatmul.mubr.bf16.gmra.mxu0 %v312
  %v775 = vpop.f32.mrf.mxu0
  %v776 = vadd.f32 %v679, %v775
  %v777 = vpop.f32.mrf.mxu0
  %v778 = vpop.f32.mrf.mxu0
  %v779 = vadd.f32 %v682, %v778
  %v780 = vpop.f32.mrf.mxu0
  %781 = vdwg.mxu0
  %782 = vmatprep.subr.bf16.mxu0 0
  %783 = vmatpush1.bf16.msra.mxu0 0
  %784 = vmatprep.subr.bf16.mxu0 0
  %785 = vmatpush1.bf16.msra.mxu0 0
  %786 = vmatprep.subr.bf16.mxu0 0
  %787 = vmatpush1.bf16.msra.mxu0 0
  %788 = vmatprep.subr.bf16.mxu0 0
  %789 = vmatpush1.bf16.msra.mxu0 0
  %790 = vmatprep.subr.bf16.mxu0 0
  %791 = vmatpush1.bf16.msra.mxu0 %v526
  %792 = vmatprep.subr.bf16.mxu0 0
  %793 = vmatpush1.bf16.msra.mxu0 %v525
  %794 = vmatprep.subr.bf16.mxu0 0
  %795 = vmatpush1.bf16.msra.mxu0 %v524
  %796 = vmatprep.subr.bf16.mxu0 0
  %797 = vmatpush1.bf16.msra.mxu0 %v523
  %798 = vmatprep.subr.bf16.mxu0 0
  %799 = vmatpush2.bf16.msra.mxu0 0
  %800 = vmatprep.subr.bf16.mxu0 0
  %801 = vmatpush2.bf16.msra.mxu0 0
  %802 = vmatprep.subr.bf16.mxu0 0
  %803 = vmatpush2.bf16.msra.mxu0 0
  %804 = vmatprep.subr.bf16.mxu0 0
  %805 = vmatpush2.bf16.msra.mxu0 0
  %806 = vmatprep.subr.bf16.mxu0 0
  %807 = vmatpush2.bf16.msra.mxu0 0
  %808 = vmatprep.subr.bf16.mxu0 0
  %809 = vmatpush2.bf16.msra.mxu0 0
  %810 = vmatprep.subr.bf16.mxu0 0
  %811 = vmatpush2.bf16.msra.mxu0 0
  %812 = vmatprep.subr.bf16.mxu0 0
  %813 = vmatpush2.bf16.msra.mxu0 0
  %814 = vmatprep.mubr.bf16.mxu0 0
  %815 = vmatmul.mubr.bf16.gmra.mxu0 %v565
  %v816 = vpop.f32.mrf.mxu0
  %v817 = vadd.f32 %v720, %v816
  %v818 = vpop.f32.mrf.mxu0
  %v819 = vpop.f32.mrf.mxu0
  %v820 = vadd.f32 %v723, %v819
  %v821 = vpop.f32.mrf.mxu0
  %822 = vmatprep.mubr.bf16.mxu0 0
  %823 = vmatmul.mubr.bf16.gmra.mxu0 %v568
  %v824 = vpop.f32.mrf.mxu0
  %v825 = vadd.f32 %v728, %v824
  %v826 = vpop.f32.mrf.mxu0
  %v827 = vpop.f32.mrf.mxu0
  %v828 = vadd.f32 %v731, %v827
  %v829 = vpop.f32.mrf.mxu0
  %830 = vmatprep.mubr.bf16.mxu0 0
  %831 = vmatmul.mubr.bf16.gmra.mxu0 %v571
  %v832 = vpop.f32.mrf.mxu0
  %v833 = vadd.f32 %v736, %v832
  %v834 = vpop.f32.mrf.mxu0
  %v835 = vpop.f32.mrf.mxu0
  %v836 = vadd.f32 %v739, %v835
  %v837 = vpop.f32.mrf.mxu0
  %838 = vmatprep.mubr.bf16.mxu0 0
  %839 = vmatmul.mubr.bf16.gmra.mxu0 %v574
  %v840 = vpop.f32.mrf.mxu0
  %v841 = vadd.f32 %v744, %v840
  %v842 = vpop.f32.mrf.mxu0
  %v843 = vpop.f32.mrf.mxu0
  %v844 = vadd.f32 %v747, %v843
  %v845 = vpop.f32.mrf.mxu0
  %846 = vmatprep.mubr.bf16.mxu0 0
  %847 = vmatmul.mubr.bf16.gmra.mxu0 %v577
  %v848 = vpop.f32.mrf.mxu0
  %v849 = vadd.f32 %v752, %v848
  %v850 = vpop.f32.mrf.mxu0
  %v851 = vpop.f32.mrf.mxu0
  %v852 = vadd.f32 %v755, %v851
  %v853 = vpop.f32.mrf.mxu0
  %854 = vmatprep.mubr.bf16.mxu0 0
  %855 = vmatmul.mubr.bf16.gmra.mxu0 %v580
  %v856 = vpop.f32.mrf.mxu0
  %v857 = vadd.f32 %v760, %v856
  %v858 = vpop.f32.mrf.mxu0
  %v859 = vpop.f32.mrf.mxu0
  %v860 = vadd.f32 %v763, %v859
  %v861 = vpop.f32.mrf.mxu0
  %862 = vmatprep.mubr.bf16.mxu0 0
  %863 = vmatmul.mubr.bf16.gmra.mxu0 %v583
  %v864 = vpop.f32.mrf.mxu0
  %v865 = vadd.f32 %v768, %v864
  %v866 = vpop.f32.mrf.mxu0
  %v867 = vpop.f32.mrf.mxu0
  %v868 = vadd.f32 %v771, %v867
  %v869 = vpop.f32.mrf.mxu0
  %870 = vmatprep.mubr.bf16.mxu0 0
  %871 = vmatmul.mubr.bf16.gmra.mxu0 %v586
  %v872 = vpop.f32.mrf.mxu0
  %v873 = vadd.f32 %v776, %v872
  %v874 = vpop.f32.mrf.mxu0
  %v875 = vpop.f32.mrf.mxu0
  %v876 = vadd.f32 %v779, %v875
  %v877 = vpop.f32.mrf.mxu0
  %878 = vdwg.mxu0
  %v879 = vld [vmem:[%s3] sm:$0x1]
  %v881 = vlaneseq
  %v882 = vshrl.u32 %v881, 7
  %v883 = vsub.s32 0, %v882
  %v884 = vrot.slane %v879, %v883
  %v886 = vmul.f32 %v817, %v884
  %v887 = vmul.f32 %v820, %v884
  %v888 = vmul.f32 %v825, %v884
  %v889 = vmul.f32 %v828, %v884
  %v890 = vmul.f32 %v833, %v884
  %v891 = vmul.f32 %v836, %v884
  %v892 = vmul.f32 %v841, %v884
  %v893 = vmul.f32 %v844, %v884
  %v894 = vmul.f32 %v849, %v884
  %v895 = vmul.f32 %v852, %v884
  %v896 = vmul.f32 %v857, %v884
  %v897 = vmul.f32 %v860, %v884
  %v898 = vmul.f32 %v865, %v884
  %v899 = vmul.f32 %v868, %v884
  %v900 = vmul.f32 %v873, %v884
  %v901 = vmul.f32 %v876, %v884
  %v902 = vld [vmem:[%s4] sm:$0x1]
  %v904 = vlaneseq
  %v905 = vshrl.u32 %v904, 7
  %v906 = vsub.s32 0, %v905
  %v907 = vrot.slane %v902, %v906
  %v909 = vadd.f32 %v886, %v907
  %v910 = vadd.f32 %v887, %v907
  %v911 = vadd.f32 %v888, %v907
  %v912 = vadd.f32 %v889, %v907
  %v913 = vadd.f32 %v890, %v907
  %v914 = vadd.f32 %v891, %v907
  %v915 = vadd.f32 %v892, %v907
  %v916 = vadd.f32 %v893, %v907
  %v917 = vadd.f32 %v894, %v907
  %v918 = vadd.f32 %v895, %v907
  %v919 = vadd.f32 %v896, %v907
  %v920 = vadd.f32 %v897, %v907
  %v921 = vadd.f32 %v898, %v907
  %v922 = vadd.f32 %v899, %v907
  %v923 = vadd.f32 %v900, %v907
  %v924 = vadd.f32 %v901, %v907
  %v925 = vmax.f32 %v909, 0.0
  %v926 = vmax.f32 %v910, 0.0
  %v927 = vmax.f32 %v911, 0.0
  %v928 = vmax.f32 %v912, 0.0
  %v929 = vmax.f32 %v913, 0.0
  %v930 = vmax.f32 %v914, 0.0
  %v931 = vmax.f32 %v915, 0.0
  %v932 = vmax.f32 %v916, 0.0
  %v933 = vmax.f32 %v917, 0.0
  %v934 = vmax.f32 %v918, 0.0
  %v935 = vmax.f32 %v919, 0.0
  %v936 = vmax.f32 %v920, 0.0
  %v937 = vmax.f32 %v921, 0.0
  %v938 = vmax.f32 %v922, 0.0
  %v939 = vmax.f32 %v923, 0.0
  %v940 = vmax.f32 %v924, 0.0
  %v941 = vlaneseq
  %v942 = vshrl.u32 %v941, 7
  %v943 = vadd.s32 %v942, 8
  %v944 = vadd.s32 %v942, 16
  %v945 = vadd.s32 %v942, 24
  %v946 = vadd.s32 %v942, 32
  %v947 = vadd.s32 %v942, 40
  %v948 = vadd.s32 %v942, 48
  %v949 = vadd.s32 %v942, 56
  %v950 = vadd.s32 %v942, 64
  %v951 = vadd.s32 %v942, 72
  %v952 = vadd.s32 %v942, 80
  %v953 = vadd.s32 %v942, 88
  %v954 = vadd.s32 %v942, 96
  %v955 = vadd.s32 %v942, 104
  %v956 = vadd.s32 %v942, 112
  %v957 = vadd.s32 %v942, 120
  %v958 = vand.u32 %v942, 63
  %v959 = vand.u32 %v943, 63
  %v960 = vand.u32 %v944, 63
  %v961 = vand.u32 %v945, 63
  %v962 = vand.u32 %v946, 63
  %v963 = vand.u32 %v947, 63
  %v964 = vand.u32 %v948, 63
  %v965 = vand.u32 %v949, 63
  %v966 = vand.u32 %v950, 63
  %v967 = vand.u32 %v951, 63
  %v968 = vand.u32 %v952, 63
  %v969 = vand.u32 %v953, 63
  %v970 = vand.u32 %v954, 63
  %v971 = vand.u32 %v955, 63
  %v972 = vand.u32 %v956, 63
  %v973 = vand.u32 %v957, 63
  %v974 = vand.u32 %v958, 7
  %v975 = vand.u32 %v959, 7
  %v976 = vand.u32 %v960, 7
  %v977 = vand.u32 %v961, 7
  %v978 = vand.u32 %v962, 7
  %v979 = vand.u32 %v963, 7
  %v980 = vand.u32 %v964, 7
  %v981 = vand.u32 %v965, 7
  %v982 = vand.u32 %v966, 7
  %v983 = vand.u32 %v967, 7
  %v984 = vand.u32 %v968, 7
  %v985 = vand.u32 %v969, 7
  %v986 = vand.u32 %v970, 7
  %v987 = vand.u32 %v971, 7
  %v988 = vand.u32 %v972, 7
  %v989 = vand.u32 %v973, 7
  %vm990 = vcmp.ge.s32.totalorder %v958, 8
  %vm991 = vcmp.ge.s32.totalorder %v959, 8
  %vm992 = vcmp.ge.s32.totalorder %v960, 8
  %vm993 = vcmp.ge.s32.totalorder %v961, 8
  %vm994 = vcmp.ge.s32.totalorder %v962, 8
  %vm995 = vcmp.ge.s32.totalorder %v963, 8
  %vm996 = vcmp.ge.s32.totalorder %v964, 8
  %vm997 = vcmp.ge.s32.totalorder %v965, 8
  %vm998 = vcmp.ge.s32.totalorder %v966, 8
  %vm999 = vcmp.ge.s32.totalorder %v967, 8
  %vm1000 = vcmp.ge.s32.totalorder %v968, 8
  %vm1001 = vcmp.ge.s32.totalorder %v969, 8
  %vm1002 = vcmp.ge.s32.totalorder %v970, 8
  %vm1003 = vcmp.ge.s32.totalorder %v971, 8
  %vm1004 = vcmp.ge.s32.totalorder %v972, 8
  %vm1005 = vcmp.ge.s32.totalorder %v973, 8
  %vm1006 = vcmp.ge.s32.totalorder %v974, 1
  %vm1007 = vcmp.ge.s32.totalorder %v975, 1
  %vm1008 = vcmp.ge.s32.totalorder %v976, 1
  %vm1009 = vcmp.ge.s32.totalorder %v977, 1
  %vm1010 = vcmp.ge.s32.totalorder %v978, 1
  %vm1011 = vcmp.ge.s32.totalorder %v979, 1
  %vm1012 = vcmp.ge.s32.totalorder %v980, 1
  %vm1013 = vcmp.ge.s32.totalorder %v981, 1
  %vm1014 = vcmp.ge.s32.totalorder %v982, 1
  %vm1015 = vcmp.ge.s32.totalorder %v983, 1
  %vm1016 = vcmp.ge.s32.totalorder %v984, 1
  %vm1017 = vcmp.ge.s32.totalorder %v985, 1
  %vm1018 = vcmp.ge.s32.totalorder %v986, 1
  %vm1019 = vcmp.ge.s32.totalorder %v987, 1
  %vm1020 = vcmp.ge.s32.totalorder %v988, 1
  %vm1021 = vcmp.ge.s32.totalorder %v989, 1
  %vm1022 = vmand %vm990, %vm1006
  %vm1023 = vmand %vm991, %vm1007
  %vm1024 = vmand %vm992, %vm1008
  %vm1025 = vmand %vm993, %vm1009
  %vm1026 = vmand %vm994, %vm1010
  %vm1027 = vmand %vm995, %vm1011
  %vm1028 = vmand %vm996, %vm1012
  %vm1029 = vmand %vm997, %vm1013
  %vm1030 = vmand %vm998, %vm1014
  %vm1031 = vmand %vm999, %vm1015
  %vm1032 = vmand %vm1000, %vm1016
  %vm1033 = vmand %vm1001, %vm1017
  %vm1034 = vmand %vm1002, %vm1018
  %vm1035 = vmand %vm1003, %vm1019
  %vm1036 = vmand %vm1004, %vm1020
  %vm1037 = vmand %vm1005, %vm1021
  %vm1054 = vcmask 1040384
  %v1055 = vrot.slane 0.0, 7
  %v1056 = vsel %vm1054, %v1055, %v1055
  %v1057 = vrot.slane %v925, 7
  %v1058 = vsel %vm1054, %v1055, %v1057
  %v1059 = vrot.slane %v926, 7
  %v1060 = vsel %vm1054, %v1057, %v1059
  %v1061 = vrot.slane %v927, 7
  %v1062 = vsel %vm1054, %v1059, %v1061
  %v1063 = vrot.slane %v928, 7
  %v1064 = vsel %vm1054, %v1061, %v1063
  %v1065 = vrot.slane %v929, 7
  %v1066 = vsel %vm1054, %v1063, %v1065
  %v1067 = vrot.slane %v930, 7
  %v1068 = vsel %vm1054, %v1065, %v1067
  %v1069 = vrot.slane %v931, 7
  %v1070 = vsel %vm1054, %v1067, %v1069
  %v1071 = vrot.slane %v932, 7
  %v1072 = vsel %vm1054, %v1069, %v1071
  %v1073 = vrot.slane %v933, 7
  %v1074 = vsel %vm1054, %v1071, %v1073
  %v1075 = vrot.slane %v934, 7
  %v1076 = vsel %vm1054, %v1073, %v1075
  %v1077 = vrot.slane %v935, 7
  %v1078 = vsel %vm1054, %v1075, %v1077
  %v1079 = vrot.slane %v936, 7
  %v1080 = vsel %vm1054, %v1077, %v1079
  %v1081 = vrot.slane %v937, 7
  %v1082 = vsel %vm1054, %v1079, %v1081
  %v1083 = vrot.slane %v938, 7
  %v1084 = vsel %vm1054, %v1081, %v1083
  %v1085 = vrot.slane %v939, 7
  %v1086 = vsel %vm1054, %v1083, %v1085
  %v1103 = vsel %vm1022, %v1056, 0.0
  %v1104 = vsel %vm1023, %v1058, 0.0
  %v1105 = vsel %vm1024, %v1060, 0.0
  %v1106 = vsel %vm1025, %v1062, 0.0
  %v1107 = vsel %vm1026, %v1064, 0.0
  %v1108 = vsel %vm1027, %v1066, 0.0
  %v1109 = vsel %vm1028, %v1068, 0.0
  %v1110 = vsel %vm1029, %v1070, 0.0
  %v1111 = vsel %vm1030, %v1072, 0.0
  %v1112 = vsel %vm1031, %v1074, 0.0
  %v1113 = vsel %vm1032, %v1076, 0.0
  %v1114 = vsel %vm1033, %v1078, 0.0
  %v1115 = vsel %vm1034, %v1080, 0.0
  %v1116 = vsel %vm1035, %v1082, 0.0
  %v1117 = vsel %vm1036, %v1084, 0.0
  %v1118 = vsel %vm1037, %v1086, 0.0
  %v1119 = vpack.c.bf16 %v1104, %v1103
  %v1120 = vpack.c.bf16 %v1106, %v1105
  %v1121 = vpack.c.bf16 %v1108, %v1107
  %v1122 = vpack.c.bf16 %v1110, %v1109
  %v1123 = vpack.c.bf16 %v1112, %v1111
  %v1124 = vpack.c.bf16 %v1114, %v1113
  %v1125 = vpack.c.bf16 %v1116, %v1115
  %v1126 = vpack.c.bf16 %v1118, %v1117
  %v1127 = vld [vmem:[%s2] sm:$0xf]
  %v1128 = vld [vmem:[%s2 + $0x4] sm:$0xf]
  %v1129 = vld [vmem:[%s2 + $0x8] sm:$0xf]
  %v1130 = vld [vmem:[%s2 + $0xc] sm:$0xf]
  %v1131 = vld [vmem:[%s2 + $0x10] sm:$0xf]
  %v1132 = vld [vmem:[%s2 + $0x14] sm:$0xf]
  %v1133 = vld [vmem:[%s2 + $0x18] sm:$0xf]
  %v1134 = vld [vmem:[%s2 + $0x1c] sm:$0xf]
  %v1135 = vld [vmem:[%s2 + $0x20] sm:$0xf]
  %v1136 = vld [vmem:[%s2 + $0x24] sm:$0xf]
  %v1137 = vld [vmem:[%s2 + $0x28] sm:$0xf]
  %v1138 = vld [vmem:[%s2 + $0x2c] sm:$0xf]
  %v1139 = vld [vmem:[%s2 + $0x30] sm:$0xf]
  %v1140 = vld [vmem:[%s2 + $0x34] sm:$0xf]
  %v1141 = vld [vmem:[%s2 + $0x38] sm:$0xf]
  %v1142 = vld [vmem:[%s2 + $0x3c] sm:$0xf]
  %v1143 = vsel %vm991, %v925, 0.0
  %v1144 = vsel %vm992, %v926, 0.0
  %v1145 = vsel %vm993, %v927, 0.0
  %v1146 = vsel %vm994, %v928, 0.0
  %v1147 = vsel %vm995, %v929, 0.0
  %v1148 = vsel %vm996, %v930, 0.0
  %v1149 = vsel %vm997, %v931, 0.0
  %v1150 = vsel %vm998, %v932, 0.0
  %v1151 = vsel %vm999, %v933, 0.0
  %v1152 = vsel %vm1000, %v934, 0.0
  %v1153 = vsel %vm1001, %v935, 0.0
  %v1154 = vsel %vm1002, %v936, 0.0
  %v1155 = vsel %vm1003, %v937, 0.0
  %v1156 = vsel %vm1004, %v938, 0.0
  %v1157 = vsel %vm1005, %v939, 0.0
  %v1158 = vpack.c.bf16 %v1143, 0.0
  %v1159 = vpack.c.bf16 %v1145, %v1144
  %v1160 = vpack.c.bf16 %v1147, %v1146
  %v1161 = vpack.c.bf16 %v1149, %v1148
  %v1162 = vpack.c.bf16 %v1151, %v1150
  %v1163 = vpack.c.bf16 %v1153, %v1152
  %v1164 = vpack.c.bf16 %v1155, %v1154
  %v1165 = vpack.c.bf16 %v1157, %v1156
  %s1166 = scalar_lea.vmem %s2, 64
  %v1167 = vld [vmem:[%s1166] sm:$0xf]
  %v1168 = vld [vmem:[%s1166 + $0x4] sm:$0xf]
  %v1169 = vld [vmem:[%s1166 + $0x8] sm:$0xf]
  %v1170 = vld [vmem:[%s1166 + $0xc] sm:$0xf]
  %v1171 = vld [vmem:[%s1166 + $0x10] sm:$0xf]
  %v1172 = vld [vmem:[%s1166 + $0x14] sm:$0xf]
  %v1173 = vld [vmem:[%s1166 + $0x18] sm:$0xf]
  %v1174 = vld [vmem:[%s1166 + $0x1c] sm:$0xf]
  %v1175 = vld [vmem:[%s1166 + $0x20] sm:$0xf]
  %v1176 = vld [vmem:[%s1166 + $0x24] sm:$0xf]
  %v1177 = vld [vmem:[%s1166 + $0x28] sm:$0xf]
  %v1178 = vld [vmem:[%s1166 + $0x2c] sm:$0xf]
  %v1179 = vld [vmem:[%s1166 + $0x30] sm:$0xf]
  %v1180 = vld [vmem:[%s1166 + $0x34] sm:$0xf]
  %v1181 = vld [vmem:[%s1166 + $0x38] sm:$0xf]
  %v1182 = vld [vmem:[%s1166 + $0x3c] sm:$0xf]
  %v1199 = vunpack.c.l.b16 %v1167
  %v1200 = vunpack.c.l.b16 %v1168
  %v1201 = vunpack.c.l.b16 %v1169
  %v1202 = vunpack.c.l.b16 %v1170
  %v1203 = vunpack.c.l.b16 %v1171
  %v1204 = vunpack.c.l.b16 %v1172
  %v1205 = vunpack.c.l.b16 %v1173
  %v1206 = vunpack.c.l.b16 %v1174
  %v1207 = vunpack.c.l.b16 %v1175
  %v1208 = vunpack.c.l.b16 %v1176
  %v1209 = vunpack.c.l.b16 %v1177
  %v1210 = vunpack.c.l.b16 %v1178
  %v1211 = vunpack.c.l.b16 %v1179
  %v1212 = vunpack.c.l.b16 %v1180
  %v1213 = vunpack.c.l.b16 %v1181
  %v1214 = vunpack.c.l.b16 %v1182
  %v1215 = vpack.c.b16 %v1200, %v1199
  %v1216 = vpack.c.b16 %v1202, %v1201
  %v1217 = vpack.c.b16 %v1204, %v1203
  %v1218 = vpack.c.b16 %v1206, %v1205
  %v1219 = vpack.c.b16 %v1208, %v1207
  %v1220 = vpack.c.b16 %v1210, %v1209
  %v1221 = vpack.c.b16 %v1212, %v1211
  %v1222 = vpack.c.b16 %v1214, %v1213
  %1231 = vmatprep.subr.bf16.mxu0 0
  %1232 = vmatpush1.bf16.msra.mxu0 %v1222
  %1233 = vmatprep.subr.bf16.mxu0 0
  %1234 = vmatpush1.bf16.msra.mxu0 %v1221
  %1235 = vmatprep.subr.bf16.mxu0 0
  %1236 = vmatpush1.bf16.msra.mxu0 %v1220
  %1237 = vmatprep.subr.bf16.mxu0 0
  %1238 = vmatpush1.bf16.msra.mxu0 %v1219
  %1239 = vmatprep.subr.bf16.mxu0 0
  %1240 = vmatpush1.bf16.msra.mxu0 %v1218
  %1241 = vmatprep.subr.bf16.mxu0 0
  %1242 = vmatpush1.bf16.msra.mxu0 %v1217
  %1243 = vmatprep.subr.bf16.mxu0 0
  %1244 = vmatpush1.bf16.msra.mxu0 %v1216
  %1245 = vmatprep.subr.bf16.mxu0 0
  %1246 = vmatpush1.bf16.msra.mxu0 %v1215
  %1247 = vmatprep.subr.bf16.mxu0 0
  %1248 = vmatpush2.bf16.msra.mxu0 0
  %1249 = vmatprep.subr.bf16.mxu0 0
  %1250 = vmatpush2.bf16.msra.mxu0 0
  %1251 = vmatprep.subr.bf16.mxu0 0
  %1252 = vmatpush2.bf16.msra.mxu0 0
  %1253 = vmatprep.subr.bf16.mxu0 0
  %1254 = vmatpush2.bf16.msra.mxu0 0
  %1255 = vmatprep.subr.bf16.mxu0 0
  %1256 = vmatpush2.bf16.msra.mxu0 0
  %1257 = vmatprep.subr.bf16.mxu0 0
  %1258 = vmatpush2.bf16.msra.mxu0 0
  %1259 = vmatprep.subr.bf16.mxu0 0
  %1260 = vmatpush2.bf16.msra.mxu0 0
  %1261 = vmatprep.subr.bf16.mxu0 0
  %1262 = vmatpush2.bf16.msra.mxu0 0
  %1263 = vmatprep.mubr.bf16.mxu0 0
  %1264 = vmatmul.mubr.bf16.gmra.mxu0 %v1158
  %v1265 = vpop.f32.mrf.mxu0
  %v1266 = vadd.f32 0.0, %v1265
  %v1267 = vpop.f32.mrf.mxu0
  %v1268 = vpop.f32.mrf.mxu0
  %v1269 = vadd.f32 0.0, %v1268
  %v1270 = vpop.f32.mrf.mxu0
  %1271 = vmatprep.mubr.bf16.mxu0 0
  %1272 = vmatmul.mubr.bf16.gmra.mxu0 %v1159
  %v1273 = vpop.f32.mrf.mxu0
  %v1274 = vadd.f32 0.0, %v1273
  %v1275 = vpop.f32.mrf.mxu0
  %v1276 = vpop.f32.mrf.mxu0
  %v1277 = vadd.f32 0.0, %v1276
  %v1278 = vpop.f32.mrf.mxu0
  %1279 = vmatprep.mubr.bf16.mxu0 0
  %1280 = vmatmul.mubr.bf16.gmra.mxu0 %v1160
  %v1281 = vpop.f32.mrf.mxu0
  %v1282 = vadd.f32 0.0, %v1281
  %v1283 = vpop.f32.mrf.mxu0
  %v1284 = vpop.f32.mrf.mxu0
  %v1285 = vadd.f32 0.0, %v1284
  %v1286 = vpop.f32.mrf.mxu0
  %1287 = vmatprep.mubr.bf16.mxu0 0
  %1288 = vmatmul.mubr.bf16.gmra.mxu0 %v1161
  %v1289 = vpop.f32.mrf.mxu0
  %v1290 = vadd.f32 0.0, %v1289
  %v1291 = vpop.f32.mrf.mxu0
  %v1292 = vpop.f32.mrf.mxu0
  %v1293 = vadd.f32 0.0, %v1292
  %v1294 = vpop.f32.mrf.mxu0
  %1295 = vmatprep.mubr.bf16.mxu0 0
  %1296 = vmatmul.mubr.bf16.gmra.mxu0 %v1162
  %v1297 = vpop.f32.mrf.mxu0
  %v1298 = vadd.f32 0.0, %v1297
  %v1299 = vpop.f32.mrf.mxu0
  %v1300 = vpop.f32.mrf.mxu0
  %v1301 = vadd.f32 0.0, %v1300
  %v1302 = vpop.f32.mrf.mxu0
  %1303 = vmatprep.mubr.bf16.mxu0 0
  %1304 = vmatmul.mubr.bf16.gmra.mxu0 %v1163
  %v1305 = vpop.f32.mrf.mxu0
  %v1306 = vadd.f32 0.0, %v1305
  %v1307 = vpop.f32.mrf.mxu0
  %v1308 = vpop.f32.mrf.mxu0
  %v1309 = vadd.f32 0.0, %v1308
  %v1310 = vpop.f32.mrf.mxu0
  %1311 = vmatprep.mubr.bf16.mxu0 0
  %1312 = vmatmul.mubr.bf16.gmra.mxu0 %v1164
  %v1313 = vpop.f32.mrf.mxu0
  %v1314 = vadd.f32 0.0, %v1313
  %v1315 = vpop.f32.mrf.mxu0
  %v1316 = vpop.f32.mrf.mxu0
  %v1317 = vadd.f32 0.0, %v1316
  %v1318 = vpop.f32.mrf.mxu0
  %1319 = vmatprep.mubr.bf16.mxu0 0
  %1320 = vmatmul.mubr.bf16.gmra.mxu0 %v1165
  %v1321 = vpop.f32.mrf.mxu0
  %v1322 = vadd.f32 0.0, %v1321
  %v1323 = vpop.f32.mrf.mxu0
  %v1324 = vpop.f32.mrf.mxu0
  %v1325 = vadd.f32 0.0, %v1324
  %v1326 = vpop.f32.mrf.mxu0
  %1327 = vdwg.mxu0
  %v1344 = vunpack.c.l.b16 %v1127
  %v1345 = vunpack.c.l.b16 %v1128
  %v1346 = vunpack.c.l.b16 %v1129
  %v1347 = vunpack.c.l.b16 %v1130
  %v1348 = vunpack.c.l.b16 %v1131
  %v1349 = vunpack.c.l.b16 %v1132
  %v1350 = vunpack.c.l.b16 %v1133
  %v1351 = vunpack.c.l.b16 %v1134
  %v1352 = vunpack.c.l.b16 %v1135
  %v1353 = vunpack.c.l.b16 %v1136
  %v1354 = vunpack.c.l.b16 %v1137
  %v1355 = vunpack.c.l.b16 %v1138
  %v1356 = vunpack.c.l.b16 %v1139
  %v1357 = vunpack.c.l.b16 %v1140
  %v1358 = vunpack.c.l.b16 %v1141
  %v1359 = vunpack.c.l.b16 %v1142
  %v1360 = vpack.c.b16 %v1345, %v1344
  %v1361 = vpack.c.b16 %v1347, %v1346
  %v1362 = vpack.c.b16 %v1349, %v1348
  %v1363 = vpack.c.b16 %v1351, %v1350
  %v1364 = vpack.c.b16 %v1353, %v1352
  %v1365 = vpack.c.b16 %v1355, %v1354
  %v1366 = vpack.c.b16 %v1357, %v1356
  %v1367 = vpack.c.b16 %v1359, %v1358
  %1376 = vmatprep.subr.bf16.mxu0 0
  %1377 = vmatpush1.bf16.msra.mxu0 %v1367
  %1378 = vmatprep.subr.bf16.mxu0 0
  %1379 = vmatpush1.bf16.msra.mxu0 %v1366
  %1380 = vmatprep.subr.bf16.mxu0 0
  %1381 = vmatpush1.bf16.msra.mxu0 %v1365
  %1382 = vmatprep.subr.bf16.mxu0 0
  %1383 = vmatpush1.bf16.msra.mxu0 %v1364
  %1384 = vmatprep.subr.bf16.mxu0 0
  %1385 = vmatpush1.bf16.msra.mxu0 %v1363
  %1386 = vmatprep.subr.bf16.mxu0 0
  %1387 = vmatpush1.bf16.msra.mxu0 %v1362
  %1388 = vmatprep.subr.bf16.mxu0 0
  %1389 = vmatpush1.bf16.msra.mxu0 %v1361
  %1390 = vmatprep.subr.bf16.mxu0 0
  %1391 = vmatpush1.bf16.msra.mxu0 %v1360
  %1392 = vmatprep.subr.bf16.mxu0 0
  %1393 = vmatpush2.bf16.msra.mxu0 0
  %1394 = vmatprep.subr.bf16.mxu0 0
  %1395 = vmatpush2.bf16.msra.mxu0 0
  %1396 = vmatprep.subr.bf16.mxu0 0
  %1397 = vmatpush2.bf16.msra.mxu0 0
  %1398 = vmatprep.subr.bf16.mxu0 0
  %1399 = vmatpush2.bf16.msra.mxu0 0
  %1400 = vmatprep.subr.bf16.mxu0 0
  %1401 = vmatpush2.bf16.msra.mxu0 0
  %1402 = vmatprep.subr.bf16.mxu0 0
  %1403 = vmatpush2.bf16.msra.mxu0 0
  %1404 = vmatprep.subr.bf16.mxu0 0
  %1405 = vmatpush2.bf16.msra.mxu0 0
  %1406 = vmatprep.subr.bf16.mxu0 0
  %1407 = vmatpush2.bf16.msra.mxu0 0
  %1408 = vmatprep.mubr.bf16.mxu0 0
  %1409 = vmatmul.mubr.bf16.gmra.mxu0 %v1119
  %v1410 = vpop.f32.mrf.mxu0
  %v1411 = vadd.f32 %v1266, %v1410
  %v1412 = vpop.f32.mrf.mxu0
  %v1413 = vpop.f32.mrf.mxu0
  %v1414 = vadd.f32 %v1269, %v1413
  %v1415 = vpop.f32.mrf.mxu0
  %1416 = vmatprep.mubr.bf16.mxu0 0
  %1417 = vmatmul.mubr.bf16.gmra.mxu0 %v1120
  %v1418 = vpop.f32.mrf.mxu0
  %v1419 = vadd.f32 %v1274, %v1418
  %v1420 = vpop.f32.mrf.mxu0
  %v1421 = vpop.f32.mrf.mxu0
  %v1422 = vadd.f32 %v1277, %v1421
  %v1423 = vpop.f32.mrf.mxu0
  %1424 = vmatprep.mubr.bf16.mxu0 0
  %1425 = vmatmul.mubr.bf16.gmra.mxu0 %v1121
  %v1426 = vpop.f32.mrf.mxu0
  %v1427 = vadd.f32 %v1282, %v1426
  %v1428 = vpop.f32.mrf.mxu0
  %v1429 = vpop.f32.mrf.mxu0
  %v1430 = vadd.f32 %v1285, %v1429
  %v1431 = vpop.f32.mrf.mxu0
  %1432 = vmatprep.mubr.bf16.mxu0 0
  %1433 = vmatmul.mubr.bf16.gmra.mxu0 %v1122
  %v1434 = vpop.f32.mrf.mxu0
  %v1435 = vadd.f32 %v1290, %v1434
  %v1436 = vpop.f32.mrf.mxu0
  %v1437 = vpop.f32.mrf.mxu0
  %v1438 = vadd.f32 %v1293, %v1437
  %v1439 = vpop.f32.mrf.mxu0
  %1440 = vmatprep.mubr.bf16.mxu0 0
  %1441 = vmatmul.mubr.bf16.gmra.mxu0 %v1123
  %v1442 = vpop.f32.mrf.mxu0
  %v1443 = vadd.f32 %v1298, %v1442
  %v1444 = vpop.f32.mrf.mxu0
  %v1445 = vpop.f32.mrf.mxu0
  %v1446 = vadd.f32 %v1301, %v1445
  %v1447 = vpop.f32.mrf.mxu0
  %1448 = vmatprep.mubr.bf16.mxu0 0
  %1449 = vmatmul.mubr.bf16.gmra.mxu0 %v1124
  %v1450 = vpop.f32.mrf.mxu0
  %v1451 = vadd.f32 %v1306, %v1450
  %v1452 = vpop.f32.mrf.mxu0
  %v1453 = vpop.f32.mrf.mxu0
  %v1454 = vadd.f32 %v1309, %v1453
  %v1455 = vpop.f32.mrf.mxu0
  %1456 = vmatprep.mubr.bf16.mxu0 0
  %1457 = vmatmul.mubr.bf16.gmra.mxu0 %v1125
  %v1458 = vpop.f32.mrf.mxu0
  %v1459 = vadd.f32 %v1314, %v1458
  %v1460 = vpop.f32.mrf.mxu0
  %v1461 = vpop.f32.mrf.mxu0
  %v1462 = vadd.f32 %v1317, %v1461
  %v1463 = vpop.f32.mrf.mxu0
  %1464 = vmatprep.mubr.bf16.mxu0 0
  %1465 = vmatmul.mubr.bf16.gmra.mxu0 %v1126
  %v1466 = vpop.f32.mrf.mxu0
  %v1467 = vadd.f32 %v1322, %v1466
  %v1468 = vpop.f32.mrf.mxu0
  %v1469 = vpop.f32.mrf.mxu0
  %v1470 = vadd.f32 %v1325, %v1469
  %v1471 = vpop.f32.mrf.mxu0
  %1472 = vdwg.mxu0
  %vm1473 = vcmp.lt.s32.totalorder %v974, 7
  %vm1474 = vcmp.lt.s32.totalorder %v975, 7
  %vm1475 = vcmp.lt.s32.totalorder %v976, 7
  %vm1476 = vcmp.lt.s32.totalorder %v977, 7
  %vm1477 = vcmp.lt.s32.totalorder %v978, 7
  %vm1478 = vcmp.lt.s32.totalorder %v979, 7
  %vm1479 = vcmp.lt.s32.totalorder %v980, 7
  %vm1480 = vcmp.lt.s32.totalorder %v981, 7
  %vm1481 = vcmp.lt.s32.totalorder %v982, 7
  %vm1482 = vcmp.lt.s32.totalorder %v983, 7
  %vm1483 = vcmp.lt.s32.totalorder %v984, 7
  %vm1484 = vcmp.lt.s32.totalorder %v985, 7
  %vm1485 = vcmp.lt.s32.totalorder %v986, 7
  %vm1486 = vcmp.lt.s32.totalorder %v987, 7
  %vm1487 = vcmp.lt.s32.totalorder %v988, 7
  %vm1488 = vcmp.lt.s32.totalorder %v989, 7
  %vm1489 = vmand %vm990, %vm1473
  %vm1490 = vmand %vm991, %vm1474
  %vm1491 = vmand %vm992, %vm1475
  %vm1492 = vmand %vm993, %vm1476
  %vm1493 = vmand %vm994, %vm1477
  %vm1494 = vmand %vm995, %vm1478
  %vm1495 = vmand %vm996, %vm1479
  %vm1496 = vmand %vm997, %vm1480
  %vm1497 = vmand %vm998, %vm1481
  %vm1498 = vmand %vm999, %vm1482
  %vm1499 = vmand %vm1000, %vm1483
  %vm1500 = vmand %vm1001, %vm1484
  %vm1501 = vmand %vm1002, %vm1485
  %vm1502 = vmand %vm1003, %vm1486
  %vm1503 = vmand %vm1004, %vm1487
  %vm1504 = vmand %vm1005, %vm1488
  %vm1506 = vcmask 1046528
  %v1507 = vrot.slane 0.0, 1
  %v1508 = vrot.slane %v925, 1
  %v1509 = vsel %vm1506, %v1507, %v1508
  %v1510 = vrot.slane %v926, 1
  %v1511 = vsel %vm1506, %v1508, %v1510
  %v1512 = vrot.slane %v927, 1
  %v1513 = vsel %vm1506, %v1510, %v1512
  %v1514 = vrot.slane %v928, 1
  %v1515 = vsel %vm1506, %v1512, %v1514
  %v1516 = vrot.slane %v929, 1
  %v1517 = vsel %vm1506, %v1514, %v1516
  %v1518 = vrot.slane %v930, 1
  %v1519 = vsel %vm1506, %v1516, %v1518
  %v1520 = vrot.slane %v931, 1
  %v1521 = vsel %vm1506, %v1518, %v1520
  %v1522 = vrot.slane %v932, 1
  %v1523 = vsel %vm1506, %v1520, %v1522
  %v1524 = vrot.slane %v933, 1
  %v1525 = vsel %vm1506, %v1522, %v1524
  %v1526 = vrot.slane %v934, 1
  %v1527 = vsel %vm1506, %v1524, %v1526
  %v1528 = vrot.slane %v935, 1
  %v1529 = vsel %vm1506, %v1526, %v1528
  %v1530 = vrot.slane %v936, 1
  %v1531 = vsel %vm1506, %v1528, %v1530
  %v1532 = vrot.slane %v937, 1
  %v1533 = vsel %vm1506, %v1530, %v1532
  %v1534 = vrot.slane %v938, 1
  %v1535 = vsel %vm1506, %v1532, %v1534
  %v1536 = vrot.slane %v939, 1
  %v1537 = vsel %vm1506, %v1534, %v1536
  %v1538 = vrot.slane %v940, 1
  %v1539 = vsel %vm1506, %v1536, %v1538
  %v1556 = vsel %vm1489, %v1509, 0.0
  %v1557 = vsel %vm1490, %v1511, 0.0
  %v1558 = vsel %vm1491, %v1513, 0.0
  %v1559 = vsel %vm1492, %v1515, 0.0
  %v1560 = vsel %vm1493, %v1517, 0.0
  %v1561 = vsel %vm1494, %v1519, 0.0
  %v1562 = vsel %vm1495, %v1521, 0.0
  %v1563 = vsel %vm1496, %v1523, 0.0
  %v1564 = vsel %vm1497, %v1525, 0.0
  %v1565 = vsel %vm1498, %v1527, 0.0
  %v1566 = vsel %vm1499, %v1529, 0.0
  %v1567 = vsel %vm1500, %v1531, 0.0
  %v1568 = vsel %vm1501, %v1533, 0.0
  %v1569 = vsel %vm1502, %v1535, 0.0
  %v1570 = vsel %vm1503, %v1537, 0.0
  %v1571 = vsel %vm1504, %v1539, 0.0
  %v1572 = vpack.c.bf16 %v1557, %v1556
  %v1573 = vpack.c.bf16 %v1559, %v1558
  %v1574 = vpack.c.bf16 %v1561, %v1560
  %v1575 = vpack.c.bf16 %v1563, %v1562
  %v1576 = vpack.c.bf16 %v1565, %v1564
  %v1577 = vpack.c.bf16 %v1567, %v1566
  %v1578 = vpack.c.bf16 %v1569, %v1568
  %v1579 = vpack.c.bf16 %v1571, %v1570
  %s1580 = scalar_lea.vmem %s2, 128
  %v1581 = vld [vmem:[%s1580] sm:$0xf]
  %v1582 = vld [vmem:[%s1580 + $0x4] sm:$0xf]
  %v1583 = vld [vmem:[%s1580 + $0x8] sm:$0xf]
  %v1584 = vld [vmem:[%s1580 + $0xc] sm:$0xf]
  %v1585 = vld [vmem:[%s1580 + $0x10] sm:$0xf]
  %v1586 = vld [vmem:[%s1580 + $0x14] sm:$0xf]
  %v1587 = vld [vmem:[%s1580 + $0x18] sm:$0xf]
  %v1588 = vld [vmem:[%s1580 + $0x1c] sm:$0xf]
  %v1589 = vld [vmem:[%s1580 + $0x20] sm:$0xf]
  %v1590 = vld [vmem:[%s1580 + $0x24] sm:$0xf]
  %v1591 = vld [vmem:[%s1580 + $0x28] sm:$0xf]
  %v1592 = vld [vmem:[%s1580 + $0x2c] sm:$0xf]
  %v1593 = vld [vmem:[%s1580 + $0x30] sm:$0xf]
  %v1594 = vld [vmem:[%s1580 + $0x34] sm:$0xf]
  %v1595 = vld [vmem:[%s1580 + $0x38] sm:$0xf]
  %v1596 = vld [vmem:[%s1580 + $0x3c] sm:$0xf]
  %v1613 = vunpack.c.l.b16 %v1581
  %v1614 = vunpack.c.l.b16 %v1582
  %v1615 = vunpack.c.l.b16 %v1583
  %v1616 = vunpack.c.l.b16 %v1584
  %v1617 = vunpack.c.l.b16 %v1585
  %v1618 = vunpack.c.l.b16 %v1586
  %v1619 = vunpack.c.l.b16 %v1587
  %v1620 = vunpack.c.l.b16 %v1588
  %v1621 = vunpack.c.l.b16 %v1589
  %v1622 = vunpack.c.l.b16 %v1590
  %v1623 = vunpack.c.l.b16 %v1591
  %v1624 = vunpack.c.l.b16 %v1592
  %v1625 = vunpack.c.l.b16 %v1593
  %v1626 = vunpack.c.l.b16 %v1594
  %v1627 = vunpack.c.l.b16 %v1595
  %v1628 = vunpack.c.l.b16 %v1596
  %v1629 = vpack.c.b16 %v1614, %v1613
  %v1630 = vpack.c.b16 %v1616, %v1615
  %v1631 = vpack.c.b16 %v1618, %v1617
  %v1632 = vpack.c.b16 %v1620, %v1619
  %v1633 = vpack.c.b16 %v1622, %v1621
  %v1634 = vpack.c.b16 %v1624, %v1623
  %v1635 = vpack.c.b16 %v1626, %v1625
  %v1636 = vpack.c.b16 %v1628, %v1627
  %1645 = vmatprep.subr.bf16.mxu0 0
  %1646 = vmatpush1.bf16.msra.mxu0 %v1636
  %1647 = vmatprep.subr.bf16.mxu0 0
  %1648 = vmatpush1.bf16.msra.mxu0 %v1635
  %1649 = vmatprep.subr.bf16.mxu0 0
  %1650 = vmatpush1.bf16.msra.mxu0 %v1634
  %1651 = vmatprep.subr.bf16.mxu0 0
  %1652 = vmatpush1.bf16.msra.mxu0 %v1633
  %1653 = vmatprep.subr.bf16.mxu0 0
  %1654 = vmatpush1.bf16.msra.mxu0 %v1632
  %1655 = vmatprep.subr.bf16.mxu0 0
  %1656 = vmatpush1.bf16.msra.mxu0 %v1631
  %1657 = vmatprep.subr.bf16.mxu0 0
  %1658 = vmatpush1.bf16.msra.mxu0 %v1630
  %1659 = vmatprep.subr.bf16.mxu0 0
  %1660 = vmatpush1.bf16.msra.mxu0 %v1629
  %1661 = vmatprep.subr.bf16.mxu0 0
  %1662 = vmatpush2.bf16.msra.mxu0 0
  %1663 = vmatprep.subr.bf16.mxu0 0
  %1664 = vmatpush2.bf16.msra.mxu0 0
  %1665 = vmatprep.subr.bf16.mxu0 0
  %1666 = vmatpush2.bf16.msra.mxu0 0
  %1667 = vmatprep.subr.bf16.mxu0 0
  %1668 = vmatpush2.bf16.msra.mxu0 0
  %1669 = vmatprep.subr.bf16.mxu0 0
  %1670 = vmatpush2.bf16.msra.mxu0 0
  %1671 = vmatprep.subr.bf16.mxu0 0
  %1672 = vmatpush2.bf16.msra.mxu0 0
  %1673 = vmatprep.subr.bf16.mxu0 0
  %1674 = vmatpush2.bf16.msra.mxu0 0
  %1675 = vmatprep.subr.bf16.mxu0 0
  %1676 = vmatpush2.bf16.msra.mxu0 0
  %1677 = vmatprep.mubr.bf16.mxu0 0
  %1678 = vmatmul.mubr.bf16.gmra.mxu0 %v1572
  %v1679 = vpop.f32.mrf.mxu0
  %v1680 = vadd.f32 0.0, %v1679
  %v1681 = vpop.f32.mrf.mxu0
  %v1682 = vpop.f32.mrf.mxu0
  %v1683 = vadd.f32 0.0, %v1682
  %v1684 = vpop.f32.mrf.mxu0
  %1685 = vmatprep.mubr.bf16.mxu0 0
  %1686 = vmatmul.mubr.bf16.gmra.mxu0 %v1573
  %v1687 = vpop.f32.mrf.mxu0
  %v1688 = vadd.f32 0.0, %v1687
  %v1689 = vpop.f32.mrf.mxu0
  %v1690 = vpop.f32.mrf.mxu0
  %v1691 = vadd.f32 0.0, %v1690
  %v1692 = vpop.f32.mrf.mxu0
  %1693 = vmatprep.mubr.bf16.mxu0 0
  %1694 = vmatmul.mubr.bf16.gmra.mxu0 %v1574
  %v1695 = vpop.f32.mrf.mxu0
  %v1696 = vadd.f32 0.0, %v1695
  %v1697 = vpop.f32.mrf.mxu0
  %v1698 = vpop.f32.mrf.mxu0
  %v1699 = vadd.f32 0.0, %v1698
  %v1700 = vpop.f32.mrf.mxu0
  %1701 = vmatprep.mubr.bf16.mxu0 0
  %1702 = vmatmul.mubr.bf16.gmra.mxu0 %v1575
  %v1703 = vpop.f32.mrf.mxu0
  %v1704 = vadd.f32 0.0, %v1703
  %v1705 = vpop.f32.mrf.mxu0
  %v1706 = vpop.f32.mrf.mxu0
  %v1707 = vadd.f32 0.0, %v1706
  %v1708 = vpop.f32.mrf.mxu0
  %1709 = vmatprep.mubr.bf16.mxu0 0
  %1710 = vmatmul.mubr.bf16.gmra.mxu0 %v1576
  %v1711 = vpop.f32.mrf.mxu0
  %v1712 = vadd.f32 0.0, %v1711
  %v1713 = vpop.f32.mrf.mxu0
  %v1714 = vpop.f32.mrf.mxu0
  %v1715 = vadd.f32 0.0, %v1714
  %v1716 = vpop.f32.mrf.mxu0
  %1717 = vmatprep.mubr.bf16.mxu0 0
  %1718 = vmatmul.mubr.bf16.gmra.mxu0 %v1577
  %v1719 = vpop.f32.mrf.mxu0
  %v1720 = vadd.f32 0.0, %v1719
  %v1721 = vpop.f32.mrf.mxu0
  %v1722 = vpop.f32.mrf.mxu0
  %v1723 = vadd.f32 0.0, %v1722
  %v1724 = vpop.f32.mrf.mxu0
  %1725 = vmatprep.mubr.bf16.mxu0 0
  %1726 = vmatmul.mubr.bf16.gmra.mxu0 %v1578
  %v1727 = vpop.f32.mrf.mxu0
  %v1728 = vadd.f32 0.0, %v1727
  %v1729 = vpop.f32.mrf.mxu0
  %v1730 = vpop.f32.mrf.mxu0
  %v1731 = vadd.f32 0.0, %v1730
  %v1732 = vpop.f32.mrf.mxu0
  %1733 = vmatprep.mubr.bf16.mxu0 0
  %1734 = vmatmul.mubr.bf16.gmra.mxu0 %v1579
  %v1735 = vpop.f32.mrf.mxu0
  %v1736 = vadd.f32 0.0, %v1735
  %v1737 = vpop.f32.mrf.mxu0
  %v1738 = vpop.f32.mrf.mxu0
  %v1739 = vadd.f32 0.0, %v1738
  %v1740 = vpop.f32.mrf.mxu0
  %1741 = vdwg.mxu0
  %v1742 = vadd.f32 %v1411, %v1680
  %v1743 = vadd.f32 %v1414, %v1683
  %v1744 = vadd.f32 %v1419, %v1688
  %v1745 = vadd.f32 %v1422, %v1691
  %v1746 = vadd.f32 %v1427, %v1696
  %v1747 = vadd.f32 %v1430, %v1699
  %v1748 = vadd.f32 %v1435, %v1704
  %v1749 = vadd.f32 %v1438, %v1707
  %v1750 = vadd.f32 %v1443, %v1712
  %v1751 = vadd.f32 %v1446, %v1715
  %v1752 = vadd.f32 %v1451, %v1720
  %v1753 = vadd.f32 %v1454, %v1723
  %v1754 = vadd.f32 %v1459, %v1728
  %v1755 = vadd.f32 %v1462, %v1731
  %v1756 = vadd.f32 %v1467, %v1736
  %v1757 = vadd.f32 %v1470, %v1739
  %v1758 = vrot.slane %v940, 7
  %v1759 = vsel %vm1054, %v1085, %v1758
  %v1761 = vsel %vm1006, %v1058, 0.0
  %v1762 = vsel %vm1007, %v1060, 0.0
  %v1763 = vsel %vm1008, %v1062, 0.0
  %v1764 = vsel %vm1009, %v1064, 0.0
  %v1765 = vsel %vm1010, %v1066, 0.0
  %v1766 = vsel %vm1011, %v1068, 0.0
  %v1767 = vsel %vm1012, %v1070, 0.0
  %v1768 = vsel %vm1013, %v1072, 0.0
  %v1769 = vsel %vm1014, %v1074, 0.0
  %v1770 = vsel %vm1015, %v1076, 0.0
  %v1771 = vsel %vm1016, %v1078, 0.0
  %v1772 = vsel %vm1017, %v1080, 0.0
  %v1773 = vsel %vm1018, %v1082, 0.0
  %v1774 = vsel %vm1019, %v1084, 0.0
  %v1775 = vsel %vm1020, %v1086, 0.0
  %v1776 = vsel %vm1021, %v1759, 0.0
  %v1777 = vpack.c.bf16 %v1762, %v1761
  %v1778 = vpack.c.bf16 %v1764, %v1763
  %v1779 = vpack.c.bf16 %v1766, %v1765
  %v1780 = vpack.c.bf16 %v1768, %v1767
  %v1781 = vpack.c.bf16 %v1770, %v1769
  %v1782 = vpack.c.bf16 %v1772, %v1771
  %v1783 = vpack.c.bf16 %v1774, %v1773
  %v1784 = vpack.c.bf16 %v1776, %v1775
  %s1785 = scalar_lea.vmem %s2, 192
  %v1786 = vld [vmem:[%s1785] sm:$0xf]
  %v1787 = vld [vmem:[%s1785 + $0x4] sm:$0xf]
  %v1788 = vld [vmem:[%s1785 + $0x8] sm:$0xf]
  %v1789 = vld [vmem:[%s1785 + $0xc] sm:$0xf]
  %v1790 = vld [vmem:[%s1785 + $0x10] sm:$0xf]
  %v1791 = vld [vmem:[%s1785 + $0x14] sm:$0xf]
  %v1792 = vld [vmem:[%s1785 + $0x18] sm:$0xf]
  %v1793 = vld [vmem:[%s1785 + $0x1c] sm:$0xf]
  %v1794 = vld [vmem:[%s1785 + $0x20] sm:$0xf]
  %v1795 = vld [vmem:[%s1785 + $0x24] sm:$0xf]
  %v1796 = vld [vmem:[%s1785 + $0x28] sm:$0xf]
  %v1797 = vld [vmem:[%s1785 + $0x2c] sm:$0xf]
  %v1798 = vld [vmem:[%s1785 + $0x30] sm:$0xf]
  %v1799 = vld [vmem:[%s1785 + $0x34] sm:$0xf]
  %v1800 = vld [vmem:[%s1785 + $0x38] sm:$0xf]
  %v1801 = vld [vmem:[%s1785 + $0x3c] sm:$0xf]
  %v1818 = vunpack.c.l.b16 %v1786
  %v1819 = vunpack.c.l.b16 %v1787
  %v1820 = vunpack.c.l.b16 %v1788
  %v1821 = vunpack.c.l.b16 %v1789
  %v1822 = vunpack.c.l.b16 %v1790
  %v1823 = vunpack.c.l.b16 %v1791
  %v1824 = vunpack.c.l.b16 %v1792
  %v1825 = vunpack.c.l.b16 %v1793
  %v1826 = vunpack.c.l.b16 %v1794
  %v1827 = vunpack.c.l.b16 %v1795
  %v1828 = vunpack.c.l.b16 %v1796
  %v1829 = vunpack.c.l.b16 %v1797
  %v1830 = vunpack.c.l.b16 %v1798
  %v1831 = vunpack.c.l.b16 %v1799
  %v1832 = vunpack.c.l.b16 %v1800
  %v1833 = vunpack.c.l.b16 %v1801
  %v1834 = vpack.c.b16 %v1819, %v1818
  %v1835 = vpack.c.b16 %v1821, %v1820
  %v1836 = vpack.c.b16 %v1823, %v1822
  %v1837 = vpack.c.b16 %v1825, %v1824
  %v1838 = vpack.c.b16 %v1827, %v1826
  %v1839 = vpack.c.b16 %v1829, %v1828
  %v1840 = vpack.c.b16 %v1831, %v1830
  %v1841 = vpack.c.b16 %v1833, %v1832
  %1850 = vmatprep.subr.bf16.mxu0 0
  %1851 = vmatpush1.bf16.msra.mxu0 %v1841
  %1852 = vmatprep.subr.bf16.mxu0 0
  %1853 = vmatpush1.bf16.msra.mxu0 %v1840
  %1854 = vmatprep.subr.bf16.mxu0 0
  %1855 = vmatpush1.bf16.msra.mxu0 %v1839
  %1856 = vmatprep.subr.bf16.mxu0 0
  %1857 = vmatpush1.bf16.msra.mxu0 %v1838
  %1858 = vmatprep.subr.bf16.mxu0 0
  %1859 = vmatpush1.bf16.msra.mxu0 %v1837
  %1860 = vmatprep.subr.bf16.mxu0 0
  %1861 = vmatpush1.bf16.msra.mxu0 %v1836
  %1862 = vmatprep.subr.bf16.mxu0 0
  %1863 = vmatpush1.bf16.msra.mxu0 %v1835
  %1864 = vmatprep.subr.bf16.mxu0 0
  %1865 = vmatpush1.bf16.msra.mxu0 %v1834
  %1866 = vmatprep.subr.bf16.mxu0 0
  %1867 = vmatpush2.bf16.msra.mxu0 0
  %1868 = vmatprep.subr.bf16.mxu0 0
  %1869 = vmatpush2.bf16.msra.mxu0 0
  %1870 = vmatprep.subr.bf16.mxu0 0
  %1871 = vmatpush2.bf16.msra.mxu0 0
  %1872 = vmatprep.subr.bf16.mxu0 0
  %1873 = vmatpush2.bf16.msra.mxu0 0
  %1874 = vmatprep.subr.bf16.mxu0 0
  %1875 = vmatpush2.bf16.msra.mxu0 0
  %1876 = vmatprep.subr.bf16.mxu0 0
  %1877 = vmatpush2.bf16.msra.mxu0 0
  %1878 = vmatprep.subr.bf16.mxu0 0
  %1879 = vmatpush2.bf16.msra.mxu0 0
  %1880 = vmatprep.subr.bf16.mxu0 0
  %1881 = vmatpush2.bf16.msra.mxu0 0
  %1882 = vmatprep.mubr.bf16.mxu0 0
  %1883 = vmatmul.mubr.bf16.gmra.mxu0 %v1777
  %v1884 = vpop.f32.mrf.mxu0
  %v1885 = vadd.f32 0.0, %v1884
  %v1886 = vpop.f32.mrf.mxu0
  %v1887 = vpop.f32.mrf.mxu0
  %v1888 = vadd.f32 0.0, %v1887
  %v1889 = vpop.f32.mrf.mxu0
  %1890 = vmatprep.mubr.bf16.mxu0 0
  %1891 = vmatmul.mubr.bf16.gmra.mxu0 %v1778
  %v1892 = vpop.f32.mrf.mxu0
  %v1893 = vadd.f32 0.0, %v1892
  %v1894 = vpop.f32.mrf.mxu0
  %v1895 = vpop.f32.mrf.mxu0
  %v1896 = vadd.f32 0.0, %v1895
  %v1897 = vpop.f32.mrf.mxu0
  %1898 = vmatprep.mubr.bf16.mxu0 0
  %1899 = vmatmul.mubr.bf16.gmra.mxu0 %v1779
  %v1900 = vpop.f32.mrf.mxu0
  %v1901 = vadd.f32 0.0, %v1900
  %v1902 = vpop.f32.mrf.mxu0
  %v1903 = vpop.f32.mrf.mxu0
  %v1904 = vadd.f32 0.0, %v1903
  %v1905 = vpop.f32.mrf.mxu0
  %1906 = vmatprep.mubr.bf16.mxu0 0
  %1907 = vmatmul.mubr.bf16.gmra.mxu0 %v1780
  %v1908 = vpop.f32.mrf.mxu0
  %v1909 = vadd.f32 0.0, %v1908
  %v1910 = vpop.f32.mrf.mxu0
  %v1911 = vpop.f32.mrf.mxu0
  %v1912 = vadd.f32 0.0, %v1911
  %v1913 = vpop.f32.mrf.mxu0
  %1914 = vmatprep.mubr.bf16.mxu0 0
  %1915 = vmatmul.mubr.bf16.gmra.mxu0 %v1781
  %v1916 = vpop.f32.mrf.mxu0
  %v1917 = vadd.f32 0.0, %v1916
  %v1918 = vpop.f32.mrf.mxu0
  %v1919 = vpop.f32.mrf.mxu0
  %v1920 = vadd.f32 0.0, %v1919
  %v1921 = vpop.f32.mrf.mxu0
  %1922 = vmatprep.mubr.bf16.mxu0 0
  %1923 = vmatmul.mubr.bf16.gmra.mxu0 %v1782
  %v1924 = vpop.f32.mrf.mxu0
  %v1925 = vadd.f32 0.0, %v1924
  %v1926 = vpop.f32.mrf.mxu0
  %v1927 = vpop.f32.mrf.mxu0
  %v1928 = vadd.f32 0.0, %v1927
  %v1929 = vpop.f32.mrf.mxu0
  %1930 = vmatprep.mubr.bf16.mxu0 0
  %1931 = vmatmul.mubr.bf16.gmra.mxu0 %v1783
  %v1932 = vpop.f32.mrf.mxu0
  %v1933 = vadd.f32 0.0, %v1932
  %v1934 = vpop.f32.mrf.mxu0
  %v1935 = vpop.f32.mrf.mxu0
  %v1936 = vadd.f32 0.0, %v1935
  %v1937 = vpop.f32.mrf.mxu0
  %1938 = vmatprep.mubr.bf16.mxu0 0
  %1939 = vmatmul.mubr.bf16.gmra.mxu0 %v1784
  %v1940 = vpop.f32.mrf.mxu0
  %v1941 = vadd.f32 0.0, %v1940
  %v1942 = vpop.f32.mrf.mxu0
  %v1943 = vpop.f32.mrf.mxu0
  %v1944 = vadd.f32 0.0, %v1943
  %v1945 = vpop.f32.mrf.mxu0
  %1946 = vdwg.mxu0
  %v1947 = vadd.f32 %v1742, %v1885
  %v1948 = vadd.f32 %v1743, %v1888
  %v1949 = vadd.f32 %v1744, %v1893
  %v1950 = vadd.f32 %v1745, %v1896
  %v1951 = vadd.f32 %v1746, %v1901
  %v1952 = vadd.f32 %v1747, %v1904
  %v1953 = vadd.f32 %v1748, %v1909
  %v1954 = vadd.f32 %v1749, %v1912
  %v1955 = vadd.f32 %v1750, %v1917
  %v1956 = vadd.f32 %v1751, %v1920
  %v1957 = vadd.f32 %v1752, %v1925
  %v1958 = vadd.f32 %v1753, %v1928
  %v1959 = vadd.f32 %v1754, %v1933
  %v1960 = vadd.f32 %v1755, %v1936
  %v1961 = vadd.f32 %v1756, %v1941
  %v1962 = vadd.f32 %v1757, %v1944
  %v1963 = vpack.c.bf16 %v926, %v925
  %v1964 = vpack.c.bf16 %v928, %v927
  %v1965 = vpack.c.bf16 %v930, %v929
  %v1966 = vpack.c.bf16 %v932, %v931
  %v1967 = vpack.c.bf16 %v934, %v933
  %v1968 = vpack.c.bf16 %v936, %v935
  %v1969 = vpack.c.bf16 %v938, %v937
  %v1970 = vpack.c.bf16 %v940, %v939
  %s1971 = scalar_lea.vmem %s2, 256
  %v1972 = vld [vmem:[%s1971] sm:$0xf]
  %v1973 = vld [vmem:[%s1971 + $0x4] sm:$0xf]
  %v1974 = vld [vmem:[%s1971 + $0x8] sm:$0xf]
  %v1975 = vld [vmem:[%s1971 + $0xc] sm:$0xf]
  %v1976 = vld [vmem:[%s1971 + $0x10] sm:$0xf]
  %v1977 = vld [vmem:[%s1971 + $0x14] sm:$0xf]
  %v1978 = vld [vmem:[%s1971 + $0x18] sm:$0xf]
  %v1979 = vld [vmem:[%s1971 + $0x1c] sm:$0xf]
  %v1980 = vld [vmem:[%s1971 + $0x20] sm:$0xf]
  %v1981 = vld [vmem:[%s1971 + $0x24] sm:$0xf]
  %v1982 = vld [vmem:[%s1971 + $0x28] sm:$0xf]
  %v1983 = vld [vmem:[%s1971 + $0x2c] sm:$0xf]
  %v1984 = vld [vmem:[%s1971 + $0x30] sm:$0xf]
  %v1985 = vld [vmem:[%s1971 + $0x34] sm:$0xf]
  %v1986 = vld [vmem:[%s1971 + $0x38] sm:$0xf]
  %v1987 = vld [vmem:[%s1971 + $0x3c] sm:$0xf]
  %v2004 = vunpack.c.l.b16 %v1972
  %v2005 = vunpack.c.l.b16 %v1973
  %v2006 = vunpack.c.l.b16 %v1974
  %v2007 = vunpack.c.l.b16 %v1975
  %v2008 = vunpack.c.l.b16 %v1976
  %v2009 = vunpack.c.l.b16 %v1977
  %v2010 = vunpack.c.l.b16 %v1978
  %v2011 = vunpack.c.l.b16 %v1979
  %v2012 = vunpack.c.l.b16 %v1980
  %v2013 = vunpack.c.l.b16 %v1981
  %v2014 = vunpack.c.l.b16 %v1982
  %v2015 = vunpack.c.l.b16 %v1983
  %v2016 = vunpack.c.l.b16 %v1984
  %v2017 = vunpack.c.l.b16 %v1985
  %v2018 = vunpack.c.l.b16 %v1986
  %v2019 = vunpack.c.l.b16 %v1987
  %v2020 = vpack.c.b16 %v2005, %v2004
  %v2021 = vpack.c.b16 %v2007, %v2006
  %v2022 = vpack.c.b16 %v2009, %v2008
  %v2023 = vpack.c.b16 %v2011, %v2010
  %v2024 = vpack.c.b16 %v2013, %v2012
  %v2025 = vpack.c.b16 %v2015, %v2014
  %v2026 = vpack.c.b16 %v2017, %v2016
  %v2027 = vpack.c.b16 %v2019, %v2018
  %2036 = vmatprep.subr.bf16.mxu0 0
  %2037 = vmatpush1.bf16.msra.mxu0 %v2027
  %2038 = vmatprep.subr.bf16.mxu0 0
  %2039 = vmatpush1.bf16.msra.mxu0 %v2026
  %2040 = vmatprep.subr.bf16.mxu0 0
  %2041 = vmatpush1.bf16.msra.mxu0 %v2025
  %2042 = vmatprep.subr.bf16.mxu0 0
  %2043 = vmatpush1.bf16.msra.mxu0 %v2024
  %2044 = vmatprep.subr.bf16.mxu0 0
  %2045 = vmatpush1.bf16.msra.mxu0 %v2023
  %2046 = vmatprep.subr.bf16.mxu0 0
  %2047 = vmatpush1.bf16.msra.mxu0 %v2022
  %2048 = vmatprep.subr.bf16.mxu0 0
  %2049 = vmatpush1.bf16.msra.mxu0 %v2021
  %2050 = vmatprep.subr.bf16.mxu0 0
  %2051 = vmatpush1.bf16.msra.mxu0 %v2020
  %2052 = vmatprep.subr.bf16.mxu0 0
  %2053 = vmatpush2.bf16.msra.mxu0 0
  %2054 = vmatprep.subr.bf16.mxu0 0
  %2055 = vmatpush2.bf16.msra.mxu0 0
  %2056 = vmatprep.subr.bf16.mxu0 0
  %2057 = vmatpush2.bf16.msra.mxu0 0
  %2058 = vmatprep.subr.bf16.mxu0 0
  %2059 = vmatpush2.bf16.msra.mxu0 0
  %2060 = vmatprep.subr.bf16.mxu0 0
  %2061 = vmatpush2.bf16.msra.mxu0 0
  %2062 = vmatprep.subr.bf16.mxu0 0
  %2063 = vmatpush2.bf16.msra.mxu0 0
  %2064 = vmatprep.subr.bf16.mxu0 0
  %2065 = vmatpush2.bf16.msra.mxu0 0
  %2066 = vmatprep.subr.bf16.mxu0 0
  %2067 = vmatpush2.bf16.msra.mxu0 0
  %2068 = vmatprep.mubr.bf16.mxu0 0
  %2069 = vmatmul.mubr.bf16.gmra.mxu0 %v1963
  %v2070 = vpop.f32.mrf.mxu0
  %v2071 = vadd.f32 0.0, %v2070
  %v2072 = vpop.f32.mrf.mxu0
  %v2073 = vpop.f32.mrf.mxu0
  %v2074 = vadd.f32 0.0, %v2073
  %v2075 = vpop.f32.mrf.mxu0
  %2076 = vmatprep.mubr.bf16.mxu0 0
  %2077 = vmatmul.mubr.bf16.gmra.mxu0 %v1964
  %v2078 = vpop.f32.mrf.mxu0
  %v2079 = vadd.f32 0.0, %v2078
  %v2080 = vpop.f32.mrf.mxu0
  %v2081 = vpop.f32.mrf.mxu0
  %v2082 = vadd.f32 0.0, %v2081
  %v2083 = vpop.f32.mrf.mxu0
  %2084 = vmatprep.mubr.bf16.mxu0 0
  %2085 = vmatmul.mubr.bf16.gmra.mxu0 %v1965
  %v2086 = vpop.f32.mrf.mxu0
  %v2087 = vadd.f32 0.0, %v2086
  %v2088 = vpop.f32.mrf.mxu0
  %v2089 = vpop.f32.mrf.mxu0
  %v2090 = vadd.f32 0.0, %v2089
  %v2091 = vpop.f32.mrf.mxu0
  %2092 = vmatprep.mubr.bf16.mxu0 0
  %2093 = vmatmul.mubr.bf16.gmra.mxu0 %v1966
  %v2094 = vpop.f32.mrf.mxu0
  %v2095 = vadd.f32 0.0, %v2094
  %v2096 = vpop.f32.mrf.mxu0
  %v2097 = vpop.f32.mrf.mxu0
  %v2098 = vadd.f32 0.0, %v2097
  %v2099 = vpop.f32.mrf.mxu0
  %2100 = vmatprep.mubr.bf16.mxu0 0
  %2101 = vmatmul.mubr.bf16.gmra.mxu0 %v1967
  %v2102 = vpop.f32.mrf.mxu0
  %v2103 = vadd.f32 0.0, %v2102
  %v2104 = vpop.f32.mrf.mxu0
  %v2105 = vpop.f32.mrf.mxu0
  %v2106 = vadd.f32 0.0, %v2105
  %v2107 = vpop.f32.mrf.mxu0
  %2108 = vmatprep.mubr.bf16.mxu0 0
  %2109 = vmatmul.mubr.bf16.gmra.mxu0 %v1968
  %v2110 = vpop.f32.mrf.mxu0
  %v2111 = vadd.f32 0.0, %v2110
  %v2112 = vpop.f32.mrf.mxu0
  %v2113 = vpop.f32.mrf.mxu0
  %v2114 = vadd.f32 0.0, %v2113
  %v2115 = vpop.f32.mrf.mxu0
  %2116 = vmatprep.mubr.bf16.mxu0 0
  %2117 = vmatmul.mubr.bf16.gmra.mxu0 %v1969
  %v2118 = vpop.f32.mrf.mxu0
  %v2119 = vadd.f32 0.0, %v2118
  %v2120 = vpop.f32.mrf.mxu0
  %v2121 = vpop.f32.mrf.mxu0
  %v2122 = vadd.f32 0.0, %v2121
  %v2123 = vpop.f32.mrf.mxu0
  %2124 = vmatprep.mubr.bf16.mxu0 0
  %2125 = vmatmul.mubr.bf16.gmra.mxu0 %v1970
  %v2126 = vpop.f32.mrf.mxu0
  %v2127 = vadd.f32 0.0, %v2126
  %v2128 = vpop.f32.mrf.mxu0
  %v2129 = vpop.f32.mrf.mxu0
  %v2130 = vadd.f32 0.0, %v2129
  %v2131 = vpop.f32.mrf.mxu0
  %2132 = vdwg.mxu0
  %v2133 = vadd.f32 %v1947, %v2071
  %v2134 = vadd.f32 %v1948, %v2074
  %v2135 = vadd.f32 %v1949, %v2079
  %v2136 = vadd.f32 %v1950, %v2082
  %v2137 = vadd.f32 %v1951, %v2087
  %v2138 = vadd.f32 %v1952, %v2090
  %v2139 = vadd.f32 %v1953, %v2095
  %v2140 = vadd.f32 %v1954, %v2098
  %v2141 = vadd.f32 %v1955, %v2103
  %v2142 = vadd.f32 %v1956, %v2106
  %v2143 = vadd.f32 %v1957, %v2111
  %v2144 = vadd.f32 %v1958, %v2114
  %v2145 = vadd.f32 %v1959, %v2119
  %v2146 = vadd.f32 %v1960, %v2122
  %v2147 = vadd.f32 %v1961, %v2127
  %v2148 = vadd.f32 %v1962, %v2130
  %v2149 = vsel %vm1506, %v1538, %v1507
  %v2151 = vsel %vm1473, %v1511, 0.0
  %v2152 = vsel %vm1474, %v1513, 0.0
  %v2153 = vsel %vm1475, %v1515, 0.0
  %v2154 = vsel %vm1476, %v1517, 0.0
  %v2155 = vsel %vm1477, %v1519, 0.0
  %v2156 = vsel %vm1478, %v1521, 0.0
  %v2157 = vsel %vm1479, %v1523, 0.0
  %v2158 = vsel %vm1480, %v1525, 0.0
  %v2159 = vsel %vm1481, %v1527, 0.0
  %v2160 = vsel %vm1482, %v1529, 0.0
  %v2161 = vsel %vm1483, %v1531, 0.0
  %v2162 = vsel %vm1484, %v1533, 0.0
  %v2163 = vsel %vm1485, %v1535, 0.0
  %v2164 = vsel %vm1486, %v1537, 0.0
  %v2165 = vsel %vm1487, %v1539, 0.0
  %v2166 = vsel %vm1488, %v2149, 0.0
  %v2167 = vpack.c.bf16 %v2152, %v2151
  %v2168 = vpack.c.bf16 %v2154, %v2153
  %v2169 = vpack.c.bf16 %v2156, %v2155
  %v2170 = vpack.c.bf16 %v2158, %v2157
  %v2171 = vpack.c.bf16 %v2160, %v2159
  %v2172 = vpack.c.bf16 %v2162, %v2161
  %v2173 = vpack.c.bf16 %v2164, %v2163
  %v2174 = vpack.c.bf16 %v2166, %v2165
  %s2175 = scalar_lea.vmem %s2, 320
  %v2176 = vld [vmem:[%s2175] sm:$0xf]
  %v2177 = vld [vmem:[%s2175 + $0x4] sm:$0xf]
  %v2178 = vld [vmem:[%s2175 + $0x8] sm:$0xf]
  %v2179 = vld [vmem:[%s2175 + $0xc] sm:$0xf]
  %v2180 = vld [vmem:[%s2175 + $0x10] sm:$0xf]
  %v2181 = vld [vmem:[%s2175 + $0x14] sm:$0xf]
  %v2182 = vld [vmem:[%s2175 + $0x18] sm:$0xf]
  %v2183 = vld [vmem:[%s2175 + $0x1c] sm:$0xf]
  %v2184 = vld [vmem:[%s2175 + $0x20] sm:$0xf]
  %v2185 = vld [vmem:[%s2175 + $0x24] sm:$0xf]
  %v2186 = vld [vmem:[%s2175 + $0x28] sm:$0xf]
  %v2187 = vld [vmem:[%s2175 + $0x2c] sm:$0xf]
  %v2188 = vld [vmem:[%s2175 + $0x30] sm:$0xf]
  %v2189 = vld [vmem:[%s2175 + $0x34] sm:$0xf]
  %v2190 = vld [vmem:[%s2175 + $0x38] sm:$0xf]
  %v2191 = vld [vmem:[%s2175 + $0x3c] sm:$0xf]
  %v2208 = vunpack.c.l.b16 %v2176
  %v2209 = vunpack.c.l.b16 %v2177
  %v2210 = vunpack.c.l.b16 %v2178
  %v2211 = vunpack.c.l.b16 %v2179
  %v2212 = vunpack.c.l.b16 %v2180
  %v2213 = vunpack.c.l.b16 %v2181
  %v2214 = vunpack.c.l.b16 %v2182
  %v2215 = vunpack.c.l.b16 %v2183
  %v2216 = vunpack.c.l.b16 %v2184
  %v2217 = vunpack.c.l.b16 %v2185
  %v2218 = vunpack.c.l.b16 %v2186
  %v2219 = vunpack.c.l.b16 %v2187
  %v2220 = vunpack.c.l.b16 %v2188
  %v2221 = vunpack.c.l.b16 %v2189
  %v2222 = vunpack.c.l.b16 %v2190
  %v2223 = vunpack.c.l.b16 %v2191
  %v2224 = vpack.c.b16 %v2209, %v2208
  %v2225 = vpack.c.b16 %v2211, %v2210
  %v2226 = vpack.c.b16 %v2213, %v2212
  %v2227 = vpack.c.b16 %v2215, %v2214
  %v2228 = vpack.c.b16 %v2217, %v2216
  %v2229 = vpack.c.b16 %v2219, %v2218
  %v2230 = vpack.c.b16 %v2221, %v2220
  %v2231 = vpack.c.b16 %v2223, %v2222
  %2240 = vmatprep.subr.bf16.mxu0 0
  %2241 = vmatpush1.bf16.msra.mxu0 %v2231
  %2242 = vmatprep.subr.bf16.mxu0 0
  %2243 = vmatpush1.bf16.msra.mxu0 %v2230
  %2244 = vmatprep.subr.bf16.mxu0 0
  %2245 = vmatpush1.bf16.msra.mxu0 %v2229
  %2246 = vmatprep.subr.bf16.mxu0 0
  %2247 = vmatpush1.bf16.msra.mxu0 %v2228
  %2248 = vmatprep.subr.bf16.mxu0 0
  %2249 = vmatpush1.bf16.msra.mxu0 %v2227
  %2250 = vmatprep.subr.bf16.mxu0 0
  %2251 = vmatpush1.bf16.msra.mxu0 %v2226
  %2252 = vmatprep.subr.bf16.mxu0 0
  %2253 = vmatpush1.bf16.msra.mxu0 %v2225
  %2254 = vmatprep.subr.bf16.mxu0 0
  %2255 = vmatpush1.bf16.msra.mxu0 %v2224
  %2256 = vmatprep.subr.bf16.mxu0 0
  %2257 = vmatpush2.bf16.msra.mxu0 0
  %2258 = vmatprep.subr.bf16.mxu0 0
  %2259 = vmatpush2.bf16.msra.mxu0 0
  %2260 = vmatprep.subr.bf16.mxu0 0
  %2261 = vmatpush2.bf16.msra.mxu0 0
  %2262 = vmatprep.subr.bf16.mxu0 0
  %2263 = vmatpush2.bf16.msra.mxu0 0
  %2264 = vmatprep.subr.bf16.mxu0 0
  %2265 = vmatpush2.bf16.msra.mxu0 0
  %2266 = vmatprep.subr.bf16.mxu0 0
  %2267 = vmatpush2.bf16.msra.mxu0 0
  %2268 = vmatprep.subr.bf16.mxu0 0
  %2269 = vmatpush2.bf16.msra.mxu0 0
  %2270 = vmatprep.subr.bf16.mxu0 0
  %2271 = vmatpush2.bf16.msra.mxu0 0
  %2272 = vmatprep.mubr.bf16.mxu0 0
  %2273 = vmatmul.mubr.bf16.gmra.mxu0 %v2167
  %v2274 = vpop.f32.mrf.mxu0
  %v2275 = vadd.f32 0.0, %v2274
  %v2276 = vpop.f32.mrf.mxu0
  %v2277 = vpop.f32.mrf.mxu0
  %v2278 = vadd.f32 0.0, %v2277
  %v2279 = vpop.f32.mrf.mxu0
  %2280 = vmatprep.mubr.bf16.mxu0 0
  %2281 = vmatmul.mubr.bf16.gmra.mxu0 %v2168
  %v2282 = vpop.f32.mrf.mxu0
  %v2283 = vadd.f32 0.0, %v2282
  %v2284 = vpop.f32.mrf.mxu0
  %v2285 = vpop.f32.mrf.mxu0
  %v2286 = vadd.f32 0.0, %v2285
  %v2287 = vpop.f32.mrf.mxu0
  %2288 = vmatprep.mubr.bf16.mxu0 0
  %2289 = vmatmul.mubr.bf16.gmra.mxu0 %v2169
  %v2290 = vpop.f32.mrf.mxu0
  %v2291 = vadd.f32 0.0, %v2290
  %v2292 = vpop.f32.mrf.mxu0
  %v2293 = vpop.f32.mrf.mxu0
  %v2294 = vadd.f32 0.0, %v2293
  %v2295 = vpop.f32.mrf.mxu0
  %2296 = vmatprep.mubr.bf16.mxu0 0
  %2297 = vmatmul.mubr.bf16.gmra.mxu0 %v2170
  %v2298 = vpop.f32.mrf.mxu0
  %v2299 = vadd.f32 0.0, %v2298
  %v2300 = vpop.f32.mrf.mxu0
  %v2301 = vpop.f32.mrf.mxu0
  %v2302 = vadd.f32 0.0, %v2301
  %v2303 = vpop.f32.mrf.mxu0
  %2304 = vmatprep.mubr.bf16.mxu0 0
  %2305 = vmatmul.mubr.bf16.gmra.mxu0 %v2171
  %v2306 = vpop.f32.mrf.mxu0
  %v2307 = vadd.f32 0.0, %v2306
  %v2308 = vpop.f32.mrf.mxu0
  %v2309 = vpop.f32.mrf.mxu0
  %v2310 = vadd.f32 0.0, %v2309
  %v2311 = vpop.f32.mrf.mxu0
  %2312 = vmatprep.mubr.bf16.mxu0 0
  %2313 = vmatmul.mubr.bf16.gmra.mxu0 %v2172
  %v2314 = vpop.f32.mrf.mxu0
  %v2315 = vadd.f32 0.0, %v2314
  %v2316 = vpop.f32.mrf.mxu0
  %v2317 = vpop.f32.mrf.mxu0
  %v2318 = vadd.f32 0.0, %v2317
  %v2319 = vpop.f32.mrf.mxu0
  %2320 = vmatprep.mubr.bf16.mxu0 0
  %2321 = vmatmul.mubr.bf16.gmra.mxu0 %v2173
  %v2322 = vpop.f32.mrf.mxu0
  %v2323 = vadd.f32 0.0, %v2322
  %v2324 = vpop.f32.mrf.mxu0
  %v2325 = vpop.f32.mrf.mxu0
  %v2326 = vadd.f32 0.0, %v2325
  %v2327 = vpop.f32.mrf.mxu0
  %2328 = vmatprep.mubr.bf16.mxu0 0
  %2329 = vmatmul.mubr.bf16.gmra.mxu0 %v2174
  %v2330 = vpop.f32.mrf.mxu0
  %v2331 = vadd.f32 0.0, %v2330
  %v2332 = vpop.f32.mrf.mxu0
  %v2333 = vpop.f32.mrf.mxu0
  %v2334 = vadd.f32 0.0, %v2333
  %v2335 = vpop.f32.mrf.mxu0
  %2336 = vdwg.mxu0
  %v2337 = vadd.f32 %v2133, %v2275
  %v2338 = vadd.f32 %v2134, %v2278
  %v2339 = vadd.f32 %v2135, %v2283
  %v2340 = vadd.f32 %v2136, %v2286
  %v2341 = vadd.f32 %v2137, %v2291
  %v2342 = vadd.f32 %v2138, %v2294
  %v2343 = vadd.f32 %v2139, %v2299
  %v2344 = vadd.f32 %v2140, %v2302
  %v2345 = vadd.f32 %v2141, %v2307
  %v2346 = vadd.f32 %v2142, %v2310
  %v2347 = vadd.f32 %v2143, %v2315
  %v2348 = vadd.f32 %v2144, %v2318
  %v2349 = vadd.f32 %v2145, %v2323
  %v2350 = vadd.f32 %v2146, %v2326
  %v2351 = vadd.f32 %v2147, %v2331
  %v2352 = vadd.f32 %v2148, %v2334
  %vm2353 = vcmp.lt.s32.totalorder %v958, 56
  %vm2354 = vcmp.lt.s32.totalorder %v959, 56
  %vm2355 = vcmp.lt.s32.totalorder %v960, 56
  %vm2356 = vcmp.lt.s32.totalorder %v961, 56
  %vm2357 = vcmp.lt.s32.totalorder %v962, 56
  %vm2358 = vcmp.lt.s32.totalorder %v963, 56
  %vm2359 = vcmp.lt.s32.totalorder %v964, 56
  %vm2360 = vcmp.lt.s32.totalorder %v965, 56
  %vm2361 = vcmp.lt.s32.totalorder %v966, 56
  %vm2362 = vcmp.lt.s32.totalorder %v967, 56
  %vm2363 = vcmp.lt.s32.totalorder %v968, 56
  %vm2364 = vcmp.lt.s32.totalorder %v969, 56
  %vm2365 = vcmp.lt.s32.totalorder %v970, 56
  %vm2366 = vcmp.lt.s32.totalorder %v971, 56
  %vm2367 = vcmp.lt.s32.totalorder %v972, 56
  %vm2368 = vcmp.lt.s32.totalorder %v973, 56
  %vm2369 = vmand %vm2353, %vm1006
  %vm2370 = vmand %vm2354, %vm1007
  %vm2371 = vmand %vm2355, %vm1008
  %vm2372 = vmand %vm2356, %vm1009
  %vm2373 = vmand %vm2357, %vm1010
  %vm2374 = vmand %vm2358, %vm1011
  %vm2375 = vmand %vm2359, %vm1012
  %vm2376 = vmand %vm2360, %vm1013
  %vm2377 = vmand %vm2361, %vm1014
  %vm2378 = vmand %vm2362, %vm1015
  %vm2379 = vmand %vm2363, %vm1016
  %vm2380 = vmand %vm2364, %vm1017
  %vm2381 = vmand %vm2365, %vm1018
  %vm2382 = vmand %vm2366, %vm1019
  %vm2383 = vmand %vm2367, %vm1020
  %vm2384 = vmand %vm2368, %vm1021
  %v2385 = vsel %vm1054, %v1758, %v1055
  %v2387 = vsel %vm2369, %v1060, 0.0
  %v2388 = vsel %vm2370, %v1062, 0.0
  %v2389 = vsel %vm2371, %v1064, 0.0
  %v2390 = vsel %vm2372, %v1066, 0.0
  %v2391 = vsel %vm2373, %v1068, 0.0
  %v2392 = vsel %vm2374, %v1070, 0.0
  %v2393 = vsel %vm2375, %v1072, 0.0
  %v2394 = vsel %vm2376, %v1074, 0.0
  %v2395 = vsel %vm2377, %v1076, 0.0
  %v2396 = vsel %vm2378, %v1078, 0.0
  %v2397 = vsel %vm2379, %v1080, 0.0
  %v2398 = vsel %vm2380, %v1082, 0.0
  %v2399 = vsel %vm2381, %v1084, 0.0
  %v2400 = vsel %vm2382, %v1086, 0.0
  %v2401 = vsel %vm2383, %v1759, 0.0
  %v2402 = vsel %vm2384, %v2385, 0.0
  %v2403 = vpack.c.bf16 %v2388, %v2387
  %v2404 = vpack.c.bf16 %v2390, %v2389
  %v2405 = vpack.c.bf16 %v2392, %v2391
  %v2406 = vpack.c.bf16 %v2394, %v2393
  %v2407 = vpack.c.bf16 %v2396, %v2395
  %v2408 = vpack.c.bf16 %v2398, %v2397
  %v2409 = vpack.c.bf16 %v2400, %v2399
  %v2410 = vpack.c.bf16 %v2402, %v2401
  %s2411 = scalar_lea.vmem %s2, 384
  %v2412 = vld [vmem:[%s2411] sm:$0xf]
  %v2413 = vld [vmem:[%s2411 + $0x4] sm:$0xf]
  %v2414 = vld [vmem:[%s2411 + $0x8] sm:$0xf]
  %v2415 = vld [vmem:[%s2411 + $0xc] sm:$0xf]
  %v2416 = vld [vmem:[%s2411 + $0x10] sm:$0xf]
  %v2417 = vld [vmem:[%s2411 + $0x14] sm:$0xf]
  %v2418 = vld [vmem:[%s2411 + $0x18] sm:$0xf]
  %v2419 = vld [vmem:[%s2411 + $0x1c] sm:$0xf]
  %v2420 = vld [vmem:[%s2411 + $0x20] sm:$0xf]
  %v2421 = vld [vmem:[%s2411 + $0x24] sm:$0xf]
  %v2422 = vld [vmem:[%s2411 + $0x28] sm:$0xf]
  %v2423 = vld [vmem:[%s2411 + $0x2c] sm:$0xf]
  %v2424 = vld [vmem:[%s2411 + $0x30] sm:$0xf]
  %v2425 = vld [vmem:[%s2411 + $0x34] sm:$0xf]
  %v2426 = vld [vmem:[%s2411 + $0x38] sm:$0xf]
  %v2427 = vld [vmem:[%s2411 + $0x3c] sm:$0xf]
  %v2444 = vunpack.c.l.b16 %v2412
  %v2445 = vunpack.c.l.b16 %v2413
  %v2446 = vunpack.c.l.b16 %v2414
  %v2447 = vunpack.c.l.b16 %v2415
  %v2448 = vunpack.c.l.b16 %v2416
  %v2449 = vunpack.c.l.b16 %v2417
  %v2450 = vunpack.c.l.b16 %v2418
  %v2451 = vunpack.c.l.b16 %v2419
  %v2452 = vunpack.c.l.b16 %v2420
  %v2453 = vunpack.c.l.b16 %v2421
  %v2454 = vunpack.c.l.b16 %v2422
  %v2455 = vunpack.c.l.b16 %v2423
  %v2456 = vunpack.c.l.b16 %v2424
  %v2457 = vunpack.c.l.b16 %v2425
  %v2458 = vunpack.c.l.b16 %v2426
  %v2459 = vunpack.c.l.b16 %v2427
  %v2460 = vpack.c.b16 %v2445, %v2444
  %v2461 = vpack.c.b16 %v2447, %v2446
  %v2462 = vpack.c.b16 %v2449, %v2448
  %v2463 = vpack.c.b16 %v2451, %v2450
  %v2464 = vpack.c.b16 %v2453, %v2452
  %v2465 = vpack.c.b16 %v2455, %v2454
  %v2466 = vpack.c.b16 %v2457, %v2456
  %v2467 = vpack.c.b16 %v2459, %v2458
  %2476 = vmatprep.subr.bf16.mxu0 0
  %2477 = vmatpush1.bf16.msra.mxu0 %v2467
  %2478 = vmatprep.subr.bf16.mxu0 0
  %2479 = vmatpush1.bf16.msra.mxu0 %v2466
  %2480 = vmatprep.subr.bf16.mxu0 0
  %2481 = vmatpush1.bf16.msra.mxu0 %v2465
  %2482 = vmatprep.subr.bf16.mxu0 0
  %2483 = vmatpush1.bf16.msra.mxu0 %v2464
  %2484 = vmatprep.subr.bf16.mxu0 0
  %2485 = vmatpush1.bf16.msra.mxu0 %v2463
  %2486 = vmatprep.subr.bf16.mxu0 0
  %2487 = vmatpush1.bf16.msra.mxu0 %v2462
  %2488 = vmatprep.subr.bf16.mxu0 0
  %2489 = vmatpush1.bf16.msra.mxu0 %v2461
  %2490 = vmatprep.subr.bf16.mxu0 0
  %2491 = vmatpush1.bf16.msra.mxu0 %v2460
  %2492 = vmatprep.subr.bf16.mxu0 0
  %2493 = vmatpush2.bf16.msra.mxu0 0
  %2494 = vmatprep.subr.bf16.mxu0 0
  %2495 = vmatpush2.bf16.msra.mxu0 0
  %2496 = vmatprep.subr.bf16.mxu0 0
  %2497 = vmatpush2.bf16.msra.mxu0 0
  %2498 = vmatprep.subr.bf16.mxu0 0
  %2499 = vmatpush2.bf16.msra.mxu0 0
  %2500 = vmatprep.subr.bf16.mxu0 0
  %2501 = vmatpush2.bf16.msra.mxu0 0
  %2502 = vmatprep.subr.bf16.mxu0 0
  %2503 = vmatpush2.bf16.msra.mxu0 0
  %2504 = vmatprep.subr.bf16.mxu0 0
  %2505 = vmatpush2.bf16.msra.mxu0 0
  %2506 = vmatprep.subr.bf16.mxu0 0
  %2507 = vmatpush2.bf16.msra.mxu0 0
  %2508 = vmatprep.mubr.bf16.mxu0 0
  %2509 = vmatmul.mubr.bf16.gmra.mxu0 %v2403
  %v2510 = vpop.f32.mrf.mxu0
  %v2511 = vadd.f32 0.0, %v2510
  %v2512 = vpop.f32.mrf.mxu0
  %v2513 = vpop.f32.mrf.mxu0
  %v2514 = vadd.f32 0.0, %v2513
  %v2515 = vpop.f32.mrf.mxu0
  %2516 = vmatprep.mubr.bf16.mxu0 0
  %2517 = vmatmul.mubr.bf16.gmra.mxu0 %v2404
  %v2518 = vpop.f32.mrf.mxu0
  %v2519 = vadd.f32 0.0, %v2518
  %v2520 = vpop.f32.mrf.mxu0
  %v2521 = vpop.f32.mrf.mxu0
  %v2522 = vadd.f32 0.0, %v2521
  %v2523 = vpop.f32.mrf.mxu0
  %2524 = vmatprep.mubr.bf16.mxu0 0
  %2525 = vmatmul.mubr.bf16.gmra.mxu0 %v2405
  %v2526 = vpop.f32.mrf.mxu0
  %v2527 = vadd.f32 0.0, %v2526
  %v2528 = vpop.f32.mrf.mxu0
  %v2529 = vpop.f32.mrf.mxu0
  %v2530 = vadd.f32 0.0, %v2529
  %v2531 = vpop.f32.mrf.mxu0
  %2532 = vmatprep.mubr.bf16.mxu0 0
  %2533 = vmatmul.mubr.bf16.gmra.mxu0 %v2406
  %v2534 = vpop.f32.mrf.mxu0
  %v2535 = vadd.f32 0.0, %v2534
  %v2536 = vpop.f32.mrf.mxu0
  %v2537 = vpop.f32.mrf.mxu0
  %v2538 = vadd.f32 0.0, %v2537
  %v2539 = vpop.f32.mrf.mxu0
  %2540 = vmatprep.mubr.bf16.mxu0 0
  %2541 = vmatmul.mubr.bf16.gmra.mxu0 %v2407
  %v2542 = vpop.f32.mrf.mxu0
  %v2543 = vadd.f32 0.0, %v2542
  %v2544 = vpop.f32.mrf.mxu0
  %v2545 = vpop.f32.mrf.mxu0
  %v2546 = vadd.f32 0.0, %v2545
  %v2547 = vpop.f32.mrf.mxu0
  %2548 = vmatprep.mubr.bf16.mxu0 0
  %2549 = vmatmul.mubr.bf16.gmra.mxu0 %v2408
  %v2550 = vpop.f32.mrf.mxu0
  %v2551 = vadd.f32 0.0, %v2550
  %v2552 = vpop.f32.mrf.mxu0
  %v2553 = vpop.f32.mrf.mxu0
  %v2554 = vadd.f32 0.0, %v2553
  %v2555 = vpop.f32.mrf.mxu0
  %2556 = vmatprep.mubr.bf16.mxu0 0
  %2557 = vmatmul.mubr.bf16.gmra.mxu0 %v2409
  %v2558 = vpop.f32.mrf.mxu0
  %v2559 = vadd.f32 0.0, %v2558
  %v2560 = vpop.f32.mrf.mxu0
  %v2561 = vpop.f32.mrf.mxu0
  %v2562 = vadd.f32 0.0, %v2561
  %v2563 = vpop.f32.mrf.mxu0
  %2564 = vmatprep.mubr.bf16.mxu0 0
  %2565 = vmatmul.mubr.bf16.gmra.mxu0 %v2410
  %v2566 = vpop.f32.mrf.mxu0
  %v2567 = vadd.f32 0.0, %v2566
  %v2568 = vpop.f32.mrf.mxu0
  %v2569 = vpop.f32.mrf.mxu0
  %v2570 = vadd.f32 0.0, %v2569
  %v2571 = vpop.f32.mrf.mxu0
  %2572 = vdwg.mxu0
  %v2573 = vadd.f32 %v2337, %v2511
  %v2574 = vadd.f32 %v2338, %v2514
  %v2575 = vadd.f32 %v2339, %v2519
  %v2576 = vadd.f32 %v2340, %v2522
  %v2577 = vadd.f32 %v2341, %v2527
  %v2578 = vadd.f32 %v2342, %v2530
  %v2579 = vadd.f32 %v2343, %v2535
  %v2580 = vadd.f32 %v2344, %v2538
  %v2581 = vadd.f32 %v2345, %v2543
  %v2582 = vadd.f32 %v2346, %v2546
  %v2583 = vadd.f32 %v2347, %v2551
  %v2584 = vadd.f32 %v2348, %v2554
  %v2585 = vadd.f32 %v2349, %v2559
  %v2586 = vadd.f32 %v2350, %v2562
  %v2587 = vadd.f32 %v2351, %v2567
  %v2588 = vadd.f32 %v2352, %v2570
  %v2589 = vsel %vm2353, %v926, 0.0
  %v2590 = vsel %vm2354, %v927, 0.0
  %v2591 = vsel %vm2355, %v928, 0.0
  %v2592 = vsel %vm2356, %v929, 0.0
  %v2593 = vsel %vm2357, %v930, 0.0
  %v2594 = vsel %vm2358, %v931, 0.0
  %v2595 = vsel %vm2359, %v932, 0.0
  %v2596 = vsel %vm2360, %v933, 0.0
  %v2597 = vsel %vm2361, %v934, 0.0
  %v2598 = vsel %vm2362, %v935, 0.0
  %v2599 = vsel %vm2363, %v936, 0.0
  %v2600 = vsel %vm2364, %v937, 0.0
  %v2601 = vsel %vm2365, %v938, 0.0
  %v2602 = vsel %vm2366, %v939, 0.0
  %v2603 = vsel %vm2367, %v940, 0.0
  %v2604 = vpack.c.bf16 %v2590, %v2589
  %v2605 = vpack.c.bf16 %v2592, %v2591
  %v2606 = vpack.c.bf16 %v2594, %v2593
  %v2607 = vpack.c.bf16 %v2596, %v2595
  %v2608 = vpack.c.bf16 %v2598, %v2597
  %v2609 = vpack.c.bf16 %v2600, %v2599
  %v2610 = vpack.c.bf16 %v2602, %v2601
  %v2611 = vpack.c.bf16 0.0, %v2603
  %s2612 = scalar_lea.vmem %s2, 448
  %v2613 = vld [vmem:[%s2612] sm:$0xf]
  %v2614 = vld [vmem:[%s2612 + $0x4] sm:$0xf]
  %v2615 = vld [vmem:[%s2612 + $0x8] sm:$0xf]
  %v2616 = vld [vmem:[%s2612 + $0xc] sm:$0xf]
  %v2617 = vld [vmem:[%s2612 + $0x10] sm:$0xf]
  %v2618 = vld [vmem:[%s2612 + $0x14] sm:$0xf]
  %v2619 = vld [vmem:[%s2612 + $0x18] sm:$0xf]
  %v2620 = vld [vmem:[%s2612 + $0x1c] sm:$0xf]
  %v2621 = vld [vmem:[%s2612 + $0x20] sm:$0xf]
  %v2622 = vld [vmem:[%s2612 + $0x24] sm:$0xf]
  %v2623 = vld [vmem:[%s2612 + $0x28] sm:$0xf]
  %v2624 = vld [vmem:[%s2612 + $0x2c] sm:$0xf]
  %v2625 = vld [vmem:[%s2612 + $0x30] sm:$0xf]
  %v2626 = vld [vmem:[%s2612 + $0x34] sm:$0xf]
  %v2627 = vld [vmem:[%s2612 + $0x38] sm:$0xf]
  %v2628 = vld [vmem:[%s2612 + $0x3c] sm:$0xf]
  %v2645 = vunpack.c.l.b16 %v2613
  %v2646 = vunpack.c.l.b16 %v2614
  %v2647 = vunpack.c.l.b16 %v2615
  %v2648 = vunpack.c.l.b16 %v2616
  %v2649 = vunpack.c.l.b16 %v2617
  %v2650 = vunpack.c.l.b16 %v2618
  %v2651 = vunpack.c.l.b16 %v2619
  %v2652 = vunpack.c.l.b16 %v2620
  %v2653 = vunpack.c.l.b16 %v2621
  %v2654 = vunpack.c.l.b16 %v2622
  %v2655 = vunpack.c.l.b16 %v2623
  %v2656 = vunpack.c.l.b16 %v2624
  %v2657 = vunpack.c.l.b16 %v2625
  %v2658 = vunpack.c.l.b16 %v2626
  %v2659 = vunpack.c.l.b16 %v2627
  %v2660 = vunpack.c.l.b16 %v2628
  %v2661 = vpack.c.b16 %v2646, %v2645
  %v2662 = vpack.c.b16 %v2648, %v2647
  %v2663 = vpack.c.b16 %v2650, %v2649
  %v2664 = vpack.c.b16 %v2652, %v2651
  %v2665 = vpack.c.b16 %v2654, %v2653
  %v2666 = vpack.c.b16 %v2656, %v2655
  %v2667 = vpack.c.b16 %v2658, %v2657
  %v2668 = vpack.c.b16 %v2660, %v2659
  %2677 = vmatprep.subr.bf16.mxu0 0
  %2678 = vmatpush1.bf16.msra.mxu0 %v2668
  %2679 = vmatprep.subr.bf16.mxu0 0
  %2680 = vmatpush1.bf16.msra.mxu0 %v2667
  %2681 = vmatprep.subr.bf16.mxu0 0
  %2682 = vmatpush1.bf16.msra.mxu0 %v2666
  %2683 = vmatprep.subr.bf16.mxu0 0
  %2684 = vmatpush1.bf16.msra.mxu0 %v2665
  %2685 = vmatprep.subr.bf16.mxu0 0
  %2686 = vmatpush1.bf16.msra.mxu0 %v2664
  %2687 = vmatprep.subr.bf16.mxu0 0
  %2688 = vmatpush1.bf16.msra.mxu0 %v2663
  %2689 = vmatprep.subr.bf16.mxu0 0
  %2690 = vmatpush1.bf16.msra.mxu0 %v2662
  %2691 = vmatprep.subr.bf16.mxu0 0
  %2692 = vmatpush1.bf16.msra.mxu0 %v2661
  %2693 = vmatprep.subr.bf16.mxu0 0
  %2694 = vmatpush2.bf16.msra.mxu0 0
  %2695 = vmatprep.subr.bf16.mxu0 0
  %2696 = vmatpush2.bf16.msra.mxu0 0
  %2697 = vmatprep.subr.bf16.mxu0 0
  %2698 = vmatpush2.bf16.msra.mxu0 0
  %2699 = vmatprep.subr.bf16.mxu0 0
  %2700 = vmatpush2.bf16.msra.mxu0 0
  %2701 = vmatprep.subr.bf16.mxu0 0
  %2702 = vmatpush2.bf16.msra.mxu0 0
  %2703 = vmatprep.subr.bf16.mxu0 0
  %2704 = vmatpush2.bf16.msra.mxu0 0
  %2705 = vmatprep.subr.bf16.mxu0 0
  %2706 = vmatpush2.bf16.msra.mxu0 0
  %2707 = vmatprep.subr.bf16.mxu0 0
  %2708 = vmatpush2.bf16.msra.mxu0 0
  %2709 = vmatprep.mubr.bf16.mxu0 0
  %2710 = vmatmul.mubr.bf16.gmra.mxu0 %v2604
  %v2711 = vpop.f32.mrf.mxu0
  %v2712 = vadd.f32 0.0, %v2711
  %v2713 = vpop.f32.mrf.mxu0
  %v2714 = vpop.f32.mrf.mxu0
  %v2715 = vadd.f32 0.0, %v2714
  %v2716 = vpop.f32.mrf.mxu0
  %2717 = vmatprep.mubr.bf16.mxu0 0
  %2718 = vmatmul.mubr.bf16.gmra.mxu0 %v2605
  %v2719 = vpop.f32.mrf.mxu0
  %v2720 = vadd.f32 0.0, %v2719
  %v2721 = vpop.f32.mrf.mxu0
  %v2722 = vpop.f32.mrf.mxu0
  %v2723 = vadd.f32 0.0, %v2722
  %v2724 = vpop.f32.mrf.mxu0
  %2725 = vmatprep.mubr.bf16.mxu0 0
  %2726 = vmatmul.mubr.bf16.gmra.mxu0 %v2606
  %v2727 = vpop.f32.mrf.mxu0
  %v2728 = vadd.f32 0.0, %v2727
  %v2729 = vpop.f32.mrf.mxu0
  %v2730 = vpop.f32.mrf.mxu0
  %v2731 = vadd.f32 0.0, %v2730
  %v2732 = vpop.f32.mrf.mxu0
  %2733 = vmatprep.mubr.bf16.mxu0 0
  %2734 = vmatmul.mubr.bf16.gmra.mxu0 %v2607
  %v2735 = vpop.f32.mrf.mxu0
  %v2736 = vadd.f32 0.0, %v2735
  %v2737 = vpop.f32.mrf.mxu0
  %v2738 = vpop.f32.mrf.mxu0
  %v2739 = vadd.f32 0.0, %v2738
  %v2740 = vpop.f32.mrf.mxu0
  %2741 = vmatprep.mubr.bf16.mxu0 0
  %2742 = vmatmul.mubr.bf16.gmra.mxu0 %v2608
  %v2743 = vpop.f32.mrf.mxu0
  %v2744 = vadd.f32 0.0, %v2743
  %v2745 = vpop.f32.mrf.mxu0
  %v2746 = vpop.f32.mrf.mxu0
  %v2747 = vadd.f32 0.0, %v2746
  %v2748 = vpop.f32.mrf.mxu0
  %2749 = vmatprep.mubr.bf16.mxu0 0
  %2750 = vmatmul.mubr.bf16.gmra.mxu0 %v2609
  %v2751 = vpop.f32.mrf.mxu0
  %v2752 = vadd.f32 0.0, %v2751
  %v2753 = vpop.f32.mrf.mxu0
  %v2754 = vpop.f32.mrf.mxu0
  %v2755 = vadd.f32 0.0, %v2754
  %v2756 = vpop.f32.mrf.mxu0
  %2757 = vmatprep.mubr.bf16.mxu0 0
  %2758 = vmatmul.mubr.bf16.gmra.mxu0 %v2610
  %v2759 = vpop.f32.mrf.mxu0
  %v2760 = vadd.f32 0.0, %v2759
  %v2761 = vpop.f32.mrf.mxu0
  %v2762 = vpop.f32.mrf.mxu0
  %v2763 = vadd.f32 0.0, %v2762
  %v2764 = vpop.f32.mrf.mxu0
  %2765 = vmatprep.mubr.bf16.mxu0 0
  %2766 = vmatmul.mubr.bf16.gmra.mxu0 %v2611
  %v2767 = vpop.f32.mrf.mxu0
  %v2768 = vadd.f32 0.0, %v2767
  %v2769 = vpop.f32.mrf.mxu0
  %v2770 = vpop.f32.mrf.mxu0
  %v2771 = vadd.f32 0.0, %v2770
  %v2772 = vpop.f32.mrf.mxu0
  %2773 = vdwg.mxu0
  %v2774 = vadd.f32 %v2573, %v2712
  %v2775 = vadd.f32 %v2574, %v2715
  %v2776 = vadd.f32 %v2575, %v2720
  %v2777 = vadd.f32 %v2576, %v2723
  %v2778 = vadd.f32 %v2577, %v2728
  %v2779 = vadd.f32 %v2578, %v2731
  %v2780 = vadd.f32 %v2579, %v2736
  %v2781 = vadd.f32 %v2580, %v2739
  %v2782 = vadd.f32 %v2581, %v2744
  %v2783 = vadd.f32 %v2582, %v2747
  %v2784 = vadd.f32 %v2583, %v2752
  %v2785 = vadd.f32 %v2584, %v2755
  %v2786 = vadd.f32 %v2585, %v2760
  %v2787 = vadd.f32 %v2586, %v2763
  %v2788 = vadd.f32 %v2587, %v2768
  %v2789 = vadd.f32 %v2588, %v2771
  %vm2790 = vmand %vm2353, %vm1473
  %vm2791 = vmand %vm2354, %vm1474
  %vm2792 = vmand %vm2355, %vm1475
  %vm2793 = vmand %vm2356, %vm1476
  %vm2794 = vmand %vm2357, %vm1477
  %vm2795 = vmand %vm2358, %vm1478
  %vm2796 = vmand %vm2359, %vm1479
  %vm2797 = vmand %vm2360, %vm1480
  %vm2798 = vmand %vm2361, %vm1481
  %vm2799 = vmand %vm2362, %vm1482
  %vm2800 = vmand %vm2363, %vm1483
  %vm2801 = vmand %vm2364, %vm1484
  %vm2802 = vmand %vm2365, %vm1485
  %vm2803 = vmand %vm2366, %vm1486
  %vm2804 = vmand %vm2367, %vm1487
  %vm2805 = vmand %vm2368, %vm1488
  %v2806 = vsel %vm1506, %v1507, %v1507
  %v2808 = vsel %vm2790, %v1513, 0.0
  %v2809 = vsel %vm2791, %v1515, 0.0
  %v2810 = vsel %vm2792, %v1517, 0.0
  %v2811 = vsel %vm2793, %v1519, 0.0
  %v2812 = vsel %vm2794, %v1521, 0.0
  %v2813 = vsel %vm2795, %v1523, 0.0
  %v2814 = vsel %vm2796, %v1525, 0.0
  %v2815 = vsel %vm2797, %v1527, 0.0
  %v2816 = vsel %vm2798, %v1529, 0.0
  %v2817 = vsel %vm2799, %v1531, 0.0
  %v2818 = vsel %vm2800, %v1533, 0.0
  %v2819 = vsel %vm2801, %v1535, 0.0
  %v2820 = vsel %vm2802, %v1537, 0.0
  %v2821 = vsel %vm2803, %v1539, 0.0
  %v2822 = vsel %vm2804, %v2149, 0.0
  %v2823 = vsel %vm2805, %v2806, 0.0
  %v2824 = vpack.c.bf16 %v2809, %v2808
  %v2825 = vpack.c.bf16 %v2811, %v2810
  %v2826 = vpack.c.bf16 %v2813, %v2812
  %v2827 = vpack.c.bf16 %v2815, %v2814
  %v2828 = vpack.c.bf16 %v2817, %v2816
  %v2829 = vpack.c.bf16 %v2819, %v2818
  %v2830 = vpack.c.bf16 %v2821, %v2820
  %v2831 = vpack.c.bf16 %v2823, %v2822
  %s2832 = scalar_lea.vmem %s2, 512
  %v2833 = vld [vmem:[%s2832] sm:$0xf]
  %v2834 = vld [vmem:[%s2832 + $0x4] sm:$0xf]
  %v2835 = vld [vmem:[%s2832 + $0x8] sm:$0xf]
  %v2836 = vld [vmem:[%s2832 + $0xc] sm:$0xf]
  %v2837 = vld [vmem:[%s2832 + $0x10] sm:$0xf]
  %v2838 = vld [vmem:[%s2832 + $0x14] sm:$0xf]
  %v2839 = vld [vmem:[%s2832 + $0x18] sm:$0xf]
  %v2840 = vld [vmem:[%s2832 + $0x1c] sm:$0xf]
  %v2841 = vld [vmem:[%s2832 + $0x20] sm:$0xf]
  %v2842 = vld [vmem:[%s2832 + $0x24] sm:$0xf]
  %v2843 = vld [vmem:[%s2832 + $0x28] sm:$0xf]
  %v2844 = vld [vmem:[%s2832 + $0x2c] sm:$0xf]
  %v2845 = vld [vmem:[%s2832 + $0x30] sm:$0xf]
  %v2846 = vld [vmem:[%s2832 + $0x34] sm:$0xf]
  %v2847 = vld [vmem:[%s2832 + $0x38] sm:$0xf]
  %v2848 = vld [vmem:[%s2832 + $0x3c] sm:$0xf]
  %v2865 = vunpack.c.l.b16 %v2833
  %v2866 = vunpack.c.l.b16 %v2834
  %v2867 = vunpack.c.l.b16 %v2835
  %v2868 = vunpack.c.l.b16 %v2836
  %v2869 = vunpack.c.l.b16 %v2837
  %v2870 = vunpack.c.l.b16 %v2838
  %v2871 = vunpack.c.l.b16 %v2839
  %v2872 = vunpack.c.l.b16 %v2840
  %v2873 = vunpack.c.l.b16 %v2841
  %v2874 = vunpack.c.l.b16 %v2842
  %v2875 = vunpack.c.l.b16 %v2843
  %v2876 = vunpack.c.l.b16 %v2844
  %v2877 = vunpack.c.l.b16 %v2845
  %v2878 = vunpack.c.l.b16 %v2846
  %v2879 = vunpack.c.l.b16 %v2847
  %v2880 = vunpack.c.l.b16 %v2848
  %v2881 = vpack.c.b16 %v2866, %v2865
  %v2882 = vpack.c.b16 %v2868, %v2867
  %v2883 = vpack.c.b16 %v2870, %v2869
  %v2884 = vpack.c.b16 %v2872, %v2871
  %v2885 = vpack.c.b16 %v2874, %v2873
  %v2886 = vpack.c.b16 %v2876, %v2875
  %v2887 = vpack.c.b16 %v2878, %v2877
  %v2888 = vpack.c.b16 %v2880, %v2879
  %2897 = vmatprep.subr.bf16.mxu0 0
  %2898 = vmatpush1.bf16.msra.mxu0 %v2888
  %2899 = vmatprep.subr.bf16.mxu0 0
  %2900 = vmatpush1.bf16.msra.mxu0 %v2887
  %2901 = vmatprep.subr.bf16.mxu0 0
  %2902 = vmatpush1.bf16.msra.mxu0 %v2886
  %2903 = vmatprep.subr.bf16.mxu0 0
  %2904 = vmatpush1.bf16.msra.mxu0 %v2885
  %2905 = vmatprep.subr.bf16.mxu0 0
  %2906 = vmatpush1.bf16.msra.mxu0 %v2884
  %2907 = vmatprep.subr.bf16.mxu0 0
  %2908 = vmatpush1.bf16.msra.mxu0 %v2883
  %2909 = vmatprep.subr.bf16.mxu0 0
  %2910 = vmatpush1.bf16.msra.mxu0 %v2882
  %2911 = vmatprep.subr.bf16.mxu0 0
  %2912 = vmatpush1.bf16.msra.mxu0 %v2881
  %2913 = vmatprep.subr.bf16.mxu0 0
  %2914 = vmatpush2.bf16.msra.mxu0 0
  %2915 = vmatprep.subr.bf16.mxu0 0
  %2916 = vmatpush2.bf16.msra.mxu0 0
  %2917 = vmatprep.subr.bf16.mxu0 0
  %2918 = vmatpush2.bf16.msra.mxu0 0
  %2919 = vmatprep.subr.bf16.mxu0 0
  %2920 = vmatpush2.bf16.msra.mxu0 0
  %2921 = vmatprep.subr.bf16.mxu0 0
  %2922 = vmatpush2.bf16.msra.mxu0 0
  %2923 = vmatprep.subr.bf16.mxu0 0
  %2924 = vmatpush2.bf16.msra.mxu0 0
  %2925 = vmatprep.subr.bf16.mxu0 0
  %2926 = vmatpush2.bf16.msra.mxu0 0
  %2927 = vmatprep.subr.bf16.mxu0 0
  %2928 = vmatpush2.bf16.msra.mxu0 0
  %2929 = vmatprep.mubr.bf16.mxu0 0
  %2930 = vmatmul.mubr.bf16.gmra.mxu0 %v2824
  %v2931 = vpop.f32.mrf.mxu0
  %v2932 = vadd.f32 0.0, %v2931
  %v2933 = vpop.f32.mrf.mxu0
  %v2934 = vpop.f32.mrf.mxu0
  %v2935 = vadd.f32 0.0, %v2934
  %v2936 = vpop.f32.mrf.mxu0
  %2937 = vmatprep.mubr.bf16.mxu0 0
  %2938 = vmatmul.mubr.bf16.gmra.mxu0 %v2825
  %v2939 = vpop.f32.mrf.mxu0
  %v2940 = vadd.f32 0.0, %v2939
  %v2941 = vpop.f32.mrf.mxu0
  %v2942 = vpop.f32.mrf.mxu0
  %v2943 = vadd.f32 0.0, %v2942
  %v2944 = vpop.f32.mrf.mxu0
  %2945 = vmatprep.mubr.bf16.mxu0 0
  %2946 = vmatmul.mubr.bf16.gmra.mxu0 %v2826
  %v2947 = vpop.f32.mrf.mxu0
  %v2948 = vadd.f32 0.0, %v2947
  %v2949 = vpop.f32.mrf.mxu0
  %v2950 = vpop.f32.mrf.mxu0
  %v2951 = vadd.f32 0.0, %v2950
  %v2952 = vpop.f32.mrf.mxu0
  %2953 = vmatprep.mubr.bf16.mxu0 0
  %2954 = vmatmul.mubr.bf16.gmra.mxu0 %v2827
  %v2955 = vpop.f32.mrf.mxu0
  %v2956 = vadd.f32 0.0, %v2955
  %v2957 = vpop.f32.mrf.mxu0
  %v2958 = vpop.f32.mrf.mxu0
  %v2959 = vadd.f32 0.0, %v2958
  %v2960 = vpop.f32.mrf.mxu0
  %2961 = vmatprep.mubr.bf16.mxu0 0
  %2962 = vmatmul.mubr.bf16.gmra.mxu0 %v2828
  %v2963 = vpop.f32.mrf.mxu0
  %v2964 = vadd.f32 0.0, %v2963
  %v2965 = vpop.f32.mrf.mxu0
  %v2966 = vpop.f32.mrf.mxu0
  %v2967 = vadd.f32 0.0, %v2966
  %v2968 = vpop.f32.mrf.mxu0
  %2969 = vmatprep.mubr.bf16.mxu0 0
  %2970 = vmatmul.mubr.bf16.gmra.mxu0 %v2829
  %v2971 = vpop.f32.mrf.mxu0
  %v2972 = vadd.f32 0.0, %v2971
  %v2973 = vpop.f32.mrf.mxu0
  %v2974 = vpop.f32.mrf.mxu0
  %v2975 = vadd.f32 0.0, %v2974
  %v2976 = vpop.f32.mrf.mxu0
  %2977 = vmatprep.mubr.bf16.mxu0 0
  %2978 = vmatmul.mubr.bf16.gmra.mxu0 %v2830
  %v2979 = vpop.f32.mrf.mxu0
  %v2980 = vadd.f32 0.0, %v2979
  %v2981 = vpop.f32.mrf.mxu0
  %v2982 = vpop.f32.mrf.mxu0
  %v2983 = vadd.f32 0.0, %v2982
  %v2984 = vpop.f32.mrf.mxu0
  %2985 = vmatprep.mubr.bf16.mxu0 0
  %2986 = vmatmul.mubr.bf16.gmra.mxu0 %v2831
  %v2987 = vpop.f32.mrf.mxu0
  %v2988 = vadd.f32 0.0, %v2987
  %v2989 = vpop.f32.mrf.mxu0
  %v2990 = vpop.f32.mrf.mxu0
  %v2991 = vadd.f32 0.0, %v2990
  %v2992 = vpop.f32.mrf.mxu0
  %2993 = vdwg.mxu0
  %v2994 = vadd.f32 %v2774, %v2932
  %v2995 = vadd.f32 %v2775, %v2935
  %v2996 = vadd.f32 %v2776, %v2940
  %v2997 = vadd.f32 %v2777, %v2943
  %v2998 = vadd.f32 %v2778, %v2948
  %v2999 = vadd.f32 %v2779, %v2951
  %v3000 = vadd.f32 %v2780, %v2956
  %v3001 = vadd.f32 %v2781, %v2959
  %v3002 = vadd.f32 %v2782, %v2964
  %v3003 = vadd.f32 %v2783, %v2967
  %v3004 = vadd.f32 %v2784, %v2972
  %v3005 = vadd.f32 %v2785, %v2975
  %v3006 = vadd.f32 %v2786, %v2980
  %v3007 = vadd.f32 %v2787, %v2983
  %v3008 = vadd.f32 %v2788, %v2988
  %v3009 = vadd.f32 %v2789, %v2991
  %s3010 = scalar_lea.vmem %s3, 1
  %v3011 = vld [vmem:[%s3010] sm:$0x1]
  %v3013 = vlaneseq
  %v3014 = vshrl.u32 %v3013, 7
  %v3015 = vsub.s32 0, %v3014
  %v3016 = vrot.slane %v3011, %v3015
  %v3018 = vmul.f32 %v2994, %v3016
  %v3019 = vmul.f32 %v2995, %v3016
  %v3020 = vmul.f32 %v2996, %v3016
  %v3021 = vmul.f32 %v2997, %v3016
  %v3022 = vmul.f32 %v2998, %v3016
  %v3023 = vmul.f32 %v2999, %v3016
  %v3024 = vmul.f32 %v3000, %v3016
  %v3025 = vmul.f32 %v3001, %v3016
  %v3026 = vmul.f32 %v3002, %v3016
  %v3027 = vmul.f32 %v3003, %v3016
  %v3028 = vmul.f32 %v3004, %v3016
  %v3029 = vmul.f32 %v3005, %v3016
  %v3030 = vmul.f32 %v3006, %v3016
  %v3031 = vmul.f32 %v3007, %v3016
  %v3032 = vmul.f32 %v3008, %v3016
  %v3033 = vmul.f32 %v3009, %v3016
  %s3034 = scalar_lea.vmem %s4, 1
  %v3035 = vld [vmem:[%s3034] sm:$0x1]
  %v3037 = vlaneseq
  %v3038 = vshrl.u32 %v3037, 7
  %v3039 = vsub.s32 0, %v3038
  %v3040 = vrot.slane %v3035, %v3039
  %v3042 = vadd.f32 %v3018, %v3040
  %v3043 = vadd.f32 %v3019, %v3040
  %v3044 = vadd.f32 %v3020, %v3040
  %v3045 = vadd.f32 %v3021, %v3040
  %v3046 = vadd.f32 %v3022, %v3040
  %v3047 = vadd.f32 %v3023, %v3040
  %v3048 = vadd.f32 %v3024, %v3040
  %v3049 = vadd.f32 %v3025, %v3040
  %v3050 = vadd.f32 %v3026, %v3040
  %v3051 = vadd.f32 %v3027, %v3040
  %v3052 = vadd.f32 %v3028, %v3040
  %v3053 = vadd.f32 %v3029, %v3040
  %v3054 = vadd.f32 %v3030, %v3040
  %v3055 = vadd.f32 %v3031, %v3040
  %v3056 = vadd.f32 %v3032, %v3040
  %v3057 = vadd.f32 %v3033, %v3040
  %v3058 = vmax.f32 %v3042, 0.0
  %v3059 = vmax.f32 %v3043, 0.0
  %v3060 = vmax.f32 %v3044, 0.0
  %v3061 = vmax.f32 %v3045, 0.0
  %v3062 = vmax.f32 %v3046, 0.0
  %v3063 = vmax.f32 %v3047, 0.0
  %v3064 = vmax.f32 %v3048, 0.0
  %v3065 = vmax.f32 %v3049, 0.0
  %v3066 = vmax.f32 %v3050, 0.0
  %v3067 = vmax.f32 %v3051, 0.0
  %v3068 = vmax.f32 %v3052, 0.0
  %v3069 = vmax.f32 %v3053, 0.0
  %v3070 = vmax.f32 %v3054, 0.0
  %v3071 = vmax.f32 %v3055, 0.0
  %v3072 = vmax.f32 %v3056, 0.0
  %v3073 = vmax.f32 %v3057, 0.0
  %v3089 = vrot.slane %v3058, 7
  %v3090 = vsel %vm1054, %v1055, %v3089
  %v3091 = vrot.slane %v3059, 7
  %v3092 = vsel %vm1054, %v3089, %v3091
  %v3093 = vrot.slane %v3060, 7
  %v3094 = vsel %vm1054, %v3091, %v3093
  %v3095 = vrot.slane %v3061, 7
  %v3096 = vsel %vm1054, %v3093, %v3095
  %v3097 = vrot.slane %v3062, 7
  %v3098 = vsel %vm1054, %v3095, %v3097
  %v3099 = vrot.slane %v3063, 7
  %v3100 = vsel %vm1054, %v3097, %v3099
  %v3101 = vrot.slane %v3064, 7
  %v3102 = vsel %vm1054, %v3099, %v3101
  %v3103 = vrot.slane %v3065, 7
  %v3104 = vsel %vm1054, %v3101, %v3103
  %v3105 = vrot.slane %v3066, 7
  %v3106 = vsel %vm1054, %v3103, %v3105
  %v3107 = vrot.slane %v3067, 7
  %v3108 = vsel %vm1054, %v3105, %v3107
  %v3109 = vrot.slane %v3068, 7
  %v3110 = vsel %vm1054, %v3107, %v3109
  %v3111 = vrot.slane %v3069, 7
  %v3112 = vsel %vm1054, %v3109, %v3111
  %v3113 = vrot.slane %v3070, 7
  %v3114 = vsel %vm1054, %v3111, %v3113
  %v3115 = vrot.slane %v3071, 7
  %v3116 = vsel %vm1054, %v3113, %v3115
  %v3117 = vrot.slane %v3072, 7
  %v3118 = vsel %vm1054, %v3115, %v3117
  %v3134 = vsel %vm1023, %v3090, 0.0
  %v3135 = vsel %vm1024, %v3092, 0.0
  %v3136 = vsel %vm1025, %v3094, 0.0
  %v3137 = vsel %vm1026, %v3096, 0.0
  %v3138 = vsel %vm1027, %v3098, 0.0
  %v3139 = vsel %vm1028, %v3100, 0.0
  %v3140 = vsel %vm1029, %v3102, 0.0
  %v3141 = vsel %vm1030, %v3104, 0.0
  %v3142 = vsel %vm1031, %v3106, 0.0
  %v3143 = vsel %vm1032, %v3108, 0.0
  %v3144 = vsel %vm1033, %v3110, 0.0
  %v3145 = vsel %vm1034, %v3112, 0.0
  %v3146 = vsel %vm1035, %v3114, 0.0
  %v3147 = vsel %vm1036, %v3116, 0.0
  %v3148 = vsel %vm1037, %v3118, 0.0
  %v3149 = vpack.c.bf16 %v3134, %v1103
  %v3150 = vpack.c.bf16 %v3136, %v3135
  %v3151 = vpack.c.bf16 %v3138, %v3137
  %v3152 = vpack.c.bf16 %v3140, %v3139
  %v3153 = vpack.c.bf16 %v3142, %v3141
  %v3154 = vpack.c.bf16 %v3144, %v3143
  %v3155 = vpack.c.bf16 %v3146, %v3145
  %v3156 = vpack.c.bf16 %v3148, %v3147
  %s3157 = scalar_lea.vmem %s2, 576
  %v3158 = vld [vmem:[%s3157] sm:$0xf]
  %v3159 = vld [vmem:[%s3157 + $0x4] sm:$0xf]
  %v3160 = vld [vmem:[%s3157 + $0x8] sm:$0xf]
  %v3161 = vld [vmem:[%s3157 + $0xc] sm:$0xf]
  %v3162 = vld [vmem:[%s3157 + $0x10] sm:$0xf]
  %v3163 = vld [vmem:[%s3157 + $0x14] sm:$0xf]
  %v3164 = vld [vmem:[%s3157 + $0x18] sm:$0xf]
  %v3165 = vld [vmem:[%s3157 + $0x1c] sm:$0xf]
  %v3166 = vld [vmem:[%s3157 + $0x20] sm:$0xf]
  %v3167 = vld [vmem:[%s3157 + $0x24] sm:$0xf]
  %v3168 = vld [vmem:[%s3157 + $0x28] sm:$0xf]
  %v3169 = vld [vmem:[%s3157 + $0x2c] sm:$0xf]
  %v3170 = vld [vmem:[%s3157 + $0x30] sm:$0xf]
  %v3171 = vld [vmem:[%s3157 + $0x34] sm:$0xf]
  %v3172 = vld [vmem:[%s3157 + $0x38] sm:$0xf]
  %v3173 = vld [vmem:[%s3157 + $0x3c] sm:$0xf]
  %v3174 = vsel %vm991, %v3058, 0.0
  %v3175 = vsel %vm992, %v3059, 0.0
  %v3176 = vsel %vm993, %v3060, 0.0
  %v3177 = vsel %vm994, %v3061, 0.0
  %v3178 = vsel %vm995, %v3062, 0.0
  %v3179 = vsel %vm996, %v3063, 0.0
  %v3180 = vsel %vm997, %v3064, 0.0
  %v3181 = vsel %vm998, %v3065, 0.0
  %v3182 = vsel %vm999, %v3066, 0.0
  %v3183 = vsel %vm1000, %v3067, 0.0
  %v3184 = vsel %vm1001, %v3068, 0.0
  %v3185 = vsel %vm1002, %v3069, 0.0
  %v3186 = vsel %vm1003, %v3070, 0.0
  %v3187 = vsel %vm1004, %v3071, 0.0
  %v3188 = vsel %vm1005, %v3072, 0.0
  %v3189 = vpack.c.bf16 %v3174, 0.0
  %v3190 = vpack.c.bf16 %v3176, %v3175
  %v3191 = vpack.c.bf16 %v3178, %v3177
  %v3192 = vpack.c.bf16 %v3180, %v3179
  %v3193 = vpack.c.bf16 %v3182, %v3181
  %v3194 = vpack.c.bf16 %v3184, %v3183
  %v3195 = vpack.c.bf16 %v3186, %v3185
  %v3196 = vpack.c.bf16 %v3188, %v3187
  %s3197 = scalar_lea.vmem %s2, 640
  %v3198 = vld [vmem:[%s3197] sm:$0xf]
  %v3199 = vld [vmem:[%s3197 + $0x4] sm:$0xf]
  %v3200 = vld [vmem:[%s3197 + $0x8] sm:$0xf]
  %v3201 = vld [vmem:[%s3197 + $0xc] sm:$0xf]
  %v3202 = vld [vmem:[%s3197 + $0x10] sm:$0xf]
  %v3203 = vld [vmem:[%s3197 + $0x14] sm:$0xf]
  %v3204 = vld [vmem:[%s3197 + $0x18] sm:$0xf]
  %v3205 = vld [vmem:[%s3197 + $0x1c] sm:$0xf]
  %v3206 = vld [vmem:[%s3197 + $0x20] sm:$0xf]
  %v3207 = vld [vmem:[%s3197 + $0x24] sm:$0xf]
  %v3208 = vld [vmem:[%s3197 + $0x28] sm:$0xf]
  %v3209 = vld [vmem:[%s3197 + $0x2c] sm:$0xf]
  %v3210 = vld [vmem:[%s3197 + $0x30] sm:$0xf]
  %v3211 = vld [vmem:[%s3197 + $0x34] sm:$0xf]
  %v3212 = vld [vmem:[%s3197 + $0x38] sm:$0xf]
  %v3213 = vld [vmem:[%s3197 + $0x3c] sm:$0xf]
  %v3230 = vunpack.c.l.b16 %v3198
  %v3231 = vunpack.c.l.b16 %v3199
  %v3232 = vunpack.c.l.b16 %v3200
  %v3233 = vunpack.c.l.b16 %v3201
  %v3234 = vunpack.c.l.b16 %v3202
  %v3235 = vunpack.c.l.b16 %v3203
  %v3236 = vunpack.c.l.b16 %v3204
  %v3237 = vunpack.c.l.b16 %v3205
  %v3238 = vunpack.c.l.b16 %v3206
  %v3239 = vunpack.c.l.b16 %v3207
  %v3240 = vunpack.c.l.b16 %v3208
  %v3241 = vunpack.c.l.b16 %v3209
  %v3242 = vunpack.c.l.b16 %v3210
  %v3243 = vunpack.c.l.b16 %v3211
  %v3244 = vunpack.c.l.b16 %v3212
  %v3245 = vunpack.c.l.b16 %v3213
  %v3246 = vpack.c.b16 %v3231, %v3230
  %v3247 = vpack.c.b16 %v3233, %v3232
  %v3248 = vpack.c.b16 %v3235, %v3234
  %v3249 = vpack.c.b16 %v3237, %v3236
  %v3250 = vpack.c.b16 %v3239, %v3238
  %v3251 = vpack.c.b16 %v3241, %v3240
  %v3252 = vpack.c.b16 %v3243, %v3242
  %v3253 = vpack.c.b16 %v3245, %v3244
  %3262 = vmatprep.subr.bf16.mxu0 0
  %3263 = vmatpush1.bf16.msra.mxu0 %v3253
  %3264 = vmatprep.subr.bf16.mxu0 0
  %3265 = vmatpush1.bf16.msra.mxu0 %v3252
  %3266 = vmatprep.subr.bf16.mxu0 0
  %3267 = vmatpush1.bf16.msra.mxu0 %v3251
  %3268 = vmatprep.subr.bf16.mxu0 0
  %3269 = vmatpush1.bf16.msra.mxu0 %v3250
  %3270 = vmatprep.subr.bf16.mxu0 0
  %3271 = vmatpush1.bf16.msra.mxu0 %v3249
  %3272 = vmatprep.subr.bf16.mxu0 0
  %3273 = vmatpush1.bf16.msra.mxu0 %v3248
  %3274 = vmatprep.subr.bf16.mxu0 0
  %3275 = vmatpush1.bf16.msra.mxu0 %v3247
  %3276 = vmatprep.subr.bf16.mxu0 0
  %3277 = vmatpush1.bf16.msra.mxu0 %v3246
  %3278 = vmatprep.subr.bf16.mxu0 0
  %3279 = vmatpush2.bf16.msra.mxu0 0
  %3280 = vmatprep.subr.bf16.mxu0 0
  %3281 = vmatpush2.bf16.msra.mxu0 0
  %3282 = vmatprep.subr.bf16.mxu0 0
  %3283 = vmatpush2.bf16.msra.mxu0 0
  %3284 = vmatprep.subr.bf16.mxu0 0
  %3285 = vmatpush2.bf16.msra.mxu0 0
  %3286 = vmatprep.subr.bf16.mxu0 0
  %3287 = vmatpush2.bf16.msra.mxu0 0
  %3288 = vmatprep.subr.bf16.mxu0 0
  %3289 = vmatpush2.bf16.msra.mxu0 0
  %3290 = vmatprep.subr.bf16.mxu0 0
  %3291 = vmatpush2.bf16.msra.mxu0 0
  %3292 = vmatprep.subr.bf16.mxu0 0
  %3293 = vmatpush2.bf16.msra.mxu0 0
  %3294 = vmatprep.mubr.bf16.mxu0 0
  %3295 = vmatmul.mubr.bf16.gmra.mxu0 %v3189
  %v3296 = vpop.f32.mrf.mxu0
  %v3297 = vadd.f32 0.0, %v3296
  %v3298 = vpop.f32.mrf.mxu0
  %v3299 = vpop.f32.mrf.mxu0
  %v3300 = vadd.f32 0.0, %v3299
  %v3301 = vpop.f32.mrf.mxu0
  %3302 = vmatprep.mubr.bf16.mxu0 0
  %3303 = vmatmul.mubr.bf16.gmra.mxu0 %v3190
  %v3304 = vpop.f32.mrf.mxu0
  %v3305 = vadd.f32 0.0, %v3304
  %v3306 = vpop.f32.mrf.mxu0
  %v3307 = vpop.f32.mrf.mxu0
  %v3308 = vadd.f32 0.0, %v3307
  %v3309 = vpop.f32.mrf.mxu0
  %3310 = vmatprep.mubr.bf16.mxu0 0
  %3311 = vmatmul.mubr.bf16.gmra.mxu0 %v3191
  %v3312 = vpop.f32.mrf.mxu0
  %v3313 = vadd.f32 0.0, %v3312
  %v3314 = vpop.f32.mrf.mxu0
  %v3315 = vpop.f32.mrf.mxu0
  %v3316 = vadd.f32 0.0, %v3315
  %v3317 = vpop.f32.mrf.mxu0
  %3318 = vmatprep.mubr.bf16.mxu0 0
  %3319 = vmatmul.mubr.bf16.gmra.mxu0 %v3192
  %v3320 = vpop.f32.mrf.mxu0
  %v3321 = vadd.f32 0.0, %v3320
  %v3322 = vpop.f32.mrf.mxu0
  %v3323 = vpop.f32.mrf.mxu0
  %v3324 = vadd.f32 0.0, %v3323
  %v3325 = vpop.f32.mrf.mxu0
  %3326 = vmatprep.mubr.bf16.mxu0 0
  %3327 = vmatmul.mubr.bf16.gmra.mxu0 %v3193
  %v3328 = vpop.f32.mrf.mxu0
  %v3329 = vadd.f32 0.0, %v3328
  %v3330 = vpop.f32.mrf.mxu0
  %v3331 = vpop.f32.mrf.mxu0
  %v3332 = vadd.f32 0.0, %v3331
  %v3333 = vpop.f32.mrf.mxu0
  %3334 = vmatprep.mubr.bf16.mxu0 0
  %3335 = vmatmul.mubr.bf16.gmra.mxu0 %v3194
  %v3336 = vpop.f32.mrf.mxu0
  %v3337 = vadd.f32 0.0, %v3336
  %v3338 = vpop.f32.mrf.mxu0
  %v3339 = vpop.f32.mrf.mxu0
  %v3340 = vadd.f32 0.0, %v3339
  %v3341 = vpop.f32.mrf.mxu0
  %3342 = vmatprep.mubr.bf16.mxu0 0
  %3343 = vmatmul.mubr.bf16.gmra.mxu0 %v3195
  %v3344 = vpop.f32.mrf.mxu0
  %v3345 = vadd.f32 0.0, %v3344
  %v3346 = vpop.f32.mrf.mxu0
  %v3347 = vpop.f32.mrf.mxu0
  %v3348 = vadd.f32 0.0, %v3347
  %v3349 = vpop.f32.mrf.mxu0
  %3350 = vmatprep.mubr.bf16.mxu0 0
  %3351 = vmatmul.mubr.bf16.gmra.mxu0 %v3196
  %v3352 = vpop.f32.mrf.mxu0
  %v3353 = vadd.f32 0.0, %v3352
  %v3354 = vpop.f32.mrf.mxu0
  %v3355 = vpop.f32.mrf.mxu0
  %v3356 = vadd.f32 0.0, %v3355
  %v3357 = vpop.f32.mrf.mxu0
  %3358 = vdwg.mxu0
  %v3375 = vunpack.c.l.b16 %v3158
  %v3376 = vunpack.c.l.b16 %v3159
  %v3377 = vunpack.c.l.b16 %v3160
  %v3378 = vunpack.c.l.b16 %v3161
  %v3379 = vunpack.c.l.b16 %v3162
  %v3380 = vunpack.c.l.b16 %v3163
  %v3381 = vunpack.c.l.b16 %v3164
  %v3382 = vunpack.c.l.b16 %v3165
  %v3383 = vunpack.c.l.b16 %v3166
  %v3384 = vunpack.c.l.b16 %v3167
  %v3385 = vunpack.c.l.b16 %v3168
  %v3386 = vunpack.c.l.b16 %v3169
  %v3387 = vunpack.c.l.b16 %v3170
  %v3388 = vunpack.c.l.b16 %v3171
  %v3389 = vunpack.c.l.b16 %v3172
  %v3390 = vunpack.c.l.b16 %v3173
  %v3391 = vpack.c.b16 %v3376, %v3375
  %v3392 = vpack.c.b16 %v3378, %v3377
  %v3393 = vpack.c.b16 %v3380, %v3379
  %v3394 = vpack.c.b16 %v3382, %v3381
  %v3395 = vpack.c.b16 %v3384, %v3383
  %v3396 = vpack.c.b16 %v3386, %v3385
  %v3397 = vpack.c.b16 %v3388, %v3387
  %v3398 = vpack.c.b16 %v3390, %v3389
  %3407 = vmatprep.subr.bf16.mxu0 0
  %3408 = vmatpush1.bf16.msra.mxu0 %v3398
  %3409 = vmatprep.subr.bf16.mxu0 0
  %3410 = vmatpush1.bf16.msra.mxu0 %v3397
  %3411 = vmatprep.subr.bf16.mxu0 0
  %3412 = vmatpush1.bf16.msra.mxu0 %v3396
  %3413 = vmatprep.subr.bf16.mxu0 0
  %3414 = vmatpush1.bf16.msra.mxu0 %v3395
  %3415 = vmatprep.subr.bf16.mxu0 0
  %3416 = vmatpush1.bf16.msra.mxu0 %v3394
  %3417 = vmatprep.subr.bf16.mxu0 0
  %3418 = vmatpush1.bf16.msra.mxu0 %v3393
  %3419 = vmatprep.subr.bf16.mxu0 0
  %3420 = vmatpush1.bf16.msra.mxu0 %v3392
  %3421 = vmatprep.subr.bf16.mxu0 0
  %3422 = vmatpush1.bf16.msra.mxu0 %v3391
  %3423 = vmatprep.subr.bf16.mxu0 0
  %3424 = vmatpush2.bf16.msra.mxu0 0
  %3425 = vmatprep.subr.bf16.mxu0 0
  %3426 = vmatpush2.bf16.msra.mxu0 0
  %3427 = vmatprep.subr.bf16.mxu0 0
  %3428 = vmatpush2.bf16.msra.mxu0 0
  %3429 = vmatprep.subr.bf16.mxu0 0
  %3430 = vmatpush2.bf16.msra.mxu0 0
  %3431 = vmatprep.subr.bf16.mxu0 0
  %3432 = vmatpush2.bf16.msra.mxu0 0
  %3433 = vmatprep.subr.bf16.mxu0 0
  %3434 = vmatpush2.bf16.msra.mxu0 0
  %3435 = vmatprep.subr.bf16.mxu0 0
  %3436 = vmatpush2.bf16.msra.mxu0 0
  %3437 = vmatprep.subr.bf16.mxu0 0
  %3438 = vmatpush2.bf16.msra.mxu0 0
  %3439 = vmatprep.mubr.bf16.mxu0 0
  %3440 = vmatmul.mubr.bf16.gmra.mxu0 %v3149
  %v3441 = vpop.f32.mrf.mxu0
  %v3442 = vadd.f32 %v3297, %v3441
  %v3443 = vpop.f32.mrf.mxu0
  %v3444 = vpop.f32.mrf.mxu0
  %v3445 = vadd.f32 %v3300, %v3444
  %v3446 = vpop.f32.mrf.mxu0
  %3447 = vmatprep.mubr.bf16.mxu0 0
  %3448 = vmatmul.mubr.bf16.gmra.mxu0 %v3150
  %v3449 = vpop.f32.mrf.mxu0
  %v3450 = vadd.f32 %v3305, %v3449
  %v3451 = vpop.f32.mrf.mxu0
  %v3452 = vpop.f32.mrf.mxu0
  %v3453 = vadd.f32 %v3308, %v3452
  %v3454 = vpop.f32.mrf.mxu0
  %3455 = vmatprep.mubr.bf16.mxu0 0
  %3456 = vmatmul.mubr.bf16.gmra.mxu0 %v3151
  %v3457 = vpop.f32.mrf.mxu0
  %v3458 = vadd.f32 %v3313, %v3457
  %v3459 = vpop.f32.mrf.mxu0
  %v3460 = vpop.f32.mrf.mxu0
  %v3461 = vadd.f32 %v3316, %v3460
  %v3462 = vpop.f32.mrf.mxu0
  %3463 = vmatprep.mubr.bf16.mxu0 0
  %3464 = vmatmul.mubr.bf16.gmra.mxu0 %v3152
  %v3465 = vpop.f32.mrf.mxu0
  %v3466 = vadd.f32 %v3321, %v3465
  %v3467 = vpop.f32.mrf.mxu0
  %v3468 = vpop.f32.mrf.mxu0
  %v3469 = vadd.f32 %v3324, %v3468
  %v3470 = vpop.f32.mrf.mxu0
  %3471 = vmatprep.mubr.bf16.mxu0 0
  %3472 = vmatmul.mubr.bf16.gmra.mxu0 %v3153
  %v3473 = vpop.f32.mrf.mxu0
  %v3474 = vadd.f32 %v3329, %v3473
  %v3475 = vpop.f32.mrf.mxu0
  %v3476 = vpop.f32.mrf.mxu0
  %v3477 = vadd.f32 %v3332, %v3476
  %v3478 = vpop.f32.mrf.mxu0
  %3479 = vmatprep.mubr.bf16.mxu0 0
  %3480 = vmatmul.mubr.bf16.gmra.mxu0 %v3154
  %v3481 = vpop.f32.mrf.mxu0
  %v3482 = vadd.f32 %v3337, %v3481
  %v3483 = vpop.f32.mrf.mxu0
  %v3484 = vpop.f32.mrf.mxu0
  %v3485 = vadd.f32 %v3340, %v3484
  %v3486 = vpop.f32.mrf.mxu0
  %3487 = vmatprep.mubr.bf16.mxu0 0
  %3488 = vmatmul.mubr.bf16.gmra.mxu0 %v3155
  %v3489 = vpop.f32.mrf.mxu0
  %v3490 = vadd.f32 %v3345, %v3489
  %v3491 = vpop.f32.mrf.mxu0
  %v3492 = vpop.f32.mrf.mxu0
  %v3493 = vadd.f32 %v3348, %v3492
  %v3494 = vpop.f32.mrf.mxu0
  %3495 = vmatprep.mubr.bf16.mxu0 0
  %3496 = vmatmul.mubr.bf16.gmra.mxu0 %v3156
  %v3497 = vpop.f32.mrf.mxu0
  %v3498 = vadd.f32 %v3353, %v3497
  %v3499 = vpop.f32.mrf.mxu0
  %v3500 = vpop.f32.mrf.mxu0
  %v3501 = vadd.f32 %v3356, %v3500
  %v3502 = vpop.f32.mrf.mxu0
  %3503 = vdwg.mxu0
  %v3505 = vrot.slane %v3058, 1
  %v3506 = vsel %vm1506, %v1507, %v3505
  %v3507 = vrot.slane %v3059, 1
  %v3508 = vsel %vm1506, %v3505, %v3507
  %v3509 = vrot.slane %v3060, 1
  %v3510 = vsel %vm1506, %v3507, %v3509
  %v3511 = vrot.slane %v3061, 1
  %v3512 = vsel %vm1506, %v3509, %v3511
  %v3513 = vrot.slane %v3062, 1
  %v3514 = vsel %vm1506, %v3511, %v3513
  %v3515 = vrot.slane %v3063, 1
  %v3516 = vsel %vm1506, %v3513, %v3515
  %v3517 = vrot.slane %v3064, 1
  %v3518 = vsel %vm1506, %v3515, %v3517
  %v3519 = vrot.slane %v3065, 1
  %v3520 = vsel %vm1506, %v3517, %v3519
  %v3521 = vrot.slane %v3066, 1
  %v3522 = vsel %vm1506, %v3519, %v3521
  %v3523 = vrot.slane %v3067, 1
  %v3524 = vsel %vm1506, %v3521, %v3523
  %v3525 = vrot.slane %v3068, 1
  %v3526 = vsel %vm1506, %v3523, %v3525
  %v3527 = vrot.slane %v3069, 1
  %v3528 = vsel %vm1506, %v3525, %v3527
  %v3529 = vrot.slane %v3070, 1
  %v3530 = vsel %vm1506, %v3527, %v3529
  %v3531 = vrot.slane %v3071, 1
  %v3532 = vsel %vm1506, %v3529, %v3531
  %v3533 = vrot.slane %v3072, 1
  %v3534 = vsel %vm1506, %v3531, %v3533
  %v3535 = vrot.slane %v3073, 1
  %v3536 = vsel %vm1506, %v3533, %v3535
  %v3553 = vsel %vm1489, %v3506, 0.0
  %v3554 = vsel %vm1490, %v3508, 0.0
  %v3555 = vsel %vm1491, %v3510, 0.0
  %v3556 = vsel %vm1492, %v3512, 0.0
  %v3557 = vsel %vm1493, %v3514, 0.0
  %v3558 = vsel %vm1494, %v3516, 0.0
  %v3559 = vsel %vm1495, %v3518, 0.0
  %v3560 = vsel %vm1496, %v3520, 0.0
  %v3561 = vsel %vm1497, %v3522, 0.0
  %v3562 = vsel %vm1498, %v3524, 0.0
  %v3563 = vsel %vm1499, %v3526, 0.0
  %v3564 = vsel %vm1500, %v3528, 0.0
  %v3565 = vsel %vm1501, %v3530, 0.0
  %v3566 = vsel %vm1502, %v3532, 0.0
  %v3567 = vsel %vm1503, %v3534, 0.0
  %v3568 = vsel %vm1504, %v3536, 0.0
  %v3569 = vpack.c.bf16 %v3554, %v3553
  %v3570 = vpack.c.bf16 %v3556, %v3555
  %v3571 = vpack.c.bf16 %v3558, %v3557
  %v3572 = vpack.c.bf16 %v3560, %v3559
  %v3573 = vpack.c.bf16 %v3562, %v3561
  %v3574 = vpack.c.bf16 %v3564, %v3563
  %v3575 = vpack.c.bf16 %v3566, %v3565
  %v3576 = vpack.c.bf16 %v3568, %v3567
  %s3577 = scalar_lea.vmem %s2, 704
  %v3578 = vld [vmem:[%s3577] sm:$0xf]
  %v3579 = vld [vmem:[%s3577 + $0x4] sm:$0xf]
  %v3580 = vld [vmem:[%s3577 + $0x8] sm:$0xf]
  %v3581 = vld [vmem:[%s3577 + $0xc] sm:$0xf]
  %v3582 = vld [vmem:[%s3577 + $0x10] sm:$0xf]
  %v3583 = vld [vmem:[%s3577 + $0x14] sm:$0xf]
  %v3584 = vld [vmem:[%s3577 + $0x18] sm:$0xf]
  %v3585 = vld [vmem:[%s3577 + $0x1c] sm:$0xf]
  %v3586 = vld [vmem:[%s3577 + $0x20] sm:$0xf]
  %v3587 = vld [vmem:[%s3577 + $0x24] sm:$0xf]
  %v3588 = vld [vmem:[%s3577 + $0x28] sm:$0xf]
  %v3589 = vld [vmem:[%s3577 + $0x2c] sm:$0xf]
  %v3590 = vld [vmem:[%s3577 + $0x30] sm:$0xf]
  %v3591 = vld [vmem:[%s3577 + $0x34] sm:$0xf]
  %v3592 = vld [vmem:[%s3577 + $0x38] sm:$0xf]
  %v3593 = vld [vmem:[%s3577 + $0x3c] sm:$0xf]
  %v3610 = vunpack.c.l.b16 %v3578
  %v3611 = vunpack.c.l.b16 %v3579
  %v3612 = vunpack.c.l.b16 %v3580
  %v3613 = vunpack.c.l.b16 %v3581
  %v3614 = vunpack.c.l.b16 %v3582
  %v3615 = vunpack.c.l.b16 %v3583
  %v3616 = vunpack.c.l.b16 %v3584
  %v3617 = vunpack.c.l.b16 %v3585
  %v3618 = vunpack.c.l.b16 %v3586
  %v3619 = vunpack.c.l.b16 %v3587
  %v3620 = vunpack.c.l.b16 %v3588
  %v3621 = vunpack.c.l.b16 %v3589
  %v3622 = vunpack.c.l.b16 %v3590
  %v3623 = vunpack.c.l.b16 %v3591
  %v3624 = vunpack.c.l.b16 %v3592
  %v3625 = vunpack.c.l.b16 %v3593
  %v3626 = vpack.c.b16 %v3611, %v3610
  %v3627 = vpack.c.b16 %v3613, %v3612
  %v3628 = vpack.c.b16 %v3615, %v3614
  %v3629 = vpack.c.b16 %v3617, %v3616
  %v3630 = vpack.c.b16 %v3619, %v3618
  %v3631 = vpack.c.b16 %v3621, %v3620
  %v3632 = vpack.c.b16 %v3623, %v3622
  %v3633 = vpack.c.b16 %v3625, %v3624
  %3642 = vmatprep.subr.bf16.mxu0 0
  %3643 = vmatpush1.bf16.msra.mxu0 %v3633
  %3644 = vmatprep.subr.bf16.mxu0 0
  %3645 = vmatpush1.bf16.msra.mxu0 %v3632
  %3646 = vmatprep.subr.bf16.mxu0 0
  %3647 = vmatpush1.bf16.msra.mxu0 %v3631
  %3648 = vmatprep.subr.bf16.mxu0 0
  %3649 = vmatpush1.bf16.msra.mxu0 %v3630
  %3650 = vmatprep.subr.bf16.mxu0 0
  %3651 = vmatpush1.bf16.msra.mxu0 %v3629
  %3652 = vmatprep.subr.bf16.mxu0 0
  %3653 = vmatpush1.bf16.msra.mxu0 %v3628
  %3654 = vmatprep.subr.bf16.mxu0 0
  %3655 = vmatpush1.bf16.msra.mxu0 %v3627
  %3656 = vmatprep.subr.bf16.mxu0 0
  %3657 = vmatpush1.bf16.msra.mxu0 %v3626
  %3658 = vmatprep.subr.bf16.mxu0 0
  %3659 = vmatpush2.bf16.msra.mxu0 0
  %3660 = vmatprep.subr.bf16.mxu0 0
  %3661 = vmatpush2.bf16.msra.mxu0 0
  %3662 = vmatprep.subr.bf16.mxu0 0
  %3663 = vmatpush2.bf16.msra.mxu0 0
  %3664 = vmatprep.subr.bf16.mxu0 0
  %3665 = vmatpush2.bf16.msra.mxu0 0
  %3666 = vmatprep.subr.bf16.mxu0 0
  %3667 = vmatpush2.bf16.msra.mxu0 0
  %3668 = vmatprep.subr.bf16.mxu0 0
  %3669 = vmatpush2.bf16.msra.mxu0 0
  %3670 = vmatprep.subr.bf16.mxu0 0
  %3671 = vmatpush2.bf16.msra.mxu0 0
  %3672 = vmatprep.subr.bf16.mxu0 0
  %3673 = vmatpush2.bf16.msra.mxu0 0
  %3674 = vmatprep.mubr.bf16.mxu0 0
  %3675 = vmatmul.mubr.bf16.gmra.mxu0 %v3569
  %v3676 = vpop.f32.mrf.mxu0
  %v3677 = vadd.f32 0.0, %v3676
  %v3678 = vpop.f32.mrf.mxu0
  %v3679 = vpop.f32.mrf.mxu0
  %v3680 = vadd.f32 0.0, %v3679
  %v3681 = vpop.f32.mrf.mxu0
  %3682 = vmatprep.mubr.bf16.mxu0 0
  %3683 = vmatmul.mubr.bf16.gmra.mxu0 %v3570
  %v3684 = vpop.f32.mrf.mxu0
  %v3685 = vadd.f32 0.0, %v3684
  %v3686 = vpop.f32.mrf.mxu0
  %v3687 = vpop.f32.mrf.mxu0
  %v3688 = vadd.f32 0.0, %v3687
  %v3689 = vpop.f32.mrf.mxu0
  %3690 = vmatprep.mubr.bf16.mxu0 0
  %3691 = vmatmul.mubr.bf16.gmra.mxu0 %v3571
  %v3692 = vpop.f32.mrf.mxu0
  %v3693 = vadd.f32 0.0, %v3692
  %v3694 = vpop.f32.mrf.mxu0
  %v3695 = vpop.f32.mrf.mxu0
  %v3696 = vadd.f32 0.0, %v3695
  %v3697 = vpop.f32.mrf.mxu0
  %3698 = vmatprep.mubr.bf16.mxu0 0
  %3699 = vmatmul.mubr.bf16.gmra.mxu0 %v3572
  %v3700 = vpop.f32.mrf.mxu0
  %v3701 = vadd.f32 0.0, %v3700
  %v3702 = vpop.f32.mrf.mxu0
  %v3703 = vpop.f32.mrf.mxu0
  %v3704 = vadd.f32 0.0, %v3703
  %v3705 = vpop.f32.mrf.mxu0
  %3706 = vmatprep.mubr.bf16.mxu0 0
  %3707 = vmatmul.mubr.bf16.gmra.mxu0 %v3573
  %v3708 = vpop.f32.mrf.mxu0
  %v3709 = vadd.f32 0.0, %v3708
  %v3710 = vpop.f32.mrf.mxu0
  %v3711 = vpop.f32.mrf.mxu0
  %v3712 = vadd.f32 0.0, %v3711
  %v3713 = vpop.f32.mrf.mxu0
  %3714 = vmatprep.mubr.bf16.mxu0 0
  %3715 = vmatmul.mubr.bf16.gmra.mxu0 %v3574
  %v3716 = vpop.f32.mrf.mxu0
  %v3717 = vadd.f32 0.0, %v3716
  %v3718 = vpop.f32.mrf.mxu0
  %v3719 = vpop.f32.mrf.mxu0
  %v3720 = vadd.f32 0.0, %v3719
  %v3721 = vpop.f32.mrf.mxu0
  %3722 = vmatprep.mubr.bf16.mxu0 0
  %3723 = vmatmul.mubr.bf16.gmra.mxu0 %v3575
  %v3724 = vpop.f32.mrf.mxu0
  %v3725 = vadd.f32 0.0, %v3724
  %v3726 = vpop.f32.mrf.mxu0
  %v3727 = vpop.f32.mrf.mxu0
  %v3728 = vadd.f32 0.0, %v3727
  %v3729 = vpop.f32.mrf.mxu0
  %3730 = vmatprep.mubr.bf16.mxu0 0
  %3731 = vmatmul.mubr.bf16.gmra.mxu0 %v3576
  %v3732 = vpop.f32.mrf.mxu0
  %v3733 = vadd.f32 0.0, %v3732
  %v3734 = vpop.f32.mrf.mxu0
  %v3735 = vpop.f32.mrf.mxu0
  %v3736 = vadd.f32 0.0, %v3735
  %v3737 = vpop.f32.mrf.mxu0
  %3738 = vdwg.mxu0
  %v3739 = vadd.f32 %v3442, %v3677
  %v3740 = vadd.f32 %v3445, %v3680
  %v3741 = vadd.f32 %v3450, %v3685
  %v3742 = vadd.f32 %v3453, %v3688
  %v3743 = vadd.f32 %v3458, %v3693
  %v3744 = vadd.f32 %v3461, %v3696
  %v3745 = vadd.f32 %v3466, %v3701
  %v3746 = vadd.f32 %v3469, %v3704
  %v3747 = vadd.f32 %v3474, %v3709
  %v3748 = vadd.f32 %v3477, %v3712
  %v3749 = vadd.f32 %v3482, %v3717
  %v3750 = vadd.f32 %v3485, %v3720
  %v3751 = vadd.f32 %v3490, %v3725
  %v3752 = vadd.f32 %v3493, %v3728
  %v3753 = vadd.f32 %v3498, %v3733
  %v3754 = vadd.f32 %v3501, %v3736
  %v3755 = vrot.slane %v3073, 7
  %v3756 = vsel %vm1054, %v3117, %v3755
  %v3758 = vsel %vm1006, %v3090, 0.0
  %v3759 = vsel %vm1007, %v3092, 0.0
  %v3760 = vsel %vm1008, %v3094, 0.0
  %v3761 = vsel %vm1009, %v3096, 0.0
  %v3762 = vsel %vm1010, %v3098, 0.0
  %v3763 = vsel %vm1011, %v3100, 0.0
  %v3764 = vsel %vm1012, %v3102, 0.0
  %v3765 = vsel %vm1013, %v3104, 0.0
  %v3766 = vsel %vm1014, %v3106, 0.0
  %v3767 = vsel %vm1015, %v3108, 0.0
  %v3768 = vsel %vm1016, %v3110, 0.0
  %v3769 = vsel %vm1017, %v3112, 0.0
  %v3770 = vsel %vm1018, %v3114, 0.0
  %v3771 = vsel %vm1019, %v3116, 0.0
  %v3772 = vsel %vm1020, %v3118, 0.0
  %v3773 = vsel %vm1021, %v3756, 0.0
  %v3774 = vpack.c.bf16 %v3759, %v3758
  %v3775 = vpack.c.bf16 %v3761, %v3760
  %v3776 = vpack.c.bf16 %v3763, %v3762
  %v3777 = vpack.c.bf16 %v3765, %v3764
  %v3778 = vpack.c.bf16 %v3767, %v3766
  %v3779 = vpack.c.bf16 %v3769, %v3768
  %v3780 = vpack.c.bf16 %v3771, %v3770
  %v3781 = vpack.c.bf16 %v3773, %v3772
  %s3782 = scalar_lea.vmem %s2, 768
  %v3783 = vld [vmem:[%s3782] sm:$0xf]
  %v3784 = vld [vmem:[%s3782 + $0x4] sm:$0xf]
  %v3785 = vld [vmem:[%s3782 + $0x8] sm:$0xf]
  %v3786 = vld [vmem:[%s3782 + $0xc] sm:$0xf]
  %v3787 = vld [vmem:[%s3782 + $0x10] sm:$0xf]
  %v3788 = vld [vmem:[%s3782 + $0x14] sm:$0xf]
  %v3789 = vld [vmem:[%s3782 + $0x18] sm:$0xf]
  %v3790 = vld [vmem:[%s3782 + $0x1c] sm:$0xf]
  %v3791 = vld [vmem:[%s3782 + $0x20] sm:$0xf]
  %v3792 = vld [vmem:[%s3782 + $0x24] sm:$0xf]
  %v3793 = vld [vmem:[%s3782 + $0x28] sm:$0xf]
  %v3794 = vld [vmem:[%s3782 + $0x2c] sm:$0xf]
  %v3795 = vld [vmem:[%s3782 + $0x30] sm:$0xf]
  %v3796 = vld [vmem:[%s3782 + $0x34] sm:$0xf]
  %v3797 = vld [vmem:[%s3782 + $0x38] sm:$0xf]
  %v3798 = vld [vmem:[%s3782 + $0x3c] sm:$0xf]
  %v3815 = vunpack.c.l.b16 %v3783
  %v3816 = vunpack.c.l.b16 %v3784
  %v3817 = vunpack.c.l.b16 %v3785
  %v3818 = vunpack.c.l.b16 %v3786
  %v3819 = vunpack.c.l.b16 %v3787
  %v3820 = vunpack.c.l.b16 %v3788
  %v3821 = vunpack.c.l.b16 %v3789
  %v3822 = vunpack.c.l.b16 %v3790
  %v3823 = vunpack.c.l.b16 %v3791
  %v3824 = vunpack.c.l.b16 %v3792
  %v3825 = vunpack.c.l.b16 %v3793
  %v3826 = vunpack.c.l.b16 %v3794
  %v3827 = vunpack.c.l.b16 %v3795
  %v3828 = vunpack.c.l.b16 %v3796
  %v3829 = vunpack.c.l.b16 %v3797
  %v3830 = vunpack.c.l.b16 %v3798
  %v3831 = vpack.c.b16 %v3816, %v3815
  %v3832 = vpack.c.b16 %v3818, %v3817
  %v3833 = vpack.c.b16 %v3820, %v3819
  %v3834 = vpack.c.b16 %v3822, %v3821
  %v3835 = vpack.c.b16 %v3824, %v3823
  %v3836 = vpack.c.b16 %v3826, %v3825
  %v3837 = vpack.c.b16 %v3828, %v3827
  %v3838 = vpack.c.b16 %v3830, %v3829
  %3847 = vmatprep.subr.bf16.mxu0 0
  %3848 = vmatpush1.bf16.msra.mxu0 %v3838
  %3849 = vmatprep.subr.bf16.mxu0 0
  %3850 = vmatpush1.bf16.msra.mxu0 %v3837
  %3851 = vmatprep.subr.bf16.mxu0 0
  %3852 = vmatpush1.bf16.msra.mxu0 %v3836
  %3853 = vmatprep.subr.bf16.mxu0 0
  %3854 = vmatpush1.bf16.msra.mxu0 %v3835
  %3855 = vmatprep.subr.bf16.mxu0 0
  %3856 = vmatpush1.bf16.msra.mxu0 %v3834
  %3857 = vmatprep.subr.bf16.mxu0 0
  %3858 = vmatpush1.bf16.msra.mxu0 %v3833
  %3859 = vmatprep.subr.bf16.mxu0 0
  %3860 = vmatpush1.bf16.msra.mxu0 %v3832
  %3861 = vmatprep.subr.bf16.mxu0 0
  %3862 = vmatpush1.bf16.msra.mxu0 %v3831
  %3863 = vmatprep.subr.bf16.mxu0 0
  %3864 = vmatpush2.bf16.msra.mxu0 0
  %3865 = vmatprep.subr.bf16.mxu0 0
  %3866 = vmatpush2.bf16.msra.mxu0 0
  %3867 = vmatprep.subr.bf16.mxu0 0
  %3868 = vmatpush2.bf16.msra.mxu0 0
  %3869 = vmatprep.subr.bf16.mxu0 0
  %3870 = vmatpush2.bf16.msra.mxu0 0
  %3871 = vmatprep.subr.bf16.mxu0 0
  %3872 = vmatpush2.bf16.msra.mxu0 0
  %3873 = vmatprep.subr.bf16.mxu0 0
  %3874 = vmatpush2.bf16.msra.mxu0 0
  %3875 = vmatprep.subr.bf16.mxu0 0
  %3876 = vmatpush2.bf16.msra.mxu0 0
  %3877 = vmatprep.subr.bf16.mxu0 0
  %3878 = vmatpush2.bf16.msra.mxu0 0
  %3879 = vmatprep.mubr.bf16.mxu0 0
  %3880 = vmatmul.mubr.bf16.gmra.mxu0 %v3774
  %v3881 = vpop.f32.mrf.mxu0
  %v3882 = vadd.f32 0.0, %v3881
  %v3883 = vpop.f32.mrf.mxu0
  %v3884 = vpop.f32.mrf.mxu0
  %v3885 = vadd.f32 0.0, %v3884
  %v3886 = vpop.f32.mrf.mxu0
  %3887 = vmatprep.mubr.bf16.mxu0 0
  %3888 = vmatmul.mubr.bf16.gmra.mxu0 %v3775
  %v3889 = vpop.f32.mrf.mxu0
  %v3890 = vadd.f32 0.0, %v3889
  %v3891 = vpop.f32.mrf.mxu0
  %v3892 = vpop.f32.mrf.mxu0
  %v3893 = vadd.f32 0.0, %v3892
  %v3894 = vpop.f32.mrf.mxu0
  %3895 = vmatprep.mubr.bf16.mxu0 0
  %3896 = vmatmul.mubr.bf16.gmra.mxu0 %v3776
  %v3897 = vpop.f32.mrf.mxu0
  %v3898 = vadd.f32 0.0, %v3897
  %v3899 = vpop.f32.mrf.mxu0
  %v3900 = vpop.f32.mrf.mxu0
  %v3901 = vadd.f32 0.0, %v3900
  %v3902 = vpop.f32.mrf.mxu0
  %3903 = vmatprep.mubr.bf16.mxu0 0
  %3904 = vmatmul.mubr.bf16.gmra.mxu0 %v3777
  %v3905 = vpop.f32.mrf.mxu0
  %v3906 = vadd.f32 0.0, %v3905
  %v3907 = vpop.f32.mrf.mxu0
  %v3908 = vpop.f32.mrf.mxu0
  %v3909 = vadd.f32 0.0, %v3908
  %v3910 = vpop.f32.mrf.mxu0
  %3911 = vmatprep.mubr.bf16.mxu0 0
  %3912 = vmatmul.mubr.bf16.gmra.mxu0 %v3778
  %v3913 = vpop.f32.mrf.mxu0
  %v3914 = vadd.f32 0.0, %v3913
  %v3915 = vpop.f32.mrf.mxu0
  %v3916 = vpop.f32.mrf.mxu0
  %v3917 = vadd.f32 0.0, %v3916
  %v3918 = vpop.f32.mrf.mxu0
  %3919 = vmatprep.mubr.bf16.mxu0 0
  %3920 = vmatmul.mubr.bf16.gmra.mxu0 %v3779
  %v3921 = vpop.f32.mrf.mxu0
  %v3922 = vadd.f32 0.0, %v3921
  %v3923 = vpop.f32.mrf.mxu0
  %v3924 = vpop.f32.mrf.mxu0
  %v3925 = vadd.f32 0.0, %v3924
  %v3926 = vpop.f32.mrf.mxu0
  %3927 = vmatprep.mubr.bf16.mxu0 0
  %3928 = vmatmul.mubr.bf16.gmra.mxu0 %v3780
  %v3929 = vpop.f32.mrf.mxu0
  %v3930 = vadd.f32 0.0, %v3929
  %v3931 = vpop.f32.mrf.mxu0
  %v3932 = vpop.f32.mrf.mxu0
  %v3933 = vadd.f32 0.0, %v3932
  %v3934 = vpop.f32.mrf.mxu0
  %3935 = vmatprep.mubr.bf16.mxu0 0
  %3936 = vmatmul.mubr.bf16.gmra.mxu0 %v3781
  %v3937 = vpop.f32.mrf.mxu0
  %v3938 = vadd.f32 0.0, %v3937
  %v3939 = vpop.f32.mrf.mxu0
  %v3940 = vpop.f32.mrf.mxu0
  %v3941 = vadd.f32 0.0, %v3940
  %v3942 = vpop.f32.mrf.mxu0
  %3943 = vdwg.mxu0
  %v3944 = vadd.f32 %v3739, %v3882
  %v3945 = vadd.f32 %v3740, %v3885
  %v3946 = vadd.f32 %v3741, %v3890
  %v3947 = vadd.f32 %v3742, %v3893
  %v3948 = vadd.f32 %v3743, %v3898
  %v3949 = vadd.f32 %v3744, %v3901
  %v3950 = vadd.f32 %v3745, %v3906
  %v3951 = vadd.f32 %v3746, %v3909
  %v3952 = vadd.f32 %v3747, %v3914
  %v3953 = vadd.f32 %v3748, %v3917
  %v3954 = vadd.f32 %v3749, %v3922
  %v3955 = vadd.f32 %v3750, %v3925
  %v3956 = vadd.f32 %v3751, %v3930
  %v3957 = vadd.f32 %v3752, %v3933
  %v3958 = vadd.f32 %v3753, %v3938
  %v3959 = vadd.f32 %v3754, %v3941
  %v3960 = vpack.c.bf16 %v3059, %v3058
  %v3961 = vpack.c.bf16 %v3061, %v3060
  %v3962 = vpack.c.bf16 %v3063, %v3062
  %v3963 = vpack.c.bf16 %v3065, %v3064
  %v3964 = vpack.c.bf16 %v3067, %v3066
  %v3965 = vpack.c.bf16 %v3069, %v3068
  %v3966 = vpack.c.bf16 %v3071, %v3070
  %v3967 = vpack.c.bf16 %v3073, %v3072
  %s3968 = scalar_lea.vmem %s2, 832
  %v3969 = vld [vmem:[%s3968] sm:$0xf]
  %v3970 = vld [vmem:[%s3968 + $0x4] sm:$0xf]
  %v3971 = vld [vmem:[%s3968 + $0x8] sm:$0xf]
  %v3972 = vld [vmem:[%s3968 + $0xc] sm:$0xf]
  %v3973 = vld [vmem:[%s3968 + $0x10] sm:$0xf]
  %v3974 = vld [vmem:[%s3968 + $0x14] sm:$0xf]
  %v3975 = vld [vmem:[%s3968 + $0x18] sm:$0xf]
  %v3976 = vld [vmem:[%s3968 + $0x1c] sm:$0xf]
  %v3977 = vld [vmem:[%s3968 + $0x20] sm:$0xf]
  %v3978 = vld [vmem:[%s3968 + $0x24] sm:$0xf]
  %v3979 = vld [vmem:[%s3968 + $0x28] sm:$0xf]
  %v3980 = vld [vmem:[%s3968 + $0x2c] sm:$0xf]
  %v3981 = vld [vmem:[%s3968 + $0x30] sm:$0xf]
  %v3982 = vld [vmem:[%s3968 + $0x34] sm:$0xf]
  %v3983 = vld [vmem:[%s3968 + $0x38] sm:$0xf]
  %v3984 = vld [vmem:[%s3968 + $0x3c] sm:$0xf]
  %v4001 = vunpack.c.l.b16 %v3969
  %v4002 = vunpack.c.l.b16 %v3970
  %v4003 = vunpack.c.l.b16 %v3971
  %v4004 = vunpack.c.l.b16 %v3972
  %v4005 = vunpack.c.l.b16 %v3973
  %v4006 = vunpack.c.l.b16 %v3974
  %v4007 = vunpack.c.l.b16 %v3975
  %v4008 = vunpack.c.l.b16 %v3976
  %v4009 = vunpack.c.l.b16 %v3977
  %v4010 = vunpack.c.l.b16 %v3978
  %v4011 = vunpack.c.l.b16 %v3979
  %v4012 = vunpack.c.l.b16 %v3980
  %v4013 = vunpack.c.l.b16 %v3981
  %v4014 = vunpack.c.l.b16 %v3982
  %v4015 = vunpack.c.l.b16 %v3983
  %v4016 = vunpack.c.l.b16 %v3984
  %v4017 = vpack.c.b16 %v4002, %v4001
  %v4018 = vpack.c.b16 %v4004, %v4003
  %v4019 = vpack.c.b16 %v4006, %v4005
  %v4020 = vpack.c.b16 %v4008, %v4007
  %v4021 = vpack.c.b16 %v4010, %v4009
  %v4022 = vpack.c.b16 %v4012, %v4011
  %v4023 = vpack.c.b16 %v4014, %v4013
  %v4024 = vpack.c.b16 %v4016, %v4015
  %4033 = vmatprep.subr.bf16.mxu0 0
  %4034 = vmatpush1.bf16.msra.mxu0 %v4024
  %4035 = vmatprep.subr.bf16.mxu0 0
  %4036 = vmatpush1.bf16.msra.mxu0 %v4023
  %4037 = vmatprep.subr.bf16.mxu0 0
  %4038 = vmatpush1.bf16.msra.mxu0 %v4022
  %4039 = vmatprep.subr.bf16.mxu0 0
  %4040 = vmatpush1.bf16.msra.mxu0 %v4021
  %4041 = vmatprep.subr.bf16.mxu0 0
  %4042 = vmatpush1.bf16.msra.mxu0 %v4020
  %4043 = vmatprep.subr.bf16.mxu0 0
  %4044 = vmatpush1.bf16.msra.mxu0 %v4019
  %4045 = vmatprep.subr.bf16.mxu0 0
  %4046 = vmatpush1.bf16.msra.mxu0 %v4018
  %4047 = vmatprep.subr.bf16.mxu0 0
  %4048 = vmatpush1.bf16.msra.mxu0 %v4017
  %4049 = vmatprep.subr.bf16.mxu0 0
  %4050 = vmatpush2.bf16.msra.mxu0 0
  %4051 = vmatprep.subr.bf16.mxu0 0
  %4052 = vmatpush2.bf16.msra.mxu0 0
  %4053 = vmatprep.subr.bf16.mxu0 0
  %4054 = vmatpush2.bf16.msra.mxu0 0
  %4055 = vmatprep.subr.bf16.mxu0 0
  %4056 = vmatpush2.bf16.msra.mxu0 0
  %4057 = vmatprep.subr.bf16.mxu0 0
  %4058 = vmatpush2.bf16.msra.mxu0 0
  %4059 = vmatprep.subr.bf16.mxu0 0
  %4060 = vmatpush2.bf16.msra.mxu0 0
  %4061 = vmatprep.subr.bf16.mxu0 0
  %4062 = vmatpush2.bf16.msra.mxu0 0
  %4063 = vmatprep.subr.bf16.mxu0 0
  %4064 = vmatpush2.bf16.msra.mxu0 0
  %4065 = vmatprep.mubr.bf16.mxu0 0
  %4066 = vmatmul.mubr.bf16.gmra.mxu0 %v3960
  %v4067 = vpop.f32.mrf.mxu0
  %v4068 = vadd.f32 0.0, %v4067
  %v4069 = vpop.f32.mrf.mxu0
  %v4070 = vpop.f32.mrf.mxu0
  %v4071 = vadd.f32 0.0, %v4070
  %v4072 = vpop.f32.mrf.mxu0
  %4073 = vmatprep.mubr.bf16.mxu0 0
  %4074 = vmatmul.mubr.bf16.gmra.mxu0 %v3961
  %v4075 = vpop.f32.mrf.mxu0
  %v4076 = vadd.f32 0.0, %v4075
  %v4077 = vpop.f32.mrf.mxu0
  %v4078 = vpop.f32.mrf.mxu0
  %v4079 = vadd.f32 0.0, %v4078
  %v4080 = vpop.f32.mrf.mxu0
  %4081 = vmatprep.mubr.bf16.mxu0 0
  %4082 = vmatmul.mubr.bf16.gmra.mxu0 %v3962
  %v4083 = vpop.f32.mrf.mxu0
  %v4084 = vadd.f32 0.0, %v4083
  %v4085 = vpop.f32.mrf.mxu0
  %v4086 = vpop.f32.mrf.mxu0
  %v4087 = vadd.f32 0.0, %v4086
  %v4088 = vpop.f32.mrf.mxu0
  %4089 = vmatprep.mubr.bf16.mxu0 0
  %4090 = vmatmul.mubr.bf16.gmra.mxu0 %v3963
  %v4091 = vpop.f32.mrf.mxu0
  %v4092 = vadd.f32 0.0, %v4091
  %v4093 = vpop.f32.mrf.mxu0
  %v4094 = vpop.f32.mrf.mxu0
  %v4095 = vadd.f32 0.0, %v4094
  %v4096 = vpop.f32.mrf.mxu0
  %4097 = vmatprep.mubr.bf16.mxu0 0
  %4098 = vmatmul.mubr.bf16.gmra.mxu0 %v3964
  %v4099 = vpop.f32.mrf.mxu0
  %v4100 = vadd.f32 0.0, %v4099
  %v4101 = vpop.f32.mrf.mxu0
  %v4102 = vpop.f32.mrf.mxu0
  %v4103 = vadd.f32 0.0, %v4102
  %v4104 = vpop.f32.mrf.mxu0
  %4105 = vmatprep.mubr.bf16.mxu0 0
  %4106 = vmatmul.mubr.bf16.gmra.mxu0 %v3965
  %v4107 = vpop.f32.mrf.mxu0
  %v4108 = vadd.f32 0.0, %v4107
  %v4109 = vpop.f32.mrf.mxu0
  %v4110 = vpop.f32.mrf.mxu0
  %v4111 = vadd.f32 0.0, %v4110
  %v4112 = vpop.f32.mrf.mxu0
  %4113 = vmatprep.mubr.bf16.mxu0 0
  %4114 = vmatmul.mubr.bf16.gmra.mxu0 %v3966
  %v4115 = vpop.f32.mrf.mxu0
  %v4116 = vadd.f32 0.0, %v4115
  %v4117 = vpop.f32.mrf.mxu0
  %v4118 = vpop.f32.mrf.mxu0
  %v4119 = vadd.f32 0.0, %v4118
  %v4120 = vpop.f32.mrf.mxu0
  %4121 = vmatprep.mubr.bf16.mxu0 0
  %4122 = vmatmul.mubr.bf16.gmra.mxu0 %v3967
  %v4123 = vpop.f32.mrf.mxu0
  %v4124 = vadd.f32 0.0, %v4123
  %v4125 = vpop.f32.mrf.mxu0
  %v4126 = vpop.f32.mrf.mxu0
  %v4127 = vadd.f32 0.0, %v4126
  %v4128 = vpop.f32.mrf.mxu0
  %4129 = vdwg.mxu0
  %v4130 = vadd.f32 %v3944, %v4068
  %v4131 = vadd.f32 %v3945, %v4071
  %v4132 = vadd.f32 %v3946, %v4076
  %v4133 = vadd.f32 %v3947, %v4079
  %v4134 = vadd.f32 %v3948, %v4084
  %v4135 = vadd.f32 %v3949, %v4087
  %v4136 = vadd.f32 %v3950, %v4092
  %v4137 = vadd.f32 %v3951, %v4095
  %v4138 = vadd.f32 %v3952, %v4100
  %v4139 = vadd.f32 %v3953, %v4103
  %v4140 = vadd.f32 %v3954, %v4108
  %v4141 = vadd.f32 %v3955, %v4111
  %v4142 = vadd.f32 %v3956, %v4116
  %v4143 = vadd.f32 %v3957, %v4119
  %v4144 = vadd.f32 %v3958, %v4124
  %v4145 = vadd.f32 %v3959, %v4127
  %v4146 = vsel %vm1506, %v3535, %v1507
  %v4148 = vsel %vm1473, %v3508, 0.0
  %v4149 = vsel %vm1474, %v3510, 0.0
  %v4150 = vsel %vm1475, %v3512, 0.0
  %v4151 = vsel %vm1476, %v3514, 0.0
  %v4152 = vsel %vm1477, %v3516, 0.0
  %v4153 = vsel %vm1478, %v3518, 0.0
  %v4154 = vsel %vm1479, %v3520, 0.0
  %v4155 = vsel %vm1480, %v3522, 0.0
  %v4156 = vsel %vm1481, %v3524, 0.0
  %v4157 = vsel %vm1482, %v3526, 0.0
  %v4158 = vsel %vm1483, %v3528, 0.0
  %v4159 = vsel %vm1484, %v3530, 0.0
  %v4160 = vsel %vm1485, %v3532, 0.0
  %v4161 = vsel %vm1486, %v3534, 0.0
  %v4162 = vsel %vm1487, %v3536, 0.0
  %v4163 = vsel %vm1488, %v4146, 0.0
  %v4164 = vpack.c.bf16 %v4149, %v4148
  %v4165 = vpack.c.bf16 %v4151, %v4150
  %v4166 = vpack.c.bf16 %v4153, %v4152
  %v4167 = vpack.c.bf16 %v4155, %v4154
  %v4168 = vpack.c.bf16 %v4157, %v4156
  %v4169 = vpack.c.bf16 %v4159, %v4158
  %v4170 = vpack.c.bf16 %v4161, %v4160
  %v4171 = vpack.c.bf16 %v4163, %v4162
  %s4172 = scalar_lea.vmem %s2, 896
  %v4173 = vld [vmem:[%s4172] sm:$0xf]
  %v4174 = vld [vmem:[%s4172 + $0x4] sm:$0xf]
  %v4175 = vld [vmem:[%s4172 + $0x8] sm:$0xf]
  %v4176 = vld [vmem:[%s4172 + $0xc] sm:$0xf]
  %v4177 = vld [vmem:[%s4172 + $0x10] sm:$0xf]
  %v4178 = vld [vmem:[%s4172 + $0x14] sm:$0xf]
  %v4179 = vld [vmem:[%s4172 + $0x18] sm:$0xf]
  %v4180 = vld [vmem:[%s4172 + $0x1c] sm:$0xf]
  %v4181 = vld [vmem:[%s4172 + $0x20] sm:$0xf]
  %v4182 = vld [vmem:[%s4172 + $0x24] sm:$0xf]
  %v4183 = vld [vmem:[%s4172 + $0x28] sm:$0xf]
  %v4184 = vld [vmem:[%s4172 + $0x2c] sm:$0xf]
  %v4185 = vld [vmem:[%s4172 + $0x30] sm:$0xf]
  %v4186 = vld [vmem:[%s4172 + $0x34] sm:$0xf]
  %v4187 = vld [vmem:[%s4172 + $0x38] sm:$0xf]
  %v4188 = vld [vmem:[%s4172 + $0x3c] sm:$0xf]
  %v4205 = vunpack.c.l.b16 %v4173
  %v4206 = vunpack.c.l.b16 %v4174
  %v4207 = vunpack.c.l.b16 %v4175
  %v4208 = vunpack.c.l.b16 %v4176
  %v4209 = vunpack.c.l.b16 %v4177
  %v4210 = vunpack.c.l.b16 %v4178
  %v4211 = vunpack.c.l.b16 %v4179
  %v4212 = vunpack.c.l.b16 %v4180
  %v4213 = vunpack.c.l.b16 %v4181
  %v4214 = vunpack.c.l.b16 %v4182
  %v4215 = vunpack.c.l.b16 %v4183
  %v4216 = vunpack.c.l.b16 %v4184
  %v4217 = vunpack.c.l.b16 %v4185
  %v4218 = vunpack.c.l.b16 %v4186
  %v4219 = vunpack.c.l.b16 %v4187
  %v4220 = vunpack.c.l.b16 %v4188
  %v4221 = vpack.c.b16 %v4206, %v4205
  %v4222 = vpack.c.b16 %v4208, %v4207
  %v4223 = vpack.c.b16 %v4210, %v4209
  %v4224 = vpack.c.b16 %v4212, %v4211
  %v4225 = vpack.c.b16 %v4214, %v4213
  %v4226 = vpack.c.b16 %v4216, %v4215
  %v4227 = vpack.c.b16 %v4218, %v4217
  %v4228 = vpack.c.b16 %v4220, %v4219
  %4237 = vmatprep.subr.bf16.mxu0 0
  %4238 = vmatpush1.bf16.msra.mxu0 %v4228
  %4239 = vmatprep.subr.bf16.mxu0 0
  %4240 = vmatpush1.bf16.msra.mxu0 %v4227
  %4241 = vmatprep.subr.bf16.mxu0 0
  %4242 = vmatpush1.bf16.msra.mxu0 %v4226
  %4243 = vmatprep.subr.bf16.mxu0 0
  %4244 = vmatpush1.bf16.msra.mxu0 %v4225
  %4245 = vmatprep.subr.bf16.mxu0 0
  %4246 = vmatpush1.bf16.msra.mxu0 %v4224
  %4247 = vmatprep.subr.bf16.mxu0 0
  %4248 = vmatpush1.bf16.msra.mxu0 %v4223
  %4249 = vmatprep.subr.bf16.mxu0 0
  %4250 = vmatpush1.bf16.msra.mxu0 %v4222
  %4251 = vmatprep.subr.bf16.mxu0 0
  %4252 = vmatpush1.bf16.msra.mxu0 %v4221
  %4253 = vmatprep.subr.bf16.mxu0 0
  %4254 = vmatpush2.bf16.msra.mxu0 0
  %4255 = vmatprep.subr.bf16.mxu0 0
  %4256 = vmatpush2.bf16.msra.mxu0 0
  %4257 = vmatprep.subr.bf16.mxu0 0
  %4258 = vmatpush2.bf16.msra.mxu0 0
  %4259 = vmatprep.subr.bf16.mxu0 0
  %4260 = vmatpush2.bf16.msra.mxu0 0
  %4261 = vmatprep.subr.bf16.mxu0 0
  %4262 = vmatpush2.bf16.msra.mxu0 0
  %4263 = vmatprep.subr.bf16.mxu0 0
  %4264 = vmatpush2.bf16.msra.mxu0 0
  %4265 = vmatprep.subr.bf16.mxu0 0
  %4266 = vmatpush2.bf16.msra.mxu0 0
  %4267 = vmatprep.subr.bf16.mxu0 0
  %4268 = vmatpush2.bf16.msra.mxu0 0
  %4269 = vmatprep.mubr.bf16.mxu0 0
  %4270 = vmatmul.mubr.bf16.gmra.mxu0 %v4164
  %v4271 = vpop.f32.mrf.mxu0
  %v4272 = vadd.f32 0.0, %v4271
  %v4273 = vpop.f32.mrf.mxu0
  %v4274 = vpop.f32.mrf.mxu0
  %v4275 = vadd.f32 0.0, %v4274
  %v4276 = vpop.f32.mrf.mxu0
  %4277 = vmatprep.mubr.bf16.mxu0 0
  %4278 = vmatmul.mubr.bf16.gmra.mxu0 %v4165
  %v4279 = vpop.f32.mrf.mxu0
  %v4280 = vadd.f32 0.0, %v4279
  %v4281 = vpop.f32.mrf.mxu0
  %v4282 = vpop.f32.mrf.mxu0
  %v4283 = vadd.f32 0.0, %v4282
  %v4284 = vpop.f32.mrf.mxu0
  %4285 = vmatprep.mubr.bf16.mxu0 0
  %4286 = vmatmul.mubr.bf16.gmra.mxu0 %v4166
  %v4287 = vpop.f32.mrf.mxu0
  %v4288 = vadd.f32 0.0, %v4287
  %v4289 = vpop.f32.mrf.mxu0
  %v4290 = vpop.f32.mrf.mxu0
  %v4291 = vadd.f32 0.0, %v4290
  %v4292 = vpop.f32.mrf.mxu0
  %4293 = vmatprep.mubr.bf16.mxu0 0
  %4294 = vmatmul.mubr.bf16.gmra.mxu0 %v4167
  %v4295 = vpop.f32.mrf.mxu0
  %v4296 = vadd.f32 0.0, %v4295
  %v4297 = vpop.f32.mrf.mxu0
  %v4298 = vpop.f32.mrf.mxu0
  %v4299 = vadd.f32 0.0, %v4298
  %v4300 = vpop.f32.mrf.mxu0
  %4301 = vmatprep.mubr.bf16.mxu0 0
  %4302 = vmatmul.mubr.bf16.gmra.mxu0 %v4168
  %v4303 = vpop.f32.mrf.mxu0
  %v4304 = vadd.f32 0.0, %v4303
  %v4305 = vpop.f32.mrf.mxu0
  %v4306 = vpop.f32.mrf.mxu0
  %v4307 = vadd.f32 0.0, %v4306
  %v4308 = vpop.f32.mrf.mxu0
  %4309 = vmatprep.mubr.bf16.mxu0 0
  %4310 = vmatmul.mubr.bf16.gmra.mxu0 %v4169
  %v4311 = vpop.f32.mrf.mxu0
  %v4312 = vadd.f32 0.0, %v4311
  %v4313 = vpop.f32.mrf.mxu0
  %v4314 = vpop.f32.mrf.mxu0
  %v4315 = vadd.f32 0.0, %v4314
  %v4316 = vpop.f32.mrf.mxu0
  %4317 = vmatprep.mubr.bf16.mxu0 0
  %4318 = vmatmul.mubr.bf16.gmra.mxu0 %v4170
  %v4319 = vpop.f32.mrf.mxu0
  %v4320 = vadd.f32 0.0, %v4319
  %v4321 = vpop.f32.mrf.mxu0
  %v4322 = vpop.f32.mrf.mxu0
  %v4323 = vadd.f32 0.0, %v4322
  %v4324 = vpop.f32.mrf.mxu0
  %4325 = vmatprep.mubr.bf16.mxu0 0
  %4326 = vmatmul.mubr.bf16.gmra.mxu0 %v4171
  %v4327 = vpop.f32.mrf.mxu0
  %v4328 = vadd.f32 0.0, %v4327
  %v4329 = vpop.f32.mrf.mxu0
  %v4330 = vpop.f32.mrf.mxu0
  %v4331 = vadd.f32 0.0, %v4330
  %v4332 = vpop.f32.mrf.mxu0
  %4333 = vdwg.mxu0
  %v4334 = vadd.f32 %v4130, %v4272
  %v4335 = vadd.f32 %v4131, %v4275
  %v4336 = vadd.f32 %v4132, %v4280
  %v4337 = vadd.f32 %v4133, %v4283
  %v4338 = vadd.f32 %v4134, %v4288
  %v4339 = vadd.f32 %v4135, %v4291
  %v4340 = vadd.f32 %v4136, %v4296
  %v4341 = vadd.f32 %v4137, %v4299
  %v4342 = vadd.f32 %v4138, %v4304
  %v4343 = vadd.f32 %v4139, %v4307
  %v4344 = vadd.f32 %v4140, %v4312
  %v4345 = vadd.f32 %v4141, %v4315
  %v4346 = vadd.f32 %v4142, %v4320
  %v4347 = vadd.f32 %v4143, %v4323
  %v4348 = vadd.f32 %v4144, %v4328
  %v4349 = vadd.f32 %v4145, %v4331
  %v4350 = vsel %vm1054, %v3755, %v1055
  %v4352 = vsel %vm2369, %v3092, 0.0
  %v4353 = vsel %vm2370, %v3094, 0.0
  %v4354 = vsel %vm2371, %v3096, 0.0
  %v4355 = vsel %vm2372, %v3098, 0.0
  %v4356 = vsel %vm2373, %v3100, 0.0
  %v4357 = vsel %vm2374, %v3102, 0.0
  %v4358 = vsel %vm2375, %v3104, 0.0
  %v4359 = vsel %vm2376, %v3106, 0.0
  %v4360 = vsel %vm2377, %v3108, 0.0
  %v4361 = vsel %vm2378, %v3110, 0.0
  %v4362 = vsel %vm2379, %v3112, 0.0
  %v4363 = vsel %vm2380, %v3114, 0.0
  %v4364 = vsel %vm2381, %v3116, 0.0
  %v4365 = vsel %vm2382, %v3118, 0.0
  %v4366 = vsel %vm2383, %v3756, 0.0
  %v4367 = vsel %vm2384, %v4350, 0.0
  %v4368 = vpack.c.bf16 %v4353, %v4352
  %v4369 = vpack.c.bf16 %v4355, %v4354
  %v4370 = vpack.c.bf16 %v4357, %v4356
  %v4371 = vpack.c.bf16 %v4359, %v4358
  %v4372 = vpack.c.bf16 %v4361, %v4360
  %v4373 = vpack.c.bf16 %v4363, %v4362
  %v4374 = vpack.c.bf16 %v4365, %v4364
  %v4375 = vpack.c.bf16 %v4367, %v4366
  %s4376 = scalar_lea.vmem %s2, 960
  %v4377 = vld [vmem:[%s4376] sm:$0xf]
  %v4378 = vld [vmem:[%s4376 + $0x4] sm:$0xf]
  %v4379 = vld [vmem:[%s4376 + $0x8] sm:$0xf]
  %v4380 = vld [vmem:[%s4376 + $0xc] sm:$0xf]
  %v4381 = vld [vmem:[%s4376 + $0x10] sm:$0xf]
  %v4382 = vld [vmem:[%s4376 + $0x14] sm:$0xf]
  %v4383 = vld [vmem:[%s4376 + $0x18] sm:$0xf]
  %v4384 = vld [vmem:[%s4376 + $0x1c] sm:$0xf]
  %v4385 = vld [vmem:[%s4376 + $0x20] sm:$0xf]
  %v4386 = vld [vmem:[%s4376 + $0x24] sm:$0xf]
  %v4387 = vld [vmem:[%s4376 + $0x28] sm:$0xf]
  %v4388 = vld [vmem:[%s4376 + $0x2c] sm:$0xf]
  %v4389 = vld [vmem:[%s4376 + $0x30] sm:$0xf]
  %v4390 = vld [vmem:[%s4376 + $0x34] sm:$0xf]
  %v4391 = vld [vmem:[%s4376 + $0x38] sm:$0xf]
  %v4392 = vld [vmem:[%s4376 + $0x3c] sm:$0xf]
  %v4409 = vunpack.c.l.b16 %v4377
  %v4410 = vunpack.c.l.b16 %v4378
  %v4411 = vunpack.c.l.b16 %v4379
  %v4412 = vunpack.c.l.b16 %v4380
  %v4413 = vunpack.c.l.b16 %v4381
  %v4414 = vunpack.c.l.b16 %v4382
  %v4415 = vunpack.c.l.b16 %v4383
  %v4416 = vunpack.c.l.b16 %v4384
  %v4417 = vunpack.c.l.b16 %v4385
  %v4418 = vunpack.c.l.b16 %v4386
  %v4419 = vunpack.c.l.b16 %v4387
  %v4420 = vunpack.c.l.b16 %v4388
  %v4421 = vunpack.c.l.b16 %v4389
  %v4422 = vunpack.c.l.b16 %v4390
  %v4423 = vunpack.c.l.b16 %v4391
  %v4424 = vunpack.c.l.b16 %v4392
  %v4425 = vpack.c.b16 %v4410, %v4409
  %v4426 = vpack.c.b16 %v4412, %v4411
  %v4427 = vpack.c.b16 %v4414, %v4413
  %v4428 = vpack.c.b16 %v4416, %v4415
  %v4429 = vpack.c.b16 %v4418, %v4417
  %v4430 = vpack.c.b16 %v4420, %v4419
  %v4431 = vpack.c.b16 %v4422, %v4421
  %v4432 = vpack.c.b16 %v4424, %v4423
  %4441 = vmatprep.subr.bf16.mxu0 0
  %4442 = vmatpush1.bf16.msra.mxu0 %v4432
  %4443 = vmatprep.subr.bf16.mxu0 0
  %4444 = vmatpush1.bf16.msra.mxu0 %v4431
  %4445 = vmatprep.subr.bf16.mxu0 0
  %4446 = vmatpush1.bf16.msra.mxu0 %v4430
  %4447 = vmatprep.subr.bf16.mxu0 0
  %4448 = vmatpush1.bf16.msra.mxu0 %v4429
  %4449 = vmatprep.subr.bf16.mxu0 0
  %4450 = vmatpush1.bf16.msra.mxu0 %v4428
  %4451 = vmatprep.subr.bf16.mxu0 0
  %4452 = vmatpush1.bf16.msra.mxu0 %v4427
  %4453 = vmatprep.subr.bf16.mxu0 0
  %4454 = vmatpush1.bf16.msra.mxu0 %v4426
  %4455 = vmatprep.subr.bf16.mxu0 0
  %4456 = vmatpush1.bf16.msra.mxu0 %v4425
  %4457 = vmatprep.subr.bf16.mxu0 0
  %4458 = vmatpush2.bf16.msra.mxu0 0
  %4459 = vmatprep.subr.bf16.mxu0 0
  %4460 = vmatpush2.bf16.msra.mxu0 0
  %4461 = vmatprep.subr.bf16.mxu0 0
  %4462 = vmatpush2.bf16.msra.mxu0 0
  %4463 = vmatprep.subr.bf16.mxu0 0
  %4464 = vmatpush2.bf16.msra.mxu0 0
  %4465 = vmatprep.subr.bf16.mxu0 0
  %4466 = vmatpush2.bf16.msra.mxu0 0
  %4467 = vmatprep.subr.bf16.mxu0 0
  %4468 = vmatpush2.bf16.msra.mxu0 0
  %4469 = vmatprep.subr.bf16.mxu0 0
  %4470 = vmatpush2.bf16.msra.mxu0 0
  %4471 = vmatprep.subr.bf16.mxu0 0
  %4472 = vmatpush2.bf16.msra.mxu0 0
  %4473 = vmatprep.mubr.bf16.mxu0 0
  %4474 = vmatmul.mubr.bf16.gmra.mxu0 %v4368
  %v4475 = vpop.f32.mrf.mxu0
  %v4476 = vadd.f32 0.0, %v4475
  %v4477 = vpop.f32.mrf.mxu0
  %v4478 = vpop.f32.mrf.mxu0
  %v4479 = vadd.f32 0.0, %v4478
  %v4480 = vpop.f32.mrf.mxu0
  %4481 = vmatprep.mubr.bf16.mxu0 0
  %4482 = vmatmul.mubr.bf16.gmra.mxu0 %v4369
  %v4483 = vpop.f32.mrf.mxu0
  %v4484 = vadd.f32 0.0, %v4483
  %v4485 = vpop.f32.mrf.mxu0
  %v4486 = vpop.f32.mrf.mxu0
  %v4487 = vadd.f32 0.0, %v4486
  %v4488 = vpop.f32.mrf.mxu0
  %4489 = vmatprep.mubr.bf16.mxu0 0
  %4490 = vmatmul.mubr.bf16.gmra.mxu0 %v4370
  %v4491 = vpop.f32.mrf.mxu0
  %v4492 = vadd.f32 0.0, %v4491
  %v4493 = vpop.f32.mrf.mxu0
  %v4494 = vpop.f32.mrf.mxu0
  %v4495 = vadd.f32 0.0, %v4494
  %v4496 = vpop.f32.mrf.mxu0
  %4497 = vmatprep.mubr.bf16.mxu0 0
  %4498 = vmatmul.mubr.bf16.gmra.mxu0 %v4371
  %v4499 = vpop.f32.mrf.mxu0
  %v4500 = vadd.f32 0.0, %v4499
  %v4501 = vpop.f32.mrf.mxu0
  %v4502 = vpop.f32.mrf.mxu0
  %v4503 = vadd.f32 0.0, %v4502
  %v4504 = vpop.f32.mrf.mxu0
  %4505 = vmatprep.mubr.bf16.mxu0 0
  %4506 = vmatmul.mubr.bf16.gmra.mxu0 %v4372
  %v4507 = vpop.f32.mrf.mxu0
  %v4508 = vadd.f32 0.0, %v4507
  %v4509 = vpop.f32.mrf.mxu0
  %v4510 = vpop.f32.mrf.mxu0
  %v4511 = vadd.f32 0.0, %v4510
  %v4512 = vpop.f32.mrf.mxu0
  %4513 = vmatprep.mubr.bf16.mxu0 0
  %4514 = vmatmul.mubr.bf16.gmra.mxu0 %v4373
  %v4515 = vpop.f32.mrf.mxu0
  %v4516 = vadd.f32 0.0, %v4515
  %v4517 = vpop.f32.mrf.mxu0
  %v4518 = vpop.f32.mrf.mxu0
  %v4519 = vadd.f32 0.0, %v4518
  %v4520 = vpop.f32.mrf.mxu0
  %4521 = vmatprep.mubr.bf16.mxu0 0
  %4522 = vmatmul.mubr.bf16.gmra.mxu0 %v4374
  %v4523 = vpop.f32.mrf.mxu0
  %v4524 = vadd.f32 0.0, %v4523
  %v4525 = vpop.f32.mrf.mxu0
  %v4526 = vpop.f32.mrf.mxu0
  %v4527 = vadd.f32 0.0, %v4526
  %v4528 = vpop.f32.mrf.mxu0
  %4529 = vmatprep.mubr.bf16.mxu0 0
  %4530 = vmatmul.mubr.bf16.gmra.mxu0 %v4375
  %v4531 = vpop.f32.mrf.mxu0
  %v4532 = vadd.f32 0.0, %v4531
  %v4533 = vpop.f32.mrf.mxu0
  %v4534 = vpop.f32.mrf.mxu0
  %v4535 = vadd.f32 0.0, %v4534
  %v4536 = vpop.f32.mrf.mxu0
  %4537 = vdwg.mxu0
  %v4538 = vadd.f32 %v4334, %v4476
  %v4539 = vadd.f32 %v4335, %v4479
  %v4540 = vadd.f32 %v4336, %v4484
  %v4541 = vadd.f32 %v4337, %v4487
  %v4542 = vadd.f32 %v4338, %v4492
  %v4543 = vadd.f32 %v4339, %v4495
  %v4544 = vadd.f32 %v4340, %v4500
  %v4545 = vadd.f32 %v4341, %v4503
  %v4546 = vadd.f32 %v4342, %v4508
  %v4547 = vadd.f32 %v4343, %v4511
  %v4548 = vadd.f32 %v4344, %v4516
  %v4549 = vadd.f32 %v4345, %v4519
  %v4550 = vadd.f32 %v4346, %v4524
  %v4551 = vadd.f32 %v4347, %v4527
  %v4552 = vadd.f32 %v4348, %v4532
  %v4553 = vadd.f32 %v4349, %v4535
  %v4554 = vsel %vm2353, %v3059, 0.0
  %v4555 = vsel %vm2354, %v3060, 0.0
  %v4556 = vsel %vm2355, %v3061, 0.0
  %v4557 = vsel %vm2356, %v3062, 0.0
  %v4558 = vsel %vm2357, %v3063, 0.0
  %v4559 = vsel %vm2358, %v3064, 0.0
  %v4560 = vsel %vm2359, %v3065, 0.0
  %v4561 = vsel %vm2360, %v3066, 0.0
  %v4562 = vsel %vm2361, %v3067, 0.0
  %v4563 = vsel %vm2362, %v3068, 0.0
  %v4564 = vsel %vm2363, %v3069, 0.0
  %v4565 = vsel %vm2364, %v3070, 0.0
  %v4566 = vsel %vm2365, %v3071, 0.0
  %v4567 = vsel %vm2366, %v3072, 0.0
  %v4568 = vsel %vm2367, %v3073, 0.0
  %v4569 = vpack.c.bf16 %v4555, %v4554
  %v4570 = vpack.c.bf16 %v4557, %v4556
  %v4571 = vpack.c.bf16 %v4559, %v4558
  %v4572 = vpack.c.bf16 %v4561, %v4560
  %v4573 = vpack.c.bf16 %v4563, %v4562
  %v4574 = vpack.c.bf16 %v4565, %v4564
  %v4575 = vpack.c.bf16 %v4567, %v4566
  %v4576 = vpack.c.bf16 0.0, %v4568
  %s4577 = scalar_lea.vmem %s2, 1024
  %v4578 = vld [vmem:[%s4577] sm:$0xf]
  %v4579 = vld [vmem:[%s4577 + $0x4] sm:$0xf]
  %v4580 = vld [vmem:[%s4577 + $0x8] sm:$0xf]
  %v4581 = vld [vmem:[%s4577 + $0xc] sm:$0xf]
  %v4582 = vld [vmem:[%s4577 + $0x10] sm:$0xf]
  %v4583 = vld [vmem:[%s4577 + $0x14] sm:$0xf]
  %v4584 = vld [vmem:[%s4577 + $0x18] sm:$0xf]
  %v4585 = vld [vmem:[%s4577 + $0x1c] sm:$0xf]
  %v4586 = vld [vmem:[%s4577 + $0x20] sm:$0xf]
  %v4587 = vld [vmem:[%s4577 + $0x24] sm:$0xf]
  %v4588 = vld [vmem:[%s4577 + $0x28] sm:$0xf]
  %v4589 = vld [vmem:[%s4577 + $0x2c] sm:$0xf]
  %v4590 = vld [vmem:[%s4577 + $0x30] sm:$0xf]
  %v4591 = vld [vmem:[%s4577 + $0x34] sm:$0xf]
  %v4592 = vld [vmem:[%s4577 + $0x38] sm:$0xf]
  %v4593 = vld [vmem:[%s4577 + $0x3c] sm:$0xf]
  %v4610 = vunpack.c.l.b16 %v4578
  %v4611 = vunpack.c.l.b16 %v4579
  %v4612 = vunpack.c.l.b16 %v4580
  %v4613 = vunpack.c.l.b16 %v4581
  %v4614 = vunpack.c.l.b16 %v4582
  %v4615 = vunpack.c.l.b16 %v4583
  %v4616 = vunpack.c.l.b16 %v4584
  %v4617 = vunpack.c.l.b16 %v4585
  %v4618 = vunpack.c.l.b16 %v4586
  %v4619 = vunpack.c.l.b16 %v4587
  %v4620 = vunpack.c.l.b16 %v4588
  %v4621 = vunpack.c.l.b16 %v4589
  %v4622 = vunpack.c.l.b16 %v4590
  %v4623 = vunpack.c.l.b16 %v4591
  %v4624 = vunpack.c.l.b16 %v4592
  %v4625 = vunpack.c.l.b16 %v4593
  %v4626 = vpack.c.b16 %v4611, %v4610
  %v4627 = vpack.c.b16 %v4613, %v4612
  %v4628 = vpack.c.b16 %v4615, %v4614
  %v4629 = vpack.c.b16 %v4617, %v4616
  %v4630 = vpack.c.b16 %v4619, %v4618
  %v4631 = vpack.c.b16 %v4621, %v4620
  %v4632 = vpack.c.b16 %v4623, %v4622
  %v4633 = vpack.c.b16 %v4625, %v4624
  %4642 = vmatprep.subr.bf16.mxu0 0
  %4643 = vmatpush1.bf16.msra.mxu0 %v4633
  %4644 = vmatprep.subr.bf16.mxu0 0
  %4645 = vmatpush1.bf16.msra.mxu0 %v4632
  %4646 = vmatprep.subr.bf16.mxu0 0
  %4647 = vmatpush1.bf16.msra.mxu0 %v4631
  %4648 = vmatprep.subr.bf16.mxu0 0
  %4649 = vmatpush1.bf16.msra.mxu0 %v4630
  %4650 = vmatprep.subr.bf16.mxu0 0
  %4651 = vmatpush1.bf16.msra.mxu0 %v4629
  %4652 = vmatprep.subr.bf16.mxu0 0
  %4653 = vmatpush1.bf16.msra.mxu0 %v4628
  %4654 = vmatprep.subr.bf16.mxu0 0
  %4655 = vmatpush1.bf16.msra.mxu0 %v4627
  %4656 = vmatprep.subr.bf16.mxu0 0
  %4657 = vmatpush1.bf16.msra.mxu0 %v4626
  %4658 = vmatprep.subr.bf16.mxu0 0
  %4659 = vmatpush2.bf16.msra.mxu0 0
  %4660 = vmatprep.subr.bf16.mxu0 0
  %4661 = vmatpush2.bf16.msra.mxu0 0
  %4662 = vmatprep.subr.bf16.mxu0 0
  %4663 = vmatpush2.bf16.msra.mxu0 0
  %4664 = vmatprep.subr.bf16.mxu0 0
  %4665 = vmatpush2.bf16.msra.mxu0 0
  %4666 = vmatprep.subr.bf16.mxu0 0
  %4667 = vmatpush2.bf16.msra.mxu0 0
  %4668 = vmatprep.subr.bf16.mxu0 0
  %4669 = vmatpush2.bf16.msra.mxu0 0
  %4670 = vmatprep.subr.bf16.mxu0 0
  %4671 = vmatpush2.bf16.msra.mxu0 0
  %4672 = vmatprep.subr.bf16.mxu0 0
  %4673 = vmatpush2.bf16.msra.mxu0 0
  %4674 = vmatprep.mubr.bf16.mxu0 0
  %4675 = vmatmul.mubr.bf16.gmra.mxu0 %v4569
  %v4676 = vpop.f32.mrf.mxu0
  %v4677 = vadd.f32 0.0, %v4676
  %v4678 = vpop.f32.mrf.mxu0
  %v4679 = vpop.f32.mrf.mxu0
  %v4680 = vadd.f32 0.0, %v4679
  %v4681 = vpop.f32.mrf.mxu0
  %4682 = vmatprep.mubr.bf16.mxu0 0
  %4683 = vmatmul.mubr.bf16.gmra.mxu0 %v4570
  %v4684 = vpop.f32.mrf.mxu0
  %v4685 = vadd.f32 0.0, %v4684
  %v4686 = vpop.f32.mrf.mxu0
  %v4687 = vpop.f32.mrf.mxu0
  %v4688 = vadd.f32 0.0, %v4687
  %v4689 = vpop.f32.mrf.mxu0
  %4690 = vmatprep.mubr.bf16.mxu0 0
  %4691 = vmatmul.mubr.bf16.gmra.mxu0 %v4571
  %v4692 = vpop.f32.mrf.mxu0
  %v4693 = vadd.f32 0.0, %v4692
  %v4694 = vpop.f32.mrf.mxu0
  %v4695 = vpop.f32.mrf.mxu0
  %v4696 = vadd.f32 0.0, %v4695
  %v4697 = vpop.f32.mrf.mxu0
  %4698 = vmatprep.mubr.bf16.mxu0 0
  %4699 = vmatmul.mubr.bf16.gmra.mxu0 %v4572
  %v4700 = vpop.f32.mrf.mxu0
  %v4701 = vadd.f32 0.0, %v4700
  %v4702 = vpop.f32.mrf.mxu0
  %v4703 = vpop.f32.mrf.mxu0
  %v4704 = vadd.f32 0.0, %v4703
  %v4705 = vpop.f32.mrf.mxu0
  %4706 = vmatprep.mubr.bf16.mxu0 0
  %4707 = vmatmul.mubr.bf16.gmra.mxu0 %v4573
  %v4708 = vpop.f32.mrf.mxu0
  %v4709 = vadd.f32 0.0, %v4708
  %v4710 = vpop.f32.mrf.mxu0
  %v4711 = vpop.f32.mrf.mxu0
  %v4712 = vadd.f32 0.0, %v4711
  %v4713 = vpop.f32.mrf.mxu0
  %4714 = vmatprep.mubr.bf16.mxu0 0
  %4715 = vmatmul.mubr.bf16.gmra.mxu0 %v4574
  %v4716 = vpop.f32.mrf.mxu0
  %v4717 = vadd.f32 0.0, %v4716
  %v4718 = vpop.f32.mrf.mxu0
  %v4719 = vpop.f32.mrf.mxu0
  %v4720 = vadd.f32 0.0, %v4719
  %v4721 = vpop.f32.mrf.mxu0
  %4722 = vmatprep.mubr.bf16.mxu0 0
  %4723 = vmatmul.mubr.bf16.gmra.mxu0 %v4575
  %v4724 = vpop.f32.mrf.mxu0
  %v4725 = vadd.f32 0.0, %v4724
  %v4726 = vpop.f32.mrf.mxu0
  %v4727 = vpop.f32.mrf.mxu0
  %v4728 = vadd.f32 0.0, %v4727
  %v4729 = vpop.f32.mrf.mxu0
  %4730 = vmatprep.mubr.bf16.mxu0 0
  %4731 = vmatmul.mubr.bf16.gmra.mxu0 %v4576
  %v4732 = vpop.f32.mrf.mxu0
  %v4733 = vadd.f32 0.0, %v4732
  %v4734 = vpop.f32.mrf.mxu0
  %v4735 = vpop.f32.mrf.mxu0
  %v4736 = vadd.f32 0.0, %v4735
  %v4737 = vpop.f32.mrf.mxu0
  %4738 = vdwg.mxu0
  %v4739 = vadd.f32 %v4538, %v4677
  %v4740 = vadd.f32 %v4539, %v4680
  %v4741 = vadd.f32 %v4540, %v4685
  %v4742 = vadd.f32 %v4541, %v4688
  %v4743 = vadd.f32 %v4542, %v4693
  %v4744 = vadd.f32 %v4543, %v4696
  %v4745 = vadd.f32 %v4544, %v4701
  %v4746 = vadd.f32 %v4545, %v4704
  %v4747 = vadd.f32 %v4546, %v4709
  %v4748 = vadd.f32 %v4547, %v4712
  %v4749 = vadd.f32 %v4548, %v4717
  %v4750 = vadd.f32 %v4549, %v4720
  %v4751 = vadd.f32 %v4550, %v4725
  %v4752 = vadd.f32 %v4551, %v4728
  %v4753 = vadd.f32 %v4552, %v4733
  %v4754 = vadd.f32 %v4553, %v4736
  %v4755 = vsel %vm2790, %v3510, 0.0
  %v4756 = vsel %vm2791, %v3512, 0.0
  %v4757 = vsel %vm2792, %v3514, 0.0
  %v4758 = vsel %vm2793, %v3516, 0.0
  %v4759 = vsel %vm2794, %v3518, 0.0
  %v4760 = vsel %vm2795, %v3520, 0.0
  %v4761 = vsel %vm2796, %v3522, 0.0
  %v4762 = vsel %vm2797, %v3524, 0.0
  %v4763 = vsel %vm2798, %v3526, 0.0
  %v4764 = vsel %vm2799, %v3528, 0.0
  %v4765 = vsel %vm2800, %v3530, 0.0
  %v4766 = vsel %vm2801, %v3532, 0.0
  %v4767 = vsel %vm2802, %v3534, 0.0
  %v4768 = vsel %vm2803, %v3536, 0.0
  %v4769 = vsel %vm2804, %v4146, 0.0
  %v4770 = vpack.c.bf16 %v4756, %v4755
  %v4771 = vpack.c.bf16 %v4758, %v4757
  %v4772 = vpack.c.bf16 %v4760, %v4759
  %v4773 = vpack.c.bf16 %v4762, %v4761
  %v4774 = vpack.c.bf16 %v4764, %v4763
  %v4775 = vpack.c.bf16 %v4766, %v4765
  %v4776 = vpack.c.bf16 %v4768, %v4767
  %v4777 = vpack.c.bf16 %v2823, %v4769
  %s4778 = scalar_lea.vmem %s2, 1088
  %v4779 = vld [vmem:[%s4778] sm:$0xf]
  %v4780 = vld [vmem:[%s4778 + $0x4] sm:$0xf]
  %v4781 = vld [vmem:[%s4778 + $0x8] sm:$0xf]
  %v4782 = vld [vmem:[%s4778 + $0xc] sm:$0xf]
  %v4783 = vld [vmem:[%s4778 + $0x10] sm:$0xf]
  %v4784 = vld [vmem:[%s4778 + $0x14] sm:$0xf]
  %v4785 = vld [vmem:[%s4778 + $0x18] sm:$0xf]
  %v4786 = vld [vmem:[%s4778 + $0x1c] sm:$0xf]
  %v4787 = vld [vmem:[%s4778 + $0x20] sm:$0xf]
  %v4788 = vld [vmem:[%s4778 + $0x24] sm:$0xf]
  %v4789 = vld [vmem:[%s4778 + $0x28] sm:$0xf]
  %v4790 = vld [vmem:[%s4778 + $0x2c] sm:$0xf]
  %v4791 = vld [vmem:[%s4778 + $0x30] sm:$0xf]
  %v4792 = vld [vmem:[%s4778 + $0x34] sm:$0xf]
  %v4793 = vld [vmem:[%s4778 + $0x38] sm:$0xf]
  %v4794 = vld [vmem:[%s4778 + $0x3c] sm:$0xf]
  %v4811 = vunpack.c.l.b16 %v4779
  %v4812 = vunpack.c.l.b16 %v4780
  %v4813 = vunpack.c.l.b16 %v4781
  %v4814 = vunpack.c.l.b16 %v4782
  %v4815 = vunpack.c.l.b16 %v4783
  %v4816 = vunpack.c.l.b16 %v4784
  %v4817 = vunpack.c.l.b16 %v4785
  %v4818 = vunpack.c.l.b16 %v4786
  %v4819 = vunpack.c.l.b16 %v4787
  %v4820 = vunpack.c.l.b16 %v4788
  %v4821 = vunpack.c.l.b16 %v4789
  %v4822 = vunpack.c.l.b16 %v4790
  %v4823 = vunpack.c.l.b16 %v4791
  %v4824 = vunpack.c.l.b16 %v4792
  %v4825 = vunpack.c.l.b16 %v4793
  %v4826 = vunpack.c.l.b16 %v4794
  %v4827 = vpack.c.b16 %v4812, %v4811
  %v4828 = vpack.c.b16 %v4814, %v4813
  %v4829 = vpack.c.b16 %v4816, %v4815
  %v4830 = vpack.c.b16 %v4818, %v4817
  %v4831 = vpack.c.b16 %v4820, %v4819
  %v4832 = vpack.c.b16 %v4822, %v4821
  %v4833 = vpack.c.b16 %v4824, %v4823
  %v4834 = vpack.c.b16 %v4826, %v4825
  %4843 = vmatprep.subr.bf16.mxu0 0
  %4844 = vmatpush1.bf16.msra.mxu0 %v4834
  %4845 = vmatprep.subr.bf16.mxu0 0
  %4846 = vmatpush1.bf16.msra.mxu0 %v4833
  %4847 = vmatprep.subr.bf16.mxu0 0
  %4848 = vmatpush1.bf16.msra.mxu0 %v4832
  %4849 = vmatprep.subr.bf16.mxu0 0
  %4850 = vmatpush1.bf16.msra.mxu0 %v4831
  %4851 = vmatprep.subr.bf16.mxu0 0
  %4852 = vmatpush1.bf16.msra.mxu0 %v4830
  %4853 = vmatprep.subr.bf16.mxu0 0
  %4854 = vmatpush1.bf16.msra.mxu0 %v4829
  %4855 = vmatprep.subr.bf16.mxu0 0
  %4856 = vmatpush1.bf16.msra.mxu0 %v4828
  %4857 = vmatprep.subr.bf16.mxu0 0
  %4858 = vmatpush1.bf16.msra.mxu0 %v4827
  %4859 = vmatprep.subr.bf16.mxu0 0
  %4860 = vmatpush2.bf16.msra.mxu0 0
  %4861 = vmatprep.subr.bf16.mxu0 0
  %4862 = vmatpush2.bf16.msra.mxu0 0
  %4863 = vmatprep.subr.bf16.mxu0 0
  %4864 = vmatpush2.bf16.msra.mxu0 0
  %4865 = vmatprep.subr.bf16.mxu0 0
  %4866 = vmatpush2.bf16.msra.mxu0 0
  %4867 = vmatprep.subr.bf16.mxu0 0
  %4868 = vmatpush2.bf16.msra.mxu0 0
  %4869 = vmatprep.subr.bf16.mxu0 0
  %4870 = vmatpush2.bf16.msra.mxu0 0
  %4871 = vmatprep.subr.bf16.mxu0 0
  %4872 = vmatpush2.bf16.msra.mxu0 0
  %4873 = vmatprep.subr.bf16.mxu0 0
  %4874 = vmatpush2.bf16.msra.mxu0 0
  %4875 = vmatprep.mubr.bf16.mxu0 0
  %4876 = vmatmul.mubr.bf16.gmra.mxu0 %v4770
  %v4877 = vpop.f32.mrf.mxu0
  %v4878 = vadd.f32 0.0, %v4877
  %v4879 = vpop.f32.mrf.mxu0
  %v4880 = vpop.f32.mrf.mxu0
  %v4881 = vadd.f32 0.0, %v4880
  %v4882 = vpop.f32.mrf.mxu0
  %4883 = vmatprep.mubr.bf16.mxu0 0
  %4884 = vmatmul.mubr.bf16.gmra.mxu0 %v4771
  %v4885 = vpop.f32.mrf.mxu0
  %v4886 = vadd.f32 0.0, %v4885
  %v4887 = vpop.f32.mrf.mxu0
  %v4888 = vpop.f32.mrf.mxu0
  %v4889 = vadd.f32 0.0, %v4888
  %v4890 = vpop.f32.mrf.mxu0
  %4891 = vmatprep.mubr.bf16.mxu0 0
  %4892 = vmatmul.mubr.bf16.gmra.mxu0 %v4772
  %v4893 = vpop.f32.mrf.mxu0
  %v4894 = vadd.f32 0.0, %v4893
  %v4895 = vpop.f32.mrf.mxu0
  %v4896 = vpop.f32.mrf.mxu0
  %v4897 = vadd.f32 0.0, %v4896
  %v4898 = vpop.f32.mrf.mxu0
  %4899 = vmatprep.mubr.bf16.mxu0 0
  %4900 = vmatmul.mubr.bf16.gmra.mxu0 %v4773
  %v4901 = vpop.f32.mrf.mxu0
  %v4902 = vadd.f32 0.0, %v4901
  %v4903 = vpop.f32.mrf.mxu0
  %v4904 = vpop.f32.mrf.mxu0
  %v4905 = vadd.f32 0.0, %v4904
  %v4906 = vpop.f32.mrf.mxu0
  %4907 = vmatprep.mubr.bf16.mxu0 0
  %4908 = vmatmul.mubr.bf16.gmra.mxu0 %v4774
  %v4909 = vpop.f32.mrf.mxu0
  %v4910 = vadd.f32 0.0, %v4909
  %v4911 = vpop.f32.mrf.mxu0
  %v4912 = vpop.f32.mrf.mxu0
  %v4913 = vadd.f32 0.0, %v4912
  %v4914 = vpop.f32.mrf.mxu0
  %4915 = vmatprep.mubr.bf16.mxu0 0
  %4916 = vmatmul.mubr.bf16.gmra.mxu0 %v4775
  %v4917 = vpop.f32.mrf.mxu0
  %v4918 = vadd.f32 0.0, %v4917
  %v4919 = vpop.f32.mrf.mxu0
  %v4920 = vpop.f32.mrf.mxu0
  %v4921 = vadd.f32 0.0, %v4920
  %v4922 = vpop.f32.mrf.mxu0
  %4923 = vmatprep.mubr.bf16.mxu0 0
  %4924 = vmatmul.mubr.bf16.gmra.mxu0 %v4776
  %v4925 = vpop.f32.mrf.mxu0
  %v4926 = vadd.f32 0.0, %v4925
  %v4927 = vpop.f32.mrf.mxu0
  %v4928 = vpop.f32.mrf.mxu0
  %v4929 = vadd.f32 0.0, %v4928
  %v4930 = vpop.f32.mrf.mxu0
  %4931 = vmatprep.mubr.bf16.mxu0 0
  %4932 = vmatmul.mubr.bf16.gmra.mxu0 %v4777
  %v4933 = vpop.f32.mrf.mxu0
  %v4934 = vadd.f32 0.0, %v4933
  %v4935 = vpop.f32.mrf.mxu0
  %v4936 = vpop.f32.mrf.mxu0
  %v4937 = vadd.f32 0.0, %v4936
  %v4938 = vpop.f32.mrf.mxu0
  %4939 = vdwg.mxu0
  %v4940 = vadd.f32 %v4739, %v4878
  %v4941 = vadd.f32 %v4740, %v4881
  %v4942 = vadd.f32 %v4741, %v4886
  %v4943 = vadd.f32 %v4742, %v4889
  %v4944 = vadd.f32 %v4743, %v4894
  %v4945 = vadd.f32 %v4744, %v4897
  %v4946 = vadd.f32 %v4745, %v4902
  %v4947 = vadd.f32 %v4746, %v4905
  %v4948 = vadd.f32 %v4747, %v4910
  %v4949 = vadd.f32 %v4748, %v4913
  %v4950 = vadd.f32 %v4749, %v4918
  %v4951 = vadd.f32 %v4750, %v4921
  %v4952 = vadd.f32 %v4751, %v4926
  %v4953 = vadd.f32 %v4752, %v4929
  %v4954 = vadd.f32 %v4753, %v4934
  %v4955 = vadd.f32 %v4754, %v4937
  %s4956 = scalar_lea.vmem %s3, 2
  %v4957 = vld [vmem:[%s4956] sm:$0x1]
  %v4959 = vlaneseq
  %v4960 = vshrl.u32 %v4959, 7
  %v4961 = vsub.s32 0, %v4960
  %v4962 = vrot.slane %v4957, %v4961
  %v4964 = vmul.f32 %v4940, %v4962
  %v4965 = vmul.f32 %v4941, %v4962
  %v4966 = vmul.f32 %v4942, %v4962
  %v4967 = vmul.f32 %v4943, %v4962
  %v4968 = vmul.f32 %v4944, %v4962
  %v4969 = vmul.f32 %v4945, %v4962
  %v4970 = vmul.f32 %v4946, %v4962
  %v4971 = vmul.f32 %v4947, %v4962
  %v4972 = vmul.f32 %v4948, %v4962
  %v4973 = vmul.f32 %v4949, %v4962
  %v4974 = vmul.f32 %v4950, %v4962
  %v4975 = vmul.f32 %v4951, %v4962
  %v4976 = vmul.f32 %v4952, %v4962
  %v4977 = vmul.f32 %v4953, %v4962
  %v4978 = vmul.f32 %v4954, %v4962
  %v4979 = vmul.f32 %v4955, %v4962
  %s4980 = scalar_lea.vmem %s4, 2
  %v4981 = vld [vmem:[%s4980] sm:$0x1]
  %v4983 = vlaneseq
  %v4984 = vshrl.u32 %v4983, 7
  %v4985 = vsub.s32 0, %v4984
  %v4986 = vrot.slane %v4981, %v4985
  %v4988 = vadd.f32 %v4964, %v4986
  %v4989 = vadd.f32 %v4965, %v4986
  %v4990 = vadd.f32 %v4966, %v4986
  %v4991 = vadd.f32 %v4967, %v4986
  %v4992 = vadd.f32 %v4968, %v4986
  %v4993 = vadd.f32 %v4969, %v4986
  %v4994 = vadd.f32 %v4970, %v4986
  %v4995 = vadd.f32 %v4971, %v4986
  %v4996 = vadd.f32 %v4972, %v4986
  %v4997 = vadd.f32 %v4973, %v4986
  %v4998 = vadd.f32 %v4974, %v4986
  %v4999 = vadd.f32 %v4975, %v4986
  %v5000 = vadd.f32 %v4976, %v4986
  %v5001 = vadd.f32 %v4977, %v4986
  %v5002 = vadd.f32 %v4978, %v4986
  %v5003 = vadd.f32 %v4979, %v4986
  %v5004 = vmax.f32 %v4988, 0.0
  %v5005 = vmax.f32 %v4989, 0.0
  %v5006 = vmax.f32 %v4990, 0.0
  %v5007 = vmax.f32 %v4991, 0.0
  %v5008 = vmax.f32 %v4992, 0.0
  %v5009 = vmax.f32 %v4993, 0.0
  %v5010 = vmax.f32 %v4994, 0.0
  %v5011 = vmax.f32 %v4995, 0.0
  %v5012 = vmax.f32 %v4996, 0.0
  %v5013 = vmax.f32 %v4997, 0.0
  %v5014 = vmax.f32 %v4998, 0.0
  %v5015 = vmax.f32 %v4999, 0.0
  %v5016 = vmax.f32 %v5000, 0.0
  %v5017 = vmax.f32 %v5001, 0.0
  %v5018 = vmax.f32 %v5002, 0.0
  %v5019 = vmax.f32 %v5003, 0.0
  %v5035 = vrot.slane %v5004, 7
  %v5036 = vsel %vm1054, %v1055, %v5035
  %v5037 = vrot.slane %v5005, 7
  %v5038 = vsel %vm1054, %v5035, %v5037
  %v5039 = vrot.slane %v5006, 7
  %v5040 = vsel %vm1054, %v5037, %v5039
  %v5041 = vrot.slane %v5007, 7
  %v5042 = vsel %vm1054, %v5039, %v5041
  %v5043 = vrot.slane %v5008, 7
  %v5044 = vsel %vm1054, %v5041, %v5043
  %v5045 = vrot.slane %v5009, 7
  %v5046 = vsel %vm1054, %v5043, %v5045
  %v5047 = vrot.slane %v5010, 7
  %v5048 = vsel %vm1054, %v5045, %v5047
  %v5049 = vrot.slane %v5011, 7
  %v5050 = vsel %vm1054, %v5047, %v5049
  %v5051 = vrot.slane %v5012, 7
  %v5052 = vsel %vm1054, %v5049, %v5051
  %v5053 = vrot.slane %v5013, 7
  %v5054 = vsel %vm1054, %v5051, %v5053
  %v5055 = vrot.slane %v5014, 7
  %v5056 = vsel %vm1054, %v5053, %v5055
  %v5057 = vrot.slane %v5015, 7
  %v5058 = vsel %vm1054, %v5055, %v5057
  %v5059 = vrot.slane %v5016, 7
  %v5060 = vsel %vm1054, %v5057, %v5059
  %v5061 = vrot.slane %v5017, 7
  %v5062 = vsel %vm1054, %v5059, %v5061
  %v5063 = vrot.slane %v5018, 7
  %v5064 = vsel %vm1054, %v5061, %v5063
  %v5080 = vsel %vm1023, %v5036, 0.0
  %v5081 = vsel %vm1024, %v5038, 0.0
  %v5082 = vsel %vm1025, %v5040, 0.0
  %v5083 = vsel %vm1026, %v5042, 0.0
  %v5084 = vsel %vm1027, %v5044, 0.0
  %v5085 = vsel %vm1028, %v5046, 0.0
  %v5086 = vsel %vm1029, %v5048, 0.0
  %v5087 = vsel %vm1030, %v5050, 0.0
  %v5088 = vsel %vm1031, %v5052, 0.0
  %v5089 = vsel %vm1032, %v5054, 0.0
  %v5090 = vsel %vm1033, %v5056, 0.0
  %v5091 = vsel %vm1034, %v5058, 0.0
  %v5092 = vsel %vm1035, %v5060, 0.0
  %v5093 = vsel %vm1036, %v5062, 0.0
  %v5094 = vsel %vm1037, %v5064, 0.0
  %v5095 = vpack.c.bf16 %v5080, %v1103
  %v5096 = vpack.c.bf16 %v5082, %v5081
  %v5097 = vpack.c.bf16 %v5084, %v5083
  %v5098 = vpack.c.bf16 %v5086, %v5085
  %v5099 = vpack.c.bf16 %v5088, %v5087
  %v5100 = vpack.c.bf16 %v5090, %v5089
  %v5101 = vpack.c.bf16 %v5092, %v5091
  %v5102 = vpack.c.bf16 %v5094, %v5093
  %s5103 = scalar_lea.vmem %s2, 1152
  %v5104 = vld [vmem:[%s5103] sm:$0xf]
  %v5105 = vld [vmem:[%s5103 + $0x4] sm:$0xf]
  %v5106 = vld [vmem:[%s5103 + $0x8] sm:$0xf]
  %v5107 = vld [vmem:[%s5103 + $0xc] sm:$0xf]
  %v5108 = vld [vmem:[%s5103 + $0x10] sm:$0xf]
  %v5109 = vld [vmem:[%s5103 + $0x14] sm:$0xf]
  %v5110 = vld [vmem:[%s5103 + $0x18] sm:$0xf]
  %v5111 = vld [vmem:[%s5103 + $0x1c] sm:$0xf]
  %v5112 = vld [vmem:[%s5103 + $0x20] sm:$0xf]
  %v5113 = vld [vmem:[%s5103 + $0x24] sm:$0xf]
  %v5114 = vld [vmem:[%s5103 + $0x28] sm:$0xf]
  %v5115 = vld [vmem:[%s5103 + $0x2c] sm:$0xf]
  %v5116 = vld [vmem:[%s5103 + $0x30] sm:$0xf]
  %v5117 = vld [vmem:[%s5103 + $0x34] sm:$0xf]
  %v5118 = vld [vmem:[%s5103 + $0x38] sm:$0xf]
  %v5119 = vld [vmem:[%s5103 + $0x3c] sm:$0xf]
  %v5120 = vsel %vm991, %v5004, 0.0
  %v5121 = vsel %vm992, %v5005, 0.0
  %v5122 = vsel %vm993, %v5006, 0.0
  %v5123 = vsel %vm994, %v5007, 0.0
  %v5124 = vsel %vm995, %v5008, 0.0
  %v5125 = vsel %vm996, %v5009, 0.0
  %v5126 = vsel %vm997, %v5010, 0.0
  %v5127 = vsel %vm998, %v5011, 0.0
  %v5128 = vsel %vm999, %v5012, 0.0
  %v5129 = vsel %vm1000, %v5013, 0.0
  %v5130 = vsel %vm1001, %v5014, 0.0
  %v5131 = vsel %vm1002, %v5015, 0.0
  %v5132 = vsel %vm1003, %v5016, 0.0
  %v5133 = vsel %vm1004, %v5017, 0.0
  %v5134 = vsel %vm1005, %v5018, 0.0
  %v5135 = vpack.c.bf16 %v5120, 0.0
  %v5136 = vpack.c.bf16 %v5122, %v5121
  %v5137 = vpack.c.bf16 %v5124, %v5123
  %v5138 = vpack.c.bf16 %v5126, %v5125
  %v5139 = vpack.c.bf16 %v5128, %v5127
  %v5140 = vpack.c.bf16 %v5130, %v5129
  %v5141 = vpack.c.bf16 %v5132, %v5131
  %v5142 = vpack.c.bf16 %v5134, %v5133
  %s5143 = scalar_lea.vmem %s2, 1216
  %v5144 = vld [vmem:[%s5143] sm:$0xf]
  %v5145 = vld [vmem:[%s5143 + $0x4] sm:$0xf]
  %v5146 = vld [vmem:[%s5143 + $0x8] sm:$0xf]
  %v5147 = vld [vmem:[%s5143 + $0xc] sm:$0xf]
  %v5148 = vld [vmem:[%s5143 + $0x10] sm:$0xf]
  %v5149 = vld [vmem:[%s5143 + $0x14] sm:$0xf]
  %v5150 = vld [vmem:[%s5143 + $0x18] sm:$0xf]
  %v5151 = vld [vmem:[%s5143 + $0x1c] sm:$0xf]
  %v5152 = vld [vmem:[%s5143 + $0x20] sm:$0xf]
  %v5153 = vld [vmem:[%s5143 + $0x24] sm:$0xf]
  %v5154 = vld [vmem:[%s5143 + $0x28] sm:$0xf]
  %v5155 = vld [vmem:[%s5143 + $0x2c] sm:$0xf]
  %v5156 = vld [vmem:[%s5143 + $0x30] sm:$0xf]
  %v5157 = vld [vmem:[%s5143 + $0x34] sm:$0xf]
  %v5158 = vld [vmem:[%s5143 + $0x38] sm:$0xf]
  %v5159 = vld [vmem:[%s5143 + $0x3c] sm:$0xf]
  %v5176 = vunpack.c.l.b16 %v5144
  %v5177 = vunpack.c.l.b16 %v5145
  %v5178 = vunpack.c.l.b16 %v5146
  %v5179 = vunpack.c.l.b16 %v5147
  %v5180 = vunpack.c.l.b16 %v5148
  %v5181 = vunpack.c.l.b16 %v5149
  %v5182 = vunpack.c.l.b16 %v5150
  %v5183 = vunpack.c.l.b16 %v5151
  %v5184 = vunpack.c.l.b16 %v5152
  %v5185 = vunpack.c.l.b16 %v5153
  %v5186 = vunpack.c.l.b16 %v5154
  %v5187 = vunpack.c.l.b16 %v5155
  %v5188 = vunpack.c.l.b16 %v5156
  %v5189 = vunpack.c.l.b16 %v5157
  %v5190 = vunpack.c.l.b16 %v5158
  %v5191 = vunpack.c.l.b16 %v5159
  %v5192 = vpack.c.b16 %v5177, %v5176
  %v5193 = vpack.c.b16 %v5179, %v5178
  %v5194 = vpack.c.b16 %v5181, %v5180
  %v5195 = vpack.c.b16 %v5183, %v5182
  %v5196 = vpack.c.b16 %v5185, %v5184
  %v5197 = vpack.c.b16 %v5187, %v5186
  %v5198 = vpack.c.b16 %v5189, %v5188
  %v5199 = vpack.c.b16 %v5191, %v5190
  %5208 = vmatprep.subr.bf16.mxu0 0
  %5209 = vmatpush1.bf16.msra.mxu0 %v5199
  %5210 = vmatprep.subr.bf16.mxu0 0
  %5211 = vmatpush1.bf16.msra.mxu0 %v5198
  %5212 = vmatprep.subr.bf16.mxu0 0
  %5213 = vmatpush1.bf16.msra.mxu0 %v5197
  %5214 = vmatprep.subr.bf16.mxu0 0
  %5215 = vmatpush1.bf16.msra.mxu0 %v5196
  %5216 = vmatprep.subr.bf16.mxu0 0
  %5217 = vmatpush1.bf16.msra.mxu0 %v5195
  %5218 = vmatprep.subr.bf16.mxu0 0
  %5219 = vmatpush1.bf16.msra.mxu0 %v5194
  %5220 = vmatprep.subr.bf16.mxu0 0
  %5221 = vmatpush1.bf16.msra.mxu0 %v5193
  %5222 = vmatprep.subr.bf16.mxu0 0
  %5223 = vmatpush1.bf16.msra.mxu0 %v5192
  %5224 = vmatprep.subr.bf16.mxu0 0
  %5225 = vmatpush2.bf16.msra.mxu0 0
  %5226 = vmatprep.subr.bf16.mxu0 0
  %5227 = vmatpush2.bf16.msra.mxu0 0
  %5228 = vmatprep.subr.bf16.mxu0 0
  %5229 = vmatpush2.bf16.msra.mxu0 0
  %5230 = vmatprep.subr.bf16.mxu0 0
  %5231 = vmatpush2.bf16.msra.mxu0 0
  %5232 = vmatprep.subr.bf16.mxu0 0
  %5233 = vmatpush2.bf16.msra.mxu0 0
  %5234 = vmatprep.subr.bf16.mxu0 0
  %5235 = vmatpush2.bf16.msra.mxu0 0
  %5236 = vmatprep.subr.bf16.mxu0 0
  %5237 = vmatpush2.bf16.msra.mxu0 0
  %5238 = vmatprep.subr.bf16.mxu0 0
  %5239 = vmatpush2.bf16.msra.mxu0 0
  %5240 = vmatprep.mubr.bf16.mxu0 0
  %5241 = vmatmul.mubr.bf16.gmra.mxu0 %v5135
  %v5242 = vpop.f32.mrf.mxu0
  %v5243 = vadd.f32 0.0, %v5242
  %v5244 = vpop.f32.mrf.mxu0
  %v5245 = vpop.f32.mrf.mxu0
  %v5246 = vadd.f32 0.0, %v5245
  %v5247 = vpop.f32.mrf.mxu0
  %5248 = vmatprep.mubr.bf16.mxu0 0
  %5249 = vmatmul.mubr.bf16.gmra.mxu0 %v5136
  %v5250 = vpop.f32.mrf.mxu0
  %v5251 = vadd.f32 0.0, %v5250
  %v5252 = vpop.f32.mrf.mxu0
  %v5253 = vpop.f32.mrf.mxu0
  %v5254 = vadd.f32 0.0, %v5253
  %v5255 = vpop.f32.mrf.mxu0
  %5256 = vmatprep.mubr.bf16.mxu0 0
  %5257 = vmatmul.mubr.bf16.gmra.mxu0 %v5137
  %v5258 = vpop.f32.mrf.mxu0
  %v5259 = vadd.f32 0.0, %v5258
  %v5260 = vpop.f32.mrf.mxu0
  %v5261 = vpop.f32.mrf.mxu0
  %v5262 = vadd.f32 0.0, %v5261
  %v5263 = vpop.f32.mrf.mxu0
  %5264 = vmatprep.mubr.bf16.mxu0 0
  %5265 = vmatmul.mubr.bf16.gmra.mxu0 %v5138
  %v5266 = vpop.f32.mrf.mxu0
  %v5267 = vadd.f32 0.0, %v5266
  %v5268 = vpop.f32.mrf.mxu0
  %v5269 = vpop.f32.mrf.mxu0
  %v5270 = vadd.f32 0.0, %v5269
  %v5271 = vpop.f32.mrf.mxu0
  %5272 = vmatprep.mubr.bf16.mxu0 0
  %5273 = vmatmul.mubr.bf16.gmra.mxu0 %v5139
  %v5274 = vpop.f32.mrf.mxu0
  %v5275 = vadd.f32 0.0, %v5274
  %v5276 = vpop.f32.mrf.mxu0
  %v5277 = vpop.f32.mrf.mxu0
  %v5278 = vadd.f32 0.0, %v5277
  %v5279 = vpop.f32.mrf.mxu0
  %5280 = vmatprep.mubr.bf16.mxu0 0
  %5281 = vmatmul.mubr.bf16.gmra.mxu0 %v5140
  %v5282 = vpop.f32.mrf.mxu0
  %v5283 = vadd.f32 0.0, %v5282
  %v5284 = vpop.f32.mrf.mxu0
  %v5285 = vpop.f32.mrf.mxu0
  %v5286 = vadd.f32 0.0, %v5285
  %v5287 = vpop.f32.mrf.mxu0
  %5288 = vmatprep.mubr.bf16.mxu0 0
  %5289 = vmatmul.mubr.bf16.gmra.mxu0 %v5141
  %v5290 = vpop.f32.mrf.mxu0
  %v5291 = vadd.f32 0.0, %v5290
  %v5292 = vpop.f32.mrf.mxu0
  %v5293 = vpop.f32.mrf.mxu0
  %v5294 = vadd.f32 0.0, %v5293
  %v5295 = vpop.f32.mrf.mxu0
  %5296 = vmatprep.mubr.bf16.mxu0 0
  %5297 = vmatmul.mubr.bf16.gmra.mxu0 %v5142
  %v5298 = vpop.f32.mrf.mxu0
  %v5299 = vadd.f32 0.0, %v5298
  %v5300 = vpop.f32.mrf.mxu0
  %v5301 = vpop.f32.mrf.mxu0
  %v5302 = vadd.f32 0.0, %v5301
  %v5303 = vpop.f32.mrf.mxu0
  %5304 = vdwg.mxu0
  %v5321 = vunpack.c.l.b16 %v5104
  %v5322 = vunpack.c.l.b16 %v5105
  %v5323 = vunpack.c.l.b16 %v5106
  %v5324 = vunpack.c.l.b16 %v5107
  %v5325 = vunpack.c.l.b16 %v5108
  %v5326 = vunpack.c.l.b16 %v5109
  %v5327 = vunpack.c.l.b16 %v5110
  %v5328 = vunpack.c.l.b16 %v5111
  %v5329 = vunpack.c.l.b16 %v5112
  %v5330 = vunpack.c.l.b16 %v5113
  %v5331 = vunpack.c.l.b16 %v5114
  %v5332 = vunpack.c.l.b16 %v5115
  %v5333 = vunpack.c.l.b16 %v5116
  %v5334 = vunpack.c.l.b16 %v5117
  %v5335 = vunpack.c.l.b16 %v5118
  %v5336 = vunpack.c.l.b16 %v5119
  %v5337 = vpack.c.b16 %v5322, %v5321
  %v5338 = vpack.c.b16 %v5324, %v5323
  %v5339 = vpack.c.b16 %v5326, %v5325
  %v5340 = vpack.c.b16 %v5328, %v5327
  %v5341 = vpack.c.b16 %v5330, %v5329
  %v5342 = vpack.c.b16 %v5332, %v5331
  %v5343 = vpack.c.b16 %v5334, %v5333
  %v5344 = vpack.c.b16 %v5336, %v5335
  %5353 = vmatprep.subr.bf16.mxu0 0
  %5354 = vmatpush1.bf16.msra.mxu0 %v5344
  %5355 = vmatprep.subr.bf16.mxu0 0
  %5356 = vmatpush1.bf16.msra.mxu0 %v5343
  %5357 = vmatprep.subr.bf16.mxu0 0
  %5358 = vmatpush1.bf16.msra.mxu0 %v5342
  %5359 = vmatprep.subr.bf16.mxu0 0
  %5360 = vmatpush1.bf16.msra.mxu0 %v5341
  %5361 = vmatprep.subr.bf16.mxu0 0
  %5362 = vmatpush1.bf16.msra.mxu0 %v5340
  %5363 = vmatprep.subr.bf16.mxu0 0
  %5364 = vmatpush1.bf16.msra.mxu0 %v5339
  %5365 = vmatprep.subr.bf16.mxu0 0
  %5366 = vmatpush1.bf16.msra.mxu0 %v5338
  %5367 = vmatprep.subr.bf16.mxu0 0
  %5368 = vmatpush1.bf16.msra.mxu0 %v5337
  %5369 = vmatprep.subr.bf16.mxu0 0
  %5370 = vmatpush2.bf16.msra.mxu0 0
  %5371 = vmatprep.subr.bf16.mxu0 0
  %5372 = vmatpush2.bf16.msra.mxu0 0
  %5373 = vmatprep.subr.bf16.mxu0 0
  %5374 = vmatpush2.bf16.msra.mxu0 0
  %5375 = vmatprep.subr.bf16.mxu0 0
  %5376 = vmatpush2.bf16.msra.mxu0 0
  %5377 = vmatprep.subr.bf16.mxu0 0
  %5378 = vmatpush2.bf16.msra.mxu0 0
  %5379 = vmatprep.subr.bf16.mxu0 0
  %5380 = vmatpush2.bf16.msra.mxu0 0
  %5381 = vmatprep.subr.bf16.mxu0 0
  %5382 = vmatpush2.bf16.msra.mxu0 0
  %5383 = vmatprep.subr.bf16.mxu0 0
  %5384 = vmatpush2.bf16.msra.mxu0 0
  %5385 = vmatprep.mubr.bf16.mxu0 0
  %5386 = vmatmul.mubr.bf16.gmra.mxu0 %v5095
  %v5387 = vpop.f32.mrf.mxu0
  %v5388 = vadd.f32 %v5243, %v5387
  %v5389 = vpop.f32.mrf.mxu0
  %v5390 = vpop.f32.mrf.mxu0
  %v5391 = vadd.f32 %v5246, %v5390
  %v5392 = vpop.f32.mrf.mxu0
  %5393 = vmatprep.mubr.bf16.mxu0 0
  %5394 = vmatmul.mubr.bf16.gmra.mxu0 %v5096
  %v5395 = vpop.f32.mrf.mxu0
  %v5396 = vadd.f32 %v5251, %v5395
  %v5397 = vpop.f32.mrf.mxu0
  %v5398 = vpop.f32.mrf.mxu0
  %v5399 = vadd.f32 %v5254, %v5398
  %v5400 = vpop.f32.mrf.mxu0
  %5401 = vmatprep.mubr.bf16.mxu0 0
  %5402 = vmatmul.mubr.bf16.gmra.mxu0 %v5097
  %v5403 = vpop.f32.mrf.mxu0
  %v5404 = vadd.f32 %v5259, %v5403
  %v5405 = vpop.f32.mrf.mxu0
  %v5406 = vpop.f32.mrf.mxu0
  %v5407 = vadd.f32 %v5262, %v5406
  %v5408 = vpop.f32.mrf.mxu0
  %5409 = vmatprep.mubr.bf16.mxu0 0
  %5410 = vmatmul.mubr.bf16.gmra.mxu0 %v5098
  %v5411 = vpop.f32.mrf.mxu0
  %v5412 = vadd.f32 %v5267, %v5411
  %v5413 = vpop.f32.mrf.mxu0
  %v5414 = vpop.f32.mrf.mxu0
  %v5415 = vadd.f32 %v5270, %v5414
  %v5416 = vpop.f32.mrf.mxu0
  %5417 = vmatprep.mubr.bf16.mxu0 0
  %5418 = vmatmul.mubr.bf16.gmra.mxu0 %v5099
  %v5419 = vpop.f32.mrf.mxu0
  %v5420 = vadd.f32 %v5275, %v5419
  %v5421 = vpop.f32.mrf.mxu0
  %v5422 = vpop.f32.mrf.mxu0
  %v5423 = vadd.f32 %v5278, %v5422
  %v5424 = vpop.f32.mrf.mxu0
  %5425 = vmatprep.mubr.bf16.mxu0 0
  %5426 = vmatmul.mubr.bf16.gmra.mxu0 %v5100
  %v5427 = vpop.f32.mrf.mxu0
  %v5428 = vadd.f32 %v5283, %v5427
  %v5429 = vpop.f32.mrf.mxu0
  %v5430 = vpop.f32.mrf.mxu0
  %v5431 = vadd.f32 %v5286, %v5430
  %v5432 = vpop.f32.mrf.mxu0
  %5433 = vmatprep.mubr.bf16.mxu0 0
  %5434 = vmatmul.mubr.bf16.gmra.mxu0 %v5101
  %v5435 = vpop.f32.mrf.mxu0
  %v5436 = vadd.f32 %v5291, %v5435
  %v5437 = vpop.f32.mrf.mxu0
  %v5438 = vpop.f32.mrf.mxu0
  %v5439 = vadd.f32 %v5294, %v5438
  %v5440 = vpop.f32.mrf.mxu0
  %5441 = vmatprep.mubr.bf16.mxu0 0
  %5442 = vmatmul.mubr.bf16.gmra.mxu0 %v5102
  %v5443 = vpop.f32.mrf.mxu0
  %v5444 = vadd.f32 %v5299, %v5443
  %v5445 = vpop.f32.mrf.mxu0
  %v5446 = vpop.f32.mrf.mxu0
  %v5447 = vadd.f32 %v5302, %v5446
  %v5448 = vpop.f32.mrf.mxu0
  %5449 = vdwg.mxu0
  %v5451 = vrot.slane %v5004, 1
  %v5452 = vsel %vm1506, %v1507, %v5451
  %v5453 = vrot.slane %v5005, 1
  %v5454 = vsel %vm1506, %v5451, %v5453
  %v5455 = vrot.slane %v5006, 1
  %v5456 = vsel %vm1506, %v5453, %v5455
  %v5457 = vrot.slane %v5007, 1
  %v5458 = vsel %vm1506, %v5455, %v5457
  %v5459 = vrot.slane %v5008, 1
  %v5460 = vsel %vm1506, %v5457, %v5459
  %v5461 = vrot.slane %v5009, 1
  %v5462 = vsel %vm1506, %v5459, %v5461
  %v5463 = vrot.slane %v5010, 1
  %v5464 = vsel %vm1506, %v5461, %v5463
  %v5465 = vrot.slane %v5011, 1
  %v5466 = vsel %vm1506, %v5463, %v5465
  %v5467 = vrot.slane %v5012, 1
  %v5468 = vsel %vm1506, %v5465, %v5467
  %v5469 = vrot.slane %v5013, 1
  %v5470 = vsel %vm1506, %v5467, %v5469
  %v5471 = vrot.slane %v5014, 1
  %v5472 = vsel %vm1506, %v5469, %v5471
  %v5473 = vrot.slane %v5015, 1
  %v5474 = vsel %vm1506, %v5471, %v5473
  %v5475 = vrot.slane %v5016, 1
  %v5476 = vsel %vm1506, %v5473, %v5475
  %v5477 = vrot.slane %v5017, 1
  %v5478 = vsel %vm1506, %v5475, %v5477
  %v5479 = vrot.slane %v5018, 1
  %v5480 = vsel %vm1506, %v5477, %v5479
  %v5481 = vrot.slane %v5019, 1
  %v5482 = vsel %vm1506, %v5479, %v5481
  %v5499 = vsel %vm1489, %v5452, 0.0
  %v5500 = vsel %vm1490, %v5454, 0.0
  %v5501 = vsel %vm1491, %v5456, 0.0
  %v5502 = vsel %vm1492, %v5458, 0.0
  %v5503 = vsel %vm1493, %v5460, 0.0
  %v5504 = vsel %vm1494, %v5462, 0.0
  %v5505 = vsel %vm1495, %v5464, 0.0
  %v5506 = vsel %vm1496, %v5466, 0.0
  %v5507 = vsel %vm1497, %v5468, 0.0
  %v5508 = vsel %vm1498, %v5470, 0.0
  %v5509 = vsel %vm1499, %v5472, 0.0
  %v5510 = vsel %vm1500, %v5474, 0.0
  %v5511 = vsel %vm1501, %v5476, 0.0
  %v5512 = vsel %vm1502, %v5478, 0.0
  %v5513 = vsel %vm1503, %v5480, 0.0
  %v5514 = vsel %vm1504, %v5482, 0.0
  %v5515 = vpack.c.bf16 %v5500, %v5499
  %v5516 = vpack.c.bf16 %v5502, %v5501
  %v5517 = vpack.c.bf16 %v5504, %v5503
  %v5518 = vpack.c.bf16 %v5506, %v5505
  %v5519 = vpack.c.bf16 %v5508, %v5507
  %v5520 = vpack.c.bf16 %v5510, %v5509
  %v5521 = vpack.c.bf16 %v5512, %v5511
  %v5522 = vpack.c.bf16 %v5514, %v5513
  %s5523 = scalar_lea.vmem %s2, 1280
  %v5524 = vld [vmem:[%s5523] sm:$0xf]
  %v5525 = vld [vmem:[%s5523 + $0x4] sm:$0xf]
  %v5526 = vld [vmem:[%s5523 + $0x8] sm:$0xf]
  %v5527 = vld [vmem:[%s5523 + $0xc] sm:$0xf]
  %v5528 = vld [vmem:[%s5523 + $0x10] sm:$0xf]
  %v5529 = vld [vmem:[%s5523 + $0x14] sm:$0xf]
  %v5530 = vld [vmem:[%s5523 + $0x18] sm:$0xf]
  %v5531 = vld [vmem:[%s5523 + $0x1c] sm:$0xf]
  %v5532 = vld [vmem:[%s5523 + $0x20] sm:$0xf]
  %v5533 = vld [vmem:[%s5523 + $0x24] sm:$0xf]
  %v5534 = vld [vmem:[%s5523 + $0x28] sm:$0xf]
  %v5535 = vld [vmem:[%s5523 + $0x2c] sm:$0xf]
  %v5536 = vld [vmem:[%s5523 + $0x30] sm:$0xf]
  %v5537 = vld [vmem:[%s5523 + $0x34] sm:$0xf]
  %v5538 = vld [vmem:[%s5523 + $0x38] sm:$0xf]
  %v5539 = vld [vmem:[%s5523 + $0x3c] sm:$0xf]
  %v5556 = vunpack.c.l.b16 %v5524
  %v5557 = vunpack.c.l.b16 %v5525
  %v5558 = vunpack.c.l.b16 %v5526
  %v5559 = vunpack.c.l.b16 %v5527
  %v5560 = vunpack.c.l.b16 %v5528
  %v5561 = vunpack.c.l.b16 %v5529
  %v5562 = vunpack.c.l.b16 %v5530
  %v5563 = vunpack.c.l.b16 %v5531
  %v5564 = vunpack.c.l.b16 %v5532
  %v5565 = vunpack.c.l.b16 %v5533
  %v5566 = vunpack.c.l.b16 %v5534
  %v5567 = vunpack.c.l.b16 %v5535
  %v5568 = vunpack.c.l.b16 %v5536
  %v5569 = vunpack.c.l.b16 %v5537
  %v5570 = vunpack.c.l.b16 %v5538
  %v5571 = vunpack.c.l.b16 %v5539
  %v5572 = vpack.c.b16 %v5557, %v5556
  %v5573 = vpack.c.b16 %v5559, %v5558
  %v5574 = vpack.c.b16 %v5561, %v5560
  %v5575 = vpack.c.b16 %v5563, %v5562
  %v5576 = vpack.c.b16 %v5565, %v5564
  %v5577 = vpack.c.b16 %v5567, %v5566
  %v5578 = vpack.c.b16 %v5569, %v5568
  %v5579 = vpack.c.b16 %v5571, %v5570
  %5588 = vmatprep.subr.bf16.mxu0 0
  %5589 = vmatpush1.bf16.msra.mxu0 %v5579
  %5590 = vmatprep.subr.bf16.mxu0 0
  %5591 = vmatpush1.bf16.msra.mxu0 %v5578
  %5592 = vmatprep.subr.bf16.mxu0 0
  %5593 = vmatpush1.bf16.msra.mxu0 %v5577
  %5594 = vmatprep.subr.bf16.mxu0 0
  %5595 = vmatpush1.bf16.msra.mxu0 %v5576
  %5596 = vmatprep.subr.bf16.mxu0 0
  %5597 = vmatpush1.bf16.msra.mxu0 %v5575
  %5598 = vmatprep.subr.bf16.mxu0 0
  %5599 = vmatpush1.bf16.msra.mxu0 %v5574
  %5600 = vmatprep.subr.bf16.mxu0 0
  %5601 = vmatpush1.bf16.msra.mxu0 %v5573
  %5602 = vmatprep.subr.bf16.mxu0 0
  %5603 = vmatpush1.bf16.msra.mxu0 %v5572
  %5604 = vmatprep.subr.bf16.mxu0 0
  %5605 = vmatpush2.bf16.msra.mxu0 0
  %5606 = vmatprep.subr.bf16.mxu0 0
  %5607 = vmatpush2.bf16.msra.mxu0 0
  %5608 = vmatprep.subr.bf16.mxu0 0
  %5609 = vmatpush2.bf16.msra.mxu0 0
  %5610 = vmatprep.subr.bf16.mxu0 0
  %5611 = vmatpush2.bf16.msra.mxu0 0
  %5612 = vmatprep.subr.bf16.mxu0 0
  %5613 = vmatpush2.bf16.msra.mxu0 0
  %5614 = vmatprep.subr.bf16.mxu0 0
  %5615 = vmatpush2.bf16.msra.mxu0 0
  %5616 = vmatprep.subr.bf16.mxu0 0
  %5617 = vmatpush2.bf16.msra.mxu0 0
  %5618 = vmatprep.subr.bf16.mxu0 0
  %5619 = vmatpush2.bf16.msra.mxu0 0
  %5620 = vmatprep.mubr.bf16.mxu0 0
  %5621 = vmatmul.mubr.bf16.gmra.mxu0 %v5515
  %v5622 = vpop.f32.mrf.mxu0
  %v5623 = vadd.f32 0.0, %v5622
  %v5624 = vpop.f32.mrf.mxu0
  %v5625 = vpop.f32.mrf.mxu0
  %v5626 = vadd.f32 0.0, %v5625
  %v5627 = vpop.f32.mrf.mxu0
  %5628 = vmatprep.mubr.bf16.mxu0 0
  %5629 = vmatmul.mubr.bf16.gmra.mxu0 %v5516
  %v5630 = vpop.f32.mrf.mxu0
  %v5631 = vadd.f32 0.0, %v5630
  %v5632 = vpop.f32.mrf.mxu0
  %v5633 = vpop.f32.mrf.mxu0
  %v5634 = vadd.f32 0.0, %v5633
  %v5635 = vpop.f32.mrf.mxu0
  %5636 = vmatprep.mubr.bf16.mxu0 0
  %5637 = vmatmul.mubr.bf16.gmra.mxu0 %v5517
  %v5638 = vpop.f32.mrf.mxu0
  %v5639 = vadd.f32 0.0, %v5638
  %v5640 = vpop.f32.mrf.mxu0
  %v5641 = vpop.f32.mrf.mxu0
  %v5642 = vadd.f32 0.0, %v5641
  %v5643 = vpop.f32.mrf.mxu0
  %5644 = vmatprep.mubr.bf16.mxu0 0
  %5645 = vmatmul.mubr.bf16.gmra.mxu0 %v5518
  %v5646 = vpop.f32.mrf.mxu0
  %v5647 = vadd.f32 0.0, %v5646
  %v5648 = vpop.f32.mrf.mxu0
  %v5649 = vpop.f32.mrf.mxu0
  %v5650 = vadd.f32 0.0, %v5649
  %v5651 = vpop.f32.mrf.mxu0
  %5652 = vmatprep.mubr.bf16.mxu0 0
  %5653 = vmatmul.mubr.bf16.gmra.mxu0 %v5519
  %v5654 = vpop.f32.mrf.mxu0
  %v5655 = vadd.f32 0.0, %v5654
  %v5656 = vpop.f32.mrf.mxu0
  %v5657 = vpop.f32.mrf.mxu0
  %v5658 = vadd.f32 0.0, %v5657
  %v5659 = vpop.f32.mrf.mxu0
  %5660 = vmatprep.mubr.bf16.mxu0 0
  %5661 = vmatmul.mubr.bf16.gmra.mxu0 %v5520
  %v5662 = vpop.f32.mrf.mxu0
  %v5663 = vadd.f32 0.0, %v5662
  %v5664 = vpop.f32.mrf.mxu0
  %v5665 = vpop.f32.mrf.mxu0
  %v5666 = vadd.f32 0.0, %v5665
  %v5667 = vpop.f32.mrf.mxu0
  %5668 = vmatprep.mubr.bf16.mxu0 0
  %5669 = vmatmul.mubr.bf16.gmra.mxu0 %v5521
  %v5670 = vpop.f32.mrf.mxu0
  %v5671 = vadd.f32 0.0, %v5670
  %v5672 = vpop.f32.mrf.mxu0
  %v5673 = vpop.f32.mrf.mxu0
  %v5674 = vadd.f32 0.0, %v5673
  %v5675 = vpop.f32.mrf.mxu0
  %5676 = vmatprep.mubr.bf16.mxu0 0
  %5677 = vmatmul.mubr.bf16.gmra.mxu0 %v5522
  %v5678 = vpop.f32.mrf.mxu0
  %v5679 = vadd.f32 0.0, %v5678
  %v5680 = vpop.f32.mrf.mxu0
  %v5681 = vpop.f32.mrf.mxu0
  %v5682 = vadd.f32 0.0, %v5681
  %v5683 = vpop.f32.mrf.mxu0
  %5684 = vdwg.mxu0
  %v5685 = vadd.f32 %v5388, %v5623
  %v5686 = vadd.f32 %v5391, %v5626
  %v5687 = vadd.f32 %v5396, %v5631
  %v5688 = vadd.f32 %v5399, %v5634
  %v5689 = vadd.f32 %v5404, %v5639
  %v5690 = vadd.f32 %v5407, %v5642
  %v5691 = vadd.f32 %v5412, %v5647
  %v5692 = vadd.f32 %v5415, %v5650
  %v5693 = vadd.f32 %v5420, %v5655
  %v5694 = vadd.f32 %v5423, %v5658
  %v5695 = vadd.f32 %v5428, %v5663
  %v5696 = vadd.f32 %v5431, %v5666
  %v5697 = vadd.f32 %v5436, %v5671
  %v5698 = vadd.f32 %v5439, %v5674
  %v5699 = vadd.f32 %v5444, %v5679
  %v5700 = vadd.f32 %v5447, %v5682
  %v5701 = vrot.slane %v5019, 7
  %v5702 = vsel %vm1054, %v5063, %v5701
  %v5704 = vsel %vm1006, %v5036, 0.0
  %v5705 = vsel %vm1007, %v5038, 0.0
  %v5706 = vsel %vm1008, %v5040, 0.0
  %v5707 = vsel %vm1009, %v5042, 0.0
  %v5708 = vsel %vm1010, %v5044, 0.0
  %v5709 = vsel %vm1011, %v5046, 0.0
  %v5710 = vsel %vm1012, %v5048, 0.0
  %v5711 = vsel %vm1013, %v5050, 0.0
  %v5712 = vsel %vm1014, %v5052, 0.0
  %v5713 = vsel %vm1015, %v5054, 0.0
  %v5714 = vsel %vm1016, %v5056, 0.0
  %v5715 = vsel %vm1017, %v5058, 0.0
  %v5716 = vsel %vm1018, %v5060, 0.0
  %v5717 = vsel %vm1019, %v5062, 0.0
  %v5718 = vsel %vm1020, %v5064, 0.0
  %v5719 = vsel %vm1021, %v5702, 0.0
  %v5720 = vpack.c.bf16 %v5705, %v5704
  %v5721 = vpack.c.bf16 %v5707, %v5706
  %v5722 = vpack.c.bf16 %v5709, %v5708
  %v5723 = vpack.c.bf16 %v5711, %v5710
  %v5724 = vpack.c.bf16 %v5713, %v5712
  %v5725 = vpack.c.bf16 %v5715, %v5714
  %v5726 = vpack.c.bf16 %v5717, %v5716
  %v5727 = vpack.c.bf16 %v5719, %v5718
  %s5728 = scalar_lea.vmem %s2, 1344
  %v5729 = vld [vmem:[%s5728] sm:$0xf]
  %v5730 = vld [vmem:[%s5728 + $0x4] sm:$0xf]
  %v5731 = vld [vmem:[%s5728 + $0x8] sm:$0xf]
  %v5732 = vld [vmem:[%s5728 + $0xc] sm:$0xf]
  %v5733 = vld [vmem:[%s5728 + $0x10] sm:$0xf]
  %v5734 = vld [vmem:[%s5728 + $0x14] sm:$0xf]
  %v5735 = vld [vmem:[%s5728 + $0x18] sm:$0xf]
  %v5736 = vld [vmem:[%s5728 + $0x1c] sm:$0xf]
  %v5737 = vld [vmem:[%s5728 + $0x20] sm:$0xf]
  %v5738 = vld [vmem:[%s5728 + $0x24] sm:$0xf]
  %v5739 = vld [vmem:[%s5728 + $0x28] sm:$0xf]
  %v5740 = vld [vmem:[%s5728 + $0x2c] sm:$0xf]
  %v5741 = vld [vmem:[%s5728 + $0x30] sm:$0xf]
  %v5742 = vld [vmem:[%s5728 + $0x34] sm:$0xf]
  %v5743 = vld [vmem:[%s5728 + $0x38] sm:$0xf]
  %v5744 = vld [vmem:[%s5728 + $0x3c] sm:$0xf]
  %v5761 = vunpack.c.l.b16 %v5729
  %v5762 = vunpack.c.l.b16 %v5730
  %v5763 = vunpack.c.l.b16 %v5731
  %v5764 = vunpack.c.l.b16 %v5732
  %v5765 = vunpack.c.l.b16 %v5733
  %v5766 = vunpack.c.l.b16 %v5734
  %v5767 = vunpack.c.l.b16 %v5735
  %v5768 = vunpack.c.l.b16 %v5736
  %v5769 = vunpack.c.l.b16 %v5737
  %v5770 = vunpack.c.l.b16 %v5738
  %v5771 = vunpack.c.l.b16 %v5739
  %v5772 = vunpack.c.l.b16 %v5740
  %v5773 = vunpack.c.l.b16 %v5741
  %v5774 = vunpack.c.l.b16 %v5742
  %v5775 = vunpack.c.l.b16 %v5743
  %v5776 = vunpack.c.l.b16 %v5744
  %v5777 = vpack.c.b16 %v5762, %v5761
  %v5778 = vpack.c.b16 %v5764, %v5763
  %v5779 = vpack.c.b16 %v5766, %v5765
  %v5780 = vpack.c.b16 %v5768, %v5767
  %v5781 = vpack.c.b16 %v5770, %v5769
  %v5782 = vpack.c.b16 %v5772, %v5771
  %v5783 = vpack.c.b16 %v5774, %v5773
  %v5784 = vpack.c.b16 %v5776, %v5775
  %5793 = vmatprep.subr.bf16.mxu0 0
  %5794 = vmatpush1.bf16.msra.mxu0 %v5784
  %5795 = vmatprep.subr.bf16.mxu0 0
  %5796 = vmatpush1.bf16.msra.mxu0 %v5783
  %5797 = vmatprep.subr.bf16.mxu0 0
  %5798 = vmatpush1.bf16.msra.mxu0 %v5782
  %5799 = vmatprep.subr.bf16.mxu0 0
  %5800 = vmatpush1.bf16.msra.mxu0 %v5781
  %5801 = vmatprep.subr.bf16.mxu0 0
  %5802 = vmatpush1.bf16.msra.mxu0 %v5780
  %5803 = vmatprep.subr.bf16.mxu0 0
  %5804 = vmatpush1.bf16.msra.mxu0 %v5779
  %5805 = vmatprep.subr.bf16.mxu0 0
  %5806 = vmatpush1.bf16.msra.mxu0 %v5778
  %5807 = vmatprep.subr.bf16.mxu0 0
  %5808 = vmatpush1.bf16.msra.mxu0 %v5777
  %5809 = vmatprep.subr.bf16.mxu0 0
  %5810 = vmatpush2.bf16.msra.mxu0 0
  %5811 = vmatprep.subr.bf16.mxu0 0
  %5812 = vmatpush2.bf16.msra.mxu0 0
  %5813 = vmatprep.subr.bf16.mxu0 0
  %5814 = vmatpush2.bf16.msra.mxu0 0
  %5815 = vmatprep.subr.bf16.mxu0 0
  %5816 = vmatpush2.bf16.msra.mxu0 0
  %5817 = vmatprep.subr.bf16.mxu0 0
  %5818 = vmatpush2.bf16.msra.mxu0 0
  %5819 = vmatprep.subr.bf16.mxu0 0
  %5820 = vmatpush2.bf16.msra.mxu0 0
  %5821 = vmatprep.subr.bf16.mxu0 0
  %5822 = vmatpush2.bf16.msra.mxu0 0
  %5823 = vmatprep.subr.bf16.mxu0 0
  %5824 = vmatpush2.bf16.msra.mxu0 0
  %5825 = vmatprep.mubr.bf16.mxu0 0
  %5826 = vmatmul.mubr.bf16.gmra.mxu0 %v5720
  %v5827 = vpop.f32.mrf.mxu0
  %v5828 = vadd.f32 0.0, %v5827
  %v5829 = vpop.f32.mrf.mxu0
  %v5830 = vpop.f32.mrf.mxu0
  %v5831 = vadd.f32 0.0, %v5830
  %v5832 = vpop.f32.mrf.mxu0
  %5833 = vmatprep.mubr.bf16.mxu0 0
  %5834 = vmatmul.mubr.bf16.gmra.mxu0 %v5721
  %v5835 = vpop.f32.mrf.mxu0
  %v5836 = vadd.f32 0.0, %v5835
  %v5837 = vpop.f32.mrf.mxu0
  %v5838 = vpop.f32.mrf.mxu0
  %v5839 = vadd.f32 0.0, %v5838
  %v5840 = vpop.f32.mrf.mxu0
  %5841 = vmatprep.mubr.bf16.mxu0 0
  %5842 = vmatmul.mubr.bf16.gmra.mxu0 %v5722
  %v5843 = vpop.f32.mrf.mxu0
  %v5844 = vadd.f32 0.0, %v5843
  %v5845 = vpop.f32.mrf.mxu0
  %v5846 = vpop.f32.mrf.mxu0
  %v5847 = vadd.f32 0.0, %v5846
  %v5848 = vpop.f32.mrf.mxu0
  %5849 = vmatprep.mubr.bf16.mxu0 0
  %5850 = vmatmul.mubr.bf16.gmra.mxu0 %v5723
  %v5851 = vpop.f32.mrf.mxu0
  %v5852 = vadd.f32 0.0, %v5851
  %v5853 = vpop.f32.mrf.mxu0
  %v5854 = vpop.f32.mrf.mxu0
  %v5855 = vadd.f32 0.0, %v5854
  %v5856 = vpop.f32.mrf.mxu0
  %5857 = vmatprep.mubr.bf16.mxu0 0
  %5858 = vmatmul.mubr.bf16.gmra.mxu0 %v5724
  %v5859 = vpop.f32.mrf.mxu0
  %v5860 = vadd.f32 0.0, %v5859
  %v5861 = vpop.f32.mrf.mxu0
  %v5862 = vpop.f32.mrf.mxu0
  %v5863 = vadd.f32 0.0, %v5862
  %v5864 = vpop.f32.mrf.mxu0
  %5865 = vmatprep.mubr.bf16.mxu0 0
  %5866 = vmatmul.mubr.bf16.gmra.mxu0 %v5725
  %v5867 = vpop.f32.mrf.mxu0
  %v5868 = vadd.f32 0.0, %v5867
  %v5869 = vpop.f32.mrf.mxu0
  %v5870 = vpop.f32.mrf.mxu0
  %v5871 = vadd.f32 0.0, %v5870
  %v5872 = vpop.f32.mrf.mxu0
  %5873 = vmatprep.mubr.bf16.mxu0 0
  %5874 = vmatmul.mubr.bf16.gmra.mxu0 %v5726
  %v5875 = vpop.f32.mrf.mxu0
  %v5876 = vadd.f32 0.0, %v5875
  %v5877 = vpop.f32.mrf.mxu0
  %v5878 = vpop.f32.mrf.mxu0
  %v5879 = vadd.f32 0.0, %v5878
  %v5880 = vpop.f32.mrf.mxu0
  %5881 = vmatprep.mubr.bf16.mxu0 0
  %5882 = vmatmul.mubr.bf16.gmra.mxu0 %v5727
  %v5883 = vpop.f32.mrf.mxu0
  %v5884 = vadd.f32 0.0, %v5883
  %v5885 = vpop.f32.mrf.mxu0
  %v5886 = vpop.f32.mrf.mxu0
  %v5887 = vadd.f32 0.0, %v5886
  %v5888 = vpop.f32.mrf.mxu0
  %5889 = vdwg.mxu0
  %v5890 = vadd.f32 %v5685, %v5828
  %v5891 = vadd.f32 %v5686, %v5831
  %v5892 = vadd.f32 %v5687, %v5836
  %v5893 = vadd.f32 %v5688, %v5839
  %v5894 = vadd.f32 %v5689, %v5844
  %v5895 = vadd.f32 %v5690, %v5847
  %v5896 = vadd.f32 %v5691, %v5852
  %v5897 = vadd.f32 %v5692, %v5855
  %v5898 = vadd.f32 %v5693, %v5860
  %v5899 = vadd.f32 %v5694, %v5863
  %v5900 = vadd.f32 %v5695, %v5868
  %v5901 = vadd.f32 %v5696, %v5871
  %v5902 = vadd.f32 %v5697, %v5876
  %v5903 = vadd.f32 %v5698, %v5879
  %v5904 = vadd.f32 %v5699, %v5884
  %v5905 = vadd.f32 %v5700, %v5887
  %v5906 = vpack.c.bf16 %v5005, %v5004
  %v5907 = vpack.c.bf16 %v5007, %v5006
  %v5908 = vpack.c.bf16 %v5009, %v5008
  %v5909 = vpack.c.bf16 %v5011, %v5010
  %v5910 = vpack.c.bf16 %v5013, %v5012
  %v5911 = vpack.c.bf16 %v5015, %v5014
  %v5912 = vpack.c.bf16 %v5017, %v5016
  %v5913 = vpack.c.bf16 %v5019, %v5018
  %s5914 = scalar_lea.vmem %s2, 1408
  %v5915 = vld [vmem:[%s5914] sm:$0xf]
  %v5916 = vld [vmem:[%s5914 + $0x4] sm:$0xf]
  %v5917 = vld [vmem:[%s5914 + $0x8] sm:$0xf]
  %v5918 = vld [vmem:[%s5914 + $0xc] sm:$0xf]
  %v5919 = vld [vmem:[%s5914 + $0x10] sm:$0xf]
  %v5920 = vld [vmem:[%s5914 + $0x14] sm:$0xf]
  %v5921 = vld [vmem:[%s5914 + $0x18] sm:$0xf]
  %v5922 = vld [vmem:[%s5914 + $0x1c] sm:$0xf]
  %v5923 = vld [vmem:[%s5914 + $0x20] sm:$0xf]
  %v5924 = vld [vmem:[%s5914 + $0x24] sm:$0xf]
  %v5925 = vld [vmem:[%s5914 + $0x28] sm:$0xf]
  %v5926 = vld [vmem:[%s5914 + $0x2c] sm:$0xf]
  %v5927 = vld [vmem:[%s5914 + $0x30] sm:$0xf]
  %v5928 = vld [vmem:[%s5914 + $0x34] sm:$0xf]
  %v5929 = vld [vmem:[%s5914 + $0x38] sm:$0xf]
  %v5930 = vld [vmem:[%s5914 + $0x3c] sm:$0xf]
  %v5947 = vunpack.c.l.b16 %v5915
  %v5948 = vunpack.c.l.b16 %v5916
  %v5949 = vunpack.c.l.b16 %v5917
  %v5950 = vunpack.c.l.b16 %v5918
  %v5951 = vunpack.c.l.b16 %v5919
  %v5952 = vunpack.c.l.b16 %v5920
  %v5953 = vunpack.c.l.b16 %v5921
  %v5954 = vunpack.c.l.b16 %v5922
  %v5955 = vunpack.c.l.b16 %v5923
  %v5956 = vunpack.c.l.b16 %v5924
  %v5957 = vunpack.c.l.b16 %v5925
  %v5958 = vunpack.c.l.b16 %v5926
  %v5959 = vunpack.c.l.b16 %v5927
  %v5960 = vunpack.c.l.b16 %v5928
  %v5961 = vunpack.c.l.b16 %v5929
  %v5962 = vunpack.c.l.b16 %v5930
  %v5963 = vpack.c.b16 %v5948, %v5947
  %v5964 = vpack.c.b16 %v5950, %v5949
  %v5965 = vpack.c.b16 %v5952, %v5951
  %v5966 = vpack.c.b16 %v5954, %v5953
  %v5967 = vpack.c.b16 %v5956, %v5955
  %v5968 = vpack.c.b16 %v5958, %v5957
  %v5969 = vpack.c.b16 %v5960, %v5959
  %v5970 = vpack.c.b16 %v5962, %v5961
  %5979 = vmatprep.subr.bf16.mxu0 0
  %5980 = vmatpush1.bf16.msra.mxu0 %v5970
  %5981 = vmatprep.subr.bf16.mxu0 0
  %5982 = vmatpush1.bf16.msra.mxu0 %v5969
  %5983 = vmatprep.subr.bf16.mxu0 0
  %5984 = vmatpush1.bf16.msra.mxu0 %v5968
  %5985 = vmatprep.subr.bf16.mxu0 0
  %5986 = vmatpush1.bf16.msra.mxu0 %v5967
  %5987 = vmatprep.subr.bf16.mxu0 0
  %5988 = vmatpush1.bf16.msra.mxu0 %v5966
  %5989 = vmatprep.subr.bf16.mxu0 0
  %5990 = vmatpush1.bf16.msra.mxu0 %v5965
  %5991 = vmatprep.subr.bf16.mxu0 0
  %5992 = vmatpush1.bf16.msra.mxu0 %v5964
  %5993 = vmatprep.subr.bf16.mxu0 0
  %5994 = vmatpush1.bf16.msra.mxu0 %v5963
  %5995 = vmatprep.subr.bf16.mxu0 0
  %5996 = vmatpush2.bf16.msra.mxu0 0
  %5997 = vmatprep.subr.bf16.mxu0 0
  %5998 = vmatpush2.bf16.msra.mxu0 0
  %5999 = vmatprep.subr.bf16.mxu0 0
  %6000 = vmatpush2.bf16.msra.mxu0 0
  %6001 = vmatprep.subr.bf16.mxu0 0
  %6002 = vmatpush2.bf16.msra.mxu0 0
  %6003 = vmatprep.subr.bf16.mxu0 0
  %6004 = vmatpush2.bf16.msra.mxu0 0
  %6005 = vmatprep.subr.bf16.mxu0 0
  %6006 = vmatpush2.bf16.msra.mxu0 0
  %6007 = vmatprep.subr.bf16.mxu0 0
  %6008 = vmatpush2.bf16.msra.mxu0 0
  %6009 = vmatprep.subr.bf16.mxu0 0
  %6010 = vmatpush2.bf16.msra.mxu0 0
  %6011 = vmatprep.mubr.bf16.mxu0 0
  %6012 = vmatmul.mubr.bf16.gmra.mxu0 %v5906
  %v6013 = vpop.f32.mrf.mxu0
  %v6014 = vadd.f32 0.0, %v6013
  %v6015 = vpop.f32.mrf.mxu0
  %v6016 = vpop.f32.mrf.mxu0
  %v6017 = vadd.f32 0.0, %v6016
  %v6018 = vpop.f32.mrf.mxu0
  %6019 = vmatprep.mubr.bf16.mxu0 0
  %6020 = vmatmul.mubr.bf16.gmra.mxu0 %v5907
  %v6021 = vpop.f32.mrf.mxu0
  %v6022 = vadd.f32 0.0, %v6021
  %v6023 = vpop.f32.mrf.mxu0
  %v6024 = vpop.f32.mrf.mxu0
  %v6025 = vadd.f32 0.0, %v6024
  %v6026 = vpop.f32.mrf.mxu0
  %6027 = vmatprep.mubr.bf16.mxu0 0
  %6028 = vmatmul.mubr.bf16.gmra.mxu0 %v5908
  %v6029 = vpop.f32.mrf.mxu0
  %v6030 = vadd.f32 0.0, %v6029
  %v6031 = vpop.f32.mrf.mxu0
  %v6032 = vpop.f32.mrf.mxu0
  %v6033 = vadd.f32 0.0, %v6032
  %v6034 = vpop.f32.mrf.mxu0
  %6035 = vmatprep.mubr.bf16.mxu0 0
  %6036 = vmatmul.mubr.bf16.gmra.mxu0 %v5909
  %v6037 = vpop.f32.mrf.mxu0
  %v6038 = vadd.f32 0.0, %v6037
  %v6039 = vpop.f32.mrf.mxu0
  %v6040 = vpop.f32.mrf.mxu0
  %v6041 = vadd.f32 0.0, %v6040
  %v6042 = vpop.f32.mrf.mxu0
  %6043 = vmatprep.mubr.bf16.mxu0 0
  %6044 = vmatmul.mubr.bf16.gmra.mxu0 %v5910
  %v6045 = vpop.f32.mrf.mxu0
  %v6046 = vadd.f32 0.0, %v6045
  %v6047 = vpop.f32.mrf.mxu0
  %v6048 = vpop.f32.mrf.mxu0
  %v6049 = vadd.f32 0.0, %v6048
  %v6050 = vpop.f32.mrf.mxu0
  %6051 = vmatprep.mubr.bf16.mxu0 0
  %6052 = vmatmul.mubr.bf16.gmra.mxu0 %v5911
  %v6053 = vpop.f32.mrf.mxu0
  %v6054 = vadd.f32 0.0, %v6053
  %v6055 = vpop.f32.mrf.mxu0
  %v6056 = vpop.f32.mrf.mxu0
  %v6057 = vadd.f32 0.0, %v6056
  %v6058 = vpop.f32.mrf.mxu0
  %6059 = vmatprep.mubr.bf16.mxu0 0
  %6060 = vmatmul.mubr.bf16.gmra.mxu0 %v5912
  %v6061 = vpop.f32.mrf.mxu0
  %v6062 = vadd.f32 0.0, %v6061
  %v6063 = vpop.f32.mrf.mxu0
  %v6064 = vpop.f32.mrf.mxu0
  %v6065 = vadd.f32 0.0, %v6064
  %v6066 = vpop.f32.mrf.mxu0
  %6067 = vmatprep.mubr.bf16.mxu0 0
  %6068 = vmatmul.mubr.bf16.gmra.mxu0 %v5913
  %v6069 = vpop.f32.mrf.mxu0
  %v6070 = vadd.f32 0.0, %v6069
  %v6071 = vpop.f32.mrf.mxu0
  %v6072 = vpop.f32.mrf.mxu0
  %v6073 = vadd.f32 0.0, %v6072
  %v6074 = vpop.f32.mrf.mxu0
  %6075 = vdwg.mxu0
  %v6076 = vadd.f32 %v5890, %v6014
  %v6077 = vadd.f32 %v5891, %v6017
  %v6078 = vadd.f32 %v5892, %v6022
  %v6079 = vadd.f32 %v5893, %v6025
  %v6080 = vadd.f32 %v5894, %v6030
  %v6081 = vadd.f32 %v5895, %v6033
  %v6082 = vadd.f32 %v5896, %v6038
  %v6083 = vadd.f32 %v5897, %v6041
  %v6084 = vadd.f32 %v5898, %v6046
  %v6085 = vadd.f32 %v5899, %v6049
  %v6086 = vadd.f32 %v5900, %v6054
  %v6087 = vadd.f32 %v5901, %v6057
  %v6088 = vadd.f32 %v5902, %v6062
  %v6089 = vadd.f32 %v5903, %v6065
  %v6090 = vadd.f32 %v5904, %v6070
  %v6091 = vadd.f32 %v5905, %v6073
  %v6092 = vsel %vm1506, %v5481, %v1507
  %v6094 = vsel %vm1473, %v5454, 0.0
  %v6095 = vsel %vm1474, %v5456, 0.0
  %v6096 = vsel %vm1475, %v5458, 0.0
  %v6097 = vsel %vm1476, %v5460, 0.0
  %v6098 = vsel %vm1477, %v5462, 0.0
  %v6099 = vsel %vm1478, %v5464, 0.0
  %v6100 = vsel %vm1479, %v5466, 0.0
  %v6101 = vsel %vm1480, %v5468, 0.0
  %v6102 = vsel %vm1481, %v5470, 0.0
  %v6103 = vsel %vm1482, %v5472, 0.0
  %v6104 = vsel %vm1483, %v5474, 0.0
  %v6105 = vsel %vm1484, %v5476, 0.0
  %v6106 = vsel %vm1485, %v5478, 0.0
  %v6107 = vsel %vm1486, %v5480, 0.0
  %v6108 = vsel %vm1487, %v5482, 0.0
  %v6109 = vsel %vm1488, %v6092, 0.0
  %v6110 = vpack.c.bf16 %v6095, %v6094
  %v6111 = vpack.c.bf16 %v6097, %v6096
  %v6112 = vpack.c.bf16 %v6099, %v6098
  %v6113 = vpack.c.bf16 %v6101, %v6100
  %v6114 = vpack.c.bf16 %v6103, %v6102
  %v6115 = vpack.c.bf16 %v6105, %v6104
  %v6116 = vpack.c.bf16 %v6107, %v6106
  %v6117 = vpack.c.bf16 %v6109, %v6108
  %s6118 = scalar_lea.vmem %s2, 1472
  %v6119 = vld [vmem:[%s6118] sm:$0xf]
  %v6120 = vld [vmem:[%s6118 + $0x4] sm:$0xf]
  %v6121 = vld [vmem:[%s6118 + $0x8] sm:$0xf]
  %v6122 = vld [vmem:[%s6118 + $0xc] sm:$0xf]
  %v6123 = vld [vmem:[%s6118 + $0x10] sm:$0xf]
  %v6124 = vld [vmem:[%s6118 + $0x14] sm:$0xf]
  %v6125 = vld [vmem:[%s6118 + $0x18] sm:$0xf]
  %v6126 = vld [vmem:[%s6118 + $0x1c] sm:$0xf]
  %v6127 = vld [vmem:[%s6118 + $0x20] sm:$0xf]
  %v6128 = vld [vmem:[%s6118 + $0x24] sm:$0xf]
  %v6129 = vld [vmem:[%s6118 + $0x28] sm:$0xf]
  %v6130 = vld [vmem:[%s6118 + $0x2c] sm:$0xf]
  %v6131 = vld [vmem:[%s6118 + $0x30] sm:$0xf]
  %v6132 = vld [vmem:[%s6118 + $0x34] sm:$0xf]
  %v6133 = vld [vmem:[%s6118 + $0x38] sm:$0xf]
  %v6134 = vld [vmem:[%s6118 + $0x3c] sm:$0xf]
  %v6151 = vunpack.c.l.b16 %v6119
  %v6152 = vunpack.c.l.b16 %v6120
  %v6153 = vunpack.c.l.b16 %v6121
  %v6154 = vunpack.c.l.b16 %v6122
  %v6155 = vunpack.c.l.b16 %v6123
  %v6156 = vunpack.c.l.b16 %v6124
  %v6157 = vunpack.c.l.b16 %v6125
  %v6158 = vunpack.c.l.b16 %v6126
  %v6159 = vunpack.c.l.b16 %v6127
  %v6160 = vunpack.c.l.b16 %v6128
  %v6161 = vunpack.c.l.b16 %v6129
  %v6162 = vunpack.c.l.b16 %v6130
  %v6163 = vunpack.c.l.b16 %v6131
  %v6164 = vunpack.c.l.b16 %v6132
  %v6165 = vunpack.c.l.b16 %v6133
  %v6166 = vunpack.c.l.b16 %v6134
  %v6167 = vpack.c.b16 %v6152, %v6151
  %v6168 = vpack.c.b16 %v6154, %v6153
  %v6169 = vpack.c.b16 %v6156, %v6155
  %v6170 = vpack.c.b16 %v6158, %v6157
  %v6171 = vpack.c.b16 %v6160, %v6159
  %v6172 = vpack.c.b16 %v6162, %v6161
  %v6173 = vpack.c.b16 %v6164, %v6163
  %v6174 = vpack.c.b16 %v6166, %v6165
  %6183 = vmatprep.subr.bf16.mxu0 0
  %6184 = vmatpush1.bf16.msra.mxu0 %v6174
  %6185 = vmatprep.subr.bf16.mxu0 0
  %6186 = vmatpush1.bf16.msra.mxu0 %v6173
  %6187 = vmatprep.subr.bf16.mxu0 0
  %6188 = vmatpush1.bf16.msra.mxu0 %v6172
  %6189 = vmatprep.subr.bf16.mxu0 0
  %6190 = vmatpush1.bf16.msra.mxu0 %v6171
  %6191 = vmatprep.subr.bf16.mxu0 0
  %6192 = vmatpush1.bf16.msra.mxu0 %v6170
  %6193 = vmatprep.subr.bf16.mxu0 0
  %6194 = vmatpush1.bf16.msra.mxu0 %v6169
  %6195 = vmatprep.subr.bf16.mxu0 0
  %6196 = vmatpush1.bf16.msra.mxu0 %v6168
  %6197 = vmatprep.subr.bf16.mxu0 0
  %6198 = vmatpush1.bf16.msra.mxu0 %v6167
  %6199 = vmatprep.subr.bf16.mxu0 0
  %6200 = vmatpush2.bf16.msra.mxu0 0
  %6201 = vmatprep.subr.bf16.mxu0 0
  %6202 = vmatpush2.bf16.msra.mxu0 0
  %6203 = vmatprep.subr.bf16.mxu0 0
  %6204 = vmatpush2.bf16.msra.mxu0 0
  %6205 = vmatprep.subr.bf16.mxu0 0
  %6206 = vmatpush2.bf16.msra.mxu0 0
  %6207 = vmatprep.subr.bf16.mxu0 0
  %6208 = vmatpush2.bf16.msra.mxu0 0
  %6209 = vmatprep.subr.bf16.mxu0 0
  %6210 = vmatpush2.bf16.msra.mxu0 0
  %6211 = vmatprep.subr.bf16.mxu0 0
  %6212 = vmatpush2.bf16.msra.mxu0 0
  %6213 = vmatprep.subr.bf16.mxu0 0
  %6214 = vmatpush2.bf16.msra.mxu0 0
  %6215 = vmatprep.mubr.bf16.mxu0 0
  %6216 = vmatmul.mubr.bf16.gmra.mxu0 %v6110
  %v6217 = vpop.f32.mrf.mxu0
  %v6218 = vadd.f32 0.0, %v6217
  %v6219 = vpop.f32.mrf.mxu0
  %v6220 = vpop.f32.mrf.mxu0
  %v6221 = vadd.f32 0.0, %v6220
  %v6222 = vpop.f32.mrf.mxu0
  %6223 = vmatprep.mubr.bf16.mxu0 0
  %6224 = vmatmul.mubr.bf16.gmra.mxu0 %v6111
  %v6225 = vpop.f32.mrf.mxu0
  %v6226 = vadd.f32 0.0, %v6225
  %v6227 = vpop.f32.mrf.mxu0
  %v6228 = vpop.f32.mrf.mxu0
  %v6229 = vadd.f32 0.0, %v6228
  %v6230 = vpop.f32.mrf.mxu0
  %6231 = vmatprep.mubr.bf16.mxu0 0
  %6232 = vmatmul.mubr.bf16.gmra.mxu0 %v6112
  %v6233 = vpop.f32.mrf.mxu0
  %v6234 = vadd.f32 0.0, %v6233
  %v6235 = vpop.f32.mrf.mxu0
  %v6236 = vpop.f32.mrf.mxu0
  %v6237 = vadd.f32 0.0, %v6236
  %v6238 = vpop.f32.mrf.mxu0
  %6239 = vmatprep.mubr.bf16.mxu0 0
  %6240 = vmatmul.mubr.bf16.gmra.mxu0 %v6113
  %v6241 = vpop.f32.mrf.mxu0
  %v6242 = vadd.f32 0.0, %v6241
  %v6243 = vpop.f32.mrf.mxu0
  %v6244 = vpop.f32.mrf.mxu0
  %v6245 = vadd.f32 0.0, %v6244
  %v6246 = vpop.f32.mrf.mxu0
  %6247 = vmatprep.mubr.bf16.mxu0 0
  %6248 = vmatmul.mubr.bf16.gmra.mxu0 %v6114
  %v6249 = vpop.f32.mrf.mxu0
  %v6250 = vadd.f32 0.0, %v6249
  %v6251 = vpop.f32.mrf.mxu0
  %v6252 = vpop.f32.mrf.mxu0
  %v6253 = vadd.f32 0.0, %v6252
  %v6254 = vpop.f32.mrf.mxu0
  %6255 = vmatprep.mubr.bf16.mxu0 0
  %6256 = vmatmul.mubr.bf16.gmra.mxu0 %v6115
  %v6257 = vpop.f32.mrf.mxu0
  %v6258 = vadd.f32 0.0, %v6257
  %v6259 = vpop.f32.mrf.mxu0
  %v6260 = vpop.f32.mrf.mxu0
  %v6261 = vadd.f32 0.0, %v6260
  %v6262 = vpop.f32.mrf.mxu0
  %6263 = vmatprep.mubr.bf16.mxu0 0
  %6264 = vmatmul.mubr.bf16.gmra.mxu0 %v6116
  %v6265 = vpop.f32.mrf.mxu0
  %v6266 = vadd.f32 0.0, %v6265
  %v6267 = vpop.f32.mrf.mxu0
  %v6268 = vpop.f32.mrf.mxu0
  %v6269 = vadd.f32 0.0, %v6268
  %v6270 = vpop.f32.mrf.mxu0
  %6271 = vmatprep.mubr.bf16.mxu0 0
  %6272 = vmatmul.mubr.bf16.gmra.mxu0 %v6117
  %v6273 = vpop.f32.mrf.mxu0
  %v6274 = vadd.f32 0.0, %v6273
  %v6275 = vpop.f32.mrf.mxu0
  %v6276 = vpop.f32.mrf.mxu0
  %v6277 = vadd.f32 0.0, %v6276
  %v6278 = vpop.f32.mrf.mxu0
  %6279 = vdwg.mxu0
  %v6280 = vadd.f32 %v6076, %v6218
  %v6281 = vadd.f32 %v6077, %v6221
  %v6282 = vadd.f32 %v6078, %v6226
  %v6283 = vadd.f32 %v6079, %v6229
  %v6284 = vadd.f32 %v6080, %v6234
  %v6285 = vadd.f32 %v6081, %v6237
  %v6286 = vadd.f32 %v6082, %v6242
  %v6287 = vadd.f32 %v6083, %v6245
  %v6288 = vadd.f32 %v6084, %v6250
  %v6289 = vadd.f32 %v6085, %v6253
  %v6290 = vadd.f32 %v6086, %v6258
  %v6291 = vadd.f32 %v6087, %v6261
  %v6292 = vadd.f32 %v6088, %v6266
  %v6293 = vadd.f32 %v6089, %v6269
  %v6294 = vadd.f32 %v6090, %v6274
  %v6295 = vadd.f32 %v6091, %v6277
  %v6296 = vsel %vm1054, %v5701, %v1055
  %v6298 = vsel %vm2369, %v5038, 0.0
  %v6299 = vsel %vm2370, %v5040, 0.0
  %v6300 = vsel %vm2371, %v5042, 0.0
  %v6301 = vsel %vm2372, %v5044, 0.0
  %v6302 = vsel %vm2373, %v5046, 0.0
  %v6303 = vsel %vm2374, %v5048, 0.0
  %v6304 = vsel %vm2375, %v5050, 0.0
  %v6305 = vsel %vm2376, %v5052, 0.0
  %v6306 = vsel %vm2377, %v5054, 0.0
  %v6307 = vsel %vm2378, %v5056, 0.0
  %v6308 = vsel %vm2379, %v5058, 0.0
  %v6309 = vsel %vm2380, %v5060, 0.0
  %v6310 = vsel %vm2381, %v5062, 0.0
  %v6311 = vsel %vm2382, %v5064, 0.0
  %v6312 = vsel %vm2383, %v5702, 0.0
  %v6313 = vsel %vm2384, %v6296, 0.0
  %v6314 = vpack.c.bf16 %v6299, %v6298
  %v6315 = vpack.c.bf16 %v6301, %v6300
  %v6316 = vpack.c.bf16 %v6303, %v6302
  %v6317 = vpack.c.bf16 %v6305, %v6304
  %v6318 = vpack.c.bf16 %v6307, %v6306
  %v6319 = vpack.c.bf16 %v6309, %v6308
  %v6320 = vpack.c.bf16 %v6311, %v6310
  %v6321 = vpack.c.bf16 %v6313, %v6312
  %s6322 = scalar_lea.vmem %s2, 1536
  %v6323 = vld [vmem:[%s6322] sm:$0xf]
  %v6324 = vld [vmem:[%s6322 + $0x4] sm:$0xf]
  %v6325 = vld [vmem:[%s6322 + $0x8] sm:$0xf]
  %v6326 = vld [vmem:[%s6322 + $0xc] sm:$0xf]
  %v6327 = vld [vmem:[%s6322 + $0x10] sm:$0xf]
  %v6328 = vld [vmem:[%s6322 + $0x14] sm:$0xf]
  %v6329 = vld [vmem:[%s6322 + $0x18] sm:$0xf]
  %v6330 = vld [vmem:[%s6322 + $0x1c] sm:$0xf]
  %v6331 = vld [vmem:[%s6322 + $0x20] sm:$0xf]
  %v6332 = vld [vmem:[%s6322 + $0x24] sm:$0xf]
  %v6333 = vld [vmem:[%s6322 + $0x28] sm:$0xf]
  %v6334 = vld [vmem:[%s6322 + $0x2c] sm:$0xf]
  %v6335 = vld [vmem:[%s6322 + $0x30] sm:$0xf]
  %v6336 = vld [vmem:[%s6322 + $0x34] sm:$0xf]
  %v6337 = vld [vmem:[%s6322 + $0x38] sm:$0xf]
  %v6338 = vld [vmem:[%s6322 + $0x3c] sm:$0xf]
  %v6355 = vunpack.c.l.b16 %v6323
  %v6356 = vunpack.c.l.b16 %v6324
  %v6357 = vunpack.c.l.b16 %v6325
  %v6358 = vunpack.c.l.b16 %v6326
  %v6359 = vunpack.c.l.b16 %v6327
  %v6360 = vunpack.c.l.b16 %v6328
  %v6361 = vunpack.c.l.b16 %v6329
  %v6362 = vunpack.c.l.b16 %v6330
  %v6363 = vunpack.c.l.b16 %v6331
  %v6364 = vunpack.c.l.b16 %v6332
  %v6365 = vunpack.c.l.b16 %v6333
  %v6366 = vunpack.c.l.b16 %v6334
  %v6367 = vunpack.c.l.b16 %v6335
  %v6368 = vunpack.c.l.b16 %v6336
  %v6369 = vunpack.c.l.b16 %v6337
  %v6370 = vunpack.c.l.b16 %v6338
  %v6371 = vpack.c.b16 %v6356, %v6355
  %v6372 = vpack.c.b16 %v6358, %v6357
  %v6373 = vpack.c.b16 %v6360, %v6359
  %v6374 = vpack.c.b16 %v6362, %v6361
  %v6375 = vpack.c.b16 %v6364, %v6363
  %v6376 = vpack.c.b16 %v6366, %v6365
  %v6377 = vpack.c.b16 %v6368, %v6367
  %v6378 = vpack.c.b16 %v6370, %v6369
  %6387 = vmatprep.subr.bf16.mxu0 0
  %6388 = vmatpush1.bf16.msra.mxu0 %v6378
  %6389 = vmatprep.subr.bf16.mxu0 0
  %6390 = vmatpush1.bf16.msra.mxu0 %v6377
  %6391 = vmatprep.subr.bf16.mxu0 0
  %6392 = vmatpush1.bf16.msra.mxu0 %v6376
  %6393 = vmatprep.subr.bf16.mxu0 0
  %6394 = vmatpush1.bf16.msra.mxu0 %v6375
  %6395 = vmatprep.subr.bf16.mxu0 0
  %6396 = vmatpush1.bf16.msra.mxu0 %v6374
  %6397 = vmatprep.subr.bf16.mxu0 0
  %6398 = vmatpush1.bf16.msra.mxu0 %v6373
  %6399 = vmatprep.subr.bf16.mxu0 0
  %6400 = vmatpush1.bf16.msra.mxu0 %v6372
  %6401 = vmatprep.subr.bf16.mxu0 0
  %6402 = vmatpush1.bf16.msra.mxu0 %v6371
  %6403 = vmatprep.subr.bf16.mxu0 0
  %6404 = vmatpush2.bf16.msra.mxu0 0
  %6405 = vmatprep.subr.bf16.mxu0 0
  %6406 = vmatpush2.bf16.msra.mxu0 0
  %6407 = vmatprep.subr.bf16.mxu0 0
  %6408 = vmatpush2.bf16.msra.mxu0 0
  %6409 = vmatprep.subr.bf16.mxu0 0
  %6410 = vmatpush2.bf16.msra.mxu0 0
  %6411 = vmatprep.subr.bf16.mxu0 0
  %6412 = vmatpush2.bf16.msra.mxu0 0
  %6413 = vmatprep.subr.bf16.mxu0 0
  %6414 = vmatpush2.bf16.msra.mxu0 0
  %6415 = vmatprep.subr.bf16.mxu0 0
  %6416 = vmatpush2.bf16.msra.mxu0 0
  %6417 = vmatprep.subr.bf16.mxu0 0
  %6418 = vmatpush2.bf16.msra.mxu0 0
  %6419 = vmatprep.mubr.bf16.mxu0 0
  %6420 = vmatmul.mubr.bf16.gmra.mxu0 %v6314
  %v6421 = vpop.f32.mrf.mxu0
  %v6422 = vadd.f32 0.0, %v6421
  %v6423 = vpop.f32.mrf.mxu0
  %v6424 = vpop.f32.mrf.mxu0
  %v6425 = vadd.f32 0.0, %v6424
  %v6426 = vpop.f32.mrf.mxu0
  %6427 = vmatprep.mubr.bf16.mxu0 0
  %6428 = vmatmul.mubr.bf16.gmra.mxu0 %v6315
  %v6429 = vpop.f32.mrf.mxu0
  %v6430 = vadd.f32 0.0, %v6429
  %v6431 = vpop.f32.mrf.mxu0
  %v6432 = vpop.f32.mrf.mxu0
  %v6433 = vadd.f32 0.0, %v6432
  %v6434 = vpop.f32.mrf.mxu0
  %6435 = vmatprep.mubr.bf16.mxu0 0
  %6436 = vmatmul.mubr.bf16.gmra.mxu0 %v6316
  %v6437 = vpop.f32.mrf.mxu0
  %v6438 = vadd.f32 0.0, %v6437
  %v6439 = vpop.f32.mrf.mxu0
  %v6440 = vpop.f32.mrf.mxu0
  %v6441 = vadd.f32 0.0, %v6440
  %v6442 = vpop.f32.mrf.mxu0
  %6443 = vmatprep.mubr.bf16.mxu0 0
  %6444 = vmatmul.mubr.bf16.gmra.mxu0 %v6317
  %v6445 = vpop.f32.mrf.mxu0
  %v6446 = vadd.f32 0.0, %v6445
  %v6447 = vpop.f32.mrf.mxu0
  %v6448 = vpop.f32.mrf.mxu0
  %v6449 = vadd.f32 0.0, %v6448
  %v6450 = vpop.f32.mrf.mxu0
  %6451 = vmatprep.mubr.bf16.mxu0 0
  %6452 = vmatmul.mubr.bf16.gmra.mxu0 %v6318
  %v6453 = vpop.f32.mrf.mxu0
  %v6454 = vadd.f32 0.0, %v6453
  %v6455 = vpop.f32.mrf.mxu0
  %v6456 = vpop.f32.mrf.mxu0
  %v6457 = vadd.f32 0.0, %v6456
  %v6458 = vpop.f32.mrf.mxu0
  %6459 = vmatprep.mubr.bf16.mxu0 0
  %6460 = vmatmul.mubr.bf16.gmra.mxu0 %v6319
  %v6461 = vpop.f32.mrf.mxu0
  %v6462 = vadd.f32 0.0, %v6461
  %v6463 = vpop.f32.mrf.mxu0
  %v6464 = vpop.f32.mrf.mxu0
  %v6465 = vadd.f32 0.0, %v6464
  %v6466 = vpop.f32.mrf.mxu0
  %6467 = vmatprep.mubr.bf16.mxu0 0
  %6468 = vmatmul.mubr.bf16.gmra.mxu0 %v6320
  %v6469 = vpop.f32.mrf.mxu0
  %v6470 = vadd.f32 0.0, %v6469
  %v6471 = vpop.f32.mrf.mxu0
  %v6472 = vpop.f32.mrf.mxu0
  %v6473 = vadd.f32 0.0, %v6472
  %v6474 = vpop.f32.mrf.mxu0
  %6475 = vmatprep.mubr.bf16.mxu0 0
  %6476 = vmatmul.mubr.bf16.gmra.mxu0 %v6321
  %v6477 = vpop.f32.mrf.mxu0
  %v6478 = vadd.f32 0.0, %v6477
  %v6479 = vpop.f32.mrf.mxu0
  %v6480 = vpop.f32.mrf.mxu0
  %v6481 = vadd.f32 0.0, %v6480
  %v6482 = vpop.f32.mrf.mxu0
  %6483 = vdwg.mxu0
  %v6484 = vadd.f32 %v6280, %v6422
  %v6485 = vadd.f32 %v6281, %v6425
  %v6486 = vadd.f32 %v6282, %v6430
  %v6487 = vadd.f32 %v6283, %v6433
  %v6488 = vadd.f32 %v6284, %v6438
  %v6489 = vadd.f32 %v6285, %v6441
  %v6490 = vadd.f32 %v6286, %v6446
  %v6491 = vadd.f32 %v6287, %v6449
  %v6492 = vadd.f32 %v6288, %v6454
  %v6493 = vadd.f32 %v6289, %v6457
  %v6494 = vadd.f32 %v6290, %v6462
  %v6495 = vadd.f32 %v6291, %v6465
  %v6496 = vadd.f32 %v6292, %v6470
  %v6497 = vadd.f32 %v6293, %v6473
  %v6498 = vadd.f32 %v6294, %v6478
  %v6499 = vadd.f32 %v6295, %v6481
  %v6500 = vsel %vm2353, %v5005, 0.0
  %v6501 = vsel %vm2354, %v5006, 0.0
  %v6502 = vsel %vm2355, %v5007, 0.0
  %v6503 = vsel %vm2356, %v5008, 0.0
  %v6504 = vsel %vm2357, %v5009, 0.0
  %v6505 = vsel %vm2358, %v5010, 0.0
  %v6506 = vsel %vm2359, %v5011, 0.0
  %v6507 = vsel %vm2360, %v5012, 0.0
  %v6508 = vsel %vm2361, %v5013, 0.0
  %v6509 = vsel %vm2362, %v5014, 0.0
  %v6510 = vsel %vm2363, %v5015, 0.0
  %v6511 = vsel %vm2364, %v5016, 0.0
  %v6512 = vsel %vm2365, %v5017, 0.0
  %v6513 = vsel %vm2366, %v5018, 0.0
  %v6514 = vsel %vm2367, %v5019, 0.0
  %v6515 = vpack.c.bf16 %v6501, %v6500
  %v6516 = vpack.c.bf16 %v6503, %v6502
  %v6517 = vpack.c.bf16 %v6505, %v6504
  %v6518 = vpack.c.bf16 %v6507, %v6506
  %v6519 = vpack.c.bf16 %v6509, %v6508
  %v6520 = vpack.c.bf16 %v6511, %v6510
  %v6521 = vpack.c.bf16 %v6513, %v6512
  %v6522 = vpack.c.bf16 0.0, %v6514
  %s6523 = scalar_lea.vmem %s2, 1600
  %v6524 = vld [vmem:[%s6523] sm:$0xf]
  %v6525 = vld [vmem:[%s6523 + $0x4] sm:$0xf]
  %v6526 = vld [vmem:[%s6523 + $0x8] sm:$0xf]
  %v6527 = vld [vmem:[%s6523 + $0xc] sm:$0xf]
  %v6528 = vld [vmem:[%s6523 + $0x10] sm:$0xf]
  %v6529 = vld [vmem:[%s6523 + $0x14] sm:$0xf]
  %v6530 = vld [vmem:[%s6523 + $0x18] sm:$0xf]
  %v6531 = vld [vmem:[%s6523 + $0x1c] sm:$0xf]
  %v6532 = vld [vmem:[%s6523 + $0x20] sm:$0xf]
  %v6533 = vld [vmem:[%s6523 + $0x24] sm:$0xf]
  %v6534 = vld [vmem:[%s6523 + $0x28] sm:$0xf]
  %v6535 = vld [vmem:[%s6523 + $0x2c] sm:$0xf]
  %v6536 = vld [vmem:[%s6523 + $0x30] sm:$0xf]
  %v6537 = vld [vmem:[%s6523 + $0x34] sm:$0xf]
  %v6538 = vld [vmem:[%s6523 + $0x38] sm:$0xf]
  %v6539 = vld [vmem:[%s6523 + $0x3c] sm:$0xf]
  %v6556 = vunpack.c.l.b16 %v6524
  %v6557 = vunpack.c.l.b16 %v6525
  %v6558 = vunpack.c.l.b16 %v6526
  %v6559 = vunpack.c.l.b16 %v6527
  %v6560 = vunpack.c.l.b16 %v6528
  %v6561 = vunpack.c.l.b16 %v6529
  %v6562 = vunpack.c.l.b16 %v6530
  %v6563 = vunpack.c.l.b16 %v6531
  %v6564 = vunpack.c.l.b16 %v6532
  %v6565 = vunpack.c.l.b16 %v6533
  %v6566 = vunpack.c.l.b16 %v6534
  %v6567 = vunpack.c.l.b16 %v6535
  %v6568 = vunpack.c.l.b16 %v6536
  %v6569 = vunpack.c.l.b16 %v6537
  %v6570 = vunpack.c.l.b16 %v6538
  %v6571 = vunpack.c.l.b16 %v6539
  %v6572 = vpack.c.b16 %v6557, %v6556
  %v6573 = vpack.c.b16 %v6559, %v6558
  %v6574 = vpack.c.b16 %v6561, %v6560
  %v6575 = vpack.c.b16 %v6563, %v6562
  %v6576 = vpack.c.b16 %v6565, %v6564
  %v6577 = vpack.c.b16 %v6567, %v6566
  %v6578 = vpack.c.b16 %v6569, %v6568
  %v6579 = vpack.c.b16 %v6571, %v6570
  %6588 = vmatprep.subr.bf16.mxu0 0
  %6589 = vmatpush1.bf16.msra.mxu0 %v6579
  %6590 = vmatprep.subr.bf16.mxu0 0
  %6591 = vmatpush1.bf16.msra.mxu0 %v6578
  %6592 = vmatprep.subr.bf16.mxu0 0
  %6593 = vmatpush1.bf16.msra.mxu0 %v6577
  %6594 = vmatprep.subr.bf16.mxu0 0
  %6595 = vmatpush1.bf16.msra.mxu0 %v6576
  %6596 = vmatprep.subr.bf16.mxu0 0
  %6597 = vmatpush1.bf16.msra.mxu0 %v6575
  %6598 = vmatprep.subr.bf16.mxu0 0
  %6599 = vmatpush1.bf16.msra.mxu0 %v6574
  %6600 = vmatprep.subr.bf16.mxu0 0
  %6601 = vmatpush1.bf16.msra.mxu0 %v6573
  %6602 = vmatprep.subr.bf16.mxu0 0
  %6603 = vmatpush1.bf16.msra.mxu0 %v6572
  %6604 = vmatprep.subr.bf16.mxu0 0
  %6605 = vmatpush2.bf16.msra.mxu0 0
  %6606 = vmatprep.subr.bf16.mxu0 0
  %6607 = vmatpush2.bf16.msra.mxu0 0
  %6608 = vmatprep.subr.bf16.mxu0 0
  %6609 = vmatpush2.bf16.msra.mxu0 0
  %6610 = vmatprep.subr.bf16.mxu0 0
  %6611 = vmatpush2.bf16.msra.mxu0 0
  %6612 = vmatprep.subr.bf16.mxu0 0
  %6613 = vmatpush2.bf16.msra.mxu0 0
  %6614 = vmatprep.subr.bf16.mxu0 0
  %6615 = vmatpush2.bf16.msra.mxu0 0
  %6616 = vmatprep.subr.bf16.mxu0 0
  %6617 = vmatpush2.bf16.msra.mxu0 0
  %6618 = vmatprep.subr.bf16.mxu0 0
  %6619 = vmatpush2.bf16.msra.mxu0 0
  %6620 = vmatprep.mubr.bf16.mxu0 0
  %6621 = vmatmul.mubr.bf16.gmra.mxu0 %v6515
  %v6622 = vpop.f32.mrf.mxu0
  %v6623 = vadd.f32 0.0, %v6622
  %v6624 = vpop.f32.mrf.mxu0
  %v6625 = vpop.f32.mrf.mxu0
  %v6626 = vadd.f32 0.0, %v6625
  %v6627 = vpop.f32.mrf.mxu0
  %6628 = vmatprep.mubr.bf16.mxu0 0
  %6629 = vmatmul.mubr.bf16.gmra.mxu0 %v6516
  %v6630 = vpop.f32.mrf.mxu0
  %v6631 = vadd.f32 0.0, %v6630
  %v6632 = vpop.f32.mrf.mxu0
  %v6633 = vpop.f32.mrf.mxu0
  %v6634 = vadd.f32 0.0, %v6633
  %v6635 = vpop.f32.mrf.mxu0
  %6636 = vmatprep.mubr.bf16.mxu0 0
  %6637 = vmatmul.mubr.bf16.gmra.mxu0 %v6517
  %v6638 = vpop.f32.mrf.mxu0
  %v6639 = vadd.f32 0.0, %v6638
  %v6640 = vpop.f32.mrf.mxu0
  %v6641 = vpop.f32.mrf.mxu0
  %v6642 = vadd.f32 0.0, %v6641
  %v6643 = vpop.f32.mrf.mxu0
  %6644 = vmatprep.mubr.bf16.mxu0 0
  %6645 = vmatmul.mubr.bf16.gmra.mxu0 %v6518
  %v6646 = vpop.f32.mrf.mxu0
  %v6647 = vadd.f32 0.0, %v6646
  %v6648 = vpop.f32.mrf.mxu0
  %v6649 = vpop.f32.mrf.mxu0
  %v6650 = vadd.f32 0.0, %v6649
  %v6651 = vpop.f32.mrf.mxu0
  %6652 = vmatprep.mubr.bf16.mxu0 0
  %6653 = vmatmul.mubr.bf16.gmra.mxu0 %v6519
  %v6654 = vpop.f32.mrf.mxu0
  %v6655 = vadd.f32 0.0, %v6654
  %v6656 = vpop.f32.mrf.mxu0
  %v6657 = vpop.f32.mrf.mxu0
  %v6658 = vadd.f32 0.0, %v6657
  %v6659 = vpop.f32.mrf.mxu0
  %6660 = vmatprep.mubr.bf16.mxu0 0
  %6661 = vmatmul.mubr.bf16.gmra.mxu0 %v6520
  %v6662 = vpop.f32.mrf.mxu0
  %v6663 = vadd.f32 0.0, %v6662
  %v6664 = vpop.f32.mrf.mxu0
  %v6665 = vpop.f32.mrf.mxu0
  %v6666 = vadd.f32 0.0, %v6665
  %v6667 = vpop.f32.mrf.mxu0
  %6668 = vmatprep.mubr.bf16.mxu0 0
  %6669 = vmatmul.mubr.bf16.gmra.mxu0 %v6521
  %v6670 = vpop.f32.mrf.mxu0
  %v6671 = vadd.f32 0.0, %v6670
  %v6672 = vpop.f32.mrf.mxu0
  %v6673 = vpop.f32.mrf.mxu0
  %v6674 = vadd.f32 0.0, %v6673
  %v6675 = vpop.f32.mrf.mxu0
  %6676 = vmatprep.mubr.bf16.mxu0 0
  %6677 = vmatmul.mubr.bf16.gmra.mxu0 %v6522
  %v6678 = vpop.f32.mrf.mxu0
  %v6679 = vadd.f32 0.0, %v6678
  %v6680 = vpop.f32.mrf.mxu0
  %v6681 = vpop.f32.mrf.mxu0
  %v6682 = vadd.f32 0.0, %v6681
  %v6683 = vpop.f32.mrf.mxu0
  %6684 = vdwg.mxu0
  %v6685 = vadd.f32 %v6484, %v6623
  %v6686 = vadd.f32 %v6485, %v6626
  %v6687 = vadd.f32 %v6486, %v6631
  %v6688 = vadd.f32 %v6487, %v6634
  %v6689 = vadd.f32 %v6488, %v6639
  %v6690 = vadd.f32 %v6489, %v6642
  %v6691 = vadd.f32 %v6490, %v6647
  %v6692 = vadd.f32 %v6491, %v6650
  %v6693 = vadd.f32 %v6492, %v6655
  %v6694 = vadd.f32 %v6493, %v6658
  %v6695 = vadd.f32 %v6494, %v6663
  %v6696 = vadd.f32 %v6495, %v6666
  %v6697 = vadd.f32 %v6496, %v6671
  %v6698 = vadd.f32 %v6497, %v6674
  %v6699 = vadd.f32 %v6498, %v6679
  %v6700 = vadd.f32 %v6499, %v6682
  %v6701 = vsel %vm2790, %v5456, 0.0
  %v6702 = vsel %vm2791, %v5458, 0.0
  %v6703 = vsel %vm2792, %v5460, 0.0
  %v6704 = vsel %vm2793, %v5462, 0.0
  %v6705 = vsel %vm2794, %v5464, 0.0
  %v6706 = vsel %vm2795, %v5466, 0.0
  %v6707 = vsel %vm2796, %v5468, 0.0
  %v6708 = vsel %vm2797, %v5470, 0.0
  %v6709 = vsel %vm2798, %v5472, 0.0
  %v6710 = vsel %vm2799, %v5474, 0.0
  %v6711 = vsel %vm2800, %v5476, 0.0
  %v6712 = vsel %vm2801, %v5478, 0.0
  %v6713 = vsel %vm2802, %v5480, 0.0
  %v6714 = vsel %vm2803, %v5482, 0.0
  %v6715 = vsel %vm2804, %v6092, 0.0
  %v6716 = vpack.c.bf16 %v6702, %v6701
  %v6717 = vpack.c.bf16 %v6704, %v6703
  %v6718 = vpack.c.bf16 %v6706, %v6705
  %v6719 = vpack.c.bf16 %v6708, %v6707
  %v6720 = vpack.c.bf16 %v6710, %v6709
  %v6721 = vpack.c.bf16 %v6712, %v6711
  %v6722 = vpack.c.bf16 %v6714, %v6713
  %v6723 = vpack.c.bf16 %v2823, %v6715
  %s6724 = scalar_lea.vmem %s2, 1664
  %v6725 = vld [vmem:[%s6724] sm:$0xf]
  %v6726 = vld [vmem:[%s6724 + $0x4] sm:$0xf]
  %v6727 = vld [vmem:[%s6724 + $0x8] sm:$0xf]
  %v6728 = vld [vmem:[%s6724 + $0xc] sm:$0xf]
  %v6729 = vld [vmem:[%s6724 + $0x10] sm:$0xf]
  %v6730 = vld [vmem:[%s6724 + $0x14] sm:$0xf]
  %v6731 = vld [vmem:[%s6724 + $0x18] sm:$0xf]
  %v6732 = vld [vmem:[%s6724 + $0x1c] sm:$0xf]
  %v6733 = vld [vmem:[%s6724 + $0x20] sm:$0xf]
  %v6734 = vld [vmem:[%s6724 + $0x24] sm:$0xf]
  %v6735 = vld [vmem:[%s6724 + $0x28] sm:$0xf]
  %v6736 = vld [vmem:[%s6724 + $0x2c] sm:$0xf]
  %v6737 = vld [vmem:[%s6724 + $0x30] sm:$0xf]
  %v6738 = vld [vmem:[%s6724 + $0x34] sm:$0xf]
  %v6739 = vld [vmem:[%s6724 + $0x38] sm:$0xf]
  %v6740 = vld [vmem:[%s6724 + $0x3c] sm:$0xf]
  %v6757 = vunpack.c.l.b16 %v6725
  %v6758 = vunpack.c.l.b16 %v6726
  %v6759 = vunpack.c.l.b16 %v6727
  %v6760 = vunpack.c.l.b16 %v6728
  %v6761 = vunpack.c.l.b16 %v6729
  %v6762 = vunpack.c.l.b16 %v6730
  %v6763 = vunpack.c.l.b16 %v6731
  %v6764 = vunpack.c.l.b16 %v6732
  %v6765 = vunpack.c.l.b16 %v6733
  %v6766 = vunpack.c.l.b16 %v6734
  %v6767 = vunpack.c.l.b16 %v6735
  %v6768 = vunpack.c.l.b16 %v6736
  %v6769 = vunpack.c.l.b16 %v6737
  %v6770 = vunpack.c.l.b16 %v6738
  %v6771 = vunpack.c.l.b16 %v6739
  %v6772 = vunpack.c.l.b16 %v6740
  %v6773 = vpack.c.b16 %v6758, %v6757
  %v6774 = vpack.c.b16 %v6760, %v6759
  %v6775 = vpack.c.b16 %v6762, %v6761
  %v6776 = vpack.c.b16 %v6764, %v6763
  %v6777 = vpack.c.b16 %v6766, %v6765
  %v6778 = vpack.c.b16 %v6768, %v6767
  %v6779 = vpack.c.b16 %v6770, %v6769
  %v6780 = vpack.c.b16 %v6772, %v6771
  %6789 = vmatprep.subr.bf16.mxu0 0
  %6790 = vmatpush1.bf16.msra.mxu0 %v6780
  %6791 = vmatprep.subr.bf16.mxu0 0
  %6792 = vmatpush1.bf16.msra.mxu0 %v6779
  %6793 = vmatprep.subr.bf16.mxu0 0
  %6794 = vmatpush1.bf16.msra.mxu0 %v6778
  %6795 = vmatprep.subr.bf16.mxu0 0
  %6796 = vmatpush1.bf16.msra.mxu0 %v6777
  %6797 = vmatprep.subr.bf16.mxu0 0
  %6798 = vmatpush1.bf16.msra.mxu0 %v6776
  %6799 = vmatprep.subr.bf16.mxu0 0
  %6800 = vmatpush1.bf16.msra.mxu0 %v6775
  %6801 = vmatprep.subr.bf16.mxu0 0
  %6802 = vmatpush1.bf16.msra.mxu0 %v6774
  %6803 = vmatprep.subr.bf16.mxu0 0
  %6804 = vmatpush1.bf16.msra.mxu0 %v6773
  %6805 = vmatprep.subr.bf16.mxu0 0
  %6806 = vmatpush2.bf16.msra.mxu0 0
  %6807 = vmatprep.subr.bf16.mxu0 0
  %6808 = vmatpush2.bf16.msra.mxu0 0
  %6809 = vmatprep.subr.bf16.mxu0 0
  %6810 = vmatpush2.bf16.msra.mxu0 0
  %6811 = vmatprep.subr.bf16.mxu0 0
  %6812 = vmatpush2.bf16.msra.mxu0 0
  %6813 = vmatprep.subr.bf16.mxu0 0
  %6814 = vmatpush2.bf16.msra.mxu0 0
  %6815 = vmatprep.subr.bf16.mxu0 0
  %6816 = vmatpush2.bf16.msra.mxu0 0
  %6817 = vmatprep.subr.bf16.mxu0 0
  %6818 = vmatpush2.bf16.msra.mxu0 0
  %6819 = vmatprep.subr.bf16.mxu0 0
  %6820 = vmatpush2.bf16.msra.mxu0 0
  %6821 = vmatprep.mubr.bf16.mxu0 0
  %6822 = vmatmul.mubr.bf16.gmra.mxu0 %v6716
  %v6823 = vpop.f32.mrf.mxu0
  %v6824 = vadd.f32 0.0, %v6823
  %v6825 = vpop.f32.mrf.mxu0
  %v6826 = vpop.f32.mrf.mxu0
  %v6827 = vadd.f32 0.0, %v6826
  %v6828 = vpop.f32.mrf.mxu0
  %6829 = vmatprep.mubr.bf16.mxu0 0
  %6830 = vmatmul.mubr.bf16.gmra.mxu0 %v6717
  %v6831 = vpop.f32.mrf.mxu0
  %v6832 = vadd.f32 0.0, %v6831
  %v6833 = vpop.f32.mrf.mxu0
  %v6834 = vpop.f32.mrf.mxu0
  %v6835 = vadd.f32 0.0, %v6834
  %v6836 = vpop.f32.mrf.mxu0
  %6837 = vmatprep.mubr.bf16.mxu0 0
  %6838 = vmatmul.mubr.bf16.gmra.mxu0 %v6718
  %v6839 = vpop.f32.mrf.mxu0
  %v6840 = vadd.f32 0.0, %v6839
  %v6841 = vpop.f32.mrf.mxu0
  %v6842 = vpop.f32.mrf.mxu0
  %v6843 = vadd.f32 0.0, %v6842
  %v6844 = vpop.f32.mrf.mxu0
  %6845 = vmatprep.mubr.bf16.mxu0 0
  %6846 = vmatmul.mubr.bf16.gmra.mxu0 %v6719
  %v6847 = vpop.f32.mrf.mxu0
  %v6848 = vadd.f32 0.0, %v6847
  %v6849 = vpop.f32.mrf.mxu0
  %v6850 = vpop.f32.mrf.mxu0
  %v6851 = vadd.f32 0.0, %v6850
  %v6852 = vpop.f32.mrf.mxu0
  %6853 = vmatprep.mubr.bf16.mxu0 0
  %6854 = vmatmul.mubr.bf16.gmra.mxu0 %v6720
  %v6855 = vpop.f32.mrf.mxu0
  %v6856 = vadd.f32 0.0, %v6855
  %v6857 = vpop.f32.mrf.mxu0
  %v6858 = vpop.f32.mrf.mxu0
  %v6859 = vadd.f32 0.0, %v6858
  %v6860 = vpop.f32.mrf.mxu0
  %6861 = vmatprep.mubr.bf16.mxu0 0
  %6862 = vmatmul.mubr.bf16.gmra.mxu0 %v6721
  %v6863 = vpop.f32.mrf.mxu0
  %v6864 = vadd.f32 0.0, %v6863
  %v6865 = vpop.f32.mrf.mxu0
  %v6866 = vpop.f32.mrf.mxu0
  %v6867 = vadd.f32 0.0, %v6866
  %v6868 = vpop.f32.mrf.mxu0
  %6869 = vmatprep.mubr.bf16.mxu0 0
  %6870 = vmatmul.mubr.bf16.gmra.mxu0 %v6722
  %v6871 = vpop.f32.mrf.mxu0
  %v6872 = vadd.f32 0.0, %v6871
  %v6873 = vpop.f32.mrf.mxu0
  %v6874 = vpop.f32.mrf.mxu0
  %v6875 = vadd.f32 0.0, %v6874
  %v6876 = vpop.f32.mrf.mxu0
  %6877 = vmatprep.mubr.bf16.mxu0 0
  %6878 = vmatmul.mubr.bf16.gmra.mxu0 %v6723
  %v6879 = vpop.f32.mrf.mxu0
  %v6880 = vadd.f32 0.0, %v6879
  %v6881 = vpop.f32.mrf.mxu0
  %v6882 = vpop.f32.mrf.mxu0
  %v6883 = vadd.f32 0.0, %v6882
  %v6884 = vpop.f32.mrf.mxu0
  %6885 = vdwg.mxu0
  %v6886 = vadd.f32 %v6685, %v6824
  %v6887 = vadd.f32 %v6686, %v6827
  %v6888 = vadd.f32 %v6687, %v6832
  %v6889 = vadd.f32 %v6688, %v6835
  %v6890 = vadd.f32 %v6689, %v6840
  %v6891 = vadd.f32 %v6690, %v6843
  %v6892 = vadd.f32 %v6691, %v6848
  %v6893 = vadd.f32 %v6692, %v6851
  %v6894 = vadd.f32 %v6693, %v6856
  %v6895 = vadd.f32 %v6694, %v6859
  %v6896 = vadd.f32 %v6695, %v6864
  %v6897 = vadd.f32 %v6696, %v6867
  %v6898 = vadd.f32 %v6697, %v6872
  %v6899 = vadd.f32 %v6698, %v6875
  %v6900 = vadd.f32 %v6699, %v6880
  %v6901 = vadd.f32 %v6700, %v6883
  %s6902 = scalar_lea.vmem %s3, 3
  %v6903 = vld [vmem:[%s6902] sm:$0x1]
  %v6905 = vlaneseq
  %v6906 = vshrl.u32 %v6905, 7
  %v6907 = vsub.s32 0, %v6906
  %v6908 = vrot.slane %v6903, %v6907
  %v6910 = vmul.f32 %v6886, %v6908
  %v6911 = vmul.f32 %v6887, %v6908
  %v6912 = vmul.f32 %v6888, %v6908
  %v6913 = vmul.f32 %v6889, %v6908
  %v6914 = vmul.f32 %v6890, %v6908
  %v6915 = vmul.f32 %v6891, %v6908
  %v6916 = vmul.f32 %v6892, %v6908
  %v6917 = vmul.f32 %v6893, %v6908
  %v6918 = vmul.f32 %v6894, %v6908
  %v6919 = vmul.f32 %v6895, %v6908
  %v6920 = vmul.f32 %v6896, %v6908
  %v6921 = vmul.f32 %v6897, %v6908
  %v6922 = vmul.f32 %v6898, %v6908
  %v6923 = vmul.f32 %v6899, %v6908
  %v6924 = vmul.f32 %v6900, %v6908
  %v6925 = vmul.f32 %v6901, %v6908
  %s6926 = scalar_lea.vmem %s4, 3
  %v6927 = vld [vmem:[%s6926] sm:$0x1]
  %v6929 = vlaneseq
  %v6930 = vshrl.u32 %v6929, 7
  %v6931 = vsub.s32 0, %v6930
  %v6932 = vrot.slane %v6927, %v6931
  %v6934 = vadd.f32 %v6910, %v6932
  %v6935 = vadd.f32 %v6911, %v6932
  %v6936 = vadd.f32 %v6912, %v6932
  %v6937 = vadd.f32 %v6913, %v6932
  %v6938 = vadd.f32 %v6914, %v6932
  %v6939 = vadd.f32 %v6915, %v6932
  %v6940 = vadd.f32 %v6916, %v6932
  %v6941 = vadd.f32 %v6917, %v6932
  %v6942 = vadd.f32 %v6918, %v6932
  %v6943 = vadd.f32 %v6919, %v6932
  %v6944 = vadd.f32 %v6920, %v6932
  %v6945 = vadd.f32 %v6921, %v6932
  %v6946 = vadd.f32 %v6922, %v6932
  %v6947 = vadd.f32 %v6923, %v6932
  %v6948 = vadd.f32 %v6924, %v6932
  %v6949 = vadd.f32 %v6925, %v6932
  %v6950 = vmax.f32 %v6934, 0.0
  %v6951 = vmax.f32 %v6935, 0.0
  %v6952 = vmax.f32 %v6936, 0.0
  %v6953 = vmax.f32 %v6937, 0.0
  %v6954 = vmax.f32 %v6938, 0.0
  %v6955 = vmax.f32 %v6939, 0.0
  %v6956 = vmax.f32 %v6940, 0.0
  %v6957 = vmax.f32 %v6941, 0.0
  %v6958 = vmax.f32 %v6942, 0.0
  %v6959 = vmax.f32 %v6943, 0.0
  %v6960 = vmax.f32 %v6944, 0.0
  %v6961 = vmax.f32 %v6945, 0.0
  %v6962 = vmax.f32 %v6946, 0.0
  %v6963 = vmax.f32 %v6947, 0.0
  %v6964 = vmax.f32 %v6948, 0.0
  %v6965 = vmax.f32 %v6949, 0.0
  %v6966 = vpack.c.bf16 %v6951, %v6950
  %v6967 = vpack.c.bf16 %v6953, %v6952
  %v6968 = vpack.c.bf16 %v6955, %v6954
  %v6969 = vpack.c.bf16 %v6957, %v6956
  %v6970 = vpack.c.bf16 %v6959, %v6958
  %v6971 = vpack.c.bf16 %v6961, %v6960
  %v6972 = vpack.c.bf16 %v6963, %v6962
  %v6973 = vpack.c.bf16 %v6965, %v6964
  %v6974 = vld [vmem:[%s5] sm:$0xf]
  %v6975 = vld [vmem:[%s5 + $0x4] sm:$0xf]
  %v6976 = vld [vmem:[%s5 + $0x8] sm:$0xf]
  %v6977 = vld [vmem:[%s5 + $0xc] sm:$0xf]
  %v6978 = vld [vmem:[%s5 + $0x10] sm:$0xf]
  %v6979 = vld [vmem:[%s5 + $0x14] sm:$0xf]
  %v6980 = vld [vmem:[%s5 + $0x18] sm:$0xf]
  %v6981 = vld [vmem:[%s5 + $0x1c] sm:$0xf]
  %v6982 = vld [vmem:[%s5 + $0x20] sm:$0xf]
  %v6983 = vld [vmem:[%s5 + $0x24] sm:$0xf]
  %v6984 = vld [vmem:[%s5 + $0x28] sm:$0xf]
  %v6985 = vld [vmem:[%s5 + $0x2c] sm:$0xf]
  %v6986 = vld [vmem:[%s5 + $0x30] sm:$0xf]
  %v6987 = vld [vmem:[%s5 + $0x34] sm:$0xf]
  %v6988 = vld [vmem:[%s5 + $0x38] sm:$0xf]
  %v6989 = vld [vmem:[%s5 + $0x3c] sm:$0xf]
  %v6990 = vld [vmem:[%s6] sm:$0x1]
  %v6992 = vlaneseq
  %v6993 = vshrl.u32 %v6992, 7
  %v6994 = vsub.s32 0, %v6993
  %v6995 = vrot.slane %v6990, %v6994
  %v7013 = vunpack.c.l.b16 %v6974
  %v7014 = vunpack.c.l.b16 %v6975
  %v7015 = vunpack.c.l.b16 %v6976
  %v7016 = vunpack.c.l.b16 %v6977
  %v7017 = vunpack.c.l.b16 %v6978
  %v7018 = vunpack.c.l.b16 %v6979
  %v7019 = vunpack.c.l.b16 %v6980
  %v7020 = vunpack.c.l.b16 %v6981
  %v7021 = vunpack.c.l.b16 %v6982
  %v7022 = vunpack.c.l.b16 %v6983
  %v7023 = vunpack.c.l.b16 %v6984
  %v7024 = vunpack.c.l.b16 %v6985
  %v7025 = vunpack.c.l.b16 %v6986
  %v7026 = vunpack.c.l.b16 %v6987
  %v7027 = vunpack.c.l.b16 %v6988
  %v7028 = vunpack.c.l.b16 %v6989
  %v7029 = vpack.c.b16 %v7014, %v7013
  %v7030 = vpack.c.b16 %v7016, %v7015
  %v7031 = vpack.c.b16 %v7018, %v7017
  %v7032 = vpack.c.b16 %v7020, %v7019
  %v7033 = vpack.c.b16 %v7022, %v7021
  %v7034 = vpack.c.b16 %v7024, %v7023
  %v7035 = vpack.c.b16 %v7026, %v7025
  %v7036 = vpack.c.b16 %v7028, %v7027
  %7045 = vmatprep.subr.bf16.mxu0 0
  %7046 = vmatpush1.bf16.msra.mxu0 %v7036
  %7047 = vmatprep.subr.bf16.mxu0 0
  %7048 = vmatpush1.bf16.msra.mxu0 %v7035
  %7049 = vmatprep.subr.bf16.mxu0 0
  %7050 = vmatpush1.bf16.msra.mxu0 %v7034
  %7051 = vmatprep.subr.bf16.mxu0 0
  %7052 = vmatpush1.bf16.msra.mxu0 %v7033
  %7053 = vmatprep.subr.bf16.mxu0 0
  %7054 = vmatpush1.bf16.msra.mxu0 %v7032
  %7055 = vmatprep.subr.bf16.mxu0 0
  %7056 = vmatpush1.bf16.msra.mxu0 %v7031
  %7057 = vmatprep.subr.bf16.mxu0 0
  %7058 = vmatpush1.bf16.msra.mxu0 %v7030
  %7059 = vmatprep.subr.bf16.mxu0 0
  %7060 = vmatpush1.bf16.msra.mxu0 %v7029
  %7061 = vmatprep.subr.bf16.mxu0 0
  %7062 = vmatpush2.bf16.msra.mxu0 0
  %7063 = vmatprep.subr.bf16.mxu0 0
  %7064 = vmatpush2.bf16.msra.mxu0 0
  %7065 = vmatprep.subr.bf16.mxu0 0
  %7066 = vmatpush2.bf16.msra.mxu0 0
  %7067 = vmatprep.subr.bf16.mxu0 0
  %7068 = vmatpush2.bf16.msra.mxu0 0
  %7069 = vmatprep.subr.bf16.mxu0 0
  %7070 = vmatpush2.bf16.msra.mxu0 0
  %7071 = vmatprep.subr.bf16.mxu0 0
  %7072 = vmatpush2.bf16.msra.mxu0 0
  %7073 = vmatprep.subr.bf16.mxu0 0
  %7074 = vmatpush2.bf16.msra.mxu0 0
  %7075 = vmatprep.subr.bf16.mxu0 0
  %7076 = vmatpush2.bf16.msra.mxu0 0
  %7077 = vmatprep.mubr.bf16.mxu0 0
  %7078 = vmatmul.mubr.bf16.gmra.mxu0 %v6966
  %v7079 = vpop.f32.mrf.mxu0
  %v7080 = vadd.f32 %v6995, %v7079
  %v7081 = vpop.f32.mrf.mxu0
  %v7082 = vpop.f32.mrf.mxu0
  %v7083 = vadd.f32 %v6995, %v7082
  %v7084 = vpop.f32.mrf.mxu0
  %7085 = vmatprep.mubr.bf16.mxu0 0
  %7086 = vmatmul.mubr.bf16.gmra.mxu0 %v6967
  %v7087 = vpop.f32.mrf.mxu0
  %v7088 = vadd.f32 %v6995, %v7087
  %v7089 = vpop.f32.mrf.mxu0
  %v7090 = vpop.f32.mrf.mxu0
  %v7091 = vadd.f32 %v6995, %v7090
  %v7092 = vpop.f32.mrf.mxu0
  %7093 = vmatprep.mubr.bf16.mxu0 0
  %7094 = vmatmul.mubr.bf16.gmra.mxu0 %v6968
  %v7095 = vpop.f32.mrf.mxu0
  %v7096 = vadd.f32 %v6995, %v7095
  %v7097 = vpop.f32.mrf.mxu0
  %v7098 = vpop.f32.mrf.mxu0
  %v7099 = vadd.f32 %v6995, %v7098
  %v7100 = vpop.f32.mrf.mxu0
  %7101 = vmatprep.mubr.bf16.mxu0 0
  %7102 = vmatmul.mubr.bf16.gmra.mxu0 %v6969
  %v7103 = vpop.f32.mrf.mxu0
  %v7104 = vadd.f32 %v6995, %v7103
  %v7105 = vpop.f32.mrf.mxu0
  %v7106 = vpop.f32.mrf.mxu0
  %v7107 = vadd.f32 %v6995, %v7106
  %v7108 = vpop.f32.mrf.mxu0
  %7109 = vmatprep.mubr.bf16.mxu0 0
  %7110 = vmatmul.mubr.bf16.gmra.mxu0 %v6970
  %v7111 = vpop.f32.mrf.mxu0
  %v7112 = vadd.f32 %v6995, %v7111
  %v7113 = vpop.f32.mrf.mxu0
  %v7114 = vpop.f32.mrf.mxu0
  %v7115 = vadd.f32 %v6995, %v7114
  %v7116 = vpop.f32.mrf.mxu0
  %7117 = vmatprep.mubr.bf16.mxu0 0
  %7118 = vmatmul.mubr.bf16.gmra.mxu0 %v6971
  %v7119 = vpop.f32.mrf.mxu0
  %v7120 = vadd.f32 %v6995, %v7119
  %v7121 = vpop.f32.mrf.mxu0
  %v7122 = vpop.f32.mrf.mxu0
  %v7123 = vadd.f32 %v6995, %v7122
  %v7124 = vpop.f32.mrf.mxu0
  %7125 = vmatprep.mubr.bf16.mxu0 0
  %7126 = vmatmul.mubr.bf16.gmra.mxu0 %v6972
  %v7127 = vpop.f32.mrf.mxu0
  %v7128 = vadd.f32 %v6995, %v7127
  %v7129 = vpop.f32.mrf.mxu0
  %v7130 = vpop.f32.mrf.mxu0
  %v7131 = vadd.f32 %v6995, %v7130
  %v7132 = vpop.f32.mrf.mxu0
  %7133 = vmatprep.mubr.bf16.mxu0 0
  %7134 = vmatmul.mubr.bf16.gmra.mxu0 %v6973
  %v7135 = vpop.f32.mrf.mxu0
  %v7136 = vadd.f32 %v6995, %v7135
  %v7137 = vpop.f32.mrf.mxu0
  %v7138 = vpop.f32.mrf.mxu0
  %v7139 = vadd.f32 %v6995, %v7138
  %v7140 = vpop.f32.mrf.mxu0
  %7141 = vdwg.mxu0
  %7142 = vst [vmem:[%s7] sm:$0xff] %v7080
  %7143 = vst [vmem:[%s7 + $0x8] sm:$0xff] %v7083
  %7144 = vst [vmem:[%s7 + $0x10] sm:$0xff] %v7088
  %7145 = vst [vmem:[%s7 + $0x18] sm:$0xff] %v7091
  %7146 = vst [vmem:[%s7 + $0x20] sm:$0xff] %v7096
  %7147 = vst [vmem:[%s7 + $0x28] sm:$0xff] %v7099
  %7148 = vst [vmem:[%s7 + $0x30] sm:$0xff] %v7104
  %7149 = vst [vmem:[%s7 + $0x38] sm:$0xff] %v7107
  %7150 = vst [vmem:[%s7 + $0x40] sm:$0xff] %v7112
  %7151 = vst [vmem:[%s7 + $0x48] sm:$0xff] %v7115
  %7152 = vst [vmem:[%s7 + $0x50] sm:$0xff] %v7120
  %7153 = vst [vmem:[%s7 + $0x58] sm:$0xff] %v7123
  %7154 = vst [vmem:[%s7 + $0x60] sm:$0xff] %v7128
  %7155 = vst [vmem:[%s7 + $0x68] sm:$0xff] %v7131
  %7156 = vst [vmem:[%s7 + $0x70] sm:$0xff] %v7136
  %7157 = vst [vmem:[%s7 + $0x78] sm:$0xff] %v7139
  // Predicated region
  $region30: #{rpn_forward.1} parent=0 // pred_check
    _
  $region31: #{rpn_forward.1} parent=0 // pred_check_branch
    %7159 = sbr.rel (0) target = $region33
  $region32: #{rpn_forward.1} parent=0 // pred_region
    _
  $region33: #{rpn_forward.1} parent=0 // pred_fallthru
    _
  // Predicated region
  $region34: #{rpn_forward.1} parent=0 // pred_check
    _
  $region35: #{rpn_forward.1} parent=0 // pred_check_branch
    %7161 = sbr.rel (0) target = $region37
  $region36: #{rpn_forward.1} parent=0 // pred_region
    _
  $region37: #{rpn_forward.1} parent=0 // pred_fallthru
    _

</llo_original>
